<compile_context>
chip_gen: v5e
topology: v5e:2x2
jax: 0.10.0
libtpu: 0.0.40
codegen_flags: <defaults>
</compile_context>

<pallas_src>
import functools

import jax
import jax.numpy as jnp
from jax import lax
from jax.experimental import pallas as pl
from jax.experimental.pallas import tpu as pltpu

_N_LANES = 128           # lane padding for conv2 channels / output layer
_PQ_ROWS = 112           # rows per conv1 parity group (100 valid + 12 zero-pad)
_T2 = 96                 # conv2 spatial rows computed (t = oh*10 + ow)
_T_VALID = 90            # t rows kept for the fc1 contraction (ow<=9; ow==9 is junk)
_OFFS = (0, 1, 10, 11)   # (a0, b0) -> row offset a0*10 + b0 into a parity group
_N_CHUNKS = 4            # fc1 weight / DMA chunks (8 conv2 channels each)
_K_CHUNK = 8 * _T_VALID  # 720: fc1 contraction depth per chunk


# ----------------------------------------------------------------------------
# Fused kernel: conv1 + conv2 + fc1 + out, everything resident in VMEM.
# ----------------------------------------------------------------------------
def _atari_kernel(p1_ref, w1_ref, b1_ref, w2_ref, b2_ref, w6_hbm, bfc1_ref,
                  wout_ref, bout_ref, o_ref,
                  y1_ref, lhs2_ref, flat_ref, w6_vmem, w6_sem):
    # Kick off the four chunked fc1-weight DMAs first so they overlap conv compute.
    w6_copies = [pltpu.make_async_copy(w6_hbm.at[g], w6_vmem.at[g], w6_sem.at[g])
                 for g in range(_N_CHUNKS)]
    for cp in w6_copies:
        cp.start()

    # ---- conv1 + ReLU: 4 parity groups, each [112,256] @ [256,16] (bf16, f32 acc).
    # Group (p,q) lands in lane group pq*16 of the [112,64] scratch, so conv2's
    # im2col becomes 4 contiguous row slabs instead of 16.
    b1 = b1_ref[...]
    for pq in range(4):
        blk = jnp.dot(p1_ref[pq * _PQ_ROWS:(pq + 1) * _PQ_ROWS, :], w1_ref[...],
                      preferred_element_type=jnp.float32)
        y1_ref[:, pq * 16:(pq + 1) * 16] = jnp.maximum(blk + b1, 0.0)

    # ---- conv2 LHS: 4 shifted [96,64] slabs -> [96,256], columns (a0,b0,p,q,cin).
    for g, off in enumerate(_OFFS):
        lhs2_ref[:, g * 64:(g + 1) * 64] = y1_ref[off:off + _T2, :]

    # ---- conv2 + ReLU as ONE bf16 matmul [96,256] @ [256,128].
    y2 = jnp.dot(lhs2_ref[...].astype(jnp.bfloat16), w2_ref[...],
                 preferred_element_type=jnp.float32)
    y2 = jnp.maximum(y2 + b2_ref[...], 0.0)        # [96,128]; cols 0..31 = channels
    y2t = jnp.transpose(y2)                        # [128,96]; row c = channel c

    # ---- flatten for fc1: flat[g, i*90 + t] = y2t[8g + i, t]  (t = oh*10 + ow).
    # Junk positions (ow == 9) are matched with zero rows in the prepped fc1 weight.
    for c in range(32):
        g, i = divmod(c, 8)
        flat_ref[g:g + 1, i * _T_VALID:(i + 1) * _T_VALID] = y2t[c:c + 1, 0:_T_VALID]

    # ---- fc1 + ReLU: 4 chunked K=720 bf16 matmuls; each waits only on its own DMA.
    h = bfc1_ref[...]                              # [1,256] f32
    for g in range(_N_CHUNKS):
        w6_copies[g].wait()
        h = h + jnp.dot(flat_ref[g:g + 1, :].astype(jnp.bfloat16), w6_vmem[g],
                        preferred_element_type=jnp.float32)
    h = jnp.maximum(h, 0.0)                        # [1,256]

    # ---- output layer (lane-padded to 128).
    o_ref[...] = jnp.dot(h.astype(jnp.bfloat16), wout_ref[...],
                         preferred_element_type=jnp.float32) + bout_ref[...]


# ----------------------------------------------------------------------------
# One-time weight re-layout (kept OUT of the per-call hot path).
# ----------------------------------------------------------------------------
def prepare_params(params):
    n_out = params["out_w"].shape[0]
    if n_out > _N_LANES:
        raise ValueError("n_out must be <= 128")

    # conv1: [16,4,8,8] -> [256,16] bf16 (patch columns ordered (cin, kh, kw)).
    w1 = params["conv1_w"].reshape(16, 256).T.astype(jnp.bfloat16)
    b1 = params["conv1_b"].reshape(1, 16).astype(jnp.float32)

    # conv2: [32,16,4,4] -> [256,128] bf16, rows ordered (a0,b0,p,q,cin) with
    # kh = 2*a0 + p, kw = 2*b0 + q; cout padded to 128 lanes.
    w2 = params["conv2_w"].reshape(32, 16, 2, 2, 2, 2)             # (co,cin,a0,p,b0,q)
    w2 = jnp.transpose(w2, (2, 4, 3, 5, 1, 0)).reshape(256, 32)    # (a0,b0,p,q,cin) x co
    w2 = jnp.zeros((256, _N_LANES), jnp.float32).at[:, :32].set(w2).astype(jnp.bfloat16)
    b2 = jnp.zeros((1, _N_LANES), jnp.float32).at[:, :32].set(params["conv2_b"])

    # fc1: [256,2592] -> [4,720,256] bf16; row index within chunk g is
    # (c - 8g)*90 + oh*10 + ow for channel c in [8g, 8g+8); ow==9 rows are zero.
    w3 = jnp.transpose(params["fc1_w"].reshape(256, 32, 9, 9), (1, 2, 3, 0))  # (c,oh,ow,j)
    w6 = jnp.zeros((32, 9, 10, 256), jnp.float32).at[:, :, :9, :].set(w3)
    w6 = w6.reshape(_N_CHUNKS, _K_CHUNK, 256).astype(jnp.bfloat16)
    bfc1 = params["fc1_b"].reshape(1, 256).astype(jnp.float32)

    # out: [n_out,256] -> [256,128] bf16 (zero-padded lanes).
    wout = jnp.zeros((256, _N_LANES), jnp.float32).at[:, :n_out].set(
        params["out_w"].T).astype(jnp.bfloat16)
    bout = jnp.zeros((1, _N_LANES), jnp.float32).at[:, :n_out].set(params["out_b"])

    return {"w1": w1, "b1": b1, "w2": w2, "b2": b2, "w6": w6,
            "bfc1": bfc1, "wout": wout, "bout": bout}


# ----------------------------------------------------------------------------
# conv1 im2col (wrapper side, tiny input), parity-group-major with zero-padded
# groups: group pq = p*2+q occupies rows [pq*112, pq*112+100), row a*10+b
# corresponds to conv1 output spatial (2a+p, 2b+q); rows 100..111 are zero.
# ----------------------------------------------------------------------------
def _build_conv1_patches(x_chw):
    idx = (jnp.arange(20) * 4)[:, None] + jnp.arange(8)[None, :]            # [20, 8]
    pat = x_chw[:, idx[:, :, None, None], idx[None, None, :, :]]            # [4,20,8,20,8]
    pat = jnp.transpose(pat, (1, 3, 0, 2, 4)).reshape(20, 20, 256)          # (h1,w1,(c,kh,kw))
    pat = pat.reshape(10, 2, 10, 2, 256)                                    # (a,p,b,q,col)
    pat = jnp.transpose(pat, (1, 3, 0, 2, 4)).reshape(4, 100, 256)          # (pq, a*10+b, col)
    pat = jnp.pad(pat, ((0, 0), (0, _PQ_ROWS - 100), (0, 0)))               # (4, 112, 256)
    return pat.reshape(4 * _PQ_ROWS, 256)


# ----------------------------------------------------------------------------
# Forward pass (single fused pallas_call)
# ----------------------------------------------------------------------------
@functools.partial(jax.jit, static_argnames=("n_out",))
def atari_network_forward(prepped, x_nchw, *, n_out):
    assert x_nchw.shape == (1, 4, 84, 84)  # module does data.view(-1) => batch 1
    p1 = _build_conv1_patches(x_nchw.reshape(4, 84, 84)).astype(jnp.bfloat16)

    out = pl.pallas_call(
        _atari_kernel,
        out_shape=jax.ShapeDtypeStruct((1, _N_LANES), jnp.float32),
        grid=(1,),
        in_specs=[
            pl.BlockSpec((4 * _PQ_ROWS, 256), lambda i: (0, 0)),   # conv1 patches (bf16)
            pl.BlockSpec((256, 16), lambda i: (0, 0)),             # conv1 weight (bf16)
            pl.BlockSpec((1, 16), lambda i: (0, 0)),               # conv1 bias (f32)
            pl.BlockSpec((256, _N_LANES), lambda i: (0, 0)),       # conv2 weight (bf16)
            pl.BlockSpec((1, _N_LANES), lambda i: (0, 0)),         # conv2 bias (f32)
            pl.BlockSpec(memory_space=pl.ANY),                     # fc1 weight chunks (HBM)
            pl.BlockSpec((1, 256), lambda i: (0, 0)),              # fc1 bias (f32)
            pl.BlockSpec((256, _N_LANES), lambda i: (0, 0)),       # out weight (bf16)
            pl.BlockSpec((1, _N_LANES), lambda i: (0, 0)),         # out bias (f32)
        ],
        out_specs=pl.BlockSpec((1, _N_LANES), lambda i: (0, 0)),
        scratch_shapes=[
            pltpu.VMEM((_PQ_ROWS, 64), jnp.float32),               # conv1 output (parity lanes)
            pltpu.VMEM((_T2, 256), jnp.float32),                   # conv2 im2col LHS
            pltpu.VMEM((_N_CHUNKS, _K_CHUNK), jnp.float32),        # flattened fc1 LHS
            pltpu.VMEM((_N_CHUNKS, _K_CHUNK, 256), jnp.bfloat16),  # fc1 weight landing buffer
            pltpu.SemaphoreType.DMA((_N_CHUNKS,)),                 # per-chunk DMA completion
        ],
        compiler_params=pltpu.CompilerParams(
            dimension_semantics=("arbitrary",)),
    )(p1, prepped["w1"], prepped["b1"], prepped["w2"], prepped["b2"],
      prepped["w6"], prepped["bfc1"], prepped["wout"], prepped["bout"])

    return out[0, :n_out]


# ----------------------------------------------------------------------------
# Pure-JAX f32 reference (for correctness check)
# ----------------------------------------------------------------------------
def atari_network_reference(params, x_nchw):
    def conv(x, w, b, stride):
        y = lax.conv_general_dilated(
            x, w, window_strides=(stride, stride), padding="VALID",
            dimension_numbers=("NCHW", "OIHW", "NCHW"))
        return y + b[None, :, None, None]

    y = jax.nn.relu(conv(x_nchw, params["conv1_w"], params["conv1_b"], 4))
    y = jax.nn.relu(conv(y, params["conv2_w"], params["conv2_b"], 2))
    flat = y.reshape(-1)
    h = jax.nn.relu(flat @ params["fc1_w"].T + params["fc1_b"])
    return h @ params["out_w"].T + params["out_b"]


# ----------------------------------------------------------------------------
# Deterministic parameter init (same shapes as the PyTorch module)
# ----------------------------------------------------------------------------
def init_params(key, n_out):
    ks = jax.random.split(key, 8)
    s = 0.05
    return {
        "conv1_w": s * jax.random.normal(ks[0], (16, 4, 8, 8), jnp.float32),
        "conv1_b": s * jax.random.normal(ks[1], (16,), jnp.float32),
        "conv2_w": s * jax.random.normal(ks[2], (32, 16, 4, 4), jnp.float32),
        "conv2_b": s * jax.random.normal(ks[3], (32,), jnp.float32),
        "fc1_w":   s * jax.random.normal(ks[4], (256, 2592), jnp.float32),
        "fc1_b":   s * jax.random.normal(ks[5], (256,), jnp.float32),
        "out_w":   s * jax.random.normal(ks[6], (n_out, 256), jnp.float32),
        "out_b":   s * jax.random.normal(ks[7], (n_out,), jnp.float32),
    }


if __name__ == "__main__":
    n_out = 6
    key = jax.random.PRNGKey(0)
    pkey, xkey = jax.random.split(key)
    params = init_params(pkey, n_out)
    # Input shape is forced by the module: fc1 expects 2592 = 32*9*9, which
    # implies the canonical 4x84x84 Atari frame stack with batch = 1.
    x = jax.random.normal(xkey, (1, 4, 84, 84), jnp.float32)

    prepped = prepare_params(params)  # one-time weight re-layout (not in hot path)
    out = jax.block_until_ready(atari_network_forward(prepped, x, n_out=n_out))

    ref = atari_network_reference(params, x)
    assert out.shape == (n_out,)
    # Kernel uses bf16 MXU operands everywhere (f32 accumulation), hence the
    # bf16-appropriate tolerance vs. the pure-f32 reference.
    assert jnp.allclose(out, ref, atol=2e-2, rtol=2e-2), (out, ref)

    print("KERNEL_OK")
</pallas_src>

<mosaic_0001>
module attributes {stable_mosaic.version = 11 : i64} {
  func.func @_atari_kernel(%arg0: i32, %arg1: memref<448x256xbf16, #tpu.memory_space<vmem>>, %arg2: memref<256x16xbf16, #tpu.memory_space<vmem>>, %arg3: memref<1x16xf32, #tpu.memory_space<vmem>>, %arg4: memref<256x128xbf16, #tpu.memory_space<vmem>>, %arg5: memref<1x128xf32, #tpu.memory_space<vmem>>, %arg6: memref<4x720x256xbf16, #tpu.memory_space<any>>, %arg7: memref<1x256xf32, #tpu.memory_space<vmem>>, %arg8: memref<256x128xbf16, #tpu.memory_space<vmem>>, %arg9: memref<1x128xf32, #tpu.memory_space<vmem>>, %arg10: memref<1x128xf32, #tpu.memory_space<vmem>>, %arg11: memref<112x64xf32, #tpu.memory_space<vmem>>, %arg12: memref<96x256xf32, #tpu.memory_space<vmem>>, %arg13: memref<4x720xf32, #tpu.memory_space<vmem>>, %arg14: memref<4x720x256xbf16, #tpu.memory_space<vmem>>, %arg15: memref<4x!tpu.dma_semaphore, #tpu.memory_space<semaphore_mem>>) attributes {dimension_semantics = [#tpu.dimension_semantics<arbitrary>], iteration_bounds = array<i64: 1>, scalar_prefetch = 0 : i64, scratch_operands = 5 : i64, tpu.core_type = #tpu.core_type<tc>, window_params = [{pipeline_mode = #tpu.pipeline_mode<synchronous>, transform_indices = @transform_0, window_bounds = array<i64: 448, 256>}, {pipeline_mode = #tpu.pipeline_mode<synchronous>, transform_indices = @transform_1, window_bounds = array<i64: 256, 16>}, {pipeline_mode = #tpu.pipeline_mode<synchronous>, transform_indices = @transform_2, window_bounds = array<i64: 1, 16>}, {pipeline_mode = #tpu.pipeline_mode<synchronous>, transform_indices = @transform_3, window_bounds = array<i64: 256, 128>}, {pipeline_mode = #tpu.pipeline_mode<synchronous>, transform_indices = @transform_4, window_bounds = array<i64: 1, 128>}, {}, {pipeline_mode = #tpu.pipeline_mode<synchronous>, transform_indices = @transform_6, window_bounds = array<i64: 1, 256>}, {pipeline_mode = #tpu.pipeline_mode<synchronous>, transform_indices = @transform_7, window_bounds = array<i64: 256, 128>}, {pipeline_mode = #tpu.pipeline_mode<synchronous>, transform_indices = @transform_8, window_bounds = array<i64: 1, 128>}, {pipeline_mode = #tpu.pipeline_mode<synchronous>, transform_indices = @transform_9, window_bounds = array<i64: 1, 128>}]} {
    %c0_i32 = arith.constant 0 : i32
    %c0_i32_0 = arith.constant 0 : i32
    %c0_i32_1 = arith.constant 0 : i32
    %c0_i32_2 = arith.constant 0 : i32
    %c0_i32_3 = arith.constant 0 : i32
    %0 = tpu.memref_slice %arg6[%c0_i32, %c0_i32_2, %c0_i32_3] : memref<4x720x256xbf16, #tpu.memory_space<any>> -> memref<1x720x256xbf16, #tpu.memory_space<any>>
    %1 = tpu.memref_squeeze %0 : memref<1x720x256xbf16, #tpu.memory_space<any>> -> memref<720x256xbf16, #tpu.memory_space<any>>
    %c0_i32_4 = arith.constant 0 : i32
    %c0_i32_5 = arith.constant 0 : i32
    %2 = tpu.memref_slice %arg14[%c0_i32_0, %c0_i32_4, %c0_i32_5] : memref<4x720x256xbf16, #tpu.memory_space<vmem>> -> memref<1x720x256xbf16, #tpu.memory_space<vmem>>
    %3 = tpu.memref_squeeze %2 : memref<1x720x256xbf16, #tpu.memory_space<vmem>> -> memref<720x256xbf16, #tpu.memory_space<vmem>>
    %4 = tpu.memref_slice %arg15[%c0_i32_1] : memref<4x!tpu.dma_semaphore, #tpu.memory_space<semaphore_mem>> -> memref<1x!tpu.dma_semaphore, #tpu.memory_space<semaphore_mem>>
    %5 = tpu.memref_squeeze %4 : memref<1x!tpu.dma_semaphore, #tpu.memory_space<semaphore_mem>> -> memref<!tpu.dma_semaphore, #tpu.memory_space<semaphore_mem>>
    tpu.enqueue_dma source(%1 : memref<720x256xbf16, #tpu.memory_space<any>>) target(%3 : memref<720x256xbf16, #tpu.memory_space<vmem>>) target_semaphore(%5 : memref<!tpu.dma_semaphore, #tpu.memory_space<semaphore_mem>>)
    %c1_i32 = arith.constant 1 : i32
    %c1_i32_6 = arith.constant 1 : i32
    %c1_i32_7 = arith.constant 1 : i32
    %c0_i32_8 = arith.constant 0 : i32
    %c0_i32_9 = arith.constant 0 : i32
    %6 = tpu.memref_slice %arg6[%c1_i32, %c0_i32_8, %c0_i32_9] : memref<4x720x256xbf16, #tpu.memory_space<any>> -> memref<1x720x256xbf16, #tpu.memory_space<any>>
    %7 = tpu.memref_squeeze %6 : memref<1x720x256xbf16, #tpu.memory_space<any>> -> memref<720x256xbf16, #tpu.memory_space<any>>
    %c0_i32_10 = arith.constant 0 : i32
    %c0_i32_11 = arith.constant 0 : i32
    %8 = tpu.memref_slice %arg14[%c1_i32_6, %c0_i32_10, %c0_i32_11] : memref<4x720x256xbf16, #tpu.memory_space<vmem>> -> memref<1x720x256xbf16, #tpu.memory_space<vmem>>
    %9 = tpu.memref_squeeze %8 : memref<1x720x256xbf16, #tpu.memory_space<vmem>> -> memref<720x256xbf16, #tpu.memory_space<vmem>>
    %10 = tpu.memref_slice %arg15[%c1_i32_7] : memref<4x!tpu.dma_semaphore, #tpu.memory_space<semaphore_mem>> -> memref<1x!tpu.dma_semaphore, #tpu.memory_space<semaphore_mem>>
    %11 = tpu.memref_squeeze %10 : memref<1x!tpu.dma_semaphore, #tpu.memory_space<semaphore_mem>> -> memref<!tpu.dma_semaphore, #tpu.memory_space<semaphore_mem>>
    tpu.enqueue_dma source(%7 : memref<720x256xbf16, #tpu.memory_space<any>>) target(%9 : memref<720x256xbf16, #tpu.memory_space<vmem>>) target_semaphore(%11 : memref<!tpu.dma_semaphore, #tpu.memory_space<semaphore_mem>>)
    %c2_i32 = arith.constant 2 : i32
    %c2_i32_12 = arith.constant 2 : i32
    %c2_i32_13 = arith.constant 2 : i32
    %c0_i32_14 = arith.constant 0 : i32
    %c0_i32_15 = arith.constant 0 : i32
    %12 = tpu.memref_slice %arg6[%c2_i32, %c0_i32_14, %c0_i32_15] : memref<4x720x256xbf16, #tpu.memory_space<any>> -> memref<1x720x256xbf16, #tpu.memory_space<any>>
    %13 = tpu.memref_squeeze %12 : memref<1x720x256xbf16, #tpu.memory_space<any>> -> memref<720x256xbf16, #tpu.memory_space<any>>
    %c0_i32_16 = arith.constant 0 : i32
    %c0_i32_17 = arith.constant 0 : i32
    %14 = tpu.memref_slice %arg14[%c2_i32_12, %c0_i32_16, %c0_i32_17] : memref<4x720x256xbf16, #tpu.memory_space<vmem>> -> memref<1x720x256xbf16, #tpu.memory_space<vmem>>
    %15 = tpu.memref_squeeze %14 : memref<1x720x256xbf16, #tpu.memory_space<vmem>> -> memref<720x256xbf16, #tpu.memory_space<vmem>>
    %16 = tpu.memref_slice %arg15[%c2_i32_13] : memref<4x!tpu.dma_semaphore, #tpu.memory_space<semaphore_mem>> -> memref<1x!tpu.dma_semaphore, #tpu.memory_space<semaphore_mem>>
    %17 = tpu.memref_squeeze %16 : memref<1x!tpu.dma_semaphore, #tpu.memory_space<semaphore_mem>> -> memref<!tpu.dma_semaphore, #tpu.memory_space<semaphore_mem>>
    tpu.enqueue_dma source(%13 : memref<720x256xbf16, #tpu.memory_space<any>>) target(%15 : memref<720x256xbf16, #tpu.memory_space<vmem>>) target_semaphore(%17 : memref<!tpu.dma_semaphore, #tpu.memory_space<semaphore_mem>>)
    %c3_i32 = arith.constant 3 : i32
    %c3_i32_18 = arith.constant 3 : i32
    %c3_i32_19 = arith.constant 3 : i32
    %c0_i32_20 = arith.constant 0 : i32
    %c0_i32_21 = arith.constant 0 : i32
    %18 = tpu.memref_slice %arg6[%c3_i32, %c0_i32_20, %c0_i32_21] : memref<4x720x256xbf16, #tpu.memory_space<any>> -> memref<1x720x256xbf16, #tpu.memory_space<any>>
    %19 = tpu.memref_squeeze %18 : memref<1x720x256xbf16, #tpu.memory_space<any>> -> memref<720x256xbf16, #tpu.memory_space<any>>
    %c0_i32_22 = arith.constant 0 : i32
    %c0_i32_23 = arith.constant 0 : i32
    %20 = tpu.memref_slice %arg14[%c3_i32_18, %c0_i32_22, %c0_i32_23] : memref<4x720x256xbf16, #tpu.memory_space<vmem>> -> memref<1x720x256xbf16, #tpu.memory_space<vmem>>
    %21 = tpu.memref_squeeze %20 : memref<1x720x256xbf16, #tpu.memory_space<vmem>> -> memref<720x256xbf16, #tpu.memory_space<vmem>>
    %22 = tpu.memref_slice %arg15[%c3_i32_19] : memref<4x!tpu.dma_semaphore, #tpu.memory_space<semaphore_mem>> -> memref<1x!tpu.dma_semaphore, #tpu.memory_space<semaphore_mem>>
    %23 = tpu.memref_squeeze %22 : memref<1x!tpu.dma_semaphore, #tpu.memory_space<semaphore_mem>> -> memref<!tpu.dma_semaphore, #tpu.memory_space<semaphore_mem>>
    tpu.enqueue_dma source(%19 : memref<720x256xbf16, #tpu.memory_space<any>>) target(%21 : memref<720x256xbf16, #tpu.memory_space<vmem>>) target_semaphore(%23 : memref<!tpu.dma_semaphore, #tpu.memory_space<semaphore_mem>>)
    %c0 = arith.constant 0 : index
    %c0_24 = arith.constant 0 : index
    %24 = vector.load %arg3[%c0, %c0_24] : memref<1x16xf32, #tpu.memory_space<vmem>>, vector<1x16xf32>
    %c0_25 = arith.constant 0 : index
    %c0_26 = arith.constant 0 : index
    %25 = vector.load %arg1[%c0_25, %c0_26] : memref<448x256xbf16, #tpu.memory_space<vmem>>, vector<112x256xbf16>
    %c0_27 = arith.constant 0 : index
    %c0_28 = arith.constant 0 : index
    %26 = vector.load %arg2[%c0_27, %c0_28] : memref<256x16xbf16, #tpu.memory_space<vmem>>, vector<256x16xbf16>
    %cst = arith.constant dense<0.000000e+00> : vector<112x16xf32>
    %27 = tpu.matmul %25, %26, %cst {dimension_numbers = #tpu.dot_dimension_numbers<[1], [0], [0], [1], [0, 0, 1, 1], [], []>} : vector<112x256xbf16>, vector<256x16xbf16>, vector<112x16xf32> -> vector<112x16xf32>
    %28 = vector.broadcast %24 : vector<1x16xf32> to vector<112x16xf32>
    %29 = arith.addf %27, %28 : vector<112x16xf32>
    %cst_29 = arith.constant 0.000000e+00 : f32
    %30 = vector.broadcast %cst_29 : f32 to vector<112x16xf32>
    %31 = arith.maximumf %29, %30 : vector<112x16xf32>
    %c0_30 = arith.constant 0 : index
    %c0_31 = arith.constant 0 : index
    %32 = vector.load %arg11[%c0_30, %c0_31] : memref<112x64xf32, #tpu.memory_space<vmem>>, vector<112x16xf32>
    tpu.vector_store %arg11[%c0_30, %c0_31], %31 {strides = array<i32>} : memref<112x64xf32, #tpu.memory_space<vmem>>, vector<112x16xf32>,
    %c112 = arith.constant 112 : index
    %c0_32 = arith.constant 0 : index
    %33 = vector.load %arg1[%c112, %c0_32] : memref<448x256xbf16, #tpu.memory_space<vmem>>, vector<112x256xbf16>
    %c0_33 = arith.constant 0 : index
    %c0_34 = arith.constant 0 : index
    %34 = vector.load %arg2[%c0_33, %c0_34] : memref<256x16xbf16, #tpu.memory_space<vmem>>, vector<256x16xbf16>
    %cst_35 = arith.constant dense<0.000000e+00> : vector<112x16xf32>
    %35 = tpu.matmul %33, %34, %cst_35 {dimension_numbers = #tpu.dot_dimension_numbers<[1], [0], [0], [1], [0, 0, 1, 1], [], []>} : vector<112x256xbf16>, vector<256x16xbf16>, vector<112x16xf32> -> vector<112x16xf32>
    %36 = vector.broadcast %24 : vector<1x16xf32> to vector<112x16xf32>
    %37 = arith.addf %35, %36 : vector<112x16xf32>
    %cst_36 = arith.constant 0.000000e+00 : f32
    %38 = vector.broadcast %cst_36 : f32 to vector<112x16xf32>
    %39 = arith.maximumf %37, %38 : vector<112x16xf32>
    %c0_37 = arith.constant 0 : index
    %c16 = arith.constant 16 : index
    %40 = vector.load %arg11[%c0_37, %c16] : memref<112x64xf32, #tpu.memory_space<vmem>>, vector<112x16xf32>
    tpu.vector_store %arg11[%c0_37, %c16], %39 {strides = array<i32>} : memref<112x64xf32, #tpu.memory_space<vmem>>, vector<112x16xf32>,
    %c224 = arith.constant 224 : index
    %c0_38 = arith.constant 0 : index
    %41 = vector.load %arg1[%c224, %c0_38] : memref<448x256xbf16, #tpu.memory_space<vmem>>, vector<112x256xbf16>
    %c0_39 = arith.constant 0 : index
    %c0_40 = arith.constant 0 : index
    %42 = vector.load %arg2[%c0_39, %c0_40] : memref<256x16xbf16, #tpu.memory_space<vmem>>, vector<256x16xbf16>
    %cst_41 = arith.constant dense<0.000000e+00> : vector<112x16xf32>
    %43 = tpu.matmul %41, %42, %cst_41 {dimension_numbers = #tpu.dot_dimension_numbers<[1], [0], [0], [1], [0, 0, 1, 1], [], []>} : vector<112x256xbf16>, vector<256x16xbf16>, vector<112x16xf32> -> vector<112x16xf32>
    %44 = vector.broadcast %24 : vector<1x16xf32> to vector<112x16xf32>
    %45 = arith.addf %43, %44 : vector<112x16xf32>
    %cst_42 = arith.constant 0.000000e+00 : f32
    %46 = vector.broadcast %cst_42 : f32 to vector<112x16xf32>
    %47 = arith.maximumf %45, %46 : vector<112x16xf32>
    %c0_43 = arith.constant 0 : index
    %c32 = arith.constant 32 : index
    %48 = vector.load %arg11[%c0_43, %c32] : memref<112x64xf32, #tpu.memory_space<vmem>>, vector<112x16xf32>
    tpu.vector_store %arg11[%c0_43, %c32], %47 {strides = array<i32>} : memref<112x64xf32, #tpu.memory_space<vmem>>, vector<112x16xf32>,
    %c336 = arith.constant 336 : index
    %c0_44 = arith.constant 0 : index
    %49 = vector.load %arg1[%c336, %c0_44] : memref<448x256xbf16, #tpu.memory_space<vmem>>, vector<112x256xbf16>
    %c0_45 = arith.constant 0 : index
    %c0_46 = arith.constant 0 : index
    %50 = vector.load %arg2[%c0_45, %c0_46] : memref<256x16xbf16, #tpu.memory_space<vmem>>, vector<256x16xbf16>
    %cst_47 = arith.constant dense<0.000000e+00> : vector<112x16xf32>
    %51 = tpu.matmul %49, %50, %cst_47 {dimension_numbers = #tpu.dot_dimension_numbers<[1], [0], [0], [1], [0, 0, 1, 1], [], []>} : vector<112x256xbf16>, vector<256x16xbf16>, vector<112x16xf32> -> vector<112x16xf32>
    %52 = vector.broadcast %24 : vector<1x16xf32> to vector<112x16xf32>
    %53 = arith.addf %51, %52 : vector<112x16xf32>
    %cst_48 = arith.constant 0.000000e+00 : f32
    %54 = vector.broadcast %cst_48 : f32 to vector<112x16xf32>
    %55 = arith.maximumf %53, %54 : vector<112x16xf32>
    %c0_49 = arith.constant 0 : index
    %c48 = arith.constant 48 : index
    %56 = vector.load %arg11[%c0_49, %c48] : memref<112x64xf32, #tpu.memory_space<vmem>>, vector<112x16xf32>
    tpu.vector_store %arg11[%c0_49, %c48], %55 {strides = array<i32>} : memref<112x64xf32, #tpu.memory_space<vmem>>, vector<112x16xf32>,
    %c0_50 = arith.constant 0 : index
    %c0_51 = arith.constant 0 : index
    %57 = vector.load %arg11[%c0_50, %c0_51] : memref<112x64xf32, #tpu.memory_space<vmem>>, vector<96x64xf32>
    %c0_52 = arith.constant 0 : index
    %c0_53 = arith.constant 0 : index
    %58 = vector.load %arg12[%c0_52, %c0_53] : memref<96x256xf32, #tpu.memory_space<vmem>>, vector<96x64xf32>
    tpu.vector_store %arg12[%c0_52, %c0_53], %57 {strides = array<i32>} : memref<96x256xf32, #tpu.memory_space<vmem>>, vector<96x64xf32>,
    %c1 = arith.constant 1 : index
    %c0_54 = arith.constant 0 : index
    %59 = vector.load %arg11[%c1, %c0_54] : memref<112x64xf32, #tpu.memory_space<vmem>>, vector<96x64xf32>
    %c0_55 = arith.constant 0 : index
    %c64 = arith.constant 64 : index
    %60 = vector.load %arg12[%c0_55, %c64] : memref<96x256xf32, #tpu.memory_space<vmem>>, vector<96x64xf32>
    tpu.vector_store %arg12[%c0_55, %c64], %59 {strides = array<i32>} : memref<96x256xf32, #tpu.memory_space<vmem>>, vector<96x64xf32>,
    %c10 = arith.constant 10 : index
    %c0_56 = arith.constant 0 : index
    %61 = vector.load %arg11[%c10, %c0_56] : memref<112x64xf32, #tpu.memory_space<vmem>>, vector<96x64xf32>
    %c0_57 = arith.constant 0 : index
    %c128 = arith.constant 128 : index
    %62 = vector.load %arg12[%c0_57, %c128] : memref<96x256xf32, #tpu.memory_space<vmem>>, vector<96x64xf32>
    tpu.vector_store %arg12[%c0_57, %c128], %61 {strides = array<i32>} : memref<96x256xf32, #tpu.memory_space<vmem>>, vector<96x64xf32>,
    %c11 = arith.constant 11 : index
    %c0_58 = arith.constant 0 : index
    %63 = vector.load %arg11[%c11, %c0_58] : memref<112x64xf32, #tpu.memory_space<vmem>>, vector<96x64xf32>
    %c0_59 = arith.constant 0 : index
    %c192 = arith.constant 192 : index
    %64 = vector.load %arg12[%c0_59, %c192] : memref<96x256xf32, #tpu.memory_space<vmem>>, vector<96x64xf32>
    tpu.vector_store %arg12[%c0_59, %c192], %63 {strides = array<i32>} : memref<96x256xf32, #tpu.memory_space<vmem>>, vector<96x64xf32>,
    %c0_60 = arith.constant 0 : index
    %c0_61 = arith.constant 0 : index
    %65 = vector.load %arg12[%c0_60, %c0_61] : memref<96x256xf32, #tpu.memory_space<vmem>>, vector<96x256xf32>
    %66 = arith.truncf %65 : vector<96x256xf32> to vector<96x256xbf16>
    %c0_62 = arith.constant 0 : index
    %c0_63 = arith.constant 0 : index
    %67 = vector.load %arg4[%c0_62, %c0_63] : memref<256x128xbf16, #tpu.memory_space<vmem>>, vector<256x128xbf16>
    %cst_64 = arith.constant dense<0.000000e+00> : vector<96x128xf32>
    %68 = tpu.matmul %66, %67, %cst_64 {dimension_numbers = #tpu.dot_dimension_numbers<[1], [0], [0], [1], [0, 0, 1, 1], [], []>} : vector<96x256xbf16>, vector<256x128xbf16>, vector<96x128xf32> -> vector<96x128xf32>
    %c0_65 = arith.constant 0 : index
    %c0_66 = arith.constant 0 : index
    %69 = vector.load %arg5[%c0_65, %c0_66] : memref<1x128xf32, #tpu.memory_space<vmem>>, vector<1x128xf32>
    %70 = vector.broadcast %69 : vector<1x128xf32> to vector<96x128xf32>
    %71 = arith.addf %68, %70 : vector<96x128xf32>
    %cst_67 = arith.constant 0.000000e+00 : f32
    %72 = vector.broadcast %cst_67 : f32 to vector<96x128xf32>
    %73 = arith.maximumf %71, %72 : vector<96x128xf32>
    %74 = tpu.transpose %73, [1, 0] : vector<96x128xf32> -> vector<128x96xf32>
    %75 = vector.extract_strided_slice %74 {offsets = [0, 0], sizes = [1, 90], strides = [1, 1]} : vector<128x96xf32> to vector<1x90xf32>
    %c0_68 = arith.constant 0 : index
    %c0_69 = arith.constant 0 : index
    %76 = vector.load %arg13[%c0_68, %c0_69] : memref<4x720xf32, #tpu.memory_space<vmem>>, vector<1x90xf32>
    tpu.vector_store %arg13[%c0_68, %c0_69], %75 {strides = array<i32>} : memref<4x720xf32, #tpu.memory_space<vmem>>, vector<1x90xf32>,
    %77 = vector.extract_strided_slice %74 {offsets = [1, 0], sizes = [1, 90], strides = [1, 1]} : vector<128x96xf32> to vector<1x90xf32>
    %c0_70 = arith.constant 0 : index
    %c90 = arith.constant 90 : index
    %78 = vector.load %arg13[%c0_70, %c90] : memref<4x720xf32, #tpu.memory_space<vmem>>, vector<1x90xf32>
    tpu.vector_store %arg13[%c0_70, %c90], %77 {strides = array<i32>} : memref<4x720xf32, #tpu.memory_space<vmem>>, vector<1x90xf32>,
    %79 = vector.extract_strided_slice %74 {offsets = [2, 0], sizes = [1, 90], strides = [1, 1]} : vector<128x96xf32> to vector<1x90xf32>
    %c0_71 = arith.constant 0 : index
    %c180 = arith.constant 180 : index
    %80 = vector.load %arg13[%c0_71, %c180] : memref<4x720xf32, #tpu.memory_space<vmem>>, vector<1x90xf32>
    tpu.vector_store %arg13[%c0_71, %c180], %79 {strides = array<i32>} : memref<4x720xf32, #tpu.memory_space<vmem>>, vector<1x90xf32>,
    %81 = vector.extract_strided_slice %74 {offsets = [3, 0], sizes = [1, 90], strides = [1, 1]} : vector<128x96xf32> to vector<1x90xf32>
    %c0_72 = arith.constant 0 : index
    %c270 = arith.constant 270 : index
    %82 = vector.load %arg13[%c0_72, %c270] : memref<4x720xf32, #tpu.memory_space<vmem>>, vector<1x90xf32>
    tpu.vector_store %arg13[%c0_72, %c270], %81 {strides = array<i32>} : memref<4x720xf32, #tpu.memory_space<vmem>>, vector<1x90xf32>,
    %83 = vector.extract_strided_slice %74 {offsets = [4, 0], sizes = [1, 90], strides = [1, 1]} : vector<128x96xf32> to vector<1x90xf32>
    %c0_73 = arith.constant 0 : index
    %c360 = arith.constant 360 : index
    %84 = vector.load %arg13[%c0_73, %c360] : memref<4x720xf32, #tpu.memory_space<vmem>>, vector<1x90xf32>
    tpu.vector_store %arg13[%c0_73, %c360], %83 {strides = array<i32>} : memref<4x720xf32, #tpu.memory_space<vmem>>, vector<1x90xf32>,
    %85 = vector.extract_strided_slice %74 {offsets = [5, 0], sizes = [1, 90], strides = [1, 1]} : vector<128x96xf32> to vector<1x90xf32>
    %c0_74 = arith.constant 0 : index
    %c450 = arith.constant 450 : index
    %86 = vector.load %arg13[%c0_74, %c450] : memref<4x720xf32, #tpu.memory_space<vmem>>, vector<1x90xf32>
    tpu.vector_store %arg13[%c0_74, %c450], %85 {strides = array<i32>} : memref<4x720xf32, #tpu.memory_space<vmem>>, vector<1x90xf32>,
    %87 = vector.extract_strided_slice %74 {offsets = [6, 0], sizes = [1, 90], strides = [1, 1]} : vector<128x96xf32> to vector<1x90xf32>
    %c0_75 = arith.constant 0 : index
    %c540 = arith.constant 540 : index
    %88 = vector.load %arg13[%c0_75, %c540] : memref<4x720xf32, #tpu.memory_space<vmem>>, vector<1x90xf32>
    tpu.vector_store %arg13[%c0_75, %c540], %87 {strides = array<i32>} : memref<4x720xf32, #tpu.memory_space<vmem>>, vector<1x90xf32>,
    %89 = vector.extract_strided_slice %74 {offsets = [7, 0], sizes = [1, 90], strides = [1, 1]} : vector<128x96xf32> to vector<1x90xf32>
    %c0_76 = arith.constant 0 : index
    %c630 = arith.constant 630 : index
    %90 = vector.load %arg13[%c0_76, %c630] : memref<4x720xf32, #tpu.memory_space<vmem>>, vector<1x90xf32>
    tpu.vector_store %arg13[%c0_76, %c630], %89 {strides = array<i32>} : memref<4x720xf32, #tpu.memory_space<vmem>>, vector<1x90xf32>,
    %91 = vector.extract_strided_slice %74 {offsets = [8, 0], sizes = [1, 90], strides = [1, 1]} : vector<128x96xf32> to vector<1x90xf32>
    %c1_77 = arith.constant 1 : index
    %c0_78 = arith.constant 0 : index
    %92 = vector.load %arg13[%c1_77, %c0_78] : memref<4x720xf32, #tpu.memory_space<vmem>>, vector<1x90xf32>
    tpu.vector_store %arg13[%c1_77, %c0_78], %91 {strides = array<i32>} : memref<4x720xf32, #tpu.memory_space<vmem>>, vector<1x90xf32>,
    %93 = vector.extract_strided_slice %74 {offsets = [9, 0], sizes = [1, 90], strides = [1, 1]} : vector<128x96xf32> to vector<1x90xf32>
    %c1_79 = arith.constant 1 : index
    %c90_80 = arith.constant 90 : index
    %94 = vector.load %arg13[%c1_79, %c90_80] : memref<4x720xf32, #tpu.memory_space<vmem>>, vector<1x90xf32>
    tpu.vector_store %arg13[%c1_79, %c90_80], %93 {strides = array<i32>} : memref<4x720xf32, #tpu.memory_space<vmem>>, vector<1x90xf32>,
    %95 = vector.extract_strided_slice %74 {offsets = [10, 0], sizes = [1, 90], strides = [1, 1]} : vector<128x96xf32> to vector<1x90xf32>
    %c1_81 = arith.constant 1 : index
    %c180_82 = arith.constant 180 : index
    %96 = vector.load %arg13[%c1_81, %c180_82] : memref<4x720xf32, #tpu.memory_space<vmem>>, vector<1x90xf32>
    tpu.vector_store %arg13[%c1_81, %c180_82], %95 {strides = array<i32>} : memref<4x720xf32, #tpu.memory_space<vmem>>, vector<1x90xf32>,
    %97 = vector.extract_strided_slice %74 {offsets = [11, 0], sizes = [1, 90], strides = [1, 1]} : vector<128x96xf32> to vector<1x90xf32>
    %c1_83 = arith.constant 1 : index
    %c270_84 = arith.constant 270 : index
    %98 = vector.load %arg13[%c1_83, %c270_84] : memref<4x720xf32, #tpu.memory_space<vmem>>, vector<1x90xf32>
    tpu.vector_store %arg13[%c1_83, %c270_84], %97 {strides = array<i32>} : memref<4x720xf32, #tpu.memory_space<vmem>>, vector<1x90xf32>,
    %99 = vector.extract_strided_slice %74 {offsets = [12, 0], sizes = [1, 90], strides = [1, 1]} : vector<128x96xf32> to vector<1x90xf32>
    %c1_85 = arith.constant 1 : index
    %c360_86 = arith.constant 360 : index
    %100 = vector.load %arg13[%c1_85, %c360_86] : memref<4x720xf32, #tpu.memory_space<vmem>>, vector<1x90xf32>
    tpu.vector_store %arg13[%c1_85, %c360_86], %99 {strides = array<i32>} : memref<4x720xf32, #tpu.memory_space<vmem>>, vector<1x90xf32>,
    %101 = vector.extract_strided_slice %74 {offsets = [13, 0], sizes = [1, 90], strides = [1, 1]} : vector<128x96xf32> to vector<1x90xf32>
    %c1_87 = arith.constant 1 : index
    %c450_88 = arith.constant 450 : index
    %102 = vector.load %arg13[%c1_87, %c450_88] : memref<4x720xf32, #tpu.memory_space<vmem>>, vector<1x90xf32>
    tpu.vector_store %arg13[%c1_87, %c450_88], %101 {strides = array<i32>} : memref<4x720xf32, #tpu.memory_space<vmem>>, vector<1x90xf32>,
    %103 = vector.extract_strided_slice %74 {offsets = [14, 0], sizes = [1, 90], strides = [1, 1]} : vector<128x96xf32> to vector<1x90xf32>
    %c1_89 = arith.constant 1 : index
    %c540_90 = arith.constant 540 : index
    %104 = vector.load %arg13[%c1_89, %c540_90] : memref<4x720xf32, #tpu.memory_space<vmem>>, vector<1x90xf32>
    tpu.vector_store %arg13[%c1_89, %c540_90], %103 {strides = array<i32>} : memref<4x720xf32, #tpu.memory_space<vmem>>, vector<1x90xf32>,
    %105 = vector.extract_strided_slice %74 {offsets = [15, 0], sizes = [1, 90], strides = [1, 1]} : vector<128x96xf32> to vector<1x90xf32>
    %c1_91 = arith.constant 1 : index
    %c630_92 = arith.constant 630 : index
    %106 = vector.load %arg13[%c1_91, %c630_92] : memref<4x720xf32, #tpu.memory_space<vmem>>, vector<1x90xf32>
    tpu.vector_store %arg13[%c1_91, %c630_92], %105 {strides = array<i32>} : memref<4x720xf32, #tpu.memory_space<vmem>>, vector<1x90xf32>,
    %107 = vector.extract_strided_slice %74 {offsets = [16, 0], sizes = [1, 90], strides = [1, 1]} : vector<128x96xf32> to vector<1x90xf32>
    %c2 = arith.constant 2 : index
    %c0_93 = arith.constant 0 : index
    %108 = vector.load %arg13[%c2, %c0_93] : memref<4x720xf32, #tpu.memory_space<vmem>>, vector<1x90xf32>
    tpu.vector_store %arg13[%c2, %c0_93], %107 {strides = array<i32>} : memref<4x720xf32, #tpu.memory_space<vmem>>, vector<1x90xf32>,
    %109 = vector.extract_strided_slice %74 {offsets = [17, 0], sizes = [1, 90], strides = [1, 1]} : vector<128x96xf32> to vector<1x90xf32>
    %c2_94 = arith.constant 2 : index
    %c90_95 = arith.constant 90 : index
    %110 = vector.load %arg13[%c2_94, %c90_95] : memref<4x720xf32, #tpu.memory_space<vmem>>, vector<1x90xf32>
    tpu.vector_store %arg13[%c2_94, %c90_95], %109 {strides = array<i32>} : memref<4x720xf32, #tpu.memory_space<vmem>>, vector<1x90xf32>,
    %111 = vector.extract_strided_slice %74 {offsets = [18, 0], sizes = [1, 90], strides = [1, 1]} : vector<128x96xf32> to vector<1x90xf32>
    %c2_96 = arith.constant 2 : index
    %c180_97 = arith.constant 180 : index
    %112 = vector.load %arg13[%c2_96, %c180_97] : memref<4x720xf32, #tpu.memory_space<vmem>>, vector<1x90xf32>
    tpu.vector_store %arg13[%c2_96, %c180_97], %111 {strides = array<i32>} : memref<4x720xf32, #tpu.memory_space<vmem>>, vector<1x90xf32>,
    %113 = vector.extract_strided_slice %74 {offsets = [19, 0], sizes = [1, 90], strides = [1, 1]} : vector<128x96xf32> to vector<1x90xf32>
    %c2_98 = arith.constant 2 : index
    %c270_99 = arith.constant 270 : index
    %114 = vector.load %arg13[%c2_98, %c270_99] : memref<4x720xf32, #tpu.memory_space<vmem>>, vector<1x90xf32>
    tpu.vector_store %arg13[%c2_98, %c270_99], %113 {strides = array<i32>} : memref<4x720xf32, #tpu.memory_space<vmem>>, vector<1x90xf32>,
    %115 = vector.extract_strided_slice %74 {offsets = [20, 0], sizes = [1, 90], strides = [1, 1]} : vector<128x96xf32> to vector<1x90xf32>
    %c2_100 = arith.constant 2 : index
    %c360_101 = arith.constant 360 : index
    %116 = vector.load %arg13[%c2_100, %c360_101] : memref<4x720xf32, #tpu.memory_space<vmem>>, vector<1x90xf32>
    tpu.vector_store %arg13[%c2_100, %c360_101], %115 {strides = array<i32>} : memref<4x720xf32, #tpu.memory_space<vmem>>, vector<1x90xf32>,
    %117 = vector.extract_strided_slice %74 {offsets = [21, 0], sizes = [1, 90], strides = [1, 1]} : vector<128x96xf32> to vector<1x90xf32>
    %c2_102 = arith.constant 2 : index
    %c450_103 = arith.constant 450 : index
    %118 = vector.load %arg13[%c2_102, %c450_103] : memref<4x720xf32, #tpu.memory_space<vmem>>, vector<1x90xf32>
    tpu.vector_store %arg13[%c2_102, %c450_103], %117 {strides = array<i32>} : memref<4x720xf32, #tpu.memory_space<vmem>>, vector<1x90xf32>,
    %119 = vector.extract_strided_slice %74 {offsets = [22, 0], sizes = [1, 90], strides = [1, 1]} : vector<128x96xf32> to vector<1x90xf32>
    %c2_104 = arith.constant 2 : index
    %c540_105 = arith.constant 540 : index
    %120 = vector.load %arg13[%c2_104, %c540_105] : memref<4x720xf32, #tpu.memory_space<vmem>>, vector<1x90xf32>
    tpu.vector_store %arg13[%c2_104, %c540_105], %119 {strides = array<i32>} : memref<4x720xf32, #tpu.memory_space<vmem>>, vector<1x90xf32>,
    %121 = vector.extract_strided_slice %74 {offsets = [23, 0], sizes = [1, 90], strides = [1, 1]} : vector<128x96xf32> to vector<1x90xf32>
    %c2_106 = arith.constant 2 : index
    %c630_107 = arith.constant 630 : index
    %122 = vector.load %arg13[%c2_106, %c630_107] : memref<4x720xf32, #tpu.memory_space<vmem>>, vector<1x90xf32>
    tpu.vector_store %arg13[%c2_106, %c630_107], %121 {strides = array<i32>} : memref<4x720xf32, #tpu.memory_space<vmem>>, vector<1x90xf32>,
    %123 = vector.extract_strided_slice %74 {offsets = [24, 0], sizes = [1, 90], strides = [1, 1]} : vector<128x96xf32> to vector<1x90xf32>
    %c3 = arith.constant 3 : index
    %c0_108 = arith.constant 0 : index
    %124 = vector.load %arg13[%c3, %c0_108] : memref<4x720xf32, #tpu.memory_space<vmem>>, vector<1x90xf32>
    tpu.vector_store %arg13[%c3, %c0_108], %123 {strides = array<i32>} : memref<4x720xf32, #tpu.memory_space<vmem>>, vector<1x90xf32>,
    %125 = vector.extract_strided_slice %74 {offsets = [25, 0], sizes = [1, 90], strides = [1, 1]} : vector<128x96xf32> to vector<1x90xf32>
    %c3_109 = arith.constant 3 : index
    %c90_110 = arith.constant 90 : index
    %126 = vector.load %arg13[%c3_109, %c90_110] : memref<4x720xf32, #tpu.memory_space<vmem>>, vector<1x90xf32>
    tpu.vector_store %arg13[%c3_109, %c90_110], %125 {strides = array<i32>} : memref<4x720xf32, #tpu.memory_space<vmem>>, vector<1x90xf32>,
    %127 = vector.extract_strided_slice %74 {offsets = [26, 0], sizes = [1, 90], strides = [1, 1]} : vector<128x96xf32> to vector<1x90xf32>
    %c3_111 = arith.constant 3 : index
    %c180_112 = arith.constant 180 : index
    %128 = vector.load %arg13[%c3_111, %c180_112] : memref<4x720xf32, #tpu.memory_space<vmem>>, vector<1x90xf32>
    tpu.vector_store %arg13[%c3_111, %c180_112], %127 {strides = array<i32>} : memref<4x720xf32, #tpu.memory_space<vmem>>, vector<1x90xf32>,
    %129 = vector.extract_strided_slice %74 {offsets = [27, 0], sizes = [1, 90], strides = [1, 1]} : vector<128x96xf32> to vector<1x90xf32>
    %c3_113 = arith.constant 3 : index
    %c270_114 = arith.constant 270 : index
    %130 = vector.load %arg13[%c3_113, %c270_114] : memref<4x720xf32, #tpu.memory_space<vmem>>, vector<1x90xf32>
    tpu.vector_store %arg13[%c3_113, %c270_114], %129 {strides = array<i32>} : memref<4x720xf32, #tpu.memory_space<vmem>>, vector<1x90xf32>,
    %131 = vector.extract_strided_slice %74 {offsets = [28, 0], sizes = [1, 90], strides = [1, 1]} : vector<128x96xf32> to vector<1x90xf32>
    %c3_115 = arith.constant 3 : index
    %c360_116 = arith.constant 360 : index
    %132 = vector.load %arg13[%c3_115, %c360_116] : memref<4x720xf32, #tpu.memory_space<vmem>>, vector<1x90xf32>
    tpu.vector_store %arg13[%c3_115, %c360_116], %131 {strides = array<i32>} : memref<4x720xf32, #tpu.memory_space<vmem>>, vector<1x90xf32>,
    %133 = vector.extract_strided_slice %74 {offsets = [29, 0], sizes = [1, 90], strides = [1, 1]} : vector<128x96xf32> to vector<1x90xf32>
    %c3_117 = arith.constant 3 : index
    %c450_118 = arith.constant 450 : index
    %134 = vector.load %arg13[%c3_117, %c450_118] : memref<4x720xf32, #tpu.memory_space<vmem>>, vector<1x90xf32>
    tpu.vector_store %arg13[%c3_117, %c450_118], %133 {strides = array<i32>} : memref<4x720xf32, #tpu.memory_space<vmem>>, vector<1x90xf32>,
    %135 = vector.extract_strided_slice %74 {offsets = [30, 0], sizes = [1, 90], strides = [1, 1]} : vector<128x96xf32> to vector<1x90xf32>
    %c3_119 = arith.constant 3 : index
    %c540_120 = arith.constant 540 : index
    %136 = vector.load %arg13[%c3_119, %c540_120] : memref<4x720xf32, #tpu.memory_space<vmem>>, vector<1x90xf32>
    tpu.vector_store %arg13[%c3_119, %c540_120], %135 {strides = array<i32>} : memref<4x720xf32, #tpu.memory_space<vmem>>, vector<1x90xf32>,
    %137 = vector.extract_strided_slice %74 {offsets = [31, 0], sizes = [1, 90], strides = [1, 1]} : vector<128x96xf32> to vector<1x90xf32>
    %c3_121 = arith.constant 3 : index
    %c630_122 = arith.constant 630 : index
    %138 = vector.load %arg13[%c3_121, %c630_122] : memref<4x720xf32, #tpu.memory_space<vmem>>, vector<1x90xf32>
    tpu.vector_store %arg13[%c3_121, %c630_122], %137 {strides = array<i32>} : memref<4x720xf32, #tpu.memory_space<vmem>>, vector<1x90xf32>,
    %c0_123 = arith.constant 0 : index
    %c0_124 = arith.constant 0 : index
    %139 = vector.load %arg7[%c0_123, %c0_124] : memref<1x256xf32, #tpu.memory_space<vmem>>, vector<1x256xf32>
    %c0_i32_125 = arith.constant 0 : i32
    %c0_i32_126 = arith.constant 0 : i32
    %c0_i32_127 = arith.constant 0 : i32
    %c0_i32_128 = arith.constant 0 : i32
    %c0_i32_129 = arith.constant 0 : i32
    %140 = tpu.memref_slice %arg6[%c0_i32_125, %c0_i32_128, %c0_i32_129] : memref<4x720x256xbf16, #tpu.memory_space<any>> -> memref<1x720x256xbf16, #tpu.memory_space<any>>
    %141 = tpu.memref_squeeze %140 : memref<1x720x256xbf16, #tpu.memory_space<any>> -> memref<720x256xbf16, #tpu.memory_space<any>>
    %c0_i32_130 = arith.constant 0 : i32
    %c0_i32_131 = arith.constant 0 : i32
    %142 = tpu.memref_slice %arg14[%c0_i32_126, %c0_i32_130, %c0_i32_131] : memref<4x720x256xbf16, #tpu.memory_space<vmem>> -> memref<1x720x256xbf16, #tpu.memory_space<vmem>>
    %143 = tpu.memref_squeeze %142 : memref<1x720x256xbf16, #tpu.memory_space<vmem>> -> memref<720x256xbf16, #tpu.memory_space<vmem>>
    %144 = tpu.memref_slice %arg15[%c0_i32_127] : memref<4x!tpu.dma_semaphore, #tpu.memory_space<semaphore_mem>> -> memref<1x!tpu.dma_semaphore, #tpu.memory_space<semaphore_mem>>
    %145 = tpu.memref_squeeze %144 : memref<1x!tpu.dma_semaphore, #tpu.memory_space<semaphore_mem>> -> memref<!tpu.dma_semaphore, #tpu.memory_space<semaphore_mem>>
    tpu.wait_dma2 semaphore(%145 : memref<!tpu.dma_semaphore, #tpu.memory_space<semaphore_mem>>) src(%141 : memref<720x256xbf16, #tpu.memory_space<any>>) dst(%143 : memref<720x256xbf16, #tpu.memory_space<vmem>>)
    %c0_132 = arith.constant 0 : index
    %c0_133 = arith.constant 0 : index
    %146 = vector.load %arg13[%c0_132, %c0_133] : memref<4x720xf32, #tpu.memory_space<vmem>>, vector<1x720xf32>
    %147 = arith.truncf %146 : vector<1x720xf32> to vector<1x720xbf16>
    %c0_134 = arith.constant 0 : index
    %c0_135 = arith.constant 0 : index
    %c0_136 = arith.constant 0 : index
    %148 = vector.load %arg14[%c0_134, %c0_135, %c0_136] : memref<4x720x256xbf16, #tpu.memory_space<vmem>>, vector<1x720x256xbf16>
    %149 = vector.shape_cast %148 : vector<1x720x256xbf16> to vector<720x256xbf16>
    %cst_137 = arith.constant dense<0.000000e+00> : vector<1x256xf32>
    %150 = tpu.matmul %147, %149, %cst_137 {dimension_numbers = #tpu.dot_dimension_numbers<[1], [0], [0], [1], [0, 0, 1, 1], [], []>} : vector<1x720xbf16>, vector<720x256xbf16>, vector<1x256xf32> -> vector<1x256xf32>
    %151 = arith.addf %139, %150 : vector<1x256xf32>
    %c1_i32_138 = arith.constant 1 : i32
    %c1_i32_139 = arith.constant 1 : i32
    %c1_i32_140 = arith.constant 1 : i32
    %c0_i32_141 = arith.constant 0 : i32
    %c0_i32_142 = arith.constant 0 : i32
    %152 = tpu.memref_slice %arg6[%c1_i32_138, %c0_i32_141, %c0_i32_142] : memref<4x720x256xbf16, #tpu.memory_space<any>> -> memref<1x720x256xbf16, #tpu.memory_space<any>>
    %153 = tpu.memref_squeeze %152 : memref<1x720x256xbf16, #tpu.memory_space<any>> -> memref<720x256xbf16, #tpu.memory_space<any>>
    %c0_i32_143 = arith.constant 0 : i32
    %c0_i32_144 = arith.constant 0 : i32
    %154 = tpu.memref_slice %arg14[%c1_i32_139, %c0_i32_143, %c0_i32_144] : memref<4x720x256xbf16, #tpu.memory_space<vmem>> -> memref<1x720x256xbf16, #tpu.memory_space<vmem>>
    %155 = tpu.memref_squeeze %154 : memref<1x720x256xbf16, #tpu.memory_space<vmem>> -> memref<720x256xbf16, #tpu.memory_space<vmem>>
    %156 = tpu.memref_slice %arg15[%c1_i32_140] : memref<4x!tpu.dma_semaphore, #tpu.memory_space<semaphore_mem>> -> memref<1x!tpu.dma_semaphore, #tpu.memory_space<semaphore_mem>>
    %157 = tpu.memref_squeeze %156 : memref<1x!tpu.dma_semaphore, #tpu.memory_space<semaphore_mem>> -> memref<!tpu.dma_semaphore, #tpu.memory_space<semaphore_mem>>
    tpu.wait_dma2 semaphore(%157 : memref<!tpu.dma_semaphore, #tpu.memory_space<semaphore_mem>>) src(%153 : memref<720x256xbf16, #tpu.memory_space<any>>) dst(%155 : memref<720x256xbf16, #tpu.memory_space<vmem>>)
    %c1_145 = arith.constant 1 : index
    %c0_146 = arith.constant 0 : index
    %158 = vector.load %arg13[%c1_145, %c0_146] : memref<4x720xf32, #tpu.memory_space<vmem>>, vector<1x720xf32>
    %159 = arith.truncf %158 : vector<1x720xf32> to vector<1x720xbf16>
    %c1_147 = arith.constant 1 : index
    %c0_148 = arith.constant 0 : index
    %c0_149 = arith.constant 0 : index
    %160 = vector.load %arg14[%c1_147, %c0_148, %c0_149] : memref<4x720x256xbf16, #tpu.memory_space<vmem>>, vector<1x720x256xbf16>
    %161 = vector.shape_cast %160 : vector<1x720x256xbf16> to vector<720x256xbf16>
    %cst_150 = arith.constant dense<0.000000e+00> : vector<1x256xf32>
    %162 = tpu.matmul %159, %161, %cst_150 {dimension_numbers = #tpu.dot_dimension_numbers<[1], [0], [0], [1], [0, 0, 1, 1], [], []>} : vector<1x720xbf16>, vector<720x256xbf16>, vector<1x256xf32> -> vector<1x256xf32>
    %163 = arith.addf %151, %162 : vector<1x256xf32>
    %c2_i32_151 = arith.constant 2 : i32
    %c2_i32_152 = arith.constant 2 : i32
    %c2_i32_153 = arith.constant 2 : i32
    %c0_i32_154 = arith.constant 0 : i32
    %c0_i32_155 = arith.constant 0 : i32
    %164 = tpu.memref_slice %arg6[%c2_i32_151, %c0_i32_154, %c0_i32_155] : memref<4x720x256xbf16, #tpu.memory_space<any>> -> memref<1x720x256xbf16, #tpu.memory_space<any>>
    %165 = tpu.memref_squeeze %164 : memref<1x720x256xbf16, #tpu.memory_space<any>> -> memref<720x256xbf16, #tpu.memory_space<any>>
    %c0_i32_156 = arith.constant 0 : i32
    %c0_i32_157 = arith.constant 0 : i32
    %166 = tpu.memref_slice %arg14[%c2_i32_152, %c0_i32_156, %c0_i32_157] : memref<4x720x256xbf16, #tpu.memory_space<vmem>> -> memref<1x720x256xbf16, #tpu.memory_space<vmem>>
    %167 = tpu.memref_squeeze %166 : memref<1x720x256xbf16, #tpu.memory_space<vmem>> -> memref<720x256xbf16, #tpu.memory_space<vmem>>
    %168 = tpu.memref_slice %arg15[%c2_i32_153] : memref<4x!tpu.dma_semaphore, #tpu.memory_space<semaphore_mem>> -> memref<1x!tpu.dma_semaphore, #tpu.memory_space<semaphore_mem>>
    %169 = tpu.memref_squeeze %168 : memref<1x!tpu.dma_semaphore, #tpu.memory_space<semaphore_mem>> -> memref<!tpu.dma_semaphore, #tpu.memory_space<semaphore_mem>>
    tpu.wait_dma2 semaphore(%169 : memref<!tpu.dma_semaphore, #tpu.memory_space<semaphore_mem>>) src(%165 : memref<720x256xbf16, #tpu.memory_space<any>>) dst(%167 : memref<720x256xbf16, #tpu.memory_space<vmem>>)
    %c2_158 = arith.constant 2 : index
    %c0_159 = arith.constant 0 : index
    %170 = vector.load %arg13[%c2_158, %c0_159] : memref<4x720xf32, #tpu.memory_space<vmem>>, vector<1x720xf32>
    %171 = arith.truncf %170 : vector<1x720xf32> to vector<1x720xbf16>
    %c2_160 = arith.constant 2 : index
    %c0_161 = arith.constant 0 : index
    %c0_162 = arith.constant 0 : index
    %172 = vector.load %arg14[%c2_160, %c0_161, %c0_162] : memref<4x720x256xbf16, #tpu.memory_space<vmem>>, vector<1x720x256xbf16>
    %173 = vector.shape_cast %172 : vector<1x720x256xbf16> to vector<720x256xbf16>
    %cst_163 = arith.constant dense<0.000000e+00> : vector<1x256xf32>
    %174 = tpu.matmul %171, %173, %cst_163 {dimension_numbers = #tpu.dot_dimension_numbers<[1], [0], [0], [1], [0, 0, 1, 1], [], []>} : vector<1x720xbf16>, vector<720x256xbf16>, vector<1x256xf32> -> vector<1x256xf32>
    %175 = arith.addf %163, %174 : vector<1x256xf32>
    %c3_i32_164 = arith.constant 3 : i32
    %c3_i32_165 = arith.constant 3 : i32
    %c3_i32_166 = arith.constant 3 : i32
    %c0_i32_167 = arith.constant 0 : i32
    %c0_i32_168 = arith.constant 0 : i32
    %176 = tpu.memref_slice %arg6[%c3_i32_164, %c0_i32_167, %c0_i32_168] : memref<4x720x256xbf16, #tpu.memory_space<any>> -> memref<1x720x256xbf16, #tpu.memory_space<any>>
    %177 = tpu.memref_squeeze %176 : memref<1x720x256xbf16, #tpu.memory_space<any>> -> memref<720x256xbf16, #tpu.memory_space<any>>
    %c0_i32_169 = arith.constant 0 : i32
    %c0_i32_170 = arith.constant 0 : i32
    %178 = tpu.memref_slice %arg14[%c3_i32_165, %c0_i32_169, %c0_i32_170] : memref<4x720x256xbf16, #tpu.memory_space<vmem>> -> memref<1x720x256xbf16, #tpu.memory_space<vmem>>
    %179 = tpu.memref_squeeze %178 : memref<1x720x256xbf16, #tpu.memory_space<vmem>> -> memref<720x256xbf16, #tpu.memory_space<vmem>>
    %180 = tpu.memref_slice %arg15[%c3_i32_166] : memref<4x!tpu.dma_semaphore, #tpu.memory_space<semaphore_mem>> -> memref<1x!tpu.dma_semaphore, #tpu.memory_space<semaphore_mem>>
    %181 = tpu.memref_squeeze %180 : memref<1x!tpu.dma_semaphore, #tpu.memory_space<semaphore_mem>> -> memref<!tpu.dma_semaphore, #tpu.memory_space<semaphore_mem>>
    tpu.wait_dma2 semaphore(%181 : memref<!tpu.dma_semaphore, #tpu.memory_space<semaphore_mem>>) src(%177 : memref<720x256xbf16, #tpu.memory_space<any>>) dst(%179 : memref<720x256xbf16, #tpu.memory_space<vmem>>)
    %c3_171 = arith.constant 3 : index
    %c0_172 = arith.constant 0 : index
    %182 = vector.load %arg13[%c3_171, %c0_172] : memref<4x720xf32, #tpu.memory_space<vmem>>, vector<1x720xf32>
    %183 = arith.truncf %182 : vector<1x720xf32> to vector<1x720xbf16>
    %c3_173 = arith.constant 3 : index
    %c0_174 = arith.constant 0 : index
    %c0_175 = arith.constant 0 : index
    %184 = vector.load %arg14[%c3_173, %c0_174, %c0_175] : memref<4x720x256xbf16, #tpu.memory_space<vmem>>, vector<1x720x256xbf16>
    %185 = vector.shape_cast %184 : vector<1x720x256xbf16> to vector<720x256xbf16>
    %cst_176 = arith.constant dense<0.000000e+00> : vector<1x256xf32>
    %186 = tpu.matmul %183, %185, %cst_176 {dimension_numbers = #tpu.dot_dimension_numbers<[1], [0], [0], [1], [0, 0, 1, 1], [], []>} : vector<1x720xbf16>, vector<720x256xbf16>, vector<1x256xf32> -> vector<1x256xf32>
    %187 = arith.addf %175, %186 : vector<1x256xf32>
    %cst_177 = arith.constant 0.000000e+00 : f32
    %188 = vector.broadcast %cst_177 : f32 to vector<1x256xf32>
    %189 = arith.maximumf %187, %188 : vector<1x256xf32>
    %190 = arith.truncf %189 : vector<1x256xf32> to vector<1x256xbf16>
    %c0_178 = arith.constant 0 : index
    %c0_179 = arith.constant 0 : index
    %191 = vector.load %arg8[%c0_178, %c0_179] : memref<256x128xbf16, #tpu.memory_space<vmem>>, vector<256x128xbf16>
    %cst_180 = arith.constant dense<0.000000e+00> : vector<1x128xf32>
    %192 = tpu.matmul %190, %191, %cst_180 {dimension_numbers = #tpu.dot_dimension_numbers<[1], [0], [0], [1], [0, 0, 1, 1], [], []>} : vector<1x256xbf16>, vector<256x128xbf16>, vector<1x128xf32> -> vector<1x128xf32>
    %c0_181 = arith.constant 0 : index
    %c0_182 = arith.constant 0 : index
    %193 = vector.load %arg9[%c0_181, %c0_182] : memref<1x128xf32, #tpu.memory_space<vmem>>, vector<1x128xf32>
    %194 = arith.addf %192, %193 : vector<1x128xf32>
    %c0_183 = arith.constant 0 : index
    %c0_184 = arith.constant 0 : index
    %195 = vector.load %arg10[%c0_183, %c0_184] : memref<1x128xf32, #tpu.memory_space<vmem>>, vector<1x128xf32>
    tpu.vector_store %arg10[%c0_183, %c0_184], %194 {strides = array<i32>} : memref<1x128xf32, #tpu.memory_space<vmem>>, vector<1x128xf32>,
    return
  }
  func.func @transform_0(%arg0: i32) -> (i32, i32) {
    %c0_i32 = arith.constant 0 : i32
    %c0_i32_0 = arith.constant 0 : i32
    %c0_i32_1 = arith.constant 0 : i32
    return %c0_i32, %c0_i32_0 : i32, i32
  }
  func.func @transform_1(%arg0: i32) -> (i32, i32) {
    %c0_i32 = arith.constant 0 : i32
    %c0_i32_0 = arith.constant 0 : i32
    %c0_i32_1 = arith.constant 0 : i32
    return %c0_i32, %c0_i32_0 : i32, i32
  }
  func.func @transform_2(%arg0: i32) -> (i32, i32) {
    %c0_i32 = arith.constant 0 : i32
    %c0_i32_0 = arith.constant 0 : i32
    %c0_i32_1 = arith.constant 0 : i32
    return %c0_i32, %c0_i32_0 : i32, i32
  }
  func.func @transform_3(%arg0: i32) -> (i32, i32) {
    %c0_i32 = arith.constant 0 : i32
    %c0_i32_0 = arith.constant 0 : i32
    %c0_i32_1 = arith.constant 0 : i32
    return %c0_i32, %c0_i32_0 : i32, i32
  }
  func.func @transform_4(%arg0: i32) -> (i32, i32) {
    %c0_i32 = arith.constant 0 : i32
    %c0_i32_0 = arith.constant 0 : i32
    %c0_i32_1 = arith.constant 0 : i32
    return %c0_i32, %c0_i32_0 : i32, i32
  }
  func.func @transform_6(%arg0: i32) -> (i32, i32) {
    %c0_i32 = arith.constant 0 : i32
    %c0_i32_0 = arith.constant 0 : i32
    %c0_i32_1 = arith.constant 0 : i32
    return %c0_i32, %c0_i32_0 : i32, i32
  }
  func.func @transform_7(%arg0: i32) -> (i32, i32) {
    %c0_i32 = arith.constant 0 : i32
    %c0_i32_0 = arith.constant 0 : i32
    %c0_i32_1 = arith.constant 0 : i32
    return %c0_i32, %c0_i32_0 : i32, i32
  }
  func.func @transform_8(%arg0: i32) -> (i32, i32) {
    %c0_i32 = arith.constant 0 : i32
    %c0_i32_0 = arith.constant 0 : i32
    %c0_i32_1 = arith.constant 0 : i32
    return %c0_i32, %c0_i32_0 : i32, i32
  }
  func.func @transform_9(%arg0: i32) -> (i32, i32) {
    %c0_i32 = arith.constant 0 : i32
    %c0_i32_0 = arith.constant 0 : i32
    %c0_i32_1 = arith.constant 0 : i32
    return %c0_i32, %c0_i32_0 : i32, i32
  }
}

</mosaic_0001>

<llo_original>
// kernel: atari_network_forward.1
$region0: #{atari_network_forward.1}
  #allocation0 [shape = 'u32[]', space=smem, size = 0x4, offset = 0x4, fixed_abs, tag = 'smem constant byte address 0x4 - core index']
  #allocation1 [shape = 'u32[72,128]{1,0:T(1,128)}', space=vmem, size = 0x9000, scoped, tag = 'internal scratch']
  #allocation2 [shape = 'f32[112,64]{1,0:T(8,128)}', space=vmem, size = 0xe000, scoped, tag = 'scratch operand']
  #allocation3 [shape = 'f32[96,256]{1,0:T(8,128)}', space=vmem, size = 0x18000, scoped, tag = 'scratch operand']
  #allocation4 [shape = 'f32[4,720]{1,0:T(4,128)}', space=vmem, size = 0x3000, scoped, tag = 'scratch operand']
  #allocation5 [shape = 'bf16[4,720,256]{2,1,0:T(8,128)(2,1)}', space=vmem, size = 0x168000, scoped, tag = 'scratch operand']
  #allocation6 [shape = 's32[4]{0}', space=sflag, size = 0x10, scoped, tag = 'scratch operand']
  #allocation7 [shape = 's32[]', space=sflag, size = 0x4, offset = 0, fixed_abs, tag = 'sflag constant byte address 0x0 - dummy sync flag']
  #allocation8 [shape = 's32[]', space=sflag, size = 0x4, offset = 0, fixed_abs, tag = 'sflag constant byte address 0x0 - dummy sync flag']
  #allocation9 [shape = 's32[]', space=sflag, size = 0x4, offset = 0, fixed_abs, tag = 'sflag constant byte address 0x0 - dummy sync flag']
  #allocation10 [shape = 's32[]', space=sflag, size = 0x4, offset = 0, fixed_abs, tag = 'sflag constant byte address 0x0 - dummy sync flag']
  %s0 = inlined_call_operand.vmem [shape: bf16[448,256], index: 0, kind: input, shape index: {}]
  %s1 = inlined_call_operand.vmem [shape: bf16[256,16], index: 1, kind: input, shape index: {}]
  %s2 = inlined_call_operand.vmem [shape: f32[1,16], index: 2, kind: input, shape index: {}]
  %s3 = inlined_call_operand.vmem [shape: bf16[256,128], index: 3, kind: input, shape index: {}]
  %s4 = inlined_call_operand.vmem [shape: f32[1,128], index: 4, kind: input, shape index: {}]
  %s5 = inlined_call_operand.vmem [shape: bf16[4,720,256], index: 5, kind: input, shape index: {}]
  %s6 = inlined_call_operand.vmem [shape: f32[1,256], index: 6, kind: input, shape index: {}]
  %s7 = inlined_call_operand.vmem [shape: bf16[256,128], index: 7, kind: input, shape index: {}]
  %s8 = inlined_call_operand.vmem [shape: f32[1,128], index: 8, kind: input, shape index: {}]
  %s9 = inlined_call_operand.vmem [shape: f32[1,128], index: 9, kind: output, shape index: {}]
  %s10 = sld [smem:[#allocation0]]
  $region118: #{atari_network_forward.1} parent=0
    _
  %s12 = ssub.s32 1, %s10
  %s13 = scalar_select 0, %s12, %s10
  // Predicated region
  $region2: #{atari_network_forward.1} parent=0 // pred_check
    _
  $region3: #{atari_network_forward.1} parent=0 // pred_check_branch
    %15 = sbr.rel (0) target = $region5
  $region4: #{atari_network_forward.1} parent=0 // pred_region
    _
  $region5: #{atari_network_forward.1} parent=0 // pred_fallthru
    _
  // Predicated region
  $region6: #{atari_network_forward.1} parent=0 // pred_check
    _
  $region7: #{atari_network_forward.1} parent=0 // pred_check_branch
    %17 = sbr.rel (0) target = $region9
  $region8: #{atari_network_forward.1} parent=0 // pred_region
    _
  $region9: #{atari_network_forward.1} parent=0 // pred_fallthru
    _
  // Predicated region
  $region10: #{atari_network_forward.1} parent=0 // pred_check
    _
  $region11: #{atari_network_forward.1} parent=0 // pred_check_branch
    %19 = sbr.rel (0) target = $region13
  $region12: #{atari_network_forward.1} parent=0 // pred_region
    _
  $region13: #{atari_network_forward.1} parent=0 // pred_fallthru
    _
  // Predicated region
  $region14: #{atari_network_forward.1} parent=0 // pred_check
    _
  $region15: #{atari_network_forward.1} parent=0 // pred_check_branch
    %21 = sbr.rel (0) target = $region17
  $region16: #{atari_network_forward.1} parent=0 // pred_region
    _
  $region17: #{atari_network_forward.1} parent=0 // pred_fallthru
    _
  // Predicated region
  $region18: #{atari_network_forward.1} parent=0 // pred_check
    _
  $region19: #{atari_network_forward.1} parent=0 // pred_check_branch
    %23 = sbr.rel (0) target = $region21
  $region20: #{atari_network_forward.1} parent=0 // pred_region
    _
  $region21: #{atari_network_forward.1} parent=0 // pred_fallthru
    _
  // Predicated region
  $region22: #{atari_network_forward.1} parent=0 // pred_check
    _
  $region23: #{atari_network_forward.1} parent=0 // pred_check_branch
    %25 = sbr.rel (0) target = $region25
  $region24: #{atari_network_forward.1} parent=0 // pred_region
    _
  $region25: #{atari_network_forward.1} parent=0 // pred_fallthru
    _
  // Predicated region
  $region26: #{atari_network_forward.1} parent=0 // pred_check
    _
  $region27: #{atari_network_forward.1} parent=0 // pred_check_branch
    %27 = sbr.rel (0) target = $region29
  $region28: #{atari_network_forward.1} parent=0 // pred_region
    _
  $region29: #{atari_network_forward.1} parent=0 // pred_fallthru
    _
  // Predicated region
  $region30: #{atari_network_forward.1} parent=0 // pred_check
    _
  $region31: #{atari_network_forward.1} parent=0 // pred_check_branch
    %29 = sbr.rel (0) target = $region33
  $region32: #{atari_network_forward.1} parent=0 // pred_region
    _
  $region33: #{atari_network_forward.1} parent=0 // pred_fallthru
    _
  // Predicated region
  $region34: #{atari_network_forward.1} parent=0 // pred_check
    _
  $region35: #{atari_network_forward.1} parent=0 // pred_check_branch
    %32 = sbr.rel (0) target = $region37
  $region36: #{atari_network_forward.1} parent=0 // pred_region
    loop: start=0, step=1, limit=1
    $region38: #{atari_network_forward.1} parent=36 // loop_pre_header
      _
    $region39: #{atari_network_forward.1} parent=36 // loop_header
      %s34 = sphi 0, %s38
      %p35 = scmp.ge.s32.totalorder %s34, 1
      %s39 = sphi %s5, %s5
      %s40 = sphi [#allocation5], [#allocation5]
    $region40: #{atari_network_forward.1} parent=36 // loop_header_branch
      %37 = sbr.rel (%p35) target = $region44
    $region41: #{atari_network_forward.1} parent=36 // loop_body
      %v41 = vld [vmem:[%s39] sm:$0xff]
      %42 = vst [vmem:[%s40] sm:$0xff] %v41
      %v43 = vld [vmem:[%s39 + $0x8] sm:$0xff]
      %44 = vst [vmem:[%s40 + $0x8] sm:$0xff] %v43
      %v45 = vld [vmem:[%s39 + $0x10] sm:$0xff]
      %46 = vst [vmem:[%s40 + $0x10] sm:$0xff] %v45
      %v47 = vld [vmem:[%s39 + $0x18] sm:$0xff]
      %48 = vst [vmem:[%s40 + $0x18] sm:$0xff] %v47
      %v49 = vld [vmem:[%s39 + $0x20] sm:$0xff]
      %50 = vst [vmem:[%s40 + $0x20] sm:$0xff] %v49
      %v51 = vld [vmem:[%s39 + $0x28] sm:$0xff]
      %52 = vst [vmem:[%s40 + $0x28] sm:$0xff] %v51
      %v53 = vld [vmem:[%s39 + $0x30] sm:$0xff]
      %54 = vst [vmem:[%s40 + $0x30] sm:$0xff] %v53
      %v55 = vld [vmem:[%s39 + $0x38] sm:$0xff]
      %56 = vst [vmem:[%s40 + $0x38] sm:$0xff] %v55
      %v57 = vld [vmem:[%s39 + $0x40] sm:$0xff]
      %58 = vst [vmem:[%s40 + $0x40] sm:$0xff] %v57
      %v59 = vld [vmem:[%s39 + $0x48] sm:$0xff]
      %60 = vst [vmem:[%s40 + $0x48] sm:$0xff] %v59
      %v61 = vld [vmem:[%s39 + $0x50] sm:$0xff]
      %62 = vst [vmem:[%s40 + $0x50] sm:$0xff] %v61
      %v63 = vld [vmem:[%s39 + $0x58] sm:$0xff]
      %64 = vst [vmem:[%s40 + $0x58] sm:$0xff] %v63
      %v65 = vld [vmem:[%s39 + $0x60] sm:$0xff]
      %66 = vst [vmem:[%s40 + $0x60] sm:$0xff] %v65
      %v67 = vld [vmem:[%s39 + $0x68] sm:$0xff]
      %68 = vst [vmem:[%s40 + $0x68] sm:$0xff] %v67
      %v69 = vld [vmem:[%s39 + $0x70] sm:$0xff]
      %70 = vst [vmem:[%s40 + $0x70] sm:$0xff] %v69
      %v71 = vld [vmem:[%s39 + $0x78] sm:$0xff]
      %72 = vst [vmem:[%s40 + $0x78] sm:$0xff] %v71
      %v73 = vld [vmem:[%s39 + $0x80] sm:$0xff]
      %74 = vst [vmem:[%s40 + $0x80] sm:$0xff] %v73
      %v75 = vld [vmem:[%s39 + $0x88] sm:$0xff]
      %76 = vst [vmem:[%s40 + $0x88] sm:$0xff] %v75
      %v77 = vld [vmem:[%s39 + $0x90] sm:$0xff]
      %78 = vst [vmem:[%s40 + $0x90] sm:$0xff] %v77
      %v79 = vld [vmem:[%s39 + $0x98] sm:$0xff]
      %80 = vst [vmem:[%s40 + $0x98] sm:$0xff] %v79
      %v81 = vld [vmem:[%s39 + $0xa0] sm:$0xff]
      %82 = vst [vmem:[%s40 + $0xa0] sm:$0xff] %v81
      %v83 = vld [vmem:[%s39 + $0xa8] sm:$0xff]
      %84 = vst [vmem:[%s40 + $0xa8] sm:$0xff] %v83
      %v85 = vld [vmem:[%s39 + $0xb0] sm:$0xff]
      %86 = vst [vmem:[%s40 + $0xb0] sm:$0xff] %v85
      %v87 = vld [vmem:[%s39 + $0xb8] sm:$0xff]
      %88 = vst [vmem:[%s40 + $0xb8] sm:$0xff] %v87
      %v89 = vld [vmem:[%s39 + $0xc0] sm:$0xff]
      %90 = vst [vmem:[%s40 + $0xc0] sm:$0xff] %v89
      %v91 = vld [vmem:[%s39 + $0xc8] sm:$0xff]
      %92 = vst [vmem:[%s40 + $0xc8] sm:$0xff] %v91
      %v93 = vld [vmem:[%s39 + $0xd0] sm:$0xff]
      %94 = vst [vmem:[%s40 + $0xd0] sm:$0xff] %v93
      %v95 = vld [vmem:[%s39 + $0xd8] sm:$0xff]
      %96 = vst [vmem:[%s40 + $0xd8] sm:$0xff] %v95
      %v97 = vld [vmem:[%s39 + $0xe0] sm:$0xff]
      %98 = vst [vmem:[%s40 + $0xe0] sm:$0xff] %v97
      %v99 = vld [vmem:[%s39 + $0xe8] sm:$0xff]
      %100 = vst [vmem:[%s40 + $0xe8] sm:$0xff] %v99
      %v101 = vld [vmem:[%s39 + $0xf0] sm:$0xff]
      %102 = vst [vmem:[%s40 + $0xf0] sm:$0xff] %v101
      %v103 = vld [vmem:[%s39 + $0xf8] sm:$0xff]
      %104 = vst [vmem:[%s40 + $0xf8] sm:$0xff] %v103
      %v105 = vld [vmem:[%s39 + $0x100] sm:$0xff]
      %106 = vst [vmem:[%s40 + $0x100] sm:$0xff] %v105
      %v107 = vld [vmem:[%s39 + $0x108] sm:$0xff]
      %108 = vst [vmem:[%s40 + $0x108] sm:$0xff] %v107
      %v109 = vld [vmem:[%s39 + $0x110] sm:$0xff]
      %110 = vst [vmem:[%s40 + $0x110] sm:$0xff] %v109
      %v111 = vld [vmem:[%s39 + $0x118] sm:$0xff]
      %112 = vst [vmem:[%s40 + $0x118] sm:$0xff] %v111
      %v113 = vld [vmem:[%s39 + $0x120] sm:$0xff]
      %114 = vst [vmem:[%s40 + $0x120] sm:$0xff] %v113
      %v115 = vld [vmem:[%s39 + $0x128] sm:$0xff]
      %116 = vst [vmem:[%s40 + $0x128] sm:$0xff] %v115
      %v117 = vld [vmem:[%s39 + $0x130] sm:$0xff]
      %118 = vst [vmem:[%s40 + $0x130] sm:$0xff] %v117
      %v119 = vld [vmem:[%s39 + $0x138] sm:$0xff]
      %120 = vst [vmem:[%s40 + $0x138] sm:$0xff] %v119
      %v121 = vld [vmem:[%s39 + $0x140] sm:$0xff]
      %122 = vst [vmem:[%s40 + $0x140] sm:$0xff] %v121
      %v123 = vld [vmem:[%s39 + $0x148] sm:$0xff]
      %124 = vst [vmem:[%s40 + $0x148] sm:$0xff] %v123
      %v125 = vld [vmem:[%s39 + $0x150] sm:$0xff]
      %126 = vst [vmem:[%s40 + $0x150] sm:$0xff] %v125
      %v127 = vld [vmem:[%s39 + $0x158] sm:$0xff]
      %128 = vst [vmem:[%s40 + $0x158] sm:$0xff] %v127
      %v129 = vld [vmem:[%s39 + $0x160] sm:$0xff]
      %130 = vst [vmem:[%s40 + $0x160] sm:$0xff] %v129
      %v131 = vld [vmem:[%s39 + $0x168] sm:$0xff]
      %132 = vst [vmem:[%s40 + $0x168] sm:$0xff] %v131
      %v133 = vld [vmem:[%s39 + $0x170] sm:$0xff]
      %134 = vst [vmem:[%s40 + $0x170] sm:$0xff] %v133
      %v135 = vld [vmem:[%s39 + $0x178] sm:$0xff]
      %136 = vst [vmem:[%s40 + $0x178] sm:$0xff] %v135
      %v137 = vld [vmem:[%s39 + $0x180] sm:$0xff]
      %138 = vst [vmem:[%s40 + $0x180] sm:$0xff] %v137
      %v139 = vld [vmem:[%s39 + $0x188] sm:$0xff]
      %140 = vst [vmem:[%s40 + $0x188] sm:$0xff] %v139
      %v141 = vld [vmem:[%s39 + $0x190] sm:$0xff]
      %142 = vst [vmem:[%s40 + $0x190] sm:$0xff] %v141
      %v143 = vld [vmem:[%s39 + $0x198] sm:$0xff]
      %144 = vst [vmem:[%s40 + $0x198] sm:$0xff] %v143
      %v145 = vld [vmem:[%s39 + $0x1a0] sm:$0xff]
      %146 = vst [vmem:[%s40 + $0x1a0] sm:$0xff] %v145
      %v147 = vld [vmem:[%s39 + $0x1a8] sm:$0xff]
      %148 = vst [vmem:[%s40 + $0x1a8] sm:$0xff] %v147
      %v149 = vld [vmem:[%s39 + $0x1b0] sm:$0xff]
      %150 = vst [vmem:[%s40 + $0x1b0] sm:$0xff] %v149
      %v151 = vld [vmem:[%s39 + $0x1b8] sm:$0xff]
      %152 = vst [vmem:[%s40 + $0x1b8] sm:$0xff] %v151
      %v153 = vld [vmem:[%s39 + $0x1c0] sm:$0xff]
      %154 = vst [vmem:[%s40 + $0x1c0] sm:$0xff] %v153
      %v155 = vld [vmem:[%s39 + $0x1c8] sm:$0xff]
      %156 = vst [vmem:[%s40 + $0x1c8] sm:$0xff] %v155
      %v157 = vld [vmem:[%s39 + $0x1d0] sm:$0xff]
      %158 = vst [vmem:[%s40 + $0x1d0] sm:$0xff] %v157
      %v159 = vld [vmem:[%s39 + $0x1d8] sm:$0xff]
      %160 = vst [vmem:[%s40 + $0x1d8] sm:$0xff] %v159
      %v161 = vld [vmem:[%s39 + $0x1e0] sm:$0xff]
      %162 = vst [vmem:[%s40 + $0x1e0] sm:$0xff] %v161
      %v163 = vld [vmem:[%s39 + $0x1e8] sm:$0xff]
      %164 = vst [vmem:[%s40 + $0x1e8] sm:$0xff] %v163
      %v165 = vld [vmem:[%s39 + $0x1f0] sm:$0xff]
      %166 = vst [vmem:[%s40 + $0x1f0] sm:$0xff] %v165
      %v167 = vld [vmem:[%s39 + $0x1f8] sm:$0xff]
      %168 = vst [vmem:[%s40 + $0x1f8] sm:$0xff] %v167
      %v169 = vld [vmem:[%s39 + $0x200] sm:$0xff]
      %170 = vst [vmem:[%s40 + $0x200] sm:$0xff] %v169
      %v171 = vld [vmem:[%s39 + $0x208] sm:$0xff]
      %172 = vst [vmem:[%s40 + $0x208] sm:$0xff] %v171
      %v173 = vld [vmem:[%s39 + $0x210] sm:$0xff]
      %174 = vst [vmem:[%s40 + $0x210] sm:$0xff] %v173
      %v175 = vld [vmem:[%s39 + $0x218] sm:$0xff]
      %176 = vst [vmem:[%s40 + $0x218] sm:$0xff] %v175
      %v177 = vld [vmem:[%s39 + $0x220] sm:$0xff]
      %178 = vst [vmem:[%s40 + $0x220] sm:$0xff] %v177
      %v179 = vld [vmem:[%s39 + $0x228] sm:$0xff]
      %180 = vst [vmem:[%s40 + $0x228] sm:$0xff] %v179
      %v181 = vld [vmem:[%s39 + $0x230] sm:$0xff]
      %182 = vst [vmem:[%s40 + $0x230] sm:$0xff] %v181
      %v183 = vld [vmem:[%s39 + $0x238] sm:$0xff]
      %184 = vst [vmem:[%s40 + $0x238] sm:$0xff] %v183
      %v185 = vld [vmem:[%s39 + $0x240] sm:$0xff]
      %186 = vst [vmem:[%s40 + $0x240] sm:$0xff] %v185
      %v187 = vld [vmem:[%s39 + $0x248] sm:$0xff]
      %188 = vst [vmem:[%s40 + $0x248] sm:$0xff] %v187
      %v189 = vld [vmem:[%s39 + $0x250] sm:$0xff]
      %190 = vst [vmem:[%s40 + $0x250] sm:$0xff] %v189
      %v191 = vld [vmem:[%s39 + $0x258] sm:$0xff]
      %192 = vst [vmem:[%s40 + $0x258] sm:$0xff] %v191
      %v193 = vld [vmem:[%s39 + $0x260] sm:$0xff]
      %194 = vst [vmem:[%s40 + $0x260] sm:$0xff] %v193
      %v195 = vld [vmem:[%s39 + $0x268] sm:$0xff]
      %196 = vst [vmem:[%s40 + $0x268] sm:$0xff] %v195
      %v197 = vld [vmem:[%s39 + $0x270] sm:$0xff]
      %198 = vst [vmem:[%s40 + $0x270] sm:$0xff] %v197
      %v199 = vld [vmem:[%s39 + $0x278] sm:$0xff]
      %200 = vst [vmem:[%s40 + $0x278] sm:$0xff] %v199
      %v201 = vld [vmem:[%s39 + $0x280] sm:$0xff]
      %202 = vst [vmem:[%s40 + $0x280] sm:$0xff] %v201
      %v203 = vld [vmem:[%s39 + $0x288] sm:$0xff]
      %204 = vst [vmem:[%s40 + $0x288] sm:$0xff] %v203
      %v205 = vld [vmem:[%s39 + $0x290] sm:$0xff]
      %206 = vst [vmem:[%s40 + $0x290] sm:$0xff] %v205
      %v207 = vld [vmem:[%s39 + $0x298] sm:$0xff]
      %208 = vst [vmem:[%s40 + $0x298] sm:$0xff] %v207
      %v209 = vld [vmem:[%s39 + $0x2a0] sm:$0xff]
      %210 = vst [vmem:[%s40 + $0x2a0] sm:$0xff] %v209
      %v211 = vld [vmem:[%s39 + $0x2a8] sm:$0xff]
      %212 = vst [vmem:[%s40 + $0x2a8] sm:$0xff] %v211
      %v213 = vld [vmem:[%s39 + $0x2b0] sm:$0xff]
      %214 = vst [vmem:[%s40 + $0x2b0] sm:$0xff] %v213
      %v215 = vld [vmem:[%s39 + $0x2b8] sm:$0xff]
      %216 = vst [vmem:[%s40 + $0x2b8] sm:$0xff] %v215
      %v217 = vld [vmem:[%s39 + $0x2c0] sm:$0xff]
      %218 = vst [vmem:[%s40 + $0x2c0] sm:$0xff] %v217
      %v219 = vld [vmem:[%s39 + $0x2c8] sm:$0xff]
      %220 = vst [vmem:[%s40 + $0x2c8] sm:$0xff] %v219
    $region42: #{atari_network_forward.1} parent=36 // loop_footer
      %s38 = sadd.s32 1, %s34
    $region43: #{atari_network_forward.1} parent=36 // loop_footer_branch
      %33 = sbr.rel target = $region39
    $region44: #{atari_network_forward.1} parent=36 // loop_exit
      _
  $region37: #{atari_network_forward.1} parent=0 // pred_fallthru
    _
  // Predicated region
  $region45: #{atari_network_forward.1} parent=0 // pred_check
    _
  $region46: #{atari_network_forward.1} parent=0 // pred_check_branch
    %222 = sbr.rel target = $region48
  $region47: #{atari_network_forward.1} parent=0 // pred_region
    _
  $region48: #{atari_network_forward.1} parent=0 // pred_fallthru
    _
  // Predicated region
  $region49: #{atari_network_forward.1} parent=0 // pred_check
    _
  $region50: #{atari_network_forward.1} parent=0 // pred_check_branch
    %225 = sbr.rel (0) target = $region52
  $region51: #{atari_network_forward.1} parent=0 // pred_region
    %226 = vsyncadd [#allocation6], 11520
  $region52: #{atari_network_forward.1} parent=0 // pred_fallthru
    _
  %s227 = scalar_lea.vmem %s5, 720
  %s228 = scalar_lea.vmem [#allocation5], 720
  %s229 = scalar_lea.sflag [#allocation6], 1
  // Predicated region
  $region53: #{atari_network_forward.1} parent=0 // pred_check
    _
  $region54: #{atari_network_forward.1} parent=0 // pred_check_branch
    %231 = sbr.rel (0) target = $region56
  $region55: #{atari_network_forward.1} parent=0 // pred_region
    loop: start=0, step=1, limit=1
    $region57: #{atari_network_forward.1} parent=55 // loop_pre_header
      _
    $region58: #{atari_network_forward.1} parent=55 // loop_header
      %s233 = sphi 0, %s237
      %p234 = scmp.ge.s32.totalorder %s233, 1
      %s238 = sphi %s227, %s227
      %s239 = sphi %s228, %s228
    $region59: #{atari_network_forward.1} parent=55 // loop_header_branch
      %236 = sbr.rel (%p234) target = $region63
    $region60: #{atari_network_forward.1} parent=55 // loop_body
      %v240 = vld [vmem:[%s238] sm:$0xff]
      %241 = vst [vmem:[%s239] sm:$0xff] %v240
      %v242 = vld [vmem:[%s238 + $0x8] sm:$0xff]
      %243 = vst [vmem:[%s239 + $0x8] sm:$0xff] %v242
      %v244 = vld [vmem:[%s238 + $0x10] sm:$0xff]
      %245 = vst [vmem:[%s239 + $0x10] sm:$0xff] %v244
      %v246 = vld [vmem:[%s238 + $0x18] sm:$0xff]
      %247 = vst [vmem:[%s239 + $0x18] sm:$0xff] %v246
      %v248 = vld [vmem:[%s238 + $0x20] sm:$0xff]
      %249 = vst [vmem:[%s239 + $0x20] sm:$0xff] %v248
      %v250 = vld [vmem:[%s238 + $0x28] sm:$0xff]
      %251 = vst [vmem:[%s239 + $0x28] sm:$0xff] %v250
      %v252 = vld [vmem:[%s238 + $0x30] sm:$0xff]
      %253 = vst [vmem:[%s239 + $0x30] sm:$0xff] %v252
      %v254 = vld [vmem:[%s238 + $0x38] sm:$0xff]
      %255 = vst [vmem:[%s239 + $0x38] sm:$0xff] %v254
      %v256 = vld [vmem:[%s238 + $0x40] sm:$0xff]
      %257 = vst [vmem:[%s239 + $0x40] sm:$0xff] %v256
      %v258 = vld [vmem:[%s238 + $0x48] sm:$0xff]
      %259 = vst [vmem:[%s239 + $0x48] sm:$0xff] %v258
      %v260 = vld [vmem:[%s238 + $0x50] sm:$0xff]
      %261 = vst [vmem:[%s239 + $0x50] sm:$0xff] %v260
      %v262 = vld [vmem:[%s238 + $0x58] sm:$0xff]
      %263 = vst [vmem:[%s239 + $0x58] sm:$0xff] %v262
      %v264 = vld [vmem:[%s238 + $0x60] sm:$0xff]
      %265 = vst [vmem:[%s239 + $0x60] sm:$0xff] %v264
      %v266 = vld [vmem:[%s238 + $0x68] sm:$0xff]
      %267 = vst [vmem:[%s239 + $0x68] sm:$0xff] %v266
      %v268 = vld [vmem:[%s238 + $0x70] sm:$0xff]
      %269 = vst [vmem:[%s239 + $0x70] sm:$0xff] %v268
      %v270 = vld [vmem:[%s238 + $0x78] sm:$0xff]
      %271 = vst [vmem:[%s239 + $0x78] sm:$0xff] %v270
      %v272 = vld [vmem:[%s238 + $0x80] sm:$0xff]
      %273 = vst [vmem:[%s239 + $0x80] sm:$0xff] %v272
      %v274 = vld [vmem:[%s238 + $0x88] sm:$0xff]
      %275 = vst [vmem:[%s239 + $0x88] sm:$0xff] %v274
      %v276 = vld [vmem:[%s238 + $0x90] sm:$0xff]
      %277 = vst [vmem:[%s239 + $0x90] sm:$0xff] %v276
      %v278 = vld [vmem:[%s238 + $0x98] sm:$0xff]
      %279 = vst [vmem:[%s239 + $0x98] sm:$0xff] %v278
      %v280 = vld [vmem:[%s238 + $0xa0] sm:$0xff]
      %281 = vst [vmem:[%s239 + $0xa0] sm:$0xff] %v280
      %v282 = vld [vmem:[%s238 + $0xa8] sm:$0xff]
      %283 = vst [vmem:[%s239 + $0xa8] sm:$0xff] %v282
      %v284 = vld [vmem:[%s238 + $0xb0] sm:$0xff]
      %285 = vst [vmem:[%s239 + $0xb0] sm:$0xff] %v284
      %v286 = vld [vmem:[%s238 + $0xb8] sm:$0xff]
      %287 = vst [vmem:[%s239 + $0xb8] sm:$0xff] %v286
      %v288 = vld [vmem:[%s238 + $0xc0] sm:$0xff]
      %289 = vst [vmem:[%s239 + $0xc0] sm:$0xff] %v288
      %v290 = vld [vmem:[%s238 + $0xc8] sm:$0xff]
      %291 = vst [vmem:[%s239 + $0xc8] sm:$0xff] %v290
      %v292 = vld [vmem:[%s238 + $0xd0] sm:$0xff]
      %293 = vst [vmem:[%s239 + $0xd0] sm:$0xff] %v292
      %v294 = vld [vmem:[%s238 + $0xd8] sm:$0xff]
      %295 = vst [vmem:[%s239 + $0xd8] sm:$0xff] %v294
      %v296 = vld [vmem:[%s238 + $0xe0] sm:$0xff]
      %297 = vst [vmem:[%s239 + $0xe0] sm:$0xff] %v296
      %v298 = vld [vmem:[%s238 + $0xe8] sm:$0xff]
      %299 = vst [vmem:[%s239 + $0xe8] sm:$0xff] %v298
      %v300 = vld [vmem:[%s238 + $0xf0] sm:$0xff]
      %301 = vst [vmem:[%s239 + $0xf0] sm:$0xff] %v300
      %v302 = vld [vmem:[%s238 + $0xf8] sm:$0xff]
      %303 = vst [vmem:[%s239 + $0xf8] sm:$0xff] %v302
      %v304 = vld [vmem:[%s238 + $0x100] sm:$0xff]
      %305 = vst [vmem:[%s239 + $0x100] sm:$0xff] %v304
      %v306 = vld [vmem:[%s238 + $0x108] sm:$0xff]
      %307 = vst [vmem:[%s239 + $0x108] sm:$0xff] %v306
      %v308 = vld [vmem:[%s238 + $0x110] sm:$0xff]
      %309 = vst [vmem:[%s239 + $0x110] sm:$0xff] %v308
      %v310 = vld [vmem:[%s238 + $0x118] sm:$0xff]
      %311 = vst [vmem:[%s239 + $0x118] sm:$0xff] %v310
      %v312 = vld [vmem:[%s238 + $0x120] sm:$0xff]
      %313 = vst [vmem:[%s239 + $0x120] sm:$0xff] %v312
      %v314 = vld [vmem:[%s238 + $0x128] sm:$0xff]
      %315 = vst [vmem:[%s239 + $0x128] sm:$0xff] %v314
      %v316 = vld [vmem:[%s238 + $0x130] sm:$0xff]
      %317 = vst [vmem:[%s239 + $0x130] sm:$0xff] %v316
      %v318 = vld [vmem:[%s238 + $0x138] sm:$0xff]
      %319 = vst [vmem:[%s239 + $0x138] sm:$0xff] %v318
      %v320 = vld [vmem:[%s238 + $0x140] sm:$0xff]
      %321 = vst [vmem:[%s239 + $0x140] sm:$0xff] %v320
      %v322 = vld [vmem:[%s238 + $0x148] sm:$0xff]
      %323 = vst [vmem:[%s239 + $0x148] sm:$0xff] %v322
      %v324 = vld [vmem:[%s238 + $0x150] sm:$0xff]
      %325 = vst [vmem:[%s239 + $0x150] sm:$0xff] %v324
      %v326 = vld [vmem:[%s238 + $0x158] sm:$0xff]
      %327 = vst [vmem:[%s239 + $0x158] sm:$0xff] %v326
      %v328 = vld [vmem:[%s238 + $0x160] sm:$0xff]
      %329 = vst [vmem:[%s239 + $0x160] sm:$0xff] %v328
      %v330 = vld [vmem:[%s238 + $0x168] sm:$0xff]
      %331 = vst [vmem:[%s239 + $0x168] sm:$0xff] %v330
      %v332 = vld [vmem:[%s238 + $0x170] sm:$0xff]
      %333 = vst [vmem:[%s239 + $0x170] sm:$0xff] %v332
      %v334 = vld [vmem:[%s238 + $0x178] sm:$0xff]
      %335 = vst [vmem:[%s239 + $0x178] sm:$0xff] %v334
      %v336 = vld [vmem:[%s238 + $0x180] sm:$0xff]
      %337 = vst [vmem:[%s239 + $0x180] sm:$0xff] %v336
      %v338 = vld [vmem:[%s238 + $0x188] sm:$0xff]
      %339 = vst [vmem:[%s239 + $0x188] sm:$0xff] %v338
      %v340 = vld [vmem:[%s238 + $0x190] sm:$0xff]
      %341 = vst [vmem:[%s239 + $0x190] sm:$0xff] %v340
      %v342 = vld [vmem:[%s238 + $0x198] sm:$0xff]
      %343 = vst [vmem:[%s239 + $0x198] sm:$0xff] %v342
      %v344 = vld [vmem:[%s238 + $0x1a0] sm:$0xff]
      %345 = vst [vmem:[%s239 + $0x1a0] sm:$0xff] %v344
      %v346 = vld [vmem:[%s238 + $0x1a8] sm:$0xff]
      %347 = vst [vmem:[%s239 + $0x1a8] sm:$0xff] %v346
      %v348 = vld [vmem:[%s238 + $0x1b0] sm:$0xff]
      %349 = vst [vmem:[%s239 + $0x1b0] sm:$0xff] %v348
      %v350 = vld [vmem:[%s238 + $0x1b8] sm:$0xff]
      %351 = vst [vmem:[%s239 + $0x1b8] sm:$0xff] %v350
      %v352 = vld [vmem:[%s238 + $0x1c0] sm:$0xff]
      %353 = vst [vmem:[%s239 + $0x1c0] sm:$0xff] %v352
      %v354 = vld [vmem:[%s238 + $0x1c8] sm:$0xff]
      %355 = vst [vmem:[%s239 + $0x1c8] sm:$0xff] %v354
      %v356 = vld [vmem:[%s238 + $0x1d0] sm:$0xff]
      %357 = vst [vmem:[%s239 + $0x1d0] sm:$0xff] %v356
      %v358 = vld [vmem:[%s238 + $0x1d8] sm:$0xff]
      %359 = vst [vmem:[%s239 + $0x1d8] sm:$0xff] %v358
      %v360 = vld [vmem:[%s238 + $0x1e0] sm:$0xff]
      %361 = vst [vmem:[%s239 + $0x1e0] sm:$0xff] %v360
      %v362 = vld [vmem:[%s238 + $0x1e8] sm:$0xff]
      %363 = vst [vmem:[%s239 + $0x1e8] sm:$0xff] %v362
      %v364 = vld [vmem:[%s238 + $0x1f0] sm:$0xff]
      %365 = vst [vmem:[%s239 + $0x1f0] sm:$0xff] %v364
      %v366 = vld [vmem:[%s238 + $0x1f8] sm:$0xff]
      %367 = vst [vmem:[%s239 + $0x1f8] sm:$0xff] %v366
      %v368 = vld [vmem:[%s238 + $0x200] sm:$0xff]
      %369 = vst [vmem:[%s239 + $0x200] sm:$0xff] %v368
      %v370 = vld [vmem:[%s238 + $0x208] sm:$0xff]
      %371 = vst [vmem:[%s239 + $0x208] sm:$0xff] %v370
      %v372 = vld [vmem:[%s238 + $0x210] sm:$0xff]
      %373 = vst [vmem:[%s239 + $0x210] sm:$0xff] %v372
      %v374 = vld [vmem:[%s238 + $0x218] sm:$0xff]
      %375 = vst [vmem:[%s239 + $0x218] sm:$0xff] %v374
      %v376 = vld [vmem:[%s238 + $0x220] sm:$0xff]
      %377 = vst [vmem:[%s239 + $0x220] sm:$0xff] %v376
      %v378 = vld [vmem:[%s238 + $0x228] sm:$0xff]
      %379 = vst [vmem:[%s239 + $0x228] sm:$0xff] %v378
      %v380 = vld [vmem:[%s238 + $0x230] sm:$0xff]
      %381 = vst [vmem:[%s239 + $0x230] sm:$0xff] %v380
      %v382 = vld [vmem:[%s238 + $0x238] sm:$0xff]
      %383 = vst [vmem:[%s239 + $0x238] sm:$0xff] %v382
      %v384 = vld [vmem:[%s238 + $0x240] sm:$0xff]
      %385 = vst [vmem:[%s239 + $0x240] sm:$0xff] %v384
      %v386 = vld [vmem:[%s238 + $0x248] sm:$0xff]
      %387 = vst [vmem:[%s239 + $0x248] sm:$0xff] %v386
      %v388 = vld [vmem:[%s238 + $0x250] sm:$0xff]
      %389 = vst [vmem:[%s239 + $0x250] sm:$0xff] %v388
      %v390 = vld [vmem:[%s238 + $0x258] sm:$0xff]
      %391 = vst [vmem:[%s239 + $0x258] sm:$0xff] %v390
      %v392 = vld [vmem:[%s238 + $0x260] sm:$0xff]
      %393 = vst [vmem:[%s239 + $0x260] sm:$0xff] %v392
      %v394 = vld [vmem:[%s238 + $0x268] sm:$0xff]
      %395 = vst [vmem:[%s239 + $0x268] sm:$0xff] %v394
      %v396 = vld [vmem:[%s238 + $0x270] sm:$0xff]
      %397 = vst [vmem:[%s239 + $0x270] sm:$0xff] %v396
      %v398 = vld [vmem:[%s238 + $0x278] sm:$0xff]
      %399 = vst [vmem:[%s239 + $0x278] sm:$0xff] %v398
      %v400 = vld [vmem:[%s238 + $0x280] sm:$0xff]
      %401 = vst [vmem:[%s239 + $0x280] sm:$0xff] %v400
      %v402 = vld [vmem:[%s238 + $0x288] sm:$0xff]
      %403 = vst [vmem:[%s239 + $0x288] sm:$0xff] %v402
      %v404 = vld [vmem:[%s238 + $0x290] sm:$0xff]
      %405 = vst [vmem:[%s239 + $0x290] sm:$0xff] %v404
      %v406 = vld [vmem:[%s238 + $0x298] sm:$0xff]
      %407 = vst [vmem:[%s239 + $0x298] sm:$0xff] %v406
      %v408 = vld [vmem:[%s238 + $0x2a0] sm:$0xff]
      %409 = vst [vmem:[%s239 + $0x2a0] sm:$0xff] %v408
      %v410 = vld [vmem:[%s238 + $0x2a8] sm:$0xff]
      %411 = vst [vmem:[%s239 + $0x2a8] sm:$0xff] %v410
      %v412 = vld [vmem:[%s238 + $0x2b0] sm:$0xff]
      %413 = vst [vmem:[%s239 + $0x2b0] sm:$0xff] %v412
      %v414 = vld [vmem:[%s238 + $0x2b8] sm:$0xff]
      %415 = vst [vmem:[%s239 + $0x2b8] sm:$0xff] %v414
      %v416 = vld [vmem:[%s238 + $0x2c0] sm:$0xff]
      %417 = vst [vmem:[%s239 + $0x2c0] sm:$0xff] %v416
      %v418 = vld [vmem:[%s238 + $0x2c8] sm:$0xff]
      %419 = vst [vmem:[%s239 + $0x2c8] sm:$0xff] %v418
    $region61: #{atari_network_forward.1} parent=55 // loop_footer
      %s237 = sadd.s32 1, %s233
    $region62: #{atari_network_forward.1} parent=55 // loop_footer_branch
      %232 = sbr.rel target = $region58
    $region63: #{atari_network_forward.1} parent=55 // loop_exit
      _
  $region56: #{atari_network_forward.1} parent=0 // pred_fallthru
    _
  // Predicated region
  $region64: #{atari_network_forward.1} parent=0 // pred_check
    _
  $region65: #{atari_network_forward.1} parent=0 // pred_check_branch
    %421 = sbr.rel target = $region67
  $region66: #{atari_network_forward.1} parent=0 // pred_region
    _
  $region67: #{atari_network_forward.1} parent=0 // pred_fallthru
    _
  // Predicated region
  $region68: #{atari_network_forward.1} parent=0 // pred_check
    _
  $region69: #{atari_network_forward.1} parent=0 // pred_check_branch
    %424 = sbr.rel (0) target = $region71
  $region70: #{atari_network_forward.1} parent=0 // pred_region
    %425 = vsyncadd %s229, 11520
  $region71: #{atari_network_forward.1} parent=0 // pred_fallthru
    _
  %s426 = scalar_lea.vmem %s5, 1440
  %s427 = scalar_lea.vmem [#allocation5], 1440
  %s428 = scalar_lea.sflag [#allocation6], 2
  // Predicated region
  $region72: #{atari_network_forward.1} parent=0 // pred_check
    _
  $region73: #{atari_network_forward.1} parent=0 // pred_check_branch
    %430 = sbr.rel (0) target = $region75
  $region74: #{atari_network_forward.1} parent=0 // pred_region
    loop: start=0, step=1, limit=1
    $region76: #{atari_network_forward.1} parent=74 // loop_pre_header
      _
    $region77: #{atari_network_forward.1} parent=74 // loop_header
      %s432 = sphi 0, %s436
      %p433 = scmp.ge.s32.totalorder %s432, 1
      %s437 = sphi %s426, %s426
      %s438 = sphi %s427, %s427
    $region78: #{atari_network_forward.1} parent=74 // loop_header_branch
      %435 = sbr.rel (%p433) target = $region82
    $region79: #{atari_network_forward.1} parent=74 // loop_body
      %v439 = vld [vmem:[%s437] sm:$0xff]
      %440 = vst [vmem:[%s438] sm:$0xff] %v439
      %v441 = vld [vmem:[%s437 + $0x8] sm:$0xff]
      %442 = vst [vmem:[%s438 + $0x8] sm:$0xff] %v441
      %v443 = vld [vmem:[%s437 + $0x10] sm:$0xff]
      %444 = vst [vmem:[%s438 + $0x10] sm:$0xff] %v443
      %v445 = vld [vmem:[%s437 + $0x18] sm:$0xff]
      %446 = vst [vmem:[%s438 + $0x18] sm:$0xff] %v445
      %v447 = vld [vmem:[%s437 + $0x20] sm:$0xff]
      %448 = vst [vmem:[%s438 + $0x20] sm:$0xff] %v447
      %v449 = vld [vmem:[%s437 + $0x28] sm:$0xff]
      %450 = vst [vmem:[%s438 + $0x28] sm:$0xff] %v449
      %v451 = vld [vmem:[%s437 + $0x30] sm:$0xff]
      %452 = vst [vmem:[%s438 + $0x30] sm:$0xff] %v451
      %v453 = vld [vmem:[%s437 + $0x38] sm:$0xff]
      %454 = vst [vmem:[%s438 + $0x38] sm:$0xff] %v453
      %v455 = vld [vmem:[%s437 + $0x40] sm:$0xff]
      %456 = vst [vmem:[%s438 + $0x40] sm:$0xff] %v455
      %v457 = vld [vmem:[%s437 + $0x48] sm:$0xff]
      %458 = vst [vmem:[%s438 + $0x48] sm:$0xff] %v457
      %v459 = vld [vmem:[%s437 + $0x50] sm:$0xff]
      %460 = vst [vmem:[%s438 + $0x50] sm:$0xff] %v459
      %v461 = vld [vmem:[%s437 + $0x58] sm:$0xff]
      %462 = vst [vmem:[%s438 + $0x58] sm:$0xff] %v461
      %v463 = vld [vmem:[%s437 + $0x60] sm:$0xff]
      %464 = vst [vmem:[%s438 + $0x60] sm:$0xff] %v463
      %v465 = vld [vmem:[%s437 + $0x68] sm:$0xff]
      %466 = vst [vmem:[%s438 + $0x68] sm:$0xff] %v465
      %v467 = vld [vmem:[%s437 + $0x70] sm:$0xff]
      %468 = vst [vmem:[%s438 + $0x70] sm:$0xff] %v467
      %v469 = vld [vmem:[%s437 + $0x78] sm:$0xff]
      %470 = vst [vmem:[%s438 + $0x78] sm:$0xff] %v469
      %v471 = vld [vmem:[%s437 + $0x80] sm:$0xff]
      %472 = vst [vmem:[%s438 + $0x80] sm:$0xff] %v471
      %v473 = vld [vmem:[%s437 + $0x88] sm:$0xff]
      %474 = vst [vmem:[%s438 + $0x88] sm:$0xff] %v473
      %v475 = vld [vmem:[%s437 + $0x90] sm:$0xff]
      %476 = vst [vmem:[%s438 + $0x90] sm:$0xff] %v475
      %v477 = vld [vmem:[%s437 + $0x98] sm:$0xff]
      %478 = vst [vmem:[%s438 + $0x98] sm:$0xff] %v477
      %v479 = vld [vmem:[%s437 + $0xa0] sm:$0xff]
      %480 = vst [vmem:[%s438 + $0xa0] sm:$0xff] %v479
      %v481 = vld [vmem:[%s437 + $0xa8] sm:$0xff]
      %482 = vst [vmem:[%s438 + $0xa8] sm:$0xff] %v481
      %v483 = vld [vmem:[%s437 + $0xb0] sm:$0xff]
      %484 = vst [vmem:[%s438 + $0xb0] sm:$0xff] %v483
      %v485 = vld [vmem:[%s437 + $0xb8] sm:$0xff]
      %486 = vst [vmem:[%s438 + $0xb8] sm:$0xff] %v485
      %v487 = vld [vmem:[%s437 + $0xc0] sm:$0xff]
      %488 = vst [vmem:[%s438 + $0xc0] sm:$0xff] %v487
      %v489 = vld [vmem:[%s437 + $0xc8] sm:$0xff]
      %490 = vst [vmem:[%s438 + $0xc8] sm:$0xff] %v489
      %v491 = vld [vmem:[%s437 + $0xd0] sm:$0xff]
      %492 = vst [vmem:[%s438 + $0xd0] sm:$0xff] %v491
      %v493 = vld [vmem:[%s437 + $0xd8] sm:$0xff]
      %494 = vst [vmem:[%s438 + $0xd8] sm:$0xff] %v493
      %v495 = vld [vmem:[%s437 + $0xe0] sm:$0xff]
      %496 = vst [vmem:[%s438 + $0xe0] sm:$0xff] %v495
      %v497 = vld [vmem:[%s437 + $0xe8] sm:$0xff]
      %498 = vst [vmem:[%s438 + $0xe8] sm:$0xff] %v497
      %v499 = vld [vmem:[%s437 + $0xf0] sm:$0xff]
      %500 = vst [vmem:[%s438 + $0xf0] sm:$0xff] %v499
      %v501 = vld [vmem:[%s437 + $0xf8] sm:$0xff]
      %502 = vst [vmem:[%s438 + $0xf8] sm:$0xff] %v501
      %v503 = vld [vmem:[%s437 + $0x100] sm:$0xff]
      %504 = vst [vmem:[%s438 + $0x100] sm:$0xff] %v503
      %v505 = vld [vmem:[%s437 + $0x108] sm:$0xff]
      %506 = vst [vmem:[%s438 + $0x108] sm:$0xff] %v505
      %v507 = vld [vmem:[%s437 + $0x110] sm:$0xff]
      %508 = vst [vmem:[%s438 + $0x110] sm:$0xff] %v507
      %v509 = vld [vmem:[%s437 + $0x118] sm:$0xff]
      %510 = vst [vmem:[%s438 + $0x118] sm:$0xff] %v509
      %v511 = vld [vmem:[%s437 + $0x120] sm:$0xff]
      %512 = vst [vmem:[%s438 + $0x120] sm:$0xff] %v511
      %v513 = vld [vmem:[%s437 + $0x128] sm:$0xff]
      %514 = vst [vmem:[%s438 + $0x128] sm:$0xff] %v513
      %v515 = vld [vmem:[%s437 + $0x130] sm:$0xff]
      %516 = vst [vmem:[%s438 + $0x130] sm:$0xff] %v515
      %v517 = vld [vmem:[%s437 + $0x138] sm:$0xff]
      %518 = vst [vmem:[%s438 + $0x138] sm:$0xff] %v517
      %v519 = vld [vmem:[%s437 + $0x140] sm:$0xff]
      %520 = vst [vmem:[%s438 + $0x140] sm:$0xff] %v519
      %v521 = vld [vmem:[%s437 + $0x148] sm:$0xff]
      %522 = vst [vmem:[%s438 + $0x148] sm:$0xff] %v521
      %v523 = vld [vmem:[%s437 + $0x150] sm:$0xff]
      %524 = vst [vmem:[%s438 + $0x150] sm:$0xff] %v523
      %v525 = vld [vmem:[%s437 + $0x158] sm:$0xff]
      %526 = vst [vmem:[%s438 + $0x158] sm:$0xff] %v525
      %v527 = vld [vmem:[%s437 + $0x160] sm:$0xff]
      %528 = vst [vmem:[%s438 + $0x160] sm:$0xff] %v527
      %v529 = vld [vmem:[%s437 + $0x168] sm:$0xff]
      %530 = vst [vmem:[%s438 + $0x168] sm:$0xff] %v529
      %v531 = vld [vmem:[%s437 + $0x170] sm:$0xff]
      %532 = vst [vmem:[%s438 + $0x170] sm:$0xff] %v531
      %v533 = vld [vmem:[%s437 + $0x178] sm:$0xff]
      %534 = vst [vmem:[%s438 + $0x178] sm:$0xff] %v533
      %v535 = vld [vmem:[%s437 + $0x180] sm:$0xff]
      %536 = vst [vmem:[%s438 + $0x180] sm:$0xff] %v535
      %v537 = vld [vmem:[%s437 + $0x188] sm:$0xff]
      %538 = vst [vmem:[%s438 + $0x188] sm:$0xff] %v537
      %v539 = vld [vmem:[%s437 + $0x190] sm:$0xff]
      %540 = vst [vmem:[%s438 + $0x190] sm:$0xff] %v539
      %v541 = vld [vmem:[%s437 + $0x198] sm:$0xff]
      %542 = vst [vmem:[%s438 + $0x198] sm:$0xff] %v541
      %v543 = vld [vmem:[%s437 + $0x1a0] sm:$0xff]
      %544 = vst [vmem:[%s438 + $0x1a0] sm:$0xff] %v543
      %v545 = vld [vmem:[%s437 + $0x1a8] sm:$0xff]
      %546 = vst [vmem:[%s438 + $0x1a8] sm:$0xff] %v545
      %v547 = vld [vmem:[%s437 + $0x1b0] sm:$0xff]
      %548 = vst [vmem:[%s438 + $0x1b0] sm:$0xff] %v547
      %v549 = vld [vmem:[%s437 + $0x1b8] sm:$0xff]
      %550 = vst [vmem:[%s438 + $0x1b8] sm:$0xff] %v549
      %v551 = vld [vmem:[%s437 + $0x1c0] sm:$0xff]
      %552 = vst [vmem:[%s438 + $0x1c0] sm:$0xff] %v551
      %v553 = vld [vmem:[%s437 + $0x1c8] sm:$0xff]
      %554 = vst [vmem:[%s438 + $0x1c8] sm:$0xff] %v553
      %v555 = vld [vmem:[%s437 + $0x1d0] sm:$0xff]
      %556 = vst [vmem:[%s438 + $0x1d0] sm:$0xff] %v555
      %v557 = vld [vmem:[%s437 + $0x1d8] sm:$0xff]
      %558 = vst [vmem:[%s438 + $0x1d8] sm:$0xff] %v557
      %v559 = vld [vmem:[%s437 + $0x1e0] sm:$0xff]
      %560 = vst [vmem:[%s438 + $0x1e0] sm:$0xff] %v559
      %v561 = vld [vmem:[%s437 + $0x1e8] sm:$0xff]
      %562 = vst [vmem:[%s438 + $0x1e8] sm:$0xff] %v561
      %v563 = vld [vmem:[%s437 + $0x1f0] sm:$0xff]
      %564 = vst [vmem:[%s438 + $0x1f0] sm:$0xff] %v563
      %v565 = vld [vmem:[%s437 + $0x1f8] sm:$0xff]
      %566 = vst [vmem:[%s438 + $0x1f8] sm:$0xff] %v565
      %v567 = vld [vmem:[%s437 + $0x200] sm:$0xff]
      %568 = vst [vmem:[%s438 + $0x200] sm:$0xff] %v567
      %v569 = vld [vmem:[%s437 + $0x208] sm:$0xff]
      %570 = vst [vmem:[%s438 + $0x208] sm:$0xff] %v569
      %v571 = vld [vmem:[%s437 + $0x210] sm:$0xff]
      %572 = vst [vmem:[%s438 + $0x210] sm:$0xff] %v571
      %v573 = vld [vmem:[%s437 + $0x218] sm:$0xff]
      %574 = vst [vmem:[%s438 + $0x218] sm:$0xff] %v573
      %v575 = vld [vmem:[%s437 + $0x220] sm:$0xff]
      %576 = vst [vmem:[%s438 + $0x220] sm:$0xff] %v575
      %v577 = vld [vmem:[%s437 + $0x228] sm:$0xff]
      %578 = vst [vmem:[%s438 + $0x228] sm:$0xff] %v577
      %v579 = vld [vmem:[%s437 + $0x230] sm:$0xff]
      %580 = vst [vmem:[%s438 + $0x230] sm:$0xff] %v579
      %v581 = vld [vmem:[%s437 + $0x238] sm:$0xff]
      %582 = vst [vmem:[%s438 + $0x238] sm:$0xff] %v581
      %v583 = vld [vmem:[%s437 + $0x240] sm:$0xff]
      %584 = vst [vmem:[%s438 + $0x240] sm:$0xff] %v583
      %v585 = vld [vmem:[%s437 + $0x248] sm:$0xff]
      %586 = vst [vmem:[%s438 + $0x248] sm:$0xff] %v585
      %v587 = vld [vmem:[%s437 + $0x250] sm:$0xff]
      %588 = vst [vmem:[%s438 + $0x250] sm:$0xff] %v587
      %v589 = vld [vmem:[%s437 + $0x258] sm:$0xff]
      %590 = vst [vmem:[%s438 + $0x258] sm:$0xff] %v589
      %v591 = vld [vmem:[%s437 + $0x260] sm:$0xff]
      %592 = vst [vmem:[%s438 + $0x260] sm:$0xff] %v591
      %v593 = vld [vmem:[%s437 + $0x268] sm:$0xff]
      %594 = vst [vmem:[%s438 + $0x268] sm:$0xff] %v593
      %v595 = vld [vmem:[%s437 + $0x270] sm:$0xff]
      %596 = vst [vmem:[%s438 + $0x270] sm:$0xff] %v595
      %v597 = vld [vmem:[%s437 + $0x278] sm:$0xff]
      %598 = vst [vmem:[%s438 + $0x278] sm:$0xff] %v597
      %v599 = vld [vmem:[%s437 + $0x280] sm:$0xff]
      %600 = vst [vmem:[%s438 + $0x280] sm:$0xff] %v599
      %v601 = vld [vmem:[%s437 + $0x288] sm:$0xff]
      %602 = vst [vmem:[%s438 + $0x288] sm:$0xff] %v601
      %v603 = vld [vmem:[%s437 + $0x290] sm:$0xff]
      %604 = vst [vmem:[%s438 + $0x290] sm:$0xff] %v603
      %v605 = vld [vmem:[%s437 + $0x298] sm:$0xff]
      %606 = vst [vmem:[%s438 + $0x298] sm:$0xff] %v605
      %v607 = vld [vmem:[%s437 + $0x2a0] sm:$0xff]
      %608 = vst [vmem:[%s438 + $0x2a0] sm:$0xff] %v607
      %v609 = vld [vmem:[%s437 + $0x2a8] sm:$0xff]
      %610 = vst [vmem:[%s438 + $0x2a8] sm:$0xff] %v609
      %v611 = vld [vmem:[%s437 + $0x2b0] sm:$0xff]
      %612 = vst [vmem:[%s438 + $0x2b0] sm:$0xff] %v611
      %v613 = vld [vmem:[%s437 + $0x2b8] sm:$0xff]
      %614 = vst [vmem:[%s438 + $0x2b8] sm:$0xff] %v613
      %v615 = vld [vmem:[%s437 + $0x2c0] sm:$0xff]
      %616 = vst [vmem:[%s438 + $0x2c0] sm:$0xff] %v615
      %v617 = vld [vmem:[%s437 + $0x2c8] sm:$0xff]
      %618 = vst [vmem:[%s438 + $0x2c8] sm:$0xff] %v617
    $region80: #{atari_network_forward.1} parent=74 // loop_footer
      %s436 = sadd.s32 1, %s432
    $region81: #{atari_network_forward.1} parent=74 // loop_footer_branch
      %431 = sbr.rel target = $region77
    $region82: #{atari_network_forward.1} parent=74 // loop_exit
      _
  $region75: #{atari_network_forward.1} parent=0 // pred_fallthru
    _
  // Predicated region
  $region83: #{atari_network_forward.1} parent=0 // pred_check
    _
  $region84: #{atari_network_forward.1} parent=0 // pred_check_branch
    %620 = sbr.rel target = $region86
  $region85: #{atari_network_forward.1} parent=0 // pred_region
    _
  $region86: #{atari_network_forward.1} parent=0 // pred_fallthru
    _
  // Predicated region
  $region87: #{atari_network_forward.1} parent=0 // pred_check
    _
  $region88: #{atari_network_forward.1} parent=0 // pred_check_branch
    %623 = sbr.rel (0) target = $region90
  $region89: #{atari_network_forward.1} parent=0 // pred_region
    %624 = vsyncadd %s428, 11520
  $region90: #{atari_network_forward.1} parent=0 // pred_fallthru
    _
  %s625 = scalar_lea.vmem %s5, 2160
  %s626 = scalar_lea.vmem [#allocation5], 2160
  %s627 = scalar_lea.sflag [#allocation6], 3
  // Predicated region
  $region91: #{atari_network_forward.1} parent=0 // pred_check
    _
  $region92: #{atari_network_forward.1} parent=0 // pred_check_branch
    %629 = sbr.rel (0) target = $region94
  $region93: #{atari_network_forward.1} parent=0 // pred_region
    loop: start=0, step=1, limit=1
    $region95: #{atari_network_forward.1} parent=93 // loop_pre_header
      _
    $region96: #{atari_network_forward.1} parent=93 // loop_header
      %s631 = sphi 0, %s635
      %p632 = scmp.ge.s32.totalorder %s631, 1
      %s636 = sphi %s625, %s625
      %s637 = sphi %s626, %s626
    $region97: #{atari_network_forward.1} parent=93 // loop_header_branch
      %634 = sbr.rel (%p632) target = $region101
    $region98: #{atari_network_forward.1} parent=93 // loop_body
      %v638 = vld [vmem:[%s636] sm:$0xff]
      %639 = vst [vmem:[%s637] sm:$0xff] %v638
      %v640 = vld [vmem:[%s636 + $0x8] sm:$0xff]
      %641 = vst [vmem:[%s637 + $0x8] sm:$0xff] %v640
      %v642 = vld [vmem:[%s636 + $0x10] sm:$0xff]
      %643 = vst [vmem:[%s637 + $0x10] sm:$0xff] %v642
      %v644 = vld [vmem:[%s636 + $0x18] sm:$0xff]
      %645 = vst [vmem:[%s637 + $0x18] sm:$0xff] %v644
      %v646 = vld [vmem:[%s636 + $0x20] sm:$0xff]
      %647 = vst [vmem:[%s637 + $0x20] sm:$0xff] %v646
      %v648 = vld [vmem:[%s636 + $0x28] sm:$0xff]
      %649 = vst [vmem:[%s637 + $0x28] sm:$0xff] %v648
      %v650 = vld [vmem:[%s636 + $0x30] sm:$0xff]
      %651 = vst [vmem:[%s637 + $0x30] sm:$0xff] %v650
      %v652 = vld [vmem:[%s636 + $0x38] sm:$0xff]
      %653 = vst [vmem:[%s637 + $0x38] sm:$0xff] %v652
      %v654 = vld [vmem:[%s636 + $0x40] sm:$0xff]
      %655 = vst [vmem:[%s637 + $0x40] sm:$0xff] %v654
      %v656 = vld [vmem:[%s636 + $0x48] sm:$0xff]
      %657 = vst [vmem:[%s637 + $0x48] sm:$0xff] %v656
      %v658 = vld [vmem:[%s636 + $0x50] sm:$0xff]
      %659 = vst [vmem:[%s637 + $0x50] sm:$0xff] %v658
      %v660 = vld [vmem:[%s636 + $0x58] sm:$0xff]
      %661 = vst [vmem:[%s637 + $0x58] sm:$0xff] %v660
      %v662 = vld [vmem:[%s636 + $0x60] sm:$0xff]
      %663 = vst [vmem:[%s637 + $0x60] sm:$0xff] %v662
      %v664 = vld [vmem:[%s636 + $0x68] sm:$0xff]
      %665 = vst [vmem:[%s637 + $0x68] sm:$0xff] %v664
      %v666 = vld [vmem:[%s636 + $0x70] sm:$0xff]
      %667 = vst [vmem:[%s637 + $0x70] sm:$0xff] %v666
      %v668 = vld [vmem:[%s636 + $0x78] sm:$0xff]
      %669 = vst [vmem:[%s637 + $0x78] sm:$0xff] %v668
      %v670 = vld [vmem:[%s636 + $0x80] sm:$0xff]
      %671 = vst [vmem:[%s637 + $0x80] sm:$0xff] %v670
      %v672 = vld [vmem:[%s636 + $0x88] sm:$0xff]
      %673 = vst [vmem:[%s637 + $0x88] sm:$0xff] %v672
      %v674 = vld [vmem:[%s636 + $0x90] sm:$0xff]
      %675 = vst [vmem:[%s637 + $0x90] sm:$0xff] %v674
      %v676 = vld [vmem:[%s636 + $0x98] sm:$0xff]
      %677 = vst [vmem:[%s637 + $0x98] sm:$0xff] %v676
      %v678 = vld [vmem:[%s636 + $0xa0] sm:$0xff]
      %679 = vst [vmem:[%s637 + $0xa0] sm:$0xff] %v678
      %v680 = vld [vmem:[%s636 + $0xa8] sm:$0xff]
      %681 = vst [vmem:[%s637 + $0xa8] sm:$0xff] %v680
      %v682 = vld [vmem:[%s636 + $0xb0] sm:$0xff]
      %683 = vst [vmem:[%s637 + $0xb0] sm:$0xff] %v682
      %v684 = vld [vmem:[%s636 + $0xb8] sm:$0xff]
      %685 = vst [vmem:[%s637 + $0xb8] sm:$0xff] %v684
      %v686 = vld [vmem:[%s636 + $0xc0] sm:$0xff]
      %687 = vst [vmem:[%s637 + $0xc0] sm:$0xff] %v686
      %v688 = vld [vmem:[%s636 + $0xc8] sm:$0xff]
      %689 = vst [vmem:[%s637 + $0xc8] sm:$0xff] %v688
      %v690 = vld [vmem:[%s636 + $0xd0] sm:$0xff]
      %691 = vst [vmem:[%s637 + $0xd0] sm:$0xff] %v690
      %v692 = vld [vmem:[%s636 + $0xd8] sm:$0xff]
      %693 = vst [vmem:[%s637 + $0xd8] sm:$0xff] %v692
      %v694 = vld [vmem:[%s636 + $0xe0] sm:$0xff]
      %695 = vst [vmem:[%s637 + $0xe0] sm:$0xff] %v694
      %v696 = vld [vmem:[%s636 + $0xe8] sm:$0xff]
      %697 = vst [vmem:[%s637 + $0xe8] sm:$0xff] %v696
      %v698 = vld [vmem:[%s636 + $0xf0] sm:$0xff]
      %699 = vst [vmem:[%s637 + $0xf0] sm:$0xff] %v698
      %v700 = vld [vmem:[%s636 + $0xf8] sm:$0xff]
      %701 = vst [vmem:[%s637 + $0xf8] sm:$0xff] %v700
      %v702 = vld [vmem:[%s636 + $0x100] sm:$0xff]
      %703 = vst [vmem:[%s637 + $0x100] sm:$0xff] %v702
      %v704 = vld [vmem:[%s636 + $0x108] sm:$0xff]
      %705 = vst [vmem:[%s637 + $0x108] sm:$0xff] %v704
      %v706 = vld [vmem:[%s636 + $0x110] sm:$0xff]
      %707 = vst [vmem:[%s637 + $0x110] sm:$0xff] %v706
      %v708 = vld [vmem:[%s636 + $0x118] sm:$0xff]
      %709 = vst [vmem:[%s637 + $0x118] sm:$0xff] %v708
      %v710 = vld [vmem:[%s636 + $0x120] sm:$0xff]
      %711 = vst [vmem:[%s637 + $0x120] sm:$0xff] %v710
      %v712 = vld [vmem:[%s636 + $0x128] sm:$0xff]
      %713 = vst [vmem:[%s637 + $0x128] sm:$0xff] %v712
      %v714 = vld [vmem:[%s636 + $0x130] sm:$0xff]
      %715 = vst [vmem:[%s637 + $0x130] sm:$0xff] %v714
      %v716 = vld [vmem:[%s636 + $0x138] sm:$0xff]
      %717 = vst [vmem:[%s637 + $0x138] sm:$0xff] %v716
      %v718 = vld [vmem:[%s636 + $0x140] sm:$0xff]
      %719 = vst [vmem:[%s637 + $0x140] sm:$0xff] %v718
      %v720 = vld [vmem:[%s636 + $0x148] sm:$0xff]
      %721 = vst [vmem:[%s637 + $0x148] sm:$0xff] %v720
      %v722 = vld [vmem:[%s636 + $0x150] sm:$0xff]
      %723 = vst [vmem:[%s637 + $0x150] sm:$0xff] %v722
      %v724 = vld [vmem:[%s636 + $0x158] sm:$0xff]
      %725 = vst [vmem:[%s637 + $0x158] sm:$0xff] %v724
      %v726 = vld [vmem:[%s636 + $0x160] sm:$0xff]
      %727 = vst [vmem:[%s637 + $0x160] sm:$0xff] %v726
      %v728 = vld [vmem:[%s636 + $0x168] sm:$0xff]
      %729 = vst [vmem:[%s637 + $0x168] sm:$0xff] %v728
      %v730 = vld [vmem:[%s636 + $0x170] sm:$0xff]
      %731 = vst [vmem:[%s637 + $0x170] sm:$0xff] %v730
      %v732 = vld [vmem:[%s636 + $0x178] sm:$0xff]
      %733 = vst [vmem:[%s637 + $0x178] sm:$0xff] %v732
      %v734 = vld [vmem:[%s636 + $0x180] sm:$0xff]
      %735 = vst [vmem:[%s637 + $0x180] sm:$0xff] %v734
      %v736 = vld [vmem:[%s636 + $0x188] sm:$0xff]
      %737 = vst [vmem:[%s637 + $0x188] sm:$0xff] %v736
      %v738 = vld [vmem:[%s636 + $0x190] sm:$0xff]
      %739 = vst [vmem:[%s637 + $0x190] sm:$0xff] %v738
      %v740 = vld [vmem:[%s636 + $0x198] sm:$0xff]
      %741 = vst [vmem:[%s637 + $0x198] sm:$0xff] %v740
      %v742 = vld [vmem:[%s636 + $0x1a0] sm:$0xff]
      %743 = vst [vmem:[%s637 + $0x1a0] sm:$0xff] %v742
      %v744 = vld [vmem:[%s636 + $0x1a8] sm:$0xff]
      %745 = vst [vmem:[%s637 + $0x1a8] sm:$0xff] %v744
      %v746 = vld [vmem:[%s636 + $0x1b0] sm:$0xff]
      %747 = vst [vmem:[%s637 + $0x1b0] sm:$0xff] %v746
      %v748 = vld [vmem:[%s636 + $0x1b8] sm:$0xff]
      %749 = vst [vmem:[%s637 + $0x1b8] sm:$0xff] %v748
      %v750 = vld [vmem:[%s636 + $0x1c0] sm:$0xff]
      %751 = vst [vmem:[%s637 + $0x1c0] sm:$0xff] %v750
      %v752 = vld [vmem:[%s636 + $0x1c8] sm:$0xff]
      %753 = vst [vmem:[%s637 + $0x1c8] sm:$0xff] %v752
      %v754 = vld [vmem:[%s636 + $0x1d0] sm:$0xff]
      %755 = vst [vmem:[%s637 + $0x1d0] sm:$0xff] %v754
      %v756 = vld [vmem:[%s636 + $0x1d8] sm:$0xff]
      %757 = vst [vmem:[%s637 + $0x1d8] sm:$0xff] %v756
      %v758 = vld [vmem:[%s636 + $0x1e0] sm:$0xff]
      %759 = vst [vmem:[%s637 + $0x1e0] sm:$0xff] %v758
      %v760 = vld [vmem:[%s636 + $0x1e8] sm:$0xff]
      %761 = vst [vmem:[%s637 + $0x1e8] sm:$0xff] %v760
      %v762 = vld [vmem:[%s636 + $0x1f0] sm:$0xff]
      %763 = vst [vmem:[%s637 + $0x1f0] sm:$0xff] %v762
      %v764 = vld [vmem:[%s636 + $0x1f8] sm:$0xff]
      %765 = vst [vmem:[%s637 + $0x1f8] sm:$0xff] %v764
      %v766 = vld [vmem:[%s636 + $0x200] sm:$0xff]
      %767 = vst [vmem:[%s637 + $0x200] sm:$0xff] %v766
      %v768 = vld [vmem:[%s636 + $0x208] sm:$0xff]
      %769 = vst [vmem:[%s637 + $0x208] sm:$0xff] %v768
      %v770 = vld [vmem:[%s636 + $0x210] sm:$0xff]
      %771 = vst [vmem:[%s637 + $0x210] sm:$0xff] %v770
      %v772 = vld [vmem:[%s636 + $0x218] sm:$0xff]
      %773 = vst [vmem:[%s637 + $0x218] sm:$0xff] %v772
      %v774 = vld [vmem:[%s636 + $0x220] sm:$0xff]
      %775 = vst [vmem:[%s637 + $0x220] sm:$0xff] %v774
      %v776 = vld [vmem:[%s636 + $0x228] sm:$0xff]
      %777 = vst [vmem:[%s637 + $0x228] sm:$0xff] %v776
      %v778 = vld [vmem:[%s636 + $0x230] sm:$0xff]
      %779 = vst [vmem:[%s637 + $0x230] sm:$0xff] %v778
      %v780 = vld [vmem:[%s636 + $0x238] sm:$0xff]
      %781 = vst [vmem:[%s637 + $0x238] sm:$0xff] %v780
      %v782 = vld [vmem:[%s636 + $0x240] sm:$0xff]
      %783 = vst [vmem:[%s637 + $0x240] sm:$0xff] %v782
      %v784 = vld [vmem:[%s636 + $0x248] sm:$0xff]
      %785 = vst [vmem:[%s637 + $0x248] sm:$0xff] %v784
      %v786 = vld [vmem:[%s636 + $0x250] sm:$0xff]
      %787 = vst [vmem:[%s637 + $0x250] sm:$0xff] %v786
      %v788 = vld [vmem:[%s636 + $0x258] sm:$0xff]
      %789 = vst [vmem:[%s637 + $0x258] sm:$0xff] %v788
      %v790 = vld [vmem:[%s636 + $0x260] sm:$0xff]
      %791 = vst [vmem:[%s637 + $0x260] sm:$0xff] %v790
      %v792 = vld [vmem:[%s636 + $0x268] sm:$0xff]
      %793 = vst [vmem:[%s637 + $0x268] sm:$0xff] %v792
      %v794 = vld [vmem:[%s636 + $0x270] sm:$0xff]
      %795 = vst [vmem:[%s637 + $0x270] sm:$0xff] %v794
      %v796 = vld [vmem:[%s636 + $0x278] sm:$0xff]
      %797 = vst [vmem:[%s637 + $0x278] sm:$0xff] %v796
      %v798 = vld [vmem:[%s636 + $0x280] sm:$0xff]
      %799 = vst [vmem:[%s637 + $0x280] sm:$0xff] %v798
      %v800 = vld [vmem:[%s636 + $0x288] sm:$0xff]
      %801 = vst [vmem:[%s637 + $0x288] sm:$0xff] %v800
      %v802 = vld [vmem:[%s636 + $0x290] sm:$0xff]
      %803 = vst [vmem:[%s637 + $0x290] sm:$0xff] %v802
      %v804 = vld [vmem:[%s636 + $0x298] sm:$0xff]
      %805 = vst [vmem:[%s637 + $0x298] sm:$0xff] %v804
      %v806 = vld [vmem:[%s636 + $0x2a0] sm:$0xff]
      %807 = vst [vmem:[%s637 + $0x2a0] sm:$0xff] %v806
      %v808 = vld [vmem:[%s636 + $0x2a8] sm:$0xff]
      %809 = vst [vmem:[%s637 + $0x2a8] sm:$0xff] %v808
      %v810 = vld [vmem:[%s636 + $0x2b0] sm:$0xff]
      %811 = vst [vmem:[%s637 + $0x2b0] sm:$0xff] %v810
      %v812 = vld [vmem:[%s636 + $0x2b8] sm:$0xff]
      %813 = vst [vmem:[%s637 + $0x2b8] sm:$0xff] %v812
      %v814 = vld [vmem:[%s636 + $0x2c0] sm:$0xff]
      %815 = vst [vmem:[%s637 + $0x2c0] sm:$0xff] %v814
      %v816 = vld [vmem:[%s636 + $0x2c8] sm:$0xff]
      %817 = vst [vmem:[%s637 + $0x2c8] sm:$0xff] %v816
    $region99: #{atari_network_forward.1} parent=93 // loop_footer
      %s635 = sadd.s32 1, %s631
    $region100: #{atari_network_forward.1} parent=93 // loop_footer_branch
      %630 = sbr.rel target = $region96
    $region101: #{atari_network_forward.1} parent=93 // loop_exit
      _
  $region94: #{atari_network_forward.1} parent=0 // pred_fallthru
    _
  // Predicated region
  $region102: #{atari_network_forward.1} parent=0 // pred_check
    _
  $region103: #{atari_network_forward.1} parent=0 // pred_check_branch
    %819 = sbr.rel target = $region105
  $region104: #{atari_network_forward.1} parent=0 // pred_region
    _
  $region105: #{atari_network_forward.1} parent=0 // pred_fallthru
    _
  // Predicated region
  $region106: #{atari_network_forward.1} parent=0 // pred_check
    _
  $region107: #{atari_network_forward.1} parent=0 // pred_check_branch
    %822 = sbr.rel (0) target = $region109
  $region108: #{atari_network_forward.1} parent=0 // pred_region
    %823 = vsyncadd %s627, 11520
  $region109: #{atari_network_forward.1} parent=0 // pred_fallthru
    _
  %v824 = vld [vmem:[%s2] sm:$0x1]
  %v825 = vld [vmem:[%s0] sm:$0xff]
  %v826 = vld [vmem:[%s0 + $0x8] sm:$0xff]
  %v827 = vld [vmem:[%s0 + $0x10] sm:$0xff]
  %v828 = vld [vmem:[%s0 + $0x18] sm:$0xff]
  %v829 = vld [vmem:[%s0 + $0x20] sm:$0xff]
  %v830 = vld [vmem:[%s0 + $0x28] sm:$0xff]
  %v831 = vld [vmem:[%s0 + $0x30] sm:$0xff]
  %v832 = vld [vmem:[%s0 + $0x38] sm:$0xff]
  %v833 = vld [vmem:[%s0 + $0x40] sm:$0xff]
  %v834 = vld [vmem:[%s0 + $0x48] sm:$0xff]
  %v835 = vld [vmem:[%s0 + $0x50] sm:$0xff]
  %v836 = vld [vmem:[%s0 + $0x58] sm:$0xff]
  %v837 = vld [vmem:[%s0 + $0x60] sm:$0xff]
  %v838 = vld [vmem:[%s0 + $0x68] sm:$0xff]
  %v839 = vld [vmem:[%s1] sm:$0xf]
  %v840 = vld [vmem:[%s1 + $0x4] sm:$0xf]
  %v841 = vld [vmem:[%s1 + $0x8] sm:$0xf]
  %v842 = vld [vmem:[%s1 + $0xc] sm:$0xf]
  %v843 = vld [vmem:[%s1 + $0x10] sm:$0xf]
  %v844 = vld [vmem:[%s1 + $0x14] sm:$0xf]
  %v845 = vld [vmem:[%s1 + $0x18] sm:$0xf]
  %v846 = vld [vmem:[%s1 + $0x1c] sm:$0xf]
  %v847 = vld [vmem:[%s1 + $0x20] sm:$0xf]
  %v848 = vld [vmem:[%s1 + $0x24] sm:$0xf]
  %v849 = vld [vmem:[%s1 + $0x28] sm:$0xf]
  %v850 = vld [vmem:[%s1 + $0x2c] sm:$0xf]
  %v851 = vld [vmem:[%s1 + $0x30] sm:$0xf]
  %v852 = vld [vmem:[%s1 + $0x34] sm:$0xf]
  %v853 = vld [vmem:[%s1 + $0x38] sm:$0xf]
  %v854 = vld [vmem:[%s1 + $0x3c] sm:$0xf]
  %v855 = vld [vmem:[%s1 + $0x40] sm:$0xf]
  %v856 = vld [vmem:[%s1 + $0x44] sm:$0xf]
  %v857 = vld [vmem:[%s1 + $0x48] sm:$0xf]
  %v858 = vld [vmem:[%s1 + $0x4c] sm:$0xf]
  %v859 = vld [vmem:[%s1 + $0x50] sm:$0xf]
  %v860 = vld [vmem:[%s1 + $0x54] sm:$0xf]
  %v861 = vld [vmem:[%s1 + $0x58] sm:$0xf]
  %v862 = vld [vmem:[%s1 + $0x5c] sm:$0xf]
  %v863 = vld [vmem:[%s1 + $0x60] sm:$0xf]
  %v864 = vld [vmem:[%s1 + $0x64] sm:$0xf]
  %v865 = vld [vmem:[%s1 + $0x68] sm:$0xf]
  %v866 = vld [vmem:[%s1 + $0x6c] sm:$0xf]
  %v867 = vld [vmem:[%s1 + $0x70] sm:$0xf]
  %v868 = vld [vmem:[%s1 + $0x74] sm:$0xf]
  %v869 = vld [vmem:[%s1 + $0x78] sm:$0xf]
  %v870 = vld [vmem:[%s1 + $0x7c] sm:$0xf]
  %v872 = vperm.slane %v824, 0
  %v888 = vunpack.c.l.b16 %v825
  %v889 = vunpack.c.h.b16 %v825
  %v890 = vunpack.c.l.b16 %v826
  %v891 = vunpack.c.h.b16 %v826
  %v892 = vunpack.c.l.b16 %v827
  %v893 = vunpack.c.h.b16 %v827
  %v894 = vunpack.c.l.b16 %v828
  %v895 = vunpack.c.h.b16 %v828
  %v896 = vunpack.c.l.b16 %v829
  %v897 = vunpack.c.h.b16 %v829
  %v898 = vunpack.c.l.b16 %v830
  %v899 = vunpack.c.h.b16 %v830
  %v900 = vunpack.c.l.b16 %v831
  %v901 = vunpack.c.h.b16 %v831
  %v902 = vunpack.c.l.b16 %v832
  %v903 = vunpack.c.h.b16 %v832
  %v904 = vunpack.c.l.b16 %v833
  %v905 = vunpack.c.h.b16 %v833
  %v906 = vunpack.c.l.b16 %v834
  %v907 = vunpack.c.h.b16 %v834
  %v908 = vunpack.c.l.b16 %v835
  %v909 = vunpack.c.h.b16 %v835
  %v910 = vunpack.c.l.b16 %v836
  %v911 = vunpack.c.h.b16 %v836
  %v912 = vunpack.c.l.b16 %v837
  %v913 = vunpack.c.h.b16 %v837
  %v914 = vunpack.c.l.b16 %v838
  %v915 = vunpack.c.h.b16 %v838
  %v916 = vpack.c.b16 %v890, %v888
  %v917 = vpack.c.b16 %v891, %v889
  %v918 = vpack.c.b16 %v894, %v892
  %v919 = vpack.c.b16 %v895, %v893
  %v920 = vpack.c.b16 %v898, %v896
  %v921 = vpack.c.b16 %v899, %v897
  %v922 = vpack.c.b16 %v902, %v900
  %v923 = vpack.c.b16 %v903, %v901
  %v924 = vpack.c.b16 %v906, %v904
  %v925 = vpack.c.b16 %v907, %v905
  %v926 = vpack.c.b16 %v910, %v908
  %v927 = vpack.c.b16 %v911, %v909
  %v928 = vpack.c.b16 %v914, %v912
  %v929 = vpack.c.b16 %v915, %v913
  %v976 = vunpack.c.l.b16 %v839
  %v977 = vunpack.c.l.b16 %v840
  %v978 = vunpack.c.l.b16 %v841
  %v979 = vunpack.c.l.b16 %v842
  %v980 = vunpack.c.l.b16 %v843
  %v981 = vunpack.c.l.b16 %v844
  %v982 = vunpack.c.l.b16 %v845
  %v983 = vunpack.c.l.b16 %v846
  %v984 = vunpack.c.l.b16 %v847
  %v985 = vunpack.c.l.b16 %v848
  %v986 = vunpack.c.l.b16 %v849
  %v987 = vunpack.c.l.b16 %v850
  %v988 = vunpack.c.l.b16 %v851
  %v989 = vunpack.c.l.b16 %v852
  %v990 = vunpack.c.l.b16 %v853
  %v991 = vunpack.c.l.b16 %v854
  %v992 = vunpack.c.l.b16 %v855
  %v993 = vunpack.c.l.b16 %v856
  %v994 = vunpack.c.l.b16 %v857
  %v995 = vunpack.c.l.b16 %v858
  %v996 = vunpack.c.l.b16 %v859
  %v997 = vunpack.c.l.b16 %v860
  %v998 = vunpack.c.l.b16 %v861
  %v999 = vunpack.c.l.b16 %v862
  %v1000 = vunpack.c.l.b16 %v863
  %v1001 = vunpack.c.l.b16 %v864
  %v1002 = vunpack.c.l.b16 %v865
  %v1003 = vunpack.c.l.b16 %v866
  %v1004 = vunpack.c.l.b16 %v867
  %v1005 = vunpack.c.l.b16 %v868
  %v1006 = vunpack.c.l.b16 %v869
  %v1007 = vunpack.c.l.b16 %v870
  %v1008 = vpack.c.b16 %v977, %v976
  %v1009 = vpack.c.b16 %v979, %v978
  %v1010 = vpack.c.b16 %v981, %v980
  %v1011 = vpack.c.b16 %v983, %v982
  %v1012 = vpack.c.b16 %v985, %v984
  %v1013 = vpack.c.b16 %v987, %v986
  %v1014 = vpack.c.b16 %v989, %v988
  %v1015 = vpack.c.b16 %v991, %v990
  %v1016 = vpack.c.b16 %v993, %v992
  %v1017 = vpack.c.b16 %v995, %v994
  %v1018 = vpack.c.b16 %v997, %v996
  %v1019 = vpack.c.b16 %v999, %v998
  %v1020 = vpack.c.b16 %v1001, %v1000
  %v1021 = vpack.c.b16 %v1003, %v1002
  %v1022 = vpack.c.b16 %v1005, %v1004
  %v1023 = vpack.c.b16 %v1007, %v1006
  %1040 = vmatpush.bf16.msra.mxu0 %v1015
  %1041 = vmatpush.bf16.msra.mxu0 %v1014
  %1042 = vmatpush.bf16.msra.mxu0 %v1013
  %1043 = vmatpush.bf16.msra.mxu0 %v1012
  %1044 = vmatpush.bf16.msra.mxu0 %v1011
  %1045 = vmatpush.bf16.msra.mxu0 %v1010
  %1046 = vmatpush.bf16.msra.mxu0 %v1009
  %1047 = vmatpush.bf16.msra.mxu0 %v1008
  %1048 = vmatmul.bf16.gmra.mxu0 %v916
  %v1049 = vpop.f32.mrf.mxu0
  %v1050 = vadd.f32 %v872, %v1049
  %v1051 = vpop.f32.mrf.mxu0
  %v1052 = vadd.f32 %v872, %v1051
  %1053 = vmatmul.bf16.gmra.mxu0 %v918
  %v1054 = vpop.f32.mrf.mxu0
  %v1055 = vadd.f32 %v872, %v1054
  %v1056 = vpop.f32.mrf.mxu0
  %v1057 = vadd.f32 %v872, %v1056
  %1058 = vmatmul.bf16.gmra.mxu0 %v920
  %v1059 = vpop.f32.mrf.mxu0
  %v1060 = vadd.f32 %v872, %v1059
  %v1061 = vpop.f32.mrf.mxu0
  %v1062 = vadd.f32 %v872, %v1061
  %1063 = vmatmul.bf16.gmra.mxu0 %v922
  %v1064 = vpop.f32.mrf.mxu0
  %v1065 = vadd.f32 %v872, %v1064
  %v1066 = vpop.f32.mrf.mxu0
  %v1067 = vadd.f32 %v872, %v1066
  %1068 = vmatmul.bf16.gmra.mxu0 %v924
  %v1069 = vpop.f32.mrf.mxu0
  %v1070 = vadd.f32 %v872, %v1069
  %v1071 = vpop.f32.mrf.mxu0
  %v1072 = vadd.f32 %v872, %v1071
  %1073 = vmatmul.bf16.gmra.mxu0 %v926
  %v1074 = vpop.f32.mrf.mxu0
  %v1075 = vadd.f32 %v872, %v1074
  %v1076 = vpop.f32.mrf.mxu0
  %v1077 = vadd.f32 %v872, %v1076
  %1078 = vmatmul.bf16.gmra.mxu0 %v928
  %v1079 = vpop.f32.mrf.mxu0
  %v1080 = vadd.f32 %v872, %v1079
  %v1081 = vpop.f32.mrf.mxu0
  %v1082 = vadd.f32 %v872, %v1081
  %1083 = vdwg.mxu0
  %1084 = vmatpush.bf16.msra.mxu0 %v1023
  %1085 = vmatpush.bf16.msra.mxu0 %v1022
  %1086 = vmatpush.bf16.msra.mxu0 %v1021
  %1087 = vmatpush.bf16.msra.mxu0 %v1020
  %1088 = vmatpush.bf16.msra.mxu0 %v1019
  %1089 = vmatpush.bf16.msra.mxu0 %v1018
  %1090 = vmatpush.bf16.msra.mxu0 %v1017
  %1091 = vmatpush.bf16.msra.mxu0 %v1016
  %1092 = vmatmul.bf16.gmra.mxu0 %v917
  %v1093 = vpop.f32.mrf.mxu0
  %v1094 = vadd.f32 %v1050, %v1093
  %v1095 = vpop.f32.mrf.mxu0
  %v1096 = vadd.f32 %v1052, %v1095
  %1097 = vmatmul.bf16.gmra.mxu0 %v919
  %v1098 = vpop.f32.mrf.mxu0
  %v1099 = vadd.f32 %v1055, %v1098
  %v1100 = vpop.f32.mrf.mxu0
  %v1101 = vadd.f32 %v1057, %v1100
  %1102 = vmatmul.bf16.gmra.mxu0 %v921
  %v1103 = vpop.f32.mrf.mxu0
  %v1104 = vadd.f32 %v1060, %v1103
  %v1105 = vpop.f32.mrf.mxu0
  %v1106 = vadd.f32 %v1062, %v1105
  %1107 = vmatmul.bf16.gmra.mxu0 %v923
  %v1108 = vpop.f32.mrf.mxu0
  %v1109 = vadd.f32 %v1065, %v1108
  %v1110 = vpop.f32.mrf.mxu0
  %v1111 = vadd.f32 %v1067, %v1110
  %1112 = vmatmul.bf16.gmra.mxu0 %v925
  %v1113 = vpop.f32.mrf.mxu0
  %v1114 = vadd.f32 %v1070, %v1113
  %v1115 = vpop.f32.mrf.mxu0
  %v1116 = vadd.f32 %v1072, %v1115
  %1117 = vmatmul.bf16.gmra.mxu0 %v927
  %v1118 = vpop.f32.mrf.mxu0
  %v1119 = vadd.f32 %v1075, %v1118
  %v1120 = vpop.f32.mrf.mxu0
  %v1121 = vadd.f32 %v1077, %v1120
  %1122 = vmatmul.bf16.gmra.mxu0 %v929
  %v1123 = vpop.f32.mrf.mxu0
  %v1124 = vadd.f32 %v1080, %v1123
  %v1125 = vpop.f32.mrf.mxu0
  %v1126 = vadd.f32 %v1082, %v1125
  %1127 = vdwg.mxu0
  %v1128 = vmax.f32 %v1094, 0.0
  %v1129 = vmax.f32 %v1096, 0.0
  %v1130 = vmax.f32 %v1099, 0.0
  %v1131 = vmax.f32 %v1101, 0.0
  %v1132 = vmax.f32 %v1104, 0.0
  %v1133 = vmax.f32 %v1106, 0.0
  %v1134 = vmax.f32 %v1109, 0.0
  %v1135 = vmax.f32 %v1111, 0.0
  %v1136 = vmax.f32 %v1114, 0.0
  %v1137 = vmax.f32 %v1116, 0.0
  %v1138 = vmax.f32 %v1119, 0.0
  %v1139 = vmax.f32 %v1121, 0.0
  %v1140 = vmax.f32 %v1124, 0.0
  %v1141 = vmax.f32 %v1126, 0.0
  %vm1142 = vcmask 130048
  %1143 = vst.msk [vmem:[#allocation2] sm:$0xff] %vm1142, %v1128
  %1144 = vst.msk [vmem:[#allocation2 + $0x8] sm:$0xff] %vm1142, %v1129
  %1145 = vst.msk [vmem:[#allocation2 + $0x10] sm:$0xff] %vm1142, %v1130
  %1146 = vst.msk [vmem:[#allocation2 + $0x18] sm:$0xff] %vm1142, %v1131
  %1147 = vst.msk [vmem:[#allocation2 + $0x20] sm:$0xff] %vm1142, %v1132
  %1148 = vst.msk [vmem:[#allocation2 + $0x28] sm:$0xff] %vm1142, %v1133
  %1149 = vst.msk [vmem:[#allocation2 + $0x30] sm:$0xff] %vm1142, %v1134
  %1150 = vst.msk [vmem:[#allocation2 + $0x38] sm:$0xff] %vm1142, %v1135
  %1151 = vst.msk [vmem:[#allocation2 + $0x40] sm:$0xff] %vm1142, %v1136
  %1152 = vst.msk [vmem:[#allocation2 + $0x48] sm:$0xff] %vm1142, %v1137
  %1153 = vst.msk [vmem:[#allocation2 + $0x50] sm:$0xff] %vm1142, %v1138
  %1154 = vst.msk [vmem:[#allocation2 + $0x58] sm:$0xff] %vm1142, %v1139
  %1155 = vst.msk [vmem:[#allocation2 + $0x60] sm:$0xff] %vm1142, %v1140
  %1156 = vst.msk [vmem:[#allocation2 + $0x68] sm:$0xff] %vm1142, %v1141
  %v1157 = vld [vmem:[%s0 + $0x70] sm:$0xff]
  %v1158 = vld [vmem:[%s0 + $0x78] sm:$0xff]
  %v1159 = vld [vmem:[%s0 + $0x80] sm:$0xff]
  %v1160 = vld [vmem:[%s0 + $0x88] sm:$0xff]
  %v1161 = vld [vmem:[%s0 + $0x90] sm:$0xff]
  %v1162 = vld [vmem:[%s0 + $0x98] sm:$0xff]
  %v1163 = vld [vmem:[%s0 + $0xa0] sm:$0xff]
  %v1164 = vld [vmem:[%s0 + $0xa8] sm:$0xff]
  %v1165 = vld [vmem:[%s0 + $0xb0] sm:$0xff]
  %v1166 = vld [vmem:[%s0 + $0xb8] sm:$0xff]
  %v1167 = vld [vmem:[%s0 + $0xc0] sm:$0xff]
  %v1168 = vld [vmem:[%s0 + $0xc8] sm:$0xff]
  %v1169 = vld [vmem:[%s0 + $0xd0] sm:$0xff]
  %v1170 = vld [vmem:[%s0 + $0xd8] sm:$0xff]
  %v1171 = vld [vmem:[%s1] sm:$0xf]
  %v1172 = vld [vmem:[%s1 + $0x4] sm:$0xf]
  %v1173 = vld [vmem:[%s1 + $0x8] sm:$0xf]
  %v1174 = vld [vmem:[%s1 + $0xc] sm:$0xf]
  %v1175 = vld [vmem:[%s1 + $0x10] sm:$0xf]
  %v1176 = vld [vmem:[%s1 + $0x14] sm:$0xf]
  %v1177 = vld [vmem:[%s1 + $0x18] sm:$0xf]
  %v1178 = vld [vmem:[%s1 + $0x1c] sm:$0xf]
  %v1179 = vld [vmem:[%s1 + $0x20] sm:$0xf]
  %v1180 = vld [vmem:[%s1 + $0x24] sm:$0xf]
  %v1181 = vld [vmem:[%s1 + $0x28] sm:$0xf]
  %v1182 = vld [vmem:[%s1 + $0x2c] sm:$0xf]
  %v1183 = vld [vmem:[%s1 + $0x30] sm:$0xf]
  %v1184 = vld [vmem:[%s1 + $0x34] sm:$0xf]
  %v1185 = vld [vmem:[%s1 + $0x38] sm:$0xf]
  %v1186 = vld [vmem:[%s1 + $0x3c] sm:$0xf]
  %v1187 = vld [vmem:[%s1 + $0x40] sm:$0xf]
  %v1188 = vld [vmem:[%s1 + $0x44] sm:$0xf]
  %v1189 = vld [vmem:[%s1 + $0x48] sm:$0xf]
  %v1190 = vld [vmem:[%s1 + $0x4c] sm:$0xf]
  %v1191 = vld [vmem:[%s1 + $0x50] sm:$0xf]
  %v1192 = vld [vmem:[%s1 + $0x54] sm:$0xf]
  %v1193 = vld [vmem:[%s1 + $0x58] sm:$0xf]
  %v1194 = vld [vmem:[%s1 + $0x5c] sm:$0xf]
  %v1195 = vld [vmem:[%s1 + $0x60] sm:$0xf]
  %v1196 = vld [vmem:[%s1 + $0x64] sm:$0xf]
  %v1197 = vld [vmem:[%s1 + $0x68] sm:$0xf]
  %v1198 = vld [vmem:[%s1 + $0x6c] sm:$0xf]
  %v1199 = vld [vmem:[%s1 + $0x70] sm:$0xf]
  %v1200 = vld [vmem:[%s1 + $0x74] sm:$0xf]
  %v1201 = vld [vmem:[%s1 + $0x78] sm:$0xf]
  %v1202 = vld [vmem:[%s1 + $0x7c] sm:$0xf]
  %v1217 = vunpack.c.l.b16 %v1157
  %v1218 = vunpack.c.h.b16 %v1157
  %v1219 = vunpack.c.l.b16 %v1158
  %v1220 = vunpack.c.h.b16 %v1158
  %v1221 = vunpack.c.l.b16 %v1159
  %v1222 = vunpack.c.h.b16 %v1159
  %v1223 = vunpack.c.l.b16 %v1160
  %v1224 = vunpack.c.h.b16 %v1160
  %v1225 = vunpack.c.l.b16 %v1161
  %v1226 = vunpack.c.h.b16 %v1161
  %v1227 = vunpack.c.l.b16 %v1162
  %v1228 = vunpack.c.h.b16 %v1162
  %v1229 = vunpack.c.l.b16 %v1163
  %v1230 = vunpack.c.h.b16 %v1163
  %v1231 = vunpack.c.l.b16 %v1164
  %v1232 = vunpack.c.h.b16 %v1164
  %v1233 = vunpack.c.l.b16 %v1165
  %v1234 = vunpack.c.h.b16 %v1165
  %v1235 = vunpack.c.l.b16 %v1166
  %v1236 = vunpack.c.h.b16 %v1166
  %v1237 = vunpack.c.l.b16 %v1167
  %v1238 = vunpack.c.h.b16 %v1167
  %v1239 = vunpack.c.l.b16 %v1168
  %v1240 = vunpack.c.h.b16 %v1168
  %v1241 = vunpack.c.l.b16 %v1169
  %v1242 = vunpack.c.h.b16 %v1169
  %v1243 = vunpack.c.l.b16 %v1170
  %v1244 = vunpack.c.h.b16 %v1170
  %v1245 = vpack.c.b16 %v1219, %v1217
  %v1246 = vpack.c.b16 %v1220, %v1218
  %v1247 = vpack.c.b16 %v1223, %v1221
  %v1248 = vpack.c.b16 %v1224, %v1222
  %v1249 = vpack.c.b16 %v1227, %v1225
  %v1250 = vpack.c.b16 %v1228, %v1226
  %v1251 = vpack.c.b16 %v1231, %v1229
  %v1252 = vpack.c.b16 %v1232, %v1230
  %v1253 = vpack.c.b16 %v1235, %v1233
  %v1254 = vpack.c.b16 %v1236, %v1234
  %v1255 = vpack.c.b16 %v1239, %v1237
  %v1256 = vpack.c.b16 %v1240, %v1238
  %v1257 = vpack.c.b16 %v1243, %v1241
  %v1258 = vpack.c.b16 %v1244, %v1242
  %v1305 = vunpack.c.l.b16 %v1171
  %v1306 = vunpack.c.l.b16 %v1172
  %v1307 = vunpack.c.l.b16 %v1173
  %v1308 = vunpack.c.l.b16 %v1174
  %v1309 = vunpack.c.l.b16 %v1175
  %v1310 = vunpack.c.l.b16 %v1176
  %v1311 = vunpack.c.l.b16 %v1177
  %v1312 = vunpack.c.l.b16 %v1178
  %v1313 = vunpack.c.l.b16 %v1179
  %v1314 = vunpack.c.l.b16 %v1180
  %v1315 = vunpack.c.l.b16 %v1181
  %v1316 = vunpack.c.l.b16 %v1182
  %v1317 = vunpack.c.l.b16 %v1183
  %v1318 = vunpack.c.l.b16 %v1184
  %v1319 = vunpack.c.l.b16 %v1185
  %v1320 = vunpack.c.l.b16 %v1186
  %v1321 = vunpack.c.l.b16 %v1187
  %v1322 = vunpack.c.l.b16 %v1188
  %v1323 = vunpack.c.l.b16 %v1189
  %v1324 = vunpack.c.l.b16 %v1190
  %v1325 = vunpack.c.l.b16 %v1191
  %v1326 = vunpack.c.l.b16 %v1192
  %v1327 = vunpack.c.l.b16 %v1193
  %v1328 = vunpack.c.l.b16 %v1194
  %v1329 = vunpack.c.l.b16 %v1195
  %v1330 = vunpack.c.l.b16 %v1196
  %v1331 = vunpack.c.l.b16 %v1197
  %v1332 = vunpack.c.l.b16 %v1198
  %v1333 = vunpack.c.l.b16 %v1199
  %v1334 = vunpack.c.l.b16 %v1200
  %v1335 = vunpack.c.l.b16 %v1201
  %v1336 = vunpack.c.l.b16 %v1202
  %v1337 = vpack.c.b16 %v1306, %v1305
  %v1338 = vpack.c.b16 %v1308, %v1307
  %v1339 = vpack.c.b16 %v1310, %v1309
  %v1340 = vpack.c.b16 %v1312, %v1311
  %v1341 = vpack.c.b16 %v1314, %v1313
  %v1342 = vpack.c.b16 %v1316, %v1315
  %v1343 = vpack.c.b16 %v1318, %v1317
  %v1344 = vpack.c.b16 %v1320, %v1319
  %v1345 = vpack.c.b16 %v1322, %v1321
  %v1346 = vpack.c.b16 %v1324, %v1323
  %v1347 = vpack.c.b16 %v1326, %v1325
  %v1348 = vpack.c.b16 %v1328, %v1327
  %v1349 = vpack.c.b16 %v1330, %v1329
  %v1350 = vpack.c.b16 %v1332, %v1331
  %v1351 = vpack.c.b16 %v1334, %v1333
  %v1352 = vpack.c.b16 %v1336, %v1335
  %1369 = vmatpush.bf16.msra.mxu0 %v1344
  %1370 = vmatpush.bf16.msra.mxu0 %v1343
  %1371 = vmatpush.bf16.msra.mxu0 %v1342
  %1372 = vmatpush.bf16.msra.mxu0 %v1341
  %1373 = vmatpush.bf16.msra.mxu0 %v1340
  %1374 = vmatpush.bf16.msra.mxu0 %v1339
  %1375 = vmatpush.bf16.msra.mxu0 %v1338
  %1376 = vmatpush.bf16.msra.mxu0 %v1337
  %1377 = vmatmul.bf16.gmra.mxu0 %v1245
  %v1378 = vpop.f32.mrf.mxu0
  %v1379 = vadd.f32 %v872, %v1378
  %v1380 = vpop.f32.mrf.mxu0
  %v1381 = vadd.f32 %v872, %v1380
  %1382 = vmatmul.bf16.gmra.mxu0 %v1247
  %v1383 = vpop.f32.mrf.mxu0
  %v1384 = vadd.f32 %v872, %v1383
  %v1385 = vpop.f32.mrf.mxu0
  %v1386 = vadd.f32 %v872, %v1385
  %1387 = vmatmul.bf16.gmra.mxu0 %v1249
  %v1388 = vpop.f32.mrf.mxu0
  %v1389 = vadd.f32 %v872, %v1388
  %v1390 = vpop.f32.mrf.mxu0
  %v1391 = vadd.f32 %v872, %v1390
  %1392 = vmatmul.bf16.gmra.mxu0 %v1251
  %v1393 = vpop.f32.mrf.mxu0
  %v1394 = vadd.f32 %v872, %v1393
  %v1395 = vpop.f32.mrf.mxu0
  %v1396 = vadd.f32 %v872, %v1395
  %1397 = vmatmul.bf16.gmra.mxu0 %v1253
  %v1398 = vpop.f32.mrf.mxu0
  %v1399 = vadd.f32 %v872, %v1398
  %v1400 = vpop.f32.mrf.mxu0
  %v1401 = vadd.f32 %v872, %v1400
  %1402 = vmatmul.bf16.gmra.mxu0 %v1255
  %v1403 = vpop.f32.mrf.mxu0
  %v1404 = vadd.f32 %v872, %v1403
  %v1405 = vpop.f32.mrf.mxu0
  %v1406 = vadd.f32 %v872, %v1405
  %1407 = vmatmul.bf16.gmra.mxu0 %v1257
  %v1408 = vpop.f32.mrf.mxu0
  %v1409 = vadd.f32 %v872, %v1408
  %v1410 = vpop.f32.mrf.mxu0
  %v1411 = vadd.f32 %v872, %v1410
  %1412 = vdwg.mxu0
  %1413 = vmatpush.bf16.msra.mxu0 %v1352
  %1414 = vmatpush.bf16.msra.mxu0 %v1351
  %1415 = vmatpush.bf16.msra.mxu0 %v1350
  %1416 = vmatpush.bf16.msra.mxu0 %v1349
  %1417 = vmatpush.bf16.msra.mxu0 %v1348
  %1418 = vmatpush.bf16.msra.mxu0 %v1347
  %1419 = vmatpush.bf16.msra.mxu0 %v1346
  %1420 = vmatpush.bf16.msra.mxu0 %v1345
  %1421 = vmatmul.bf16.gmra.mxu0 %v1246
  %v1422 = vpop.f32.mrf.mxu0
  %v1423 = vadd.f32 %v1379, %v1422
  %v1424 = vpop.f32.mrf.mxu0
  %v1425 = vadd.f32 %v1381, %v1424
  %1426 = vmatmul.bf16.gmra.mxu0 %v1248
  %v1427 = vpop.f32.mrf.mxu0
  %v1428 = vadd.f32 %v1384, %v1427
  %v1429 = vpop.f32.mrf.mxu0
  %v1430 = vadd.f32 %v1386, %v1429
  %1431 = vmatmul.bf16.gmra.mxu0 %v1250
  %v1432 = vpop.f32.mrf.mxu0
  %v1433 = vadd.f32 %v1389, %v1432
  %v1434 = vpop.f32.mrf.mxu0
  %v1435 = vadd.f32 %v1391, %v1434
  %1436 = vmatmul.bf16.gmra.mxu0 %v1252
  %v1437 = vpop.f32.mrf.mxu0
  %v1438 = vadd.f32 %v1394, %v1437
  %v1439 = vpop.f32.mrf.mxu0
  %v1440 = vadd.f32 %v1396, %v1439
  %1441 = vmatmul.bf16.gmra.mxu0 %v1254
  %v1442 = vpop.f32.mrf.mxu0
  %v1443 = vadd.f32 %v1399, %v1442
  %v1444 = vpop.f32.mrf.mxu0
  %v1445 = vadd.f32 %v1401, %v1444
  %1446 = vmatmul.bf16.gmra.mxu0 %v1256
  %v1447 = vpop.f32.mrf.mxu0
  %v1448 = vadd.f32 %v1404, %v1447
  %v1449 = vpop.f32.mrf.mxu0
  %v1450 = vadd.f32 %v1406, %v1449
  %1451 = vmatmul.bf16.gmra.mxu0 %v1258
  %v1452 = vpop.f32.mrf.mxu0
  %v1453 = vadd.f32 %v1409, %v1452
  %v1454 = vpop.f32.mrf.mxu0
  %v1455 = vadd.f32 %v1411, %v1454
  %1456 = vdwg.mxu0
  %v1457 = vmax.f32 %v1423, 0.0
  %v1458 = vmax.f32 %v1425, 0.0
  %v1459 = vmax.f32 %v1428, 0.0
  %v1460 = vmax.f32 %v1430, 0.0
  %v1461 = vmax.f32 %v1433, 0.0
  %v1462 = vmax.f32 %v1435, 0.0
  %v1463 = vmax.f32 %v1438, 0.0
  %v1464 = vmax.f32 %v1440, 0.0
  %v1465 = vmax.f32 %v1443, 0.0
  %v1466 = vmax.f32 %v1445, 0.0
  %v1467 = vmax.f32 %v1448, 0.0
  %v1468 = vmax.f32 %v1450, 0.0
  %v1469 = vmax.f32 %v1453, 0.0
  %v1470 = vmax.f32 %v1455, 0.0
  %1485 = vrot.lane.b32.xlu0 %v1457, 16
  %v1486 = vpop.permute.xlu0 %1485
  %1487 = vrot.lane.b32.xlu0 %v1458, 16
  %v1488 = vpop.permute.xlu0 %1487
  %1489 = vrot.lane.b32.xlu0 %v1459, 16
  %v1490 = vpop.permute.xlu0 %1489
  %1491 = vrot.lane.b32.xlu0 %v1460, 16
  %v1492 = vpop.permute.xlu0 %1491
  %1493 = vrot.lane.b32.xlu0 %v1461, 16
  %v1494 = vpop.permute.xlu0 %1493
  %1495 = vrot.lane.b32.xlu0 %v1462, 16
  %v1496 = vpop.permute.xlu0 %1495
  %1497 = vrot.lane.b32.xlu0 %v1463, 16
  %v1498 = vpop.permute.xlu0 %1497
  %1499 = vrot.lane.b32.xlu0 %v1464, 16
  %v1500 = vpop.permute.xlu0 %1499
  %1501 = vrot.lane.b32.xlu0 %v1465, 16
  %v1502 = vpop.permute.xlu0 %1501
  %1503 = vrot.lane.b32.xlu0 %v1466, 16
  %v1504 = vpop.permute.xlu0 %1503
  %1505 = vrot.lane.b32.xlu0 %v1467, 16
  %v1506 = vpop.permute.xlu0 %1505
  %1507 = vrot.lane.b32.xlu0 %v1468, 16
  %v1508 = vpop.permute.xlu0 %1507
  %1509 = vrot.lane.b32.xlu0 %v1469, 16
  %v1510 = vpop.permute.xlu0 %1509
  %1511 = vrot.lane.b32.xlu0 %v1470, 16
  %v1512 = vpop.permute.xlu0 %1511
  %vm1527 = vcmask 261248
  %1528 = vst.msk [vmem:[#allocation2] sm:$0xff] %vm1527, %v1486
  %1529 = vst.msk [vmem:[#allocation2 + $0x8] sm:$0xff] %vm1527, %v1488
  %1530 = vst.msk [vmem:[#allocation2 + $0x10] sm:$0xff] %vm1527, %v1490
  %1531 = vst.msk [vmem:[#allocation2 + $0x18] sm:$0xff] %vm1527, %v1492
  %1532 = vst.msk [vmem:[#allocation2 + $0x20] sm:$0xff] %vm1527, %v1494
  %1533 = vst.msk [vmem:[#allocation2 + $0x28] sm:$0xff] %vm1527, %v1496
  %1534 = vst.msk [vmem:[#allocation2 + $0x30] sm:$0xff] %vm1527, %v1498
  %1535 = vst.msk [vmem:[#allocation2 + $0x38] sm:$0xff] %vm1527, %v1500
  %1536 = vst.msk [vmem:[#allocation2 + $0x40] sm:$0xff] %vm1527, %v1502
  %1537 = vst.msk [vmem:[#allocation2 + $0x48] sm:$0xff] %vm1527, %v1504
  %1538 = vst.msk [vmem:[#allocation2 + $0x50] sm:$0xff] %vm1527, %v1506
  %1539 = vst.msk [vmem:[#allocation2 + $0x58] sm:$0xff] %vm1527, %v1508
  %1540 = vst.msk [vmem:[#allocation2 + $0x60] sm:$0xff] %vm1527, %v1510
  %1541 = vst.msk [vmem:[#allocation2 + $0x68] sm:$0xff] %vm1527, %v1512
  %v1542 = vld [vmem:[%s0 + $0xe0] sm:$0xff]
  %v1543 = vld [vmem:[%s0 + $0xe8] sm:$0xff]
  %v1544 = vld [vmem:[%s0 + $0xf0] sm:$0xff]
  %v1545 = vld [vmem:[%s0 + $0xf8] sm:$0xff]
  %v1546 = vld [vmem:[%s0 + $0x100] sm:$0xff]
  %v1547 = vld [vmem:[%s0 + $0x108] sm:$0xff]
  %v1548 = vld [vmem:[%s0 + $0x110] sm:$0xff]
  %v1549 = vld [vmem:[%s0 + $0x118] sm:$0xff]
  %v1550 = vld [vmem:[%s0 + $0x120] sm:$0xff]
  %v1551 = vld [vmem:[%s0 + $0x128] sm:$0xff]
  %v1552 = vld [vmem:[%s0 + $0x130] sm:$0xff]
  %v1553 = vld [vmem:[%s0 + $0x138] sm:$0xff]
  %v1554 = vld [vmem:[%s0 + $0x140] sm:$0xff]
  %v1555 = vld [vmem:[%s0 + $0x148] sm:$0xff]
  %v1556 = vld [vmem:[%s1] sm:$0xf]
  %v1557 = vld [vmem:[%s1 + $0x4] sm:$0xf]
  %v1558 = vld [vmem:[%s1 + $0x8] sm:$0xf]
  %v1559 = vld [vmem:[%s1 + $0xc] sm:$0xf]
  %v1560 = vld [vmem:[%s1 + $0x10] sm:$0xf]
  %v1561 = vld [vmem:[%s1 + $0x14] sm:$0xf]
  %v1562 = vld [vmem:[%s1 + $0x18] sm:$0xf]
  %v1563 = vld [vmem:[%s1 + $0x1c] sm:$0xf]
  %v1564 = vld [vmem:[%s1 + $0x20] sm:$0xf]
  %v1565 = vld [vmem:[%s1 + $0x24] sm:$0xf]
  %v1566 = vld [vmem:[%s1 + $0x28] sm:$0xf]
  %v1567 = vld [vmem:[%s1 + $0x2c] sm:$0xf]
  %v1568 = vld [vmem:[%s1 + $0x30] sm:$0xf]
  %v1569 = vld [vmem:[%s1 + $0x34] sm:$0xf]
  %v1570 = vld [vmem:[%s1 + $0x38] sm:$0xf]
  %v1571 = vld [vmem:[%s1 + $0x3c] sm:$0xf]
  %v1572 = vld [vmem:[%s1 + $0x40] sm:$0xf]
  %v1573 = vld [vmem:[%s1 + $0x44] sm:$0xf]
  %v1574 = vld [vmem:[%s1 + $0x48] sm:$0xf]
  %v1575 = vld [vmem:[%s1 + $0x4c] sm:$0xf]
  %v1576 = vld [vmem:[%s1 + $0x50] sm:$0xf]
  %v1577 = vld [vmem:[%s1 + $0x54] sm:$0xf]
  %v1578 = vld [vmem:[%s1 + $0x58] sm:$0xf]
  %v1579 = vld [vmem:[%s1 + $0x5c] sm:$0xf]
  %v1580 = vld [vmem:[%s1 + $0x60] sm:$0xf]
  %v1581 = vld [vmem:[%s1 + $0x64] sm:$0xf]
  %v1582 = vld [vmem:[%s1 + $0x68] sm:$0xf]
  %v1583 = vld [vmem:[%s1 + $0x6c] sm:$0xf]
  %v1584 = vld [vmem:[%s1 + $0x70] sm:$0xf]
  %v1585 = vld [vmem:[%s1 + $0x74] sm:$0xf]
  %v1586 = vld [vmem:[%s1 + $0x78] sm:$0xf]
  %v1587 = vld [vmem:[%s1 + $0x7c] sm:$0xf]
  %v1602 = vunpack.c.l.b16 %v1542
  %v1603 = vunpack.c.h.b16 %v1542
  %v1604 = vunpack.c.l.b16 %v1543
  %v1605 = vunpack.c.h.b16 %v1543
  %v1606 = vunpack.c.l.b16 %v1544
  %v1607 = vunpack.c.h.b16 %v1544
  %v1608 = vunpack.c.l.b16 %v1545
  %v1609 = vunpack.c.h.b16 %v1545
  %v1610 = vunpack.c.l.b16 %v1546
  %v1611 = vunpack.c.h.b16 %v1546
  %v1612 = vunpack.c.l.b16 %v1547
  %v1613 = vunpack.c.h.b16 %v1547
  %v1614 = vunpack.c.l.b16 %v1548
  %v1615 = vunpack.c.h.b16 %v1548
  %v1616 = vunpack.c.l.b16 %v1549
  %v1617 = vunpack.c.h.b16 %v1549
  %v1618 = vunpack.c.l.b16 %v1550
  %v1619 = vunpack.c.h.b16 %v1550
  %v1620 = vunpack.c.l.b16 %v1551
  %v1621 = vunpack.c.h.b16 %v1551
  %v1622 = vunpack.c.l.b16 %v1552
  %v1623 = vunpack.c.h.b16 %v1552
  %v1624 = vunpack.c.l.b16 %v1553
  %v1625 = vunpack.c.h.b16 %v1553
  %v1626 = vunpack.c.l.b16 %v1554
  %v1627 = vunpack.c.h.b16 %v1554
  %v1628 = vunpack.c.l.b16 %v1555
  %v1629 = vunpack.c.h.b16 %v1555
  %v1630 = vpack.c.b16 %v1604, %v1602
  %v1631 = vpack.c.b16 %v1605, %v1603
  %v1632 = vpack.c.b16 %v1608, %v1606
  %v1633 = vpack.c.b16 %v1609, %v1607
  %v1634 = vpack.c.b16 %v1612, %v1610
  %v1635 = vpack.c.b16 %v1613, %v1611
  %v1636 = vpack.c.b16 %v1616, %v1614
  %v1637 = vpack.c.b16 %v1617, %v1615
  %v1638 = vpack.c.b16 %v1620, %v1618
  %v1639 = vpack.c.b16 %v1621, %v1619
  %v1640 = vpack.c.b16 %v1624, %v1622
  %v1641 = vpack.c.b16 %v1625, %v1623
  %v1642 = vpack.c.b16 %v1628, %v1626
  %v1643 = vpack.c.b16 %v1629, %v1627
  %v1690 = vunpack.c.l.b16 %v1556
  %v1691 = vunpack.c.l.b16 %v1557
  %v1692 = vunpack.c.l.b16 %v1558
  %v1693 = vunpack.c.l.b16 %v1559
  %v1694 = vunpack.c.l.b16 %v1560
  %v1695 = vunpack.c.l.b16 %v1561
  %v1696 = vunpack.c.l.b16 %v1562
  %v1697 = vunpack.c.l.b16 %v1563
  %v1698 = vunpack.c.l.b16 %v1564
  %v1699 = vunpack.c.l.b16 %v1565
  %v1700 = vunpack.c.l.b16 %v1566
  %v1701 = vunpack.c.l.b16 %v1567
  %v1702 = vunpack.c.l.b16 %v1568
  %v1703 = vunpack.c.l.b16 %v1569
  %v1704 = vunpack.c.l.b16 %v1570
  %v1705 = vunpack.c.l.b16 %v1571
  %v1706 = vunpack.c.l.b16 %v1572
  %v1707 = vunpack.c.l.b16 %v1573
  %v1708 = vunpack.c.l.b16 %v1574
  %v1709 = vunpack.c.l.b16 %v1575
  %v1710 = vunpack.c.l.b16 %v1576
  %v1711 = vunpack.c.l.b16 %v1577
  %v1712 = vunpack.c.l.b16 %v1578
  %v1713 = vunpack.c.l.b16 %v1579
  %v1714 = vunpack.c.l.b16 %v1580
  %v1715 = vunpack.c.l.b16 %v1581
  %v1716 = vunpack.c.l.b16 %v1582
  %v1717 = vunpack.c.l.b16 %v1583
  %v1718 = vunpack.c.l.b16 %v1584
  %v1719 = vunpack.c.l.b16 %v1585
  %v1720 = vunpack.c.l.b16 %v1586
  %v1721 = vunpack.c.l.b16 %v1587
  %v1722 = vpack.c.b16 %v1691, %v1690
  %v1723 = vpack.c.b16 %v1693, %v1692
  %v1724 = vpack.c.b16 %v1695, %v1694
  %v1725 = vpack.c.b16 %v1697, %v1696
  %v1726 = vpack.c.b16 %v1699, %v1698
  %v1727 = vpack.c.b16 %v1701, %v1700
  %v1728 = vpack.c.b16 %v1703, %v1702
  %v1729 = vpack.c.b16 %v1705, %v1704
  %v1730 = vpack.c.b16 %v1707, %v1706
  %v1731 = vpack.c.b16 %v1709, %v1708
  %v1732 = vpack.c.b16 %v1711, %v1710
  %v1733 = vpack.c.b16 %v1713, %v1712
  %v1734 = vpack.c.b16 %v1715, %v1714
  %v1735 = vpack.c.b16 %v1717, %v1716
  %v1736 = vpack.c.b16 %v1719, %v1718
  %v1737 = vpack.c.b16 %v1721, %v1720
  %1754 = vmatpush.bf16.msra.mxu0 %v1729
  %1755 = vmatpush.bf16.msra.mxu0 %v1728
  %1756 = vmatpush.bf16.msra.mxu0 %v1727
  %1757 = vmatpush.bf16.msra.mxu0 %v1726
  %1758 = vmatpush.bf16.msra.mxu0 %v1725
  %1759 = vmatpush.bf16.msra.mxu0 %v1724
  %1760 = vmatpush.bf16.msra.mxu0 %v1723
  %1761 = vmatpush.bf16.msra.mxu0 %v1722
  %1762 = vmatmul.bf16.gmra.mxu0 %v1630
  %v1763 = vpop.f32.mrf.mxu0
  %v1764 = vadd.f32 %v872, %v1763
  %v1765 = vpop.f32.mrf.mxu0
  %v1766 = vadd.f32 %v872, %v1765
  %1767 = vmatmul.bf16.gmra.mxu0 %v1632
  %v1768 = vpop.f32.mrf.mxu0
  %v1769 = vadd.f32 %v872, %v1768
  %v1770 = vpop.f32.mrf.mxu0
  %v1771 = vadd.f32 %v872, %v1770
  %1772 = vmatmul.bf16.gmra.mxu0 %v1634
  %v1773 = vpop.f32.mrf.mxu0
  %v1774 = vadd.f32 %v872, %v1773
  %v1775 = vpop.f32.mrf.mxu0
  %v1776 = vadd.f32 %v872, %v1775
  %1777 = vmatmul.bf16.gmra.mxu0 %v1636
  %v1778 = vpop.f32.mrf.mxu0
  %v1779 = vadd.f32 %v872, %v1778
  %v1780 = vpop.f32.mrf.mxu0
  %v1781 = vadd.f32 %v872, %v1780
  %1782 = vmatmul.bf16.gmra.mxu0 %v1638
  %v1783 = vpop.f32.mrf.mxu0
  %v1784 = vadd.f32 %v872, %v1783
  %v1785 = vpop.f32.mrf.mxu0
  %v1786 = vadd.f32 %v872, %v1785
  %1787 = vmatmul.bf16.gmra.mxu0 %v1640
  %v1788 = vpop.f32.mrf.mxu0
  %v1789 = vadd.f32 %v872, %v1788
  %v1790 = vpop.f32.mrf.mxu0
  %v1791 = vadd.f32 %v872, %v1790
  %1792 = vmatmul.bf16.gmra.mxu0 %v1642
  %v1793 = vpop.f32.mrf.mxu0
  %v1794 = vadd.f32 %v872, %v1793
  %v1795 = vpop.f32.mrf.mxu0
  %v1796 = vadd.f32 %v872, %v1795
  %1797 = vdwg.mxu0
  %1798 = vmatpush.bf16.msra.mxu0 %v1737
  %1799 = vmatpush.bf16.msra.mxu0 %v1736
  %1800 = vmatpush.bf16.msra.mxu0 %v1735
  %1801 = vmatpush.bf16.msra.mxu0 %v1734
  %1802 = vmatpush.bf16.msra.mxu0 %v1733
  %1803 = vmatpush.bf16.msra.mxu0 %v1732
  %1804 = vmatpush.bf16.msra.mxu0 %v1731
  %1805 = vmatpush.bf16.msra.mxu0 %v1730
  %1806 = vmatmul.bf16.gmra.mxu0 %v1631
  %v1807 = vpop.f32.mrf.mxu0
  %v1808 = vadd.f32 %v1764, %v1807
  %v1809 = vpop.f32.mrf.mxu0
  %v1810 = vadd.f32 %v1766, %v1809
  %1811 = vmatmul.bf16.gmra.mxu0 %v1633
  %v1812 = vpop.f32.mrf.mxu0
  %v1813 = vadd.f32 %v1769, %v1812
  %v1814 = vpop.f32.mrf.mxu0
  %v1815 = vadd.f32 %v1771, %v1814
  %1816 = vmatmul.bf16.gmra.mxu0 %v1635
  %v1817 = vpop.f32.mrf.mxu0
  %v1818 = vadd.f32 %v1774, %v1817
  %v1819 = vpop.f32.mrf.mxu0
  %v1820 = vadd.f32 %v1776, %v1819
  %1821 = vmatmul.bf16.gmra.mxu0 %v1637
  %v1822 = vpop.f32.mrf.mxu0
  %v1823 = vadd.f32 %v1779, %v1822
  %v1824 = vpop.f32.mrf.mxu0
  %v1825 = vadd.f32 %v1781, %v1824
  %1826 = vmatmul.bf16.gmra.mxu0 %v1639
  %v1827 = vpop.f32.mrf.mxu0
  %v1828 = vadd.f32 %v1784, %v1827
  %v1829 = vpop.f32.mrf.mxu0
  %v1830 = vadd.f32 %v1786, %v1829
  %1831 = vmatmul.bf16.gmra.mxu0 %v1641
  %v1832 = vpop.f32.mrf.mxu0
  %v1833 = vadd.f32 %v1789, %v1832
  %v1834 = vpop.f32.mrf.mxu0
  %v1835 = vadd.f32 %v1791, %v1834
  %1836 = vmatmul.bf16.gmra.mxu0 %v1643
  %v1837 = vpop.f32.mrf.mxu0
  %v1838 = vadd.f32 %v1794, %v1837
  %v1839 = vpop.f32.mrf.mxu0
  %v1840 = vadd.f32 %v1796, %v1839
  %1841 = vdwg.mxu0
  %v1842 = vmax.f32 %v1808, 0.0
  %v1843 = vmax.f32 %v1810, 0.0
  %v1844 = vmax.f32 %v1813, 0.0
  %v1845 = vmax.f32 %v1815, 0.0
  %v1846 = vmax.f32 %v1818, 0.0
  %v1847 = vmax.f32 %v1820, 0.0
  %v1848 = vmax.f32 %v1823, 0.0
  %v1849 = vmax.f32 %v1825, 0.0
  %v1850 = vmax.f32 %v1828, 0.0
  %v1851 = vmax.f32 %v1830, 0.0
  %v1852 = vmax.f32 %v1833, 0.0
  %v1853 = vmax.f32 %v1835, 0.0
  %v1854 = vmax.f32 %v1838, 0.0
  %v1855 = vmax.f32 %v1840, 0.0
  %1870 = vrot.lane.b32.xlu0 %v1842, 32
  %v1871 = vpop.permute.xlu0 %1870
  %1872 = vrot.lane.b32.xlu0 %v1843, 32
  %v1873 = vpop.permute.xlu0 %1872
  %1874 = vrot.lane.b32.xlu0 %v1844, 32
  %v1875 = vpop.permute.xlu0 %1874
  %1876 = vrot.lane.b32.xlu0 %v1845, 32
  %v1877 = vpop.permute.xlu0 %1876
  %1878 = vrot.lane.b32.xlu0 %v1846, 32
  %v1879 = vpop.permute.xlu0 %1878
  %1880 = vrot.lane.b32.xlu0 %v1847, 32
  %v1881 = vpop.permute.xlu0 %1880
  %1882 = vrot.lane.b32.xlu0 %v1848, 32
  %v1883 = vpop.permute.xlu0 %1882
  %1884 = vrot.lane.b32.xlu0 %v1849, 32
  %v1885 = vpop.permute.xlu0 %1884
  %1886 = vrot.lane.b32.xlu0 %v1850, 32
  %v1887 = vpop.permute.xlu0 %1886
  %1888 = vrot.lane.b32.xlu0 %v1851, 32
  %v1889 = vpop.permute.xlu0 %1888
  %1890 = vrot.lane.b32.xlu0 %v1852, 32
  %v1891 = vpop.permute.xlu0 %1890
  %1892 = vrot.lane.b32.xlu0 %v1853, 32
  %v1893 = vpop.permute.xlu0 %1892
  %1894 = vrot.lane.b32.xlu0 %v1854, 32
  %v1895 = vpop.permute.xlu0 %1894
  %1896 = vrot.lane.b32.xlu0 %v1855, 32
  %v1897 = vpop.permute.xlu0 %1896
  %vm1912 = vcmask 392448
  %1913 = vst.msk [vmem:[#allocation2] sm:$0xff] %vm1912, %v1871
  %1914 = vst.msk [vmem:[#allocation2 + $0x8] sm:$0xff] %vm1912, %v1873
  %1915 = vst.msk [vmem:[#allocation2 + $0x10] sm:$0xff] %vm1912, %v1875
  %1916 = vst.msk [vmem:[#allocation2 + $0x18] sm:$0xff] %vm1912, %v1877
  %1917 = vst.msk [vmem:[#allocation2 + $0x20] sm:$0xff] %vm1912, %v1879
  %1918 = vst.msk [vmem:[#allocation2 + $0x28] sm:$0xff] %vm1912, %v1881
  %1919 = vst.msk [vmem:[#allocation2 + $0x30] sm:$0xff] %vm1912, %v1883
  %1920 = vst.msk [vmem:[#allocation2 + $0x38] sm:$0xff] %vm1912, %v1885
  %1921 = vst.msk [vmem:[#allocation2 + $0x40] sm:$0xff] %vm1912, %v1887
  %1922 = vst.msk [vmem:[#allocation2 + $0x48] sm:$0xff] %vm1912, %v1889
  %1923 = vst.msk [vmem:[#allocation2 + $0x50] sm:$0xff] %vm1912, %v1891
  %1924 = vst.msk [vmem:[#allocation2 + $0x58] sm:$0xff] %vm1912, %v1893
  %1925 = vst.msk [vmem:[#allocation2 + $0x60] sm:$0xff] %vm1912, %v1895
  %1926 = vst.msk [vmem:[#allocation2 + $0x68] sm:$0xff] %vm1912, %v1897
  %v1927 = vld [vmem:[%s0 + $0x150] sm:$0xff]
  %v1928 = vld [vmem:[%s0 + $0x158] sm:$0xff]
  %v1929 = vld [vmem:[%s0 + $0x160] sm:$0xff]
  %v1930 = vld [vmem:[%s0 + $0x168] sm:$0xff]
  %v1931 = vld [vmem:[%s0 + $0x170] sm:$0xff]
  %v1932 = vld [vmem:[%s0 + $0x178] sm:$0xff]
  %v1933 = vld [vmem:[%s0 + $0x180] sm:$0xff]
  %v1934 = vld [vmem:[%s0 + $0x188] sm:$0xff]
  %v1935 = vld [vmem:[%s0 + $0x190] sm:$0xff]
  %v1936 = vld [vmem:[%s0 + $0x198] sm:$0xff]
  %v1937 = vld [vmem:[%s0 + $0x1a0] sm:$0xff]
  %v1938 = vld [vmem:[%s0 + $0x1a8] sm:$0xff]
  %v1939 = vld [vmem:[%s0 + $0x1b0] sm:$0xff]
  %v1940 = vld [vmem:[%s0 + $0x1b8] sm:$0xff]
  %v1941 = vld [vmem:[%s1] sm:$0xf]
  %v1942 = vld [vmem:[%s1 + $0x4] sm:$0xf]
  %v1943 = vld [vmem:[%s1 + $0x8] sm:$0xf]
  %v1944 = vld [vmem:[%s1 + $0xc] sm:$0xf]
  %v1945 = vld [vmem:[%s1 + $0x10] sm:$0xf]
  %v1946 = vld [vmem:[%s1 + $0x14] sm:$0xf]
  %v1947 = vld [vmem:[%s1 + $0x18] sm:$0xf]
  %v1948 = vld [vmem:[%s1 + $0x1c] sm:$0xf]
  %v1949 = vld [vmem:[%s1 + $0x20] sm:$0xf]
  %v1950 = vld [vmem:[%s1 + $0x24] sm:$0xf]
  %v1951 = vld [vmem:[%s1 + $0x28] sm:$0xf]
  %v1952 = vld [vmem:[%s1 + $0x2c] sm:$0xf]
  %v1953 = vld [vmem:[%s1 + $0x30] sm:$0xf]
  %v1954 = vld [vmem:[%s1 + $0x34] sm:$0xf]
  %v1955 = vld [vmem:[%s1 + $0x38] sm:$0xf]
  %v1956 = vld [vmem:[%s1 + $0x3c] sm:$0xf]
  %v1957 = vld [vmem:[%s1 + $0x40] sm:$0xf]
  %v1958 = vld [vmem:[%s1 + $0x44] sm:$0xf]
  %v1959 = vld [vmem:[%s1 + $0x48] sm:$0xf]
  %v1960 = vld [vmem:[%s1 + $0x4c] sm:$0xf]
  %v1961 = vld [vmem:[%s1 + $0x50] sm:$0xf]
  %v1962 = vld [vmem:[%s1 + $0x54] sm:$0xf]
  %v1963 = vld [vmem:[%s1 + $0x58] sm:$0xf]
  %v1964 = vld [vmem:[%s1 + $0x5c] sm:$0xf]
  %v1965 = vld [vmem:[%s1 + $0x60] sm:$0xf]
  %v1966 = vld [vmem:[%s1 + $0x64] sm:$0xf]
  %v1967 = vld [vmem:[%s1 + $0x68] sm:$0xf]
  %v1968 = vld [vmem:[%s1 + $0x6c] sm:$0xf]
  %v1969 = vld [vmem:[%s1 + $0x70] sm:$0xf]
  %v1970 = vld [vmem:[%s1 + $0x74] sm:$0xf]
  %v1971 = vld [vmem:[%s1 + $0x78] sm:$0xf]
  %v1972 = vld [vmem:[%s1 + $0x7c] sm:$0xf]
  %v1987 = vunpack.c.l.b16 %v1927
  %v1988 = vunpack.c.h.b16 %v1927
  %v1989 = vunpack.c.l.b16 %v1928
  %v1990 = vunpack.c.h.b16 %v1928
  %v1991 = vunpack.c.l.b16 %v1929
  %v1992 = vunpack.c.h.b16 %v1929
  %v1993 = vunpack.c.l.b16 %v1930
  %v1994 = vunpack.c.h.b16 %v1930
  %v1995 = vunpack.c.l.b16 %v1931
  %v1996 = vunpack.c.h.b16 %v1931
  %v1997 = vunpack.c.l.b16 %v1932
  %v1998 = vunpack.c.h.b16 %v1932
  %v1999 = vunpack.c.l.b16 %v1933
  %v2000 = vunpack.c.h.b16 %v1933
  %v2001 = vunpack.c.l.b16 %v1934
  %v2002 = vunpack.c.h.b16 %v1934
  %v2003 = vunpack.c.l.b16 %v1935
  %v2004 = vunpack.c.h.b16 %v1935
  %v2005 = vunpack.c.l.b16 %v1936
  %v2006 = vunpack.c.h.b16 %v1936
  %v2007 = vunpack.c.l.b16 %v1937
  %v2008 = vunpack.c.h.b16 %v1937
  %v2009 = vunpack.c.l.b16 %v1938
  %v2010 = vunpack.c.h.b16 %v1938
  %v2011 = vunpack.c.l.b16 %v1939
  %v2012 = vunpack.c.h.b16 %v1939
  %v2013 = vunpack.c.l.b16 %v1940
  %v2014 = vunpack.c.h.b16 %v1940
  %v2015 = vpack.c.b16 %v1989, %v1987
  %v2016 = vpack.c.b16 %v1990, %v1988
  %v2017 = vpack.c.b16 %v1993, %v1991
  %v2018 = vpack.c.b16 %v1994, %v1992
  %v2019 = vpack.c.b16 %v1997, %v1995
  %v2020 = vpack.c.b16 %v1998, %v1996
  %v2021 = vpack.c.b16 %v2001, %v1999
  %v2022 = vpack.c.b16 %v2002, %v2000
  %v2023 = vpack.c.b16 %v2005, %v2003
  %v2024 = vpack.c.b16 %v2006, %v2004
  %v2025 = vpack.c.b16 %v2009, %v2007
  %v2026 = vpack.c.b16 %v2010, %v2008
  %v2027 = vpack.c.b16 %v2013, %v2011
  %v2028 = vpack.c.b16 %v2014, %v2012
  %v2075 = vunpack.c.l.b16 %v1941
  %v2076 = vunpack.c.l.b16 %v1942
  %v2077 = vunpack.c.l.b16 %v1943
  %v2078 = vunpack.c.l.b16 %v1944
  %v2079 = vunpack.c.l.b16 %v1945
  %v2080 = vunpack.c.l.b16 %v1946
  %v2081 = vunpack.c.l.b16 %v1947
  %v2082 = vunpack.c.l.b16 %v1948
  %v2083 = vunpack.c.l.b16 %v1949
  %v2084 = vunpack.c.l.b16 %v1950
  %v2085 = vunpack.c.l.b16 %v1951
  %v2086 = vunpack.c.l.b16 %v1952
  %v2087 = vunpack.c.l.b16 %v1953
  %v2088 = vunpack.c.l.b16 %v1954
  %v2089 = vunpack.c.l.b16 %v1955
  %v2090 = vunpack.c.l.b16 %v1956
  %v2091 = vunpack.c.l.b16 %v1957
  %v2092 = vunpack.c.l.b16 %v1958
  %v2093 = vunpack.c.l.b16 %v1959
  %v2094 = vunpack.c.l.b16 %v1960
  %v2095 = vunpack.c.l.b16 %v1961
  %v2096 = vunpack.c.l.b16 %v1962
  %v2097 = vunpack.c.l.b16 %v1963
  %v2098 = vunpack.c.l.b16 %v1964
  %v2099 = vunpack.c.l.b16 %v1965
  %v2100 = vunpack.c.l.b16 %v1966
  %v2101 = vunpack.c.l.b16 %v1967
  %v2102 = vunpack.c.l.b16 %v1968
  %v2103 = vunpack.c.l.b16 %v1969
  %v2104 = vunpack.c.l.b16 %v1970
  %v2105 = vunpack.c.l.b16 %v1971
  %v2106 = vunpack.c.l.b16 %v1972
  %v2107 = vpack.c.b16 %v2076, %v2075
  %v2108 = vpack.c.b16 %v2078, %v2077
  %v2109 = vpack.c.b16 %v2080, %v2079
  %v2110 = vpack.c.b16 %v2082, %v2081
  %v2111 = vpack.c.b16 %v2084, %v2083
  %v2112 = vpack.c.b16 %v2086, %v2085
  %v2113 = vpack.c.b16 %v2088, %v2087
  %v2114 = vpack.c.b16 %v2090, %v2089
  %v2115 = vpack.c.b16 %v2092, %v2091
  %v2116 = vpack.c.b16 %v2094, %v2093
  %v2117 = vpack.c.b16 %v2096, %v2095
  %v2118 = vpack.c.b16 %v2098, %v2097
  %v2119 = vpack.c.b16 %v2100, %v2099
  %v2120 = vpack.c.b16 %v2102, %v2101
  %v2121 = vpack.c.b16 %v2104, %v2103
  %v2122 = vpack.c.b16 %v2106, %v2105
  %2139 = vmatpush.bf16.msra.mxu0 %v2114
  %2140 = vmatpush.bf16.msra.mxu0 %v2113
  %2141 = vmatpush.bf16.msra.mxu0 %v2112
  %2142 = vmatpush.bf16.msra.mxu0 %v2111
  %2143 = vmatpush.bf16.msra.mxu0 %v2110
  %2144 = vmatpush.bf16.msra.mxu0 %v2109
  %2145 = vmatpush.bf16.msra.mxu0 %v2108
  %2146 = vmatpush.bf16.msra.mxu0 %v2107
  %2147 = vmatmul.bf16.gmra.mxu0 %v2015
  %v2148 = vpop.f32.mrf.mxu0
  %v2149 = vadd.f32 %v872, %v2148
  %v2150 = vpop.f32.mrf.mxu0
  %v2151 = vadd.f32 %v872, %v2150
  %2152 = vmatmul.bf16.gmra.mxu0 %v2017
  %v2153 = vpop.f32.mrf.mxu0
  %v2154 = vadd.f32 %v872, %v2153
  %v2155 = vpop.f32.mrf.mxu0
  %v2156 = vadd.f32 %v872, %v2155
  %2157 = vmatmul.bf16.gmra.mxu0 %v2019
  %v2158 = vpop.f32.mrf.mxu0
  %v2159 = vadd.f32 %v872, %v2158
  %v2160 = vpop.f32.mrf.mxu0
  %v2161 = vadd.f32 %v872, %v2160
  %2162 = vmatmul.bf16.gmra.mxu0 %v2021
  %v2163 = vpop.f32.mrf.mxu0
  %v2164 = vadd.f32 %v872, %v2163
  %v2165 = vpop.f32.mrf.mxu0
  %v2166 = vadd.f32 %v872, %v2165
  %2167 = vmatmul.bf16.gmra.mxu0 %v2023
  %v2168 = vpop.f32.mrf.mxu0
  %v2169 = vadd.f32 %v872, %v2168
  %v2170 = vpop.f32.mrf.mxu0
  %v2171 = vadd.f32 %v872, %v2170
  %2172 = vmatmul.bf16.gmra.mxu0 %v2025
  %v2173 = vpop.f32.mrf.mxu0
  %v2174 = vadd.f32 %v872, %v2173
  %v2175 = vpop.f32.mrf.mxu0
  %v2176 = vadd.f32 %v872, %v2175
  %2177 = vmatmul.bf16.gmra.mxu0 %v2027
  %v2178 = vpop.f32.mrf.mxu0
  %v2179 = vadd.f32 %v872, %v2178
  %v2180 = vpop.f32.mrf.mxu0
  %v2181 = vadd.f32 %v872, %v2180
  %2182 = vdwg.mxu0
  %2183 = vmatpush.bf16.msra.mxu0 %v2122
  %2184 = vmatpush.bf16.msra.mxu0 %v2121
  %2185 = vmatpush.bf16.msra.mxu0 %v2120
  %2186 = vmatpush.bf16.msra.mxu0 %v2119
  %2187 = vmatpush.bf16.msra.mxu0 %v2118
  %2188 = vmatpush.bf16.msra.mxu0 %v2117
  %2189 = vmatpush.bf16.msra.mxu0 %v2116
  %2190 = vmatpush.bf16.msra.mxu0 %v2115
  %2191 = vmatmul.bf16.gmra.mxu0 %v2016
  %v2192 = vpop.f32.mrf.mxu0
  %v2193 = vadd.f32 %v2149, %v2192
  %v2194 = vpop.f32.mrf.mxu0
  %v2195 = vadd.f32 %v2151, %v2194
  %2196 = vmatmul.bf16.gmra.mxu0 %v2018
  %v2197 = vpop.f32.mrf.mxu0
  %v2198 = vadd.f32 %v2154, %v2197
  %v2199 = vpop.f32.mrf.mxu0
  %v2200 = vadd.f32 %v2156, %v2199
  %2201 = vmatmul.bf16.gmra.mxu0 %v2020
  %v2202 = vpop.f32.mrf.mxu0
  %v2203 = vadd.f32 %v2159, %v2202
  %v2204 = vpop.f32.mrf.mxu0
  %v2205 = vadd.f32 %v2161, %v2204
  %2206 = vmatmul.bf16.gmra.mxu0 %v2022
  %v2207 = vpop.f32.mrf.mxu0
  %v2208 = vadd.f32 %v2164, %v2207
  %v2209 = vpop.f32.mrf.mxu0
  %v2210 = vadd.f32 %v2166, %v2209
  %2211 = vmatmul.bf16.gmra.mxu0 %v2024
  %v2212 = vpop.f32.mrf.mxu0
  %v2213 = vadd.f32 %v2169, %v2212
  %v2214 = vpop.f32.mrf.mxu0
  %v2215 = vadd.f32 %v2171, %v2214
  %2216 = vmatmul.bf16.gmra.mxu0 %v2026
  %v2217 = vpop.f32.mrf.mxu0
  %v2218 = vadd.f32 %v2174, %v2217
  %v2219 = vpop.f32.mrf.mxu0
  %v2220 = vadd.f32 %v2176, %v2219
  %2221 = vmatmul.bf16.gmra.mxu0 %v2028
  %v2222 = vpop.f32.mrf.mxu0
  %v2223 = vadd.f32 %v2179, %v2222
  %v2224 = vpop.f32.mrf.mxu0
  %v2225 = vadd.f32 %v2181, %v2224
  %2226 = vdwg.mxu0
  %v2227 = vmax.f32 %v2193, 0.0
  %v2228 = vmax.f32 %v2195, 0.0
  %v2229 = vmax.f32 %v2198, 0.0
  %v2230 = vmax.f32 %v2200, 0.0
  %v2231 = vmax.f32 %v2203, 0.0
  %v2232 = vmax.f32 %v2205, 0.0
  %v2233 = vmax.f32 %v2208, 0.0
  %v2234 = vmax.f32 %v2210, 0.0
  %v2235 = vmax.f32 %v2213, 0.0
  %v2236 = vmax.f32 %v2215, 0.0
  %v2237 = vmax.f32 %v2218, 0.0
  %v2238 = vmax.f32 %v2220, 0.0
  %v2239 = vmax.f32 %v2223, 0.0
  %v2240 = vmax.f32 %v2225, 0.0
  %2255 = vrot.lane.b32.xlu0 %v2227, 48
  %v2256 = vpop.permute.xlu0 %2255
  %2257 = vrot.lane.b32.xlu0 %v2228, 48
  %v2258 = vpop.permute.xlu0 %2257
  %2259 = vrot.lane.b32.xlu0 %v2229, 48
  %v2260 = vpop.permute.xlu0 %2259
  %2261 = vrot.lane.b32.xlu0 %v2230, 48
  %v2262 = vpop.permute.xlu0 %2261
  %2263 = vrot.lane.b32.xlu0 %v2231, 48
  %v2264 = vpop.permute.xlu0 %2263
  %2265 = vrot.lane.b32.xlu0 %v2232, 48
  %v2266 = vpop.permute.xlu0 %2265
  %2267 = vrot.lane.b32.xlu0 %v2233, 48
  %v2268 = vpop.permute.xlu0 %2267
  %2269 = vrot.lane.b32.xlu0 %v2234, 48
  %v2270 = vpop.permute.xlu0 %2269
  %2271 = vrot.lane.b32.xlu0 %v2235, 48
  %v2272 = vpop.permute.xlu0 %2271
  %2273 = vrot.lane.b32.xlu0 %v2236, 48
  %v2274 = vpop.permute.xlu0 %2273
  %2275 = vrot.lane.b32.xlu0 %v2237, 48
  %v2276 = vpop.permute.xlu0 %2275
  %2277 = vrot.lane.b32.xlu0 %v2238, 48
  %v2278 = vpop.permute.xlu0 %2277
  %2279 = vrot.lane.b32.xlu0 %v2239, 48
  %v2280 = vpop.permute.xlu0 %2279
  %2281 = vrot.lane.b32.xlu0 %v2240, 48
  %v2282 = vpop.permute.xlu0 %2281
  %vm2297 = vcmask 523648
  %2298 = vst.msk [vmem:[#allocation2] sm:$0xff] %vm2297, %v2256
  %2299 = vst.msk [vmem:[#allocation2 + $0x8] sm:$0xff] %vm2297, %v2258
  %2300 = vst.msk [vmem:[#allocation2 + $0x10] sm:$0xff] %vm2297, %v2260
  %2301 = vst.msk [vmem:[#allocation2 + $0x18] sm:$0xff] %vm2297, %v2262
  %2302 = vst.msk [vmem:[#allocation2 + $0x20] sm:$0xff] %vm2297, %v2264
  %2303 = vst.msk [vmem:[#allocation2 + $0x28] sm:$0xff] %vm2297, %v2266
  %2304 = vst.msk [vmem:[#allocation2 + $0x30] sm:$0xff] %vm2297, %v2268
  %2305 = vst.msk [vmem:[#allocation2 + $0x38] sm:$0xff] %vm2297, %v2270
  %2306 = vst.msk [vmem:[#allocation2 + $0x40] sm:$0xff] %vm2297, %v2272
  %2307 = vst.msk [vmem:[#allocation2 + $0x48] sm:$0xff] %vm2297, %v2274
  %2308 = vst.msk [vmem:[#allocation2 + $0x50] sm:$0xff] %vm2297, %v2276
  %2309 = vst.msk [vmem:[#allocation2 + $0x58] sm:$0xff] %vm2297, %v2278
  %2310 = vst.msk [vmem:[#allocation2 + $0x60] sm:$0xff] %vm2297, %v2280
  %2311 = vst.msk [vmem:[#allocation2 + $0x68] sm:$0xff] %vm2297, %v2282
  %v2312 = vld [vmem:[#allocation2] sm:$0xff]
  %v2313 = vld [vmem:[#allocation2 + $0x8] sm:$0xff]
  %v2314 = vld [vmem:[#allocation2 + $0x10] sm:$0xff]
  %v2315 = vld [vmem:[#allocation2 + $0x18] sm:$0xff]
  %v2316 = vld [vmem:[#allocation2 + $0x20] sm:$0xff]
  %v2317 = vld [vmem:[#allocation2 + $0x28] sm:$0xff]
  %v2318 = vld [vmem:[#allocation2 + $0x30] sm:$0xff]
  %v2319 = vld [vmem:[#allocation2 + $0x38] sm:$0xff]
  %v2320 = vld [vmem:[#allocation2 + $0x40] sm:$0xff]
  %v2321 = vld [vmem:[#allocation2 + $0x48] sm:$0xff]
  %v2322 = vld [vmem:[#allocation2 + $0x50] sm:$0xff]
  %v2323 = vld [vmem:[#allocation2 + $0x58] sm:$0xff]
  %vm2324 = vcmask 523264
  %2325 = vst.msk [vmem:[#allocation3] sm:$0xff] %vm2324, %v2312
  %2326 = vst.msk [vmem:[#allocation3 + $0x10] sm:$0xff] %vm2324, %v2313
  %2327 = vst.msk [vmem:[#allocation3 + $0x20] sm:$0xff] %vm2324, %v2314
  %2328 = vst.msk [vmem:[#allocation3 + $0x30] sm:$0xff] %vm2324, %v2315
  %2329 = vst.msk [vmem:[#allocation3 + $0x40] sm:$0xff] %vm2324, %v2316
  %2330 = vst.msk [vmem:[#allocation3 + $0x50] sm:$0xff] %vm2324, %v2317
  %2331 = vst.msk [vmem:[#allocation3 + $0x60] sm:$0xff] %vm2324, %v2318
  %2332 = vst.msk [vmem:[#allocation3 + $0x70] sm:$0xff] %vm2324, %v2319
  %2333 = vst.msk [vmem:[#allocation3 + $0x80] sm:$0xff] %vm2324, %v2320
  %2334 = vst.msk [vmem:[#allocation3 + $0x90] sm:$0xff] %vm2324, %v2321
  %2335 = vst.msk [vmem:[#allocation3 + $0xa0] sm:$0xff] %vm2324, %v2322
  %2336 = vst.msk [vmem:[#allocation3 + $0xb0] sm:$0xff] %vm2324, %v2323
  %v2337 = vld [vmem:[#allocation2 + $0x1] sm:$0xff]
  %v2338 = vld [vmem:[#allocation2 + $0x9] sm:$0xff]
  %v2339 = vld [vmem:[#allocation2 + $0x11] sm:$0xff]
  %v2340 = vld [vmem:[#allocation2 + $0x19] sm:$0xff]
  %v2341 = vld [vmem:[#allocation2 + $0x21] sm:$0xff]
  %v2342 = vld [vmem:[#allocation2 + $0x29] sm:$0xff]
  %v2343 = vld [vmem:[#allocation2 + $0x31] sm:$0xff]
  %v2344 = vld [vmem:[#allocation2 + $0x39] sm:$0xff]
  %v2345 = vld [vmem:[#allocation2 + $0x41] sm:$0xff]
  %v2346 = vld [vmem:[#allocation2 + $0x49] sm:$0xff]
  %v2347 = vld [vmem:[#allocation2 + $0x51] sm:$0xff]
  %v2348 = vld [vmem:[#allocation2 + $0x59] sm:$0xff]
  %2361 = vrot.lane.b32.xlu0 %v2337, 64
  %v2362 = vpop.permute.xlu0 %2361
  %2363 = vrot.lane.b32.xlu0 %v2338, 64
  %v2364 = vpop.permute.xlu0 %2363
  %2365 = vrot.lane.b32.xlu0 %v2339, 64
  %v2366 = vpop.permute.xlu0 %2365
  %2367 = vrot.lane.b32.xlu0 %v2340, 64
  %v2368 = vpop.permute.xlu0 %2367
  %2369 = vrot.lane.b32.xlu0 %v2341, 64
  %v2370 = vpop.permute.xlu0 %2369
  %2371 = vrot.lane.b32.xlu0 %v2342, 64
  %v2372 = vpop.permute.xlu0 %2371
  %2373 = vrot.lane.b32.xlu0 %v2343, 64
  %v2374 = vpop.permute.xlu0 %2373
  %2375 = vrot.lane.b32.xlu0 %v2344, 64
  %v2376 = vpop.permute.xlu0 %2375
  %2377 = vrot.lane.b32.xlu0 %v2345, 64
  %v2378 = vpop.permute.xlu0 %2377
  %2379 = vrot.lane.b32.xlu0 %v2346, 64
  %v2380 = vpop.permute.xlu0 %2379
  %2381 = vrot.lane.b32.xlu0 %v2347, 64
  %v2382 = vpop.permute.xlu0 %2381
  %2383 = vrot.lane.b32.xlu0 %v2348, 64
  %v2384 = vpop.permute.xlu0 %2383
  %vm2397 = vcmask 1048064
  %2398 = vst.msk [vmem:[#allocation3] sm:$0xff] %vm2397, %v2362
  %2399 = vst.msk [vmem:[#allocation3 + $0x10] sm:$0xff] %vm2397, %v2364
  %2400 = vst.msk [vmem:[#allocation3 + $0x20] sm:$0xff] %vm2397, %v2366
  %2401 = vst.msk [vmem:[#allocation3 + $0x30] sm:$0xff] %vm2397, %v2368
  %2402 = vst.msk [vmem:[#allocation3 + $0x40] sm:$0xff] %vm2397, %v2370
  %2403 = vst.msk [vmem:[#allocation3 + $0x50] sm:$0xff] %vm2397, %v2372
  %2404 = vst.msk [vmem:[#allocation3 + $0x60] sm:$0xff] %vm2397, %v2374
  %2405 = vst.msk [vmem:[#allocation3 + $0x70] sm:$0xff] %vm2397, %v2376
  %2406 = vst.msk [vmem:[#allocation3 + $0x80] sm:$0xff] %vm2397, %v2378
  %2407 = vst.msk [vmem:[#allocation3 + $0x90] sm:$0xff] %vm2397, %v2380
  %2408 = vst.msk [vmem:[#allocation3 + $0xa0] sm:$0xff] %vm2397, %v2382
  %2409 = vst.msk [vmem:[#allocation3 + $0xb0] sm:$0xff] %vm2397, %v2384
  %v2410 = vld [vmem:[#allocation2 + $0xa] sm:$0xff]
  %v2411 = vld [vmem:[#allocation2 + $0x12] sm:$0xff]
  %v2412 = vld [vmem:[#allocation2 + $0x1a] sm:$0xff]
  %v2413 = vld [vmem:[#allocation2 + $0x22] sm:$0xff]
  %v2414 = vld [vmem:[#allocation2 + $0x2a] sm:$0xff]
  %v2415 = vld [vmem:[#allocation2 + $0x32] sm:$0xff]
  %v2416 = vld [vmem:[#allocation2 + $0x3a] sm:$0xff]
  %v2417 = vld [vmem:[#allocation2 + $0x42] sm:$0xff]
  %v2418 = vld [vmem:[#allocation2 + $0x4a] sm:$0xff]
  %v2419 = vld [vmem:[#allocation2 + $0x52] sm:$0xff]
  %v2420 = vld [vmem:[#allocation2 + $0x5a] sm:$0xff]
  %v2421 = vld [vmem:[#allocation2 + $0x62] sm:$0xff]
  %2422 = vst.msk [vmem:[#allocation3 + $0x8] sm:$0xff] %vm2324, %v2410
  %2423 = vst.msk [vmem:[#allocation3 + $0x18] sm:$0xff] %vm2324, %v2411
  %2424 = vst.msk [vmem:[#allocation3 + $0x28] sm:$0xff] %vm2324, %v2412
  %2425 = vst.msk [vmem:[#allocation3 + $0x38] sm:$0xff] %vm2324, %v2413
  %2426 = vst.msk [vmem:[#allocation3 + $0x48] sm:$0xff] %vm2324, %v2414
  %2427 = vst.msk [vmem:[#allocation3 + $0x58] sm:$0xff] %vm2324, %v2415
  %2428 = vst.msk [vmem:[#allocation3 + $0x68] sm:$0xff] %vm2324, %v2416
  %2429 = vst.msk [vmem:[#allocation3 + $0x78] sm:$0xff] %vm2324, %v2417
  %2430 = vst.msk [vmem:[#allocation3 + $0x88] sm:$0xff] %vm2324, %v2418
  %2431 = vst.msk [vmem:[#allocation3 + $0x98] sm:$0xff] %vm2324, %v2419
  %2432 = vst.msk [vmem:[#allocation3 + $0xa8] sm:$0xff] %vm2324, %v2420
  %2433 = vst.msk [vmem:[#allocation3 + $0xb8] sm:$0xff] %vm2324, %v2421
  %v2434 = vld [vmem:[#allocation2 + $0xb] sm:$0xff]
  %v2435 = vld [vmem:[#allocation2 + $0x13] sm:$0xff]
  %v2436 = vld [vmem:[#allocation2 + $0x1b] sm:$0xff]
  %v2437 = vld [vmem:[#allocation2 + $0x23] sm:$0xff]
  %v2438 = vld [vmem:[#allocation2 + $0x2b] sm:$0xff]
  %v2439 = vld [vmem:[#allocation2 + $0x33] sm:$0xff]
  %v2440 = vld [vmem:[#allocation2 + $0x3b] sm:$0xff]
  %v2441 = vld [vmem:[#allocation2 + $0x43] sm:$0xff]
  %v2442 = vld [vmem:[#allocation2 + $0x4b] sm:$0xff]
  %v2443 = vld [vmem:[#allocation2 + $0x53] sm:$0xff]
  %v2444 = vld [vmem:[#allocation2 + $0x5b] sm:$0xff]
  %v2445 = vld [vmem:[#allocation2 + $0x63] sm:$0xff]
  %2458 = vrot.lane.b32.xlu0 %v2434, 64
  %v2459 = vpop.permute.xlu0 %2458
  %2460 = vrot.lane.b32.xlu0 %v2435, 64
  %v2461 = vpop.permute.xlu0 %2460
  %2462 = vrot.lane.b32.xlu0 %v2436, 64
  %v2463 = vpop.permute.xlu0 %2462
  %2464 = vrot.lane.b32.xlu0 %v2437, 64
  %v2465 = vpop.permute.xlu0 %2464
  %2466 = vrot.lane.b32.xlu0 %v2438, 64
  %v2467 = vpop.permute.xlu0 %2466
  %2468 = vrot.lane.b32.xlu0 %v2439, 64
  %v2469 = vpop.permute.xlu0 %2468
  %2470 = vrot.lane.b32.xlu0 %v2440, 64
  %v2471 = vpop.permute.xlu0 %2470
  %2472 = vrot.lane.b32.xlu0 %v2441, 64
  %v2473 = vpop.permute.xlu0 %2472
  %2474 = vrot.lane.b32.xlu0 %v2442, 64
  %v2475 = vpop.permute.xlu0 %2474
  %2476 = vrot.lane.b32.xlu0 %v2443, 64
  %v2477 = vpop.permute.xlu0 %2476
  %2478 = vrot.lane.b32.xlu0 %v2444, 64
  %v2479 = vpop.permute.xlu0 %2478
  %2480 = vrot.lane.b32.xlu0 %v2445, 64
  %v2481 = vpop.permute.xlu0 %2480
  %2494 = vst.msk [vmem:[#allocation3 + $0x8] sm:$0xff] %vm2397, %v2459
  %2495 = vst.msk [vmem:[#allocation3 + $0x18] sm:$0xff] %vm2397, %v2461
  %2496 = vst.msk [vmem:[#allocation3 + $0x28] sm:$0xff] %vm2397, %v2463
  %2497 = vst.msk [vmem:[#allocation3 + $0x38] sm:$0xff] %vm2397, %v2465
  %2498 = vst.msk [vmem:[#allocation3 + $0x48] sm:$0xff] %vm2397, %v2467
  %2499 = vst.msk [vmem:[#allocation3 + $0x58] sm:$0xff] %vm2397, %v2469
  %2500 = vst.msk [vmem:[#allocation3 + $0x68] sm:$0xff] %vm2397, %v2471
  %2501 = vst.msk [vmem:[#allocation3 + $0x78] sm:$0xff] %vm2397, %v2473
  %2502 = vst.msk [vmem:[#allocation3 + $0x88] sm:$0xff] %vm2397, %v2475
  %2503 = vst.msk [vmem:[#allocation3 + $0x98] sm:$0xff] %vm2397, %v2477
  %2504 = vst.msk [vmem:[#allocation3 + $0xa8] sm:$0xff] %vm2397, %v2479
  %2505 = vst.msk [vmem:[#allocation3 + $0xb8] sm:$0xff] %vm2397, %v2481
  %v2506 = vld [vmem:[#allocation3] sm:$0xff]
  %v2507 = vld [vmem:[#allocation3 + $0x8] sm:$0xff]
  %v2508 = vld [vmem:[#allocation3 + $0x10] sm:$0xff]
  %v2509 = vld [vmem:[#allocation3 + $0x18] sm:$0xff]
  %v2510 = vld [vmem:[#allocation3 + $0x20] sm:$0xff]
  %v2511 = vld [vmem:[#allocation3 + $0x28] sm:$0xff]
  %v2512 = vld [vmem:[#allocation3 + $0x30] sm:$0xff]
  %v2513 = vld [vmem:[#allocation3 + $0x38] sm:$0xff]
  %v2514 = vld [vmem:[#allocation3 + $0x40] sm:$0xff]
  %v2515 = vld [vmem:[#allocation3 + $0x48] sm:$0xff]
  %v2516 = vld [vmem:[#allocation3 + $0x50] sm:$0xff]
  %v2517 = vld [vmem:[#allocation3 + $0x58] sm:$0xff]
  %v2518 = vld [vmem:[#allocation3 + $0x60] sm:$0xff]
  %v2519 = vld [vmem:[#allocation3 + $0x68] sm:$0xff]
  %v2520 = vld [vmem:[#allocation3 + $0x70] sm:$0xff]
  %v2521 = vld [vmem:[#allocation3 + $0x78] sm:$0xff]
  %v2522 = vld [vmem:[#allocation3 + $0x80] sm:$0xff]
  %v2523 = vld [vmem:[#allocation3 + $0x88] sm:$0xff]
  %v2524 = vld [vmem:[#allocation3 + $0x90] sm:$0xff]
  %v2525 = vld [vmem:[#allocation3 + $0x98] sm:$0xff]
  %v2526 = vld [vmem:[#allocation3 + $0xa0] sm:$0xff]
  %v2527 = vld [vmem:[#allocation3 + $0xa8] sm:$0xff]
  %v2528 = vld [vmem:[#allocation3 + $0xb0] sm:$0xff]
  %v2529 = vld [vmem:[#allocation3 + $0xb8] sm:$0xff]
  %v2530 = vpack.c.bf16 %v2508, %v2506
  %v2531 = vpack.c.bf16 %v2509, %v2507
  %v2532 = vpack.c.bf16 %v2512, %v2510
  %v2533 = vpack.c.bf16 %v2513, %v2511
  %v2534 = vpack.c.bf16 %v2516, %v2514
  %v2535 = vpack.c.bf16 %v2517, %v2515
  %v2536 = vpack.c.bf16 %v2520, %v2518
  %v2537 = vpack.c.bf16 %v2521, %v2519
  %v2538 = vpack.c.bf16 %v2524, %v2522
  %v2539 = vpack.c.bf16 %v2525, %v2523
  %v2540 = vpack.c.bf16 %v2528, %v2526
  %v2541 = vpack.c.bf16 %v2529, %v2527
  %v2542 = vld [vmem:[%s3] sm:$0xf]
  %v2543 = vld [vmem:[%s3 + $0x4] sm:$0xf]
  %v2544 = vld [vmem:[%s3 + $0x8] sm:$0xf]
  %v2545 = vld [vmem:[%s3 + $0xc] sm:$0xf]
  %v2546 = vld [vmem:[%s3 + $0x10] sm:$0xf]
  %v2547 = vld [vmem:[%s3 + $0x14] sm:$0xf]
  %v2548 = vld [vmem:[%s3 + $0x18] sm:$0xf]
  %v2549 = vld [vmem:[%s3 + $0x1c] sm:$0xf]
  %v2550 = vld [vmem:[%s3 + $0x20] sm:$0xf]
  %v2551 = vld [vmem:[%s3 + $0x24] sm:$0xf]
  %v2552 = vld [vmem:[%s3 + $0x28] sm:$0xf]
  %v2553 = vld [vmem:[%s3 + $0x2c] sm:$0xf]
  %v2554 = vld [vmem:[%s3 + $0x30] sm:$0xf]
  %v2555 = vld [vmem:[%s3 + $0x34] sm:$0xf]
  %v2556 = vld [vmem:[%s3 + $0x38] sm:$0xf]
  %v2557 = vld [vmem:[%s3 + $0x3c] sm:$0xf]
  %v2558 = vld [vmem:[%s3 + $0x40] sm:$0xf]
  %v2559 = vld [vmem:[%s3 + $0x44] sm:$0xf]
  %v2560 = vld [vmem:[%s3 + $0x48] sm:$0xf]
  %v2561 = vld [vmem:[%s3 + $0x4c] sm:$0xf]
  %v2562 = vld [vmem:[%s3 + $0x50] sm:$0xf]
  %v2563 = vld [vmem:[%s3 + $0x54] sm:$0xf]
  %v2564 = vld [vmem:[%s3 + $0x58] sm:$0xf]
  %v2565 = vld [vmem:[%s3 + $0x5c] sm:$0xf]
  %v2566 = vld [vmem:[%s3 + $0x60] sm:$0xf]
  %v2567 = vld [vmem:[%s3 + $0x64] sm:$0xf]
  %v2568 = vld [vmem:[%s3 + $0x68] sm:$0xf]
  %v2569 = vld [vmem:[%s3 + $0x6c] sm:$0xf]
  %v2570 = vld [vmem:[%s3 + $0x70] sm:$0xf]
  %v2571 = vld [vmem:[%s3 + $0x74] sm:$0xf]
  %v2572 = vld [vmem:[%s3 + $0x78] sm:$0xf]
  %v2573 = vld [vmem:[%s3 + $0x7c] sm:$0xf]
  %v2574 = vld [vmem:[%s4] sm:$0x1]
  %v2576 = vperm.slane %v2574, 0
  %v2610 = vunpack.c.l.b16 %v2542
  %v2611 = vunpack.c.l.b16 %v2543
  %v2612 = vunpack.c.l.b16 %v2544
  %v2613 = vunpack.c.l.b16 %v2545
  %v2614 = vunpack.c.l.b16 %v2546
  %v2615 = vunpack.c.l.b16 %v2547
  %v2616 = vunpack.c.l.b16 %v2548
  %v2617 = vunpack.c.l.b16 %v2549
  %v2618 = vunpack.c.l.b16 %v2550
  %v2619 = vunpack.c.l.b16 %v2551
  %v2620 = vunpack.c.l.b16 %v2552
  %v2621 = vunpack.c.l.b16 %v2553
  %v2622 = vunpack.c.l.b16 %v2554
  %v2623 = vunpack.c.l.b16 %v2555
  %v2624 = vunpack.c.l.b16 %v2556
  %v2625 = vunpack.c.l.b16 %v2557
  %v2626 = vunpack.c.l.b16 %v2558
  %v2627 = vunpack.c.l.b16 %v2559
  %v2628 = vunpack.c.l.b16 %v2560
  %v2629 = vunpack.c.l.b16 %v2561
  %v2630 = vunpack.c.l.b16 %v2562
  %v2631 = vunpack.c.l.b16 %v2563
  %v2632 = vunpack.c.l.b16 %v2564
  %v2633 = vunpack.c.l.b16 %v2565
  %v2634 = vunpack.c.l.b16 %v2566
  %v2635 = vunpack.c.l.b16 %v2567
  %v2636 = vunpack.c.l.b16 %v2568
  %v2637 = vunpack.c.l.b16 %v2569
  %v2638 = vunpack.c.l.b16 %v2570
  %v2639 = vunpack.c.l.b16 %v2571
  %v2640 = vunpack.c.l.b16 %v2572
  %v2641 = vunpack.c.l.b16 %v2573
  %v2642 = vpack.c.b16 %v2611, %v2610
  %v2643 = vpack.c.b16 %v2613, %v2612
  %v2644 = vpack.c.b16 %v2615, %v2614
  %v2645 = vpack.c.b16 %v2617, %v2616
  %v2646 = vpack.c.b16 %v2619, %v2618
  %v2647 = vpack.c.b16 %v2621, %v2620
  %v2648 = vpack.c.b16 %v2623, %v2622
  %v2649 = vpack.c.b16 %v2625, %v2624
  %v2650 = vpack.c.b16 %v2627, %v2626
  %v2651 = vpack.c.b16 %v2629, %v2628
  %v2652 = vpack.c.b16 %v2631, %v2630
  %v2653 = vpack.c.b16 %v2633, %v2632
  %v2654 = vpack.c.b16 %v2635, %v2634
  %v2655 = vpack.c.b16 %v2637, %v2636
  %v2656 = vpack.c.b16 %v2639, %v2638
  %v2657 = vpack.c.b16 %v2641, %v2640
  %2674 = vmatpush.bf16.msra.mxu0 %v2649
  %2675 = vmatpush.bf16.msra.mxu0 %v2648
  %2676 = vmatpush.bf16.msra.mxu0 %v2647
  %2677 = vmatpush.bf16.msra.mxu0 %v2646
  %2678 = vmatpush.bf16.msra.mxu0 %v2645
  %2679 = vmatpush.bf16.msra.mxu0 %v2644
  %2680 = vmatpush.bf16.msra.mxu0 %v2643
  %2681 = vmatpush.bf16.msra.mxu0 %v2642
  %2682 = vmatmul.bf16.gmra.mxu0 %v2530
  %v2683 = vpop.f32.mrf.mxu0
  %v2684 = vadd.f32 %v2576, %v2683
  %v2685 = vpop.f32.mrf.mxu0
  %v2686 = vadd.f32 %v2576, %v2685
  %2687 = vmatmul.bf16.gmra.mxu0 %v2532
  %v2688 = vpop.f32.mrf.mxu0
  %v2689 = vadd.f32 %v2576, %v2688
  %v2690 = vpop.f32.mrf.mxu0
  %v2691 = vadd.f32 %v2576, %v2690
  %2692 = vmatmul.bf16.gmra.mxu0 %v2534
  %v2693 = vpop.f32.mrf.mxu0
  %v2694 = vadd.f32 %v2576, %v2693
  %v2695 = vpop.f32.mrf.mxu0
  %v2696 = vadd.f32 %v2576, %v2695
  %2697 = vmatmul.bf16.gmra.mxu0 %v2536
  %v2698 = vpop.f32.mrf.mxu0
  %v2699 = vadd.f32 %v2576, %v2698
  %v2700 = vpop.f32.mrf.mxu0
  %v2701 = vadd.f32 %v2576, %v2700
  %2702 = vmatmul.bf16.gmra.mxu0 %v2538
  %v2703 = vpop.f32.mrf.mxu0
  %v2704 = vadd.f32 %v2576, %v2703
  %v2705 = vpop.f32.mrf.mxu0
  %v2706 = vadd.f32 %v2576, %v2705
  %2707 = vmatmul.bf16.gmra.mxu0 %v2540
  %v2708 = vpop.f32.mrf.mxu0
  %v2709 = vadd.f32 %v2576, %v2708
  %v2710 = vpop.f32.mrf.mxu0
  %v2711 = vadd.f32 %v2576, %v2710
  %2712 = vdwg.mxu0
  %2713 = vmatpush.bf16.msra.mxu0 %v2657
  %2714 = vmatpush.bf16.msra.mxu0 %v2656
  %2715 = vmatpush.bf16.msra.mxu0 %v2655
  %2716 = vmatpush.bf16.msra.mxu0 %v2654
  %2717 = vmatpush.bf16.msra.mxu0 %v2653
  %2718 = vmatpush.bf16.msra.mxu0 %v2652
  %2719 = vmatpush.bf16.msra.mxu0 %v2651
  %2720 = vmatpush.bf16.msra.mxu0 %v2650
  %2721 = vmatmul.bf16.gmra.mxu0 %v2531
  %v2722 = vpop.f32.mrf.mxu0
  %v2723 = vadd.f32 %v2684, %v2722
  %v2724 = vpop.f32.mrf.mxu0
  %v2725 = vadd.f32 %v2686, %v2724
  %2726 = vmatmul.bf16.gmra.mxu0 %v2533
  %v2727 = vpop.f32.mrf.mxu0
  %v2728 = vadd.f32 %v2689, %v2727
  %v2729 = vpop.f32.mrf.mxu0
  %v2730 = vadd.f32 %v2691, %v2729
  %2731 = vmatmul.bf16.gmra.mxu0 %v2535
  %v2732 = vpop.f32.mrf.mxu0
  %v2733 = vadd.f32 %v2694, %v2732
  %v2734 = vpop.f32.mrf.mxu0
  %v2735 = vadd.f32 %v2696, %v2734
  %2736 = vmatmul.bf16.gmra.mxu0 %v2537
  %v2737 = vpop.f32.mrf.mxu0
  %v2738 = vadd.f32 %v2699, %v2737
  %v2739 = vpop.f32.mrf.mxu0
  %v2740 = vadd.f32 %v2701, %v2739
  %2741 = vmatmul.bf16.gmra.mxu0 %v2539
  %v2742 = vpop.f32.mrf.mxu0
  %v2743 = vadd.f32 %v2704, %v2742
  %v2744 = vpop.f32.mrf.mxu0
  %v2745 = vadd.f32 %v2706, %v2744
  %2746 = vmatmul.bf16.gmra.mxu0 %v2541
  %v2747 = vpop.f32.mrf.mxu0
  %v2748 = vadd.f32 %v2709, %v2747
  %v2749 = vpop.f32.mrf.mxu0
  %v2750 = vadd.f32 %v2711, %v2749
  %2751 = vdwg.mxu0
  %v2752 = vmax.f32 %v2723, 0.0
  %v2753 = vmax.f32 %v2725, 0.0
  %v2754 = vmax.f32 %v2728, 0.0
  %v2755 = vmax.f32 %v2730, 0.0
  %v2756 = vmax.f32 %v2733, 0.0
  %v2757 = vmax.f32 %v2735, 0.0
  %v2758 = vmax.f32 %v2738, 0.0
  %v2759 = vmax.f32 %v2740, 0.0
  %v2760 = vmax.f32 %v2743, 0.0
  %v2761 = vmax.f32 %v2745, 0.0
  %v2762 = vmax.f32 %v2748, 0.0
  %v2763 = vmax.f32 %v2750, 0.0
  %2764 = vxpose.xlu0.b32.start [1/16] %v2752, 128
  %2765 = vxpose.xlu0.b32.cont [2/16] %v2753, 128
  %2766 = vxpose.xlu0.b32.cont [3/16] %v2754, 128
  %2767 = vxpose.xlu0.b32.cont [4/16] %v2755, 128
  %2768 = vxpose.xlu0.b32.cont [5/16] %v2756, 128
  %2769 = vxpose.xlu0.b32.cont [6/16] %v2757, 128
  %2770 = vxpose.xlu0.b32.cont [7/16] %v2758, 128
  %2771 = vxpose.xlu0.b32.cont [8/16] %v2759, 128
  %2772 = vxpose.xlu0.b32.cont [9/16] %v2760, 128
  %2773 = vxpose.xlu0.b32.cont [10/16] %v2761, 128
  %2774 = vxpose.xlu0.b32.cont [11/16] %v2762, 128
  %2775 = vxpose.xlu0.b32.cont [12/16] %v2763, 128
  %2776 = vxpose.xlu0.b32.cont [13/16] 0.0, 128
  %2777 = vxpose.xlu0.b32.cont [14/16] 0.0, 128
  %2778 = vxpose.xlu0.b32.cont [15/16] 0.0, 128
  %2779 = vxpose.xlu0.b32.end [16/16] 0.0, 128
  %v2780 = vpop.trf.xlu0
  %v2781 = vpop.trf.xlu0
  %v2782 = vpop.trf.xlu0
  %v2783 = vpop.trf.xlu0
  %v2784 = vpop.trf.xlu0
  %v2785 = vpop.trf.xlu0
  %v2786 = vpop.trf.xlu0
  %v2787 = vpop.trf.xlu0
  %v2788 = vpop.trf.xlu0
  %v2789 = vpop.trf.xlu0
  %v2790 = vpop.trf.xlu0
  %v2791 = vpop.trf.xlu0
  %v2792 = vpop.trf.xlu0
  %v2793 = vpop.trf.xlu0
  %v2794 = vpop.trf.xlu0
  %v2795 = vpop.trf.xlu0
  %vm2796 = vcmask 729088
  %2797 = vst.msk [vmem:[#allocation4] sm:$0x1] %vm2796, %v2780
  %v2799 = vrot.slane %v2780, 5
  %v2800 = vrot.slane %v2799, 4
  %2801 = vrot.lane.b32.xlu0 %v2800, 90
  %v2802 = vpop.permute.xlu0 %2801
  %v2803 = vrot.slane %v2802, 4
  %vm2804 = vcmask 736256
  %v2805 = vsel %vm2804, %v2803, %v2802
  %vm2807 = vcmask 1041104
  %vm2808 = vcmask 421892
  %vm2809 = vmor %vm2808, %vm2807
  %2810 = vst.msk [vmem:[#allocation4] sm:$0x11] %vm2809, %v2805
  %v2811 = vrot.slane %v2780, 6
  %v2812 = vrot.slane %v2811, 4
  %2813 = vrot.lane.b32.xlu0 %v2812, 52
  %v2814 = vpop.permute.xlu0 %2813
  %v2815 = vrot.slane %v2814, 4
  %vm2816 = vcmask 424960
  %v2817 = vsel %vm2816, %v2815, %v2814
  %vm2819 = vcmask 1040800
  %vm2820 = vcmask 110596
  %vm2821 = vmor %vm2820, %vm2819
  %2822 = vst.msk [vmem:[#allocation4 + $0x4] sm:$0x11] %vm2821, %v2817
  %v2823 = vrot.slane %v2780, 7
  %v2824 = vrot.slane %v2823, 4
  %2825 = vrot.lane.b32.xlu0 %v2824, 14
  %v2826 = vpop.permute.xlu0 %2825
  %vm2828 = vcmask 843888
  %2829 = vst.msk [vmem:[#allocation4 + $0x8] sm:$0x1] %vm2828, %v2826
  %2830 = vst.sshfl [vmem:[#allocation1] sm:$0xff pattern:$0x75316420] %v2780
  %s2831 = scalar_lea.vmem [#allocation1], 1
  %v2832 = vld [vmem:[%s2831] ss:$2 sm:$0xff]
  %2833 = vrot.lane.b32.xlu0 %v2832, 104
  %v2834 = vpop.permute.xlu0 %2833
  %v2835 = vrot.slane %v2834, 4
  %vm2836 = vcmask 850944
  %v2837 = vsel %vm2836, %v2835, %v2834
  %vm2839 = vcmask 1041216
  %vm2840 = vcmask 536580
  %vm2841 = vmor %vm2840, %vm2839
  %2842 = vst.msk [vmem:[#allocation4 + $0x8] sm:$0x11] %vm2841, %v2837
  %2843 = vst.sshfl [vmem:[#allocation1] sm:$0xff pattern:$0x75316420] %v2780
  %s2844 = scalar_lea.vmem [#allocation1], 1
  %v2845 = vld [vmem:[%s2844] ss:$2 sm:$0xff]
  %v2846 = vrot.slane %v2845, 5
  %v2847 = vrot.slane %v2846, 4
  %2848 = vrot.lane.b32.xlu0 %v2847, 66
  %v2849 = vpop.permute.xlu0 %2848
  %v2850 = vrot.slane %v2849, 4
  %vm2851 = vcmask 539648
  %v2852 = vsel %vm2851, %v2850, %v2849
  %vm2854 = vcmask 1040912
  %vm2855 = vcmask 225284
  %vm2856 = vmor %vm2855, %vm2854
  %2857 = vst.msk [vmem:[#allocation4 + $0xc] sm:$0x11] %vm2856, %v2852
  %2858 = vst.sshfl [vmem:[#allocation1] sm:$0xff pattern:$0x75316420] %v2780
  %s2859 = scalar_lea.vmem [#allocation1], 1
  %v2860 = vld [vmem:[%s2859] ss:$2 sm:$0xff]
  %v2861 = vrot.slane %v2860, 6
  %v2862 = vrot.slane %v2861, 4
  %2863 = vrot.lane.b32.xlu0 %v2862, 28
  %v2864 = vpop.permute.xlu0 %2863
  %vm2866 = vcmask 958688
  %2867 = vst.msk [vmem:[#allocation4 + $0x10] sm:$0x1] %vm2866, %v2864
  %2868 = vst.sshfl [vmem:[#allocation1] sm:$0xff pattern:$0x75316420] %v2780
  %s2869 = scalar_lea.vmem [#allocation1], 1
  %v2870 = vld [vmem:[%s2869] ss:$2 sm:$0xff]
  %v2871 = vrot.slane %v2870, 7
  %v2872 = vrot.slane %v2871, 4
  %2873 = vrot.lane.b32.xlu0 %v2872, 118
  %v2874 = vpop.permute.xlu0 %2873
  %v2875 = vrot.slane %v2874, 4
  %vm2876 = vcmask 965632
  %v2877 = vsel %vm2876, %v2875, %v2874
  %vm2879 = vcmask 1041328
  %vm2880 = vcmask 651268
  %vm2881 = vmor %vm2880, %vm2879
  %2882 = vst.msk [vmem:[#allocation4 + $0x10] sm:$0x11] %vm2881, %v2877
  %2883 = vst.msk [vmem:[#allocation4 + $0x1] sm:$0x1] %vm2796, %v2781
  %v2885 = vrot.slane %v2781, 5
  %v2886 = vrot.slane %v2885, 4
  %2887 = vrot.lane.b32.xlu0 %v2886, 90
  %v2888 = vpop.permute.xlu0 %2887
  %v2889 = vrot.slane %v2888, 4
  %v2890 = vsel %vm2804, %v2889, %v2888
  %2892 = vst.msk [vmem:[#allocation4 + $0x1] sm:$0x11] %vm2809, %v2890
  %v2893 = vrot.slane %v2781, 6
  %v2894 = vrot.slane %v2893, 4
  %2895 = vrot.lane.b32.xlu0 %v2894, 52
  %v2896 = vpop.permute.xlu0 %2895
  %v2897 = vrot.slane %v2896, 4
  %v2898 = vsel %vm2816, %v2897, %v2896
  %2900 = vst.msk [vmem:[#allocation4 + $0x5] sm:$0x11] %vm2821, %v2898
  %v2901 = vrot.slane %v2781, 7
  %v2902 = vrot.slane %v2901, 4
  %2903 = vrot.lane.b32.xlu0 %v2902, 14
  %v2904 = vpop.permute.xlu0 %2903
  %2906 = vst.msk [vmem:[#allocation4 + $0x9] sm:$0x1] %vm2828, %v2904
  %2907 = vst.sshfl [vmem:[#allocation1] sm:$0xff pattern:$0x75316420] %v2781
  %s2908 = scalar_lea.vmem [#allocation1], 1
  %v2909 = vld [vmem:[%s2908] ss:$2 sm:$0xff]
  %2910 = vrot.lane.b32.xlu0 %v2909, 104
  %v2911 = vpop.permute.xlu0 %2910
  %v2912 = vrot.slane %v2911, 4
  %v2913 = vsel %vm2836, %v2912, %v2911
  %2915 = vst.msk [vmem:[#allocation4 + $0x9] sm:$0x11] %vm2841, %v2913
  %2916 = vst.sshfl [vmem:[#allocation1] sm:$0xff pattern:$0x75316420] %v2781
  %s2917 = scalar_lea.vmem [#allocation1], 1
  %v2918 = vld [vmem:[%s2917] ss:$2 sm:$0xff]
  %v2919 = vrot.slane %v2918, 5
  %v2920 = vrot.slane %v2919, 4
  %2921 = vrot.lane.b32.xlu0 %v2920, 66
  %v2922 = vpop.permute.xlu0 %2921
  %v2923 = vrot.slane %v2922, 4
  %v2924 = vsel %vm2851, %v2923, %v2922
  %2926 = vst.msk [vmem:[#allocation4 + $0xd] sm:$0x11] %vm2856, %v2924
  %2927 = vst.sshfl [vmem:[#allocation1] sm:$0xff pattern:$0x75316420] %v2781
  %s2928 = scalar_lea.vmem [#allocation1], 1
  %v2929 = vld [vmem:[%s2928] ss:$2 sm:$0xff]
  %v2930 = vrot.slane %v2929, 6
  %v2931 = vrot.slane %v2930, 4
  %2932 = vrot.lane.b32.xlu0 %v2931, 28
  %v2933 = vpop.permute.xlu0 %2932
  %2935 = vst.msk [vmem:[#allocation4 + $0x11] sm:$0x1] %vm2866, %v2933
  %2936 = vst.sshfl [vmem:[#allocation1] sm:$0xff pattern:$0x75316420] %v2781
  %s2937 = scalar_lea.vmem [#allocation1], 1
  %v2938 = vld [vmem:[%s2937] ss:$2 sm:$0xff]
  %v2939 = vrot.slane %v2938, 7
  %v2940 = vrot.slane %v2939, 4
  %2941 = vrot.lane.b32.xlu0 %v2940, 118
  %v2942 = vpop.permute.xlu0 %2941
  %v2943 = vrot.slane %v2942, 4
  %v2944 = vsel %vm2876, %v2943, %v2942
  %2946 = vst.msk [vmem:[#allocation4 + $0x11] sm:$0x11] %vm2881, %v2944
  %2947 = vst.msk [vmem:[#allocation4 + $0x2] sm:$0x1] %vm2796, %v2782
  %v2949 = vrot.slane %v2782, 5
  %v2950 = vrot.slane %v2949, 4
  %2951 = vrot.lane.b32.xlu0 %v2950, 90
  %v2952 = vpop.permute.xlu0 %2951
  %v2953 = vrot.slane %v2952, 4
  %v2954 = vsel %vm2804, %v2953, %v2952
  %2956 = vst.msk [vmem:[#allocation4 + $0x2] sm:$0x11] %vm2809, %v2954
  %v2957 = vrot.slane %v2782, 6
  %v2958 = vrot.slane %v2957, 4
  %2959 = vrot.lane.b32.xlu0 %v2958, 52
  %v2960 = vpop.permute.xlu0 %2959
  %v2961 = vrot.slane %v2960, 4
  %v2962 = vsel %vm2816, %v2961, %v2960
  %2964 = vst.msk [vmem:[#allocation4 + $0x6] sm:$0x11] %vm2821, %v2962
  %v2965 = vrot.slane %v2782, 7
  %v2966 = vrot.slane %v2965, 4
  %2967 = vrot.lane.b32.xlu0 %v2966, 14
  %v2968 = vpop.permute.xlu0 %2967
  %2970 = vst.msk [vmem:[#allocation4 + $0xa] sm:$0x1] %vm2828, %v2968
  %2971 = vst.sshfl [vmem:[#allocation1] sm:$0xff pattern:$0x75316420] %v2782
  %s2972 = scalar_lea.vmem [#allocation1], 1
  %v2973 = vld [vmem:[%s2972] ss:$2 sm:$0xff]
  %2974 = vrot.lane.b32.xlu0 %v2973, 104
  %v2975 = vpop.permute.xlu0 %2974
  %v2976 = vrot.slane %v2975, 4
  %v2977 = vsel %vm2836, %v2976, %v2975
  %2979 = vst.msk [vmem:[#allocation4 + $0xa] sm:$0x11] %vm2841, %v2977
  %2980 = vst.sshfl [vmem:[#allocation1] sm:$0xff pattern:$0x75316420] %v2782
  %s2981 = scalar_lea.vmem [#allocation1], 1
  %v2982 = vld [vmem:[%s2981] ss:$2 sm:$0xff]
  %v2983 = vrot.slane %v2982, 5
  %v2984 = vrot.slane %v2983, 4
  %2985 = vrot.lane.b32.xlu0 %v2984, 66
  %v2986 = vpop.permute.xlu0 %2985
  %v2987 = vrot.slane %v2986, 4
  %v2988 = vsel %vm2851, %v2987, %v2986
  %2990 = vst.msk [vmem:[#allocation4 + $0xe] sm:$0x11] %vm2856, %v2988
  %2991 = vst.sshfl [vmem:[#allocation1] sm:$0xff pattern:$0x75316420] %v2782
  %s2992 = scalar_lea.vmem [#allocation1], 1
  %v2993 = vld [vmem:[%s2992] ss:$2 sm:$0xff]
  %v2994 = vrot.slane %v2993, 6
  %v2995 = vrot.slane %v2994, 4
  %2996 = vrot.lane.b32.xlu0 %v2995, 28
  %v2997 = vpop.permute.xlu0 %2996
  %2999 = vst.msk [vmem:[#allocation4 + $0x12] sm:$0x1] %vm2866, %v2997
  %3000 = vst.sshfl [vmem:[#allocation1] sm:$0xff pattern:$0x75316420] %v2782
  %s3001 = scalar_lea.vmem [#allocation1], 1
  %v3002 = vld [vmem:[%s3001] ss:$2 sm:$0xff]
  %v3003 = vrot.slane %v3002, 7
  %v3004 = vrot.slane %v3003, 4
  %3005 = vrot.lane.b32.xlu0 %v3004, 118
  %v3006 = vpop.permute.xlu0 %3005
  %v3007 = vrot.slane %v3006, 4
  %v3008 = vsel %vm2876, %v3007, %v3006
  %3010 = vst.msk [vmem:[#allocation4 + $0x12] sm:$0x11] %vm2881, %v3008
  %3011 = vst.msk [vmem:[#allocation4 + $0x3] sm:$0x1] %vm2796, %v2783
  %v3013 = vrot.slane %v2783, 5
  %v3014 = vrot.slane %v3013, 4
  %3015 = vrot.lane.b32.xlu0 %v3014, 90
  %v3016 = vpop.permute.xlu0 %3015
  %v3017 = vrot.slane %v3016, 4
  %v3018 = vsel %vm2804, %v3017, %v3016
  %3020 = vst.msk [vmem:[#allocation4 + $0x3] sm:$0x11] %vm2809, %v3018
  %v3021 = vrot.slane %v2783, 6
  %v3022 = vrot.slane %v3021, 4
  %3023 = vrot.lane.b32.xlu0 %v3022, 52
  %v3024 = vpop.permute.xlu0 %3023
  %v3025 = vrot.slane %v3024, 4
  %v3026 = vsel %vm2816, %v3025, %v3024
  %3028 = vst.msk [vmem:[#allocation4 + $0x7] sm:$0x11] %vm2821, %v3026
  %v3029 = vrot.slane %v2783, 7
  %v3030 = vrot.slane %v3029, 4
  %3031 = vrot.lane.b32.xlu0 %v3030, 14
  %v3032 = vpop.permute.xlu0 %3031
  %3034 = vst.msk [vmem:[#allocation4 + $0xb] sm:$0x1] %vm2828, %v3032
  %3035 = vst.sshfl [vmem:[#allocation1] sm:$0xff pattern:$0x75316420] %v2783
  %s3036 = scalar_lea.vmem [#allocation1], 1
  %v3037 = vld [vmem:[%s3036] ss:$2 sm:$0xff]
  %3038 = vrot.lane.b32.xlu0 %v3037, 104
  %v3039 = vpop.permute.xlu0 %3038
  %v3040 = vrot.slane %v3039, 4
  %v3041 = vsel %vm2836, %v3040, %v3039
  %3043 = vst.msk [vmem:[#allocation4 + $0xb] sm:$0x11] %vm2841, %v3041
  %3044 = vst.sshfl [vmem:[#allocation1] sm:$0xff pattern:$0x75316420] %v2783
  %s3045 = scalar_lea.vmem [#allocation1], 1
  %v3046 = vld [vmem:[%s3045] ss:$2 sm:$0xff]
  %v3047 = vrot.slane %v3046, 5
  %v3048 = vrot.slane %v3047, 4
  %3049 = vrot.lane.b32.xlu0 %v3048, 66
  %v3050 = vpop.permute.xlu0 %3049
  %v3051 = vrot.slane %v3050, 4
  %v3052 = vsel %vm2851, %v3051, %v3050
  %3054 = vst.msk [vmem:[#allocation4 + $0xf] sm:$0x11] %vm2856, %v3052
  %3055 = vst.sshfl [vmem:[#allocation1] sm:$0xff pattern:$0x75316420] %v2783
  %s3056 = scalar_lea.vmem [#allocation1], 1
  %v3057 = vld [vmem:[%s3056] ss:$2 sm:$0xff]
  %v3058 = vrot.slane %v3057, 6
  %v3059 = vrot.slane %v3058, 4
  %3060 = vrot.lane.b32.xlu0 %v3059, 28
  %v3061 = vpop.permute.xlu0 %3060
  %3063 = vst.msk [vmem:[#allocation4 + $0x13] sm:$0x1] %vm2866, %v3061
  %3064 = vst.sshfl [vmem:[#allocation1] sm:$0xff pattern:$0x75316420] %v2783
  %s3065 = scalar_lea.vmem [#allocation1], 1
  %v3066 = vld [vmem:[%s3065] ss:$2 sm:$0xff]
  %v3067 = vrot.slane %v3066, 7
  %v3068 = vrot.slane %v3067, 4
  %3069 = vrot.lane.b32.xlu0 %v3068, 118
  %v3070 = vpop.permute.xlu0 %3069
  %v3071 = vrot.slane %v3070, 4
  %v3072 = vsel %vm2876, %v3071, %v3070
  %3074 = vst.msk [vmem:[#allocation4 + $0x13] sm:$0x11] %vm2881, %v3072
  %v3075 = vld [vmem:[%s6] sm:$0x3]
  %s3076 = smul.u32 4, 90
  %s3077 = smul.u32 %s3076, 2
  %s3078 = sshll.u32 %s3077, 4
  %3079 = dma.done [#allocation6], %s3078
  %v3080 = vld [vmem:[#allocation4] ss:$4 sm:$0x3f]
  %v3082 = vperm.slane %v3080, 0
  %v3083 = vperm.slane %v3080, 1
  %v3084 = vperm.slane %v3080, 2
  %v3085 = vperm.slane %v3080, 3
  %v3086 = vperm.slane %v3080, 4
  %v3087 = vperm.slane %v3080, 5
  %v3094 = vpack.c.bf16 %v3082, %v3082
  %v3095 = vpack.c.bf16 %v3083, %v3083
  %v3096 = vpack.c.bf16 %v3084, %v3084
  %v3097 = vpack.c.bf16 %v3085, %v3085
  %v3098 = vpack.c.bf16 %v3086, %v3086
  %v3099 = vpack.c.bf16 %v3087, %v3087
  %v3100 = vld [vmem:[#allocation5] sm:$0xff]
  %v3101 = vld [vmem:[#allocation5 + $0x8] sm:$0xff]
  %v3102 = vld [vmem:[#allocation5 + $0x10] sm:$0xff]
  %v3103 = vld [vmem:[#allocation5 + $0x18] sm:$0xff]
  %v3104 = vld [vmem:[#allocation5 + $0x20] sm:$0xff]
  %v3105 = vld [vmem:[#allocation5 + $0x28] sm:$0xff]
  %v3106 = vld [vmem:[#allocation5 + $0x30] sm:$0xff]
  %v3107 = vld [vmem:[#allocation5 + $0x38] sm:$0xff]
  %v3108 = vld [vmem:[#allocation5 + $0x40] sm:$0xff]
  %v3109 = vld [vmem:[#allocation5 + $0x48] sm:$0xff]
  %v3110 = vld [vmem:[#allocation5 + $0x50] sm:$0xff]
  %v3111 = vld [vmem:[#allocation5 + $0x58] sm:$0xff]
  %v3112 = vld [vmem:[#allocation5 + $0x60] sm:$0xff]
  %v3113 = vld [vmem:[#allocation5 + $0x68] sm:$0xff]
  %v3114 = vld [vmem:[#allocation5 + $0x70] sm:$0xff]
  %v3115 = vld [vmem:[#allocation5 + $0x78] sm:$0xff]
  %v3116 = vld [vmem:[#allocation5 + $0x80] sm:$0xff]
  %v3117 = vld [vmem:[#allocation5 + $0x88] sm:$0xff]
  %v3118 = vld [vmem:[#allocation5 + $0x90] sm:$0xff]
  %v3119 = vld [vmem:[#allocation5 + $0x98] sm:$0xff]
  %v3120 = vld [vmem:[#allocation5 + $0xa0] sm:$0xff]
  %v3121 = vld [vmem:[#allocation5 + $0xa8] sm:$0xff]
  %v3122 = vld [vmem:[#allocation5 + $0xb0] sm:$0xff]
  %v3123 = vld [vmem:[#allocation5 + $0xb8] sm:$0xff]
  %v3124 = vld [vmem:[#allocation5 + $0xc0] sm:$0xff]
  %v3125 = vld [vmem:[#allocation5 + $0xc8] sm:$0xff]
  %v3126 = vld [vmem:[#allocation5 + $0xd0] sm:$0xff]
  %v3127 = vld [vmem:[#allocation5 + $0xd8] sm:$0xff]
  %v3128 = vld [vmem:[#allocation5 + $0xe0] sm:$0xff]
  %v3129 = vld [vmem:[#allocation5 + $0xe8] sm:$0xff]
  %v3130 = vld [vmem:[#allocation5 + $0xf0] sm:$0xff]
  %v3131 = vld [vmem:[#allocation5 + $0xf8] sm:$0xff]
  %v3132 = vld [vmem:[#allocation5 + $0x100] sm:$0xff]
  %v3133 = vld [vmem:[#allocation5 + $0x108] sm:$0xff]
  %v3134 = vld [vmem:[#allocation5 + $0x110] sm:$0xff]
  %v3135 = vld [vmem:[#allocation5 + $0x118] sm:$0xff]
  %v3136 = vld [vmem:[#allocation5 + $0x120] sm:$0xff]
  %v3137 = vld [vmem:[#allocation5 + $0x128] sm:$0xff]
  %v3138 = vld [vmem:[#allocation5 + $0x130] sm:$0xff]
  %v3139 = vld [vmem:[#allocation5 + $0x138] sm:$0xff]
  %v3140 = vld [vmem:[#allocation5 + $0x140] sm:$0xff]
  %v3141 = vld [vmem:[#allocation5 + $0x148] sm:$0xff]
  %v3142 = vld [vmem:[#allocation5 + $0x150] sm:$0xff]
  %v3143 = vld [vmem:[#allocation5 + $0x158] sm:$0xff]
  %v3144 = vld [vmem:[#allocation5 + $0x160] sm:$0xff]
  %v3145 = vld [vmem:[#allocation5 + $0x168] sm:$0xff]
  %v3146 = vld [vmem:[#allocation5 + $0x170] sm:$0xff]
  %v3147 = vld [vmem:[#allocation5 + $0x178] sm:$0xff]
  %v3148 = vld [vmem:[#allocation5 + $0x180] sm:$0xff]
  %v3149 = vld [vmem:[#allocation5 + $0x188] sm:$0xff]
  %v3150 = vld [vmem:[#allocation5 + $0x190] sm:$0xff]
  %v3151 = vld [vmem:[#allocation5 + $0x198] sm:$0xff]
  %v3152 = vld [vmem:[#allocation5 + $0x1a0] sm:$0xff]
  %v3153 = vld [vmem:[#allocation5 + $0x1a8] sm:$0xff]
  %v3154 = vld [vmem:[#allocation5 + $0x1b0] sm:$0xff]
  %v3155 = vld [vmem:[#allocation5 + $0x1b8] sm:$0xff]
  %v3156 = vld [vmem:[#allocation5 + $0x1c0] sm:$0xff]
  %v3157 = vld [vmem:[#allocation5 + $0x1c8] sm:$0xff]
  %v3158 = vld [vmem:[#allocation5 + $0x1d0] sm:$0xff]
  %v3159 = vld [vmem:[#allocation5 + $0x1d8] sm:$0xff]
  %v3160 = vld [vmem:[#allocation5 + $0x1e0] sm:$0xff]
  %v3161 = vld [vmem:[#allocation5 + $0x1e8] sm:$0xff]
  %v3162 = vld [vmem:[#allocation5 + $0x1f0] sm:$0xff]
  %v3163 = vld [vmem:[#allocation5 + $0x1f8] sm:$0xff]
  %v3164 = vld [vmem:[#allocation5 + $0x200] sm:$0xff]
  %v3165 = vld [vmem:[#allocation5 + $0x208] sm:$0xff]
  %v3166 = vld [vmem:[#allocation5 + $0x210] sm:$0xff]
  %v3167 = vld [vmem:[#allocation5 + $0x218] sm:$0xff]
  %v3168 = vld [vmem:[#allocation5 + $0x220] sm:$0xff]
  %v3169 = vld [vmem:[#allocation5 + $0x228] sm:$0xff]
  %v3170 = vld [vmem:[#allocation5 + $0x230] sm:$0xff]
  %v3171 = vld [vmem:[#allocation5 + $0x238] sm:$0xff]
  %v3172 = vld [vmem:[#allocation5 + $0x240] sm:$0xff]
  %v3173 = vld [vmem:[#allocation5 + $0x248] sm:$0xff]
  %v3174 = vld [vmem:[#allocation5 + $0x250] sm:$0xff]
  %v3175 = vld [vmem:[#allocation5 + $0x258] sm:$0xff]
  %v3176 = vld [vmem:[#allocation5 + $0x260] sm:$0xff]
  %v3177 = vld [vmem:[#allocation5 + $0x268] sm:$0xff]
  %v3178 = vld [vmem:[#allocation5 + $0x270] sm:$0xff]
  %v3179 = vld [vmem:[#allocation5 + $0x278] sm:$0xff]
  %v3180 = vld [vmem:[#allocation5 + $0x280] sm:$0xff]
  %v3181 = vld [vmem:[#allocation5 + $0x288] sm:$0xff]
  %v3182 = vld [vmem:[#allocation5 + $0x290] sm:$0xff]
  %v3183 = vld [vmem:[#allocation5 + $0x298] sm:$0xff]
  %v3184 = vld [vmem:[#allocation5 + $0x2a0] sm:$0xff]
  %v3185 = vld [vmem:[#allocation5 + $0x2a8] sm:$0xff]
  %v3186 = vld [vmem:[#allocation5 + $0x2b0] sm:$0xff]
  %v3187 = vld [vmem:[#allocation5 + $0x2b8] sm:$0xff]
  %v3188 = vld [vmem:[#allocation5 + $0x2c0] sm:$0xff]
  %v3189 = vld [vmem:[#allocation5 + $0x2c8] sm:$0xff]
  %v3280 = vunpack.c.l.b16 %v3100
  %v3281 = vunpack.c.h.b16 %v3100
  %v3282 = vunpack.c.l.b16 %v3101
  %v3283 = vunpack.c.h.b16 %v3101
  %v3284 = vunpack.c.l.b16 %v3102
  %v3285 = vunpack.c.h.b16 %v3102
  %v3286 = vunpack.c.l.b16 %v3103
  %v3287 = vunpack.c.h.b16 %v3103
  %v3288 = vunpack.c.l.b16 %v3104
  %v3289 = vunpack.c.h.b16 %v3104
  %v3290 = vunpack.c.l.b16 %v3105
  %v3291 = vunpack.c.h.b16 %v3105
  %v3292 = vunpack.c.l.b16 %v3106
  %v3293 = vunpack.c.h.b16 %v3106
  %v3294 = vunpack.c.l.b16 %v3107
  %v3295 = vunpack.c.h.b16 %v3107
  %v3296 = vunpack.c.l.b16 %v3108
  %v3297 = vunpack.c.h.b16 %v3108
  %v3298 = vunpack.c.l.b16 %v3109
  %v3299 = vunpack.c.h.b16 %v3109
  %v3300 = vunpack.c.l.b16 %v3110
  %v3301 = vunpack.c.h.b16 %v3110
  %v3302 = vunpack.c.l.b16 %v3111
  %v3303 = vunpack.c.h.b16 %v3111
  %v3304 = vunpack.c.l.b16 %v3112
  %v3305 = vunpack.c.h.b16 %v3112
  %v3306 = vunpack.c.l.b16 %v3113
  %v3307 = vunpack.c.h.b16 %v3113
  %v3308 = vunpack.c.l.b16 %v3114
  %v3309 = vunpack.c.h.b16 %v3114
  %v3310 = vunpack.c.l.b16 %v3115
  %v3311 = vunpack.c.h.b16 %v3115
  %v3312 = vunpack.c.l.b16 %v3116
  %v3313 = vunpack.c.h.b16 %v3116
  %v3314 = vunpack.c.l.b16 %v3117
  %v3315 = vunpack.c.h.b16 %v3117
  %v3316 = vunpack.c.l.b16 %v3118
  %v3317 = vunpack.c.h.b16 %v3118
  %v3318 = vunpack.c.l.b16 %v3119
  %v3319 = vunpack.c.h.b16 %v3119
  %v3320 = vunpack.c.l.b16 %v3120
  %v3321 = vunpack.c.h.b16 %v3120
  %v3322 = vunpack.c.l.b16 %v3121
  %v3323 = vunpack.c.h.b16 %v3121
  %v3324 = vunpack.c.l.b16 %v3122
  %v3325 = vunpack.c.h.b16 %v3122
  %v3326 = vunpack.c.l.b16 %v3123
  %v3327 = vunpack.c.h.b16 %v3123
  %v3328 = vunpack.c.l.b16 %v3124
  %v3329 = vunpack.c.h.b16 %v3124
  %v3330 = vunpack.c.l.b16 %v3125
  %v3331 = vunpack.c.h.b16 %v3125
  %v3332 = vunpack.c.l.b16 %v3126
  %v3333 = vunpack.c.h.b16 %v3126
  %v3334 = vunpack.c.l.b16 %v3127
  %v3335 = vunpack.c.h.b16 %v3127
  %v3336 = vunpack.c.l.b16 %v3128
  %v3337 = vunpack.c.h.b16 %v3128
  %v3338 = vunpack.c.l.b16 %v3129
  %v3339 = vunpack.c.h.b16 %v3129
  %v3340 = vunpack.c.l.b16 %v3130
  %v3341 = vunpack.c.h.b16 %v3130
  %v3342 = vunpack.c.l.b16 %v3131
  %v3343 = vunpack.c.h.b16 %v3131
  %v3344 = vunpack.c.l.b16 %v3132
  %v3345 = vunpack.c.h.b16 %v3132
  %v3346 = vunpack.c.l.b16 %v3133
  %v3347 = vunpack.c.h.b16 %v3133
  %v3348 = vunpack.c.l.b16 %v3134
  %v3349 = vunpack.c.h.b16 %v3134
  %v3350 = vunpack.c.l.b16 %v3135
  %v3351 = vunpack.c.h.b16 %v3135
  %v3352 = vunpack.c.l.b16 %v3136
  %v3353 = vunpack.c.h.b16 %v3136
  %v3354 = vunpack.c.l.b16 %v3137
  %v3355 = vunpack.c.h.b16 %v3137
  %v3356 = vunpack.c.l.b16 %v3138
  %v3357 = vunpack.c.h.b16 %v3138
  %v3358 = vunpack.c.l.b16 %v3139
  %v3359 = vunpack.c.h.b16 %v3139
  %v3360 = vunpack.c.l.b16 %v3140
  %v3361 = vunpack.c.h.b16 %v3140
  %v3362 = vunpack.c.l.b16 %v3141
  %v3363 = vunpack.c.h.b16 %v3141
  %v3364 = vunpack.c.l.b16 %v3142
  %v3365 = vunpack.c.h.b16 %v3142
  %v3366 = vunpack.c.l.b16 %v3143
  %v3367 = vunpack.c.h.b16 %v3143
  %v3368 = vunpack.c.l.b16 %v3144
  %v3369 = vunpack.c.h.b16 %v3144
  %v3370 = vunpack.c.l.b16 %v3145
  %v3371 = vunpack.c.h.b16 %v3145
  %v3372 = vunpack.c.l.b16 %v3146
  %v3373 = vunpack.c.h.b16 %v3146
  %v3374 = vunpack.c.l.b16 %v3147
  %v3375 = vunpack.c.h.b16 %v3147
  %v3376 = vunpack.c.l.b16 %v3148
  %v3377 = vunpack.c.h.b16 %v3148
  %v3378 = vunpack.c.l.b16 %v3149
  %v3379 = vunpack.c.h.b16 %v3149
  %v3380 = vunpack.c.l.b16 %v3150
  %v3381 = vunpack.c.h.b16 %v3150
  %v3382 = vunpack.c.l.b16 %v3151
  %v3383 = vunpack.c.h.b16 %v3151
  %v3384 = vunpack.c.l.b16 %v3152
  %v3385 = vunpack.c.h.b16 %v3152
  %v3386 = vunpack.c.l.b16 %v3153
  %v3387 = vunpack.c.h.b16 %v3153
  %v3388 = vunpack.c.l.b16 %v3154
  %v3389 = vunpack.c.h.b16 %v3154
  %v3390 = vunpack.c.l.b16 %v3155
  %v3391 = vunpack.c.h.b16 %v3155
  %v3392 = vunpack.c.l.b16 %v3156
  %v3393 = vunpack.c.h.b16 %v3156
  %v3394 = vunpack.c.l.b16 %v3157
  %v3395 = vunpack.c.h.b16 %v3157
  %v3396 = vunpack.c.l.b16 %v3158
  %v3397 = vunpack.c.h.b16 %v3158
  %v3398 = vunpack.c.l.b16 %v3159
  %v3399 = vunpack.c.h.b16 %v3159
  %v3400 = vunpack.c.l.b16 %v3160
  %v3401 = vunpack.c.h.b16 %v3160
  %v3402 = vunpack.c.l.b16 %v3161
  %v3403 = vunpack.c.h.b16 %v3161
  %v3404 = vunpack.c.l.b16 %v3162
  %v3405 = vunpack.c.h.b16 %v3162
  %v3406 = vunpack.c.l.b16 %v3163
  %v3407 = vunpack.c.h.b16 %v3163
  %v3408 = vunpack.c.l.b16 %v3164
  %v3409 = vunpack.c.h.b16 %v3164
  %v3410 = vunpack.c.l.b16 %v3165
  %v3411 = vunpack.c.h.b16 %v3165
  %v3412 = vunpack.c.l.b16 %v3166
  %v3413 = vunpack.c.h.b16 %v3166
  %v3414 = vunpack.c.l.b16 %v3167
  %v3415 = vunpack.c.h.b16 %v3167
  %v3416 = vunpack.c.l.b16 %v3168
  %v3417 = vunpack.c.h.b16 %v3168
  %v3418 = vunpack.c.l.b16 %v3169
  %v3419 = vunpack.c.h.b16 %v3169
  %v3420 = vunpack.c.l.b16 %v3170
  %v3421 = vunpack.c.h.b16 %v3170
  %v3422 = vunpack.c.l.b16 %v3171
  %v3423 = vunpack.c.h.b16 %v3171
  %v3424 = vunpack.c.l.b16 %v3172
  %v3425 = vunpack.c.h.b16 %v3172
  %v3426 = vunpack.c.l.b16 %v3173
  %v3427 = vunpack.c.h.b16 %v3173
  %v3428 = vunpack.c.l.b16 %v3174
  %v3429 = vunpack.c.h.b16 %v3174
  %v3430 = vunpack.c.l.b16 %v3175
  %v3431 = vunpack.c.h.b16 %v3175
  %v3432 = vunpack.c.l.b16 %v3176
  %v3433 = vunpack.c.h.b16 %v3176
  %v3434 = vunpack.c.l.b16 %v3177
  %v3435 = vunpack.c.h.b16 %v3177
  %v3436 = vunpack.c.l.b16 %v3178
  %v3437 = vunpack.c.h.b16 %v3178
  %v3438 = vunpack.c.l.b16 %v3179
  %v3439 = vunpack.c.h.b16 %v3179
  %v3440 = vunpack.c.l.b16 %v3180
  %v3441 = vunpack.c.h.b16 %v3180
  %v3442 = vunpack.c.l.b16 %v3181
  %v3443 = vunpack.c.h.b16 %v3181
  %v3444 = vunpack.c.l.b16 %v3182
  %v3445 = vunpack.c.h.b16 %v3182
  %v3446 = vunpack.c.l.b16 %v3183
  %v3447 = vunpack.c.h.b16 %v3183
  %v3448 = vunpack.c.l.b16 %v3184
  %v3449 = vunpack.c.h.b16 %v3184
  %v3450 = vunpack.c.l.b16 %v3185
  %v3451 = vunpack.c.h.b16 %v3185
  %v3452 = vunpack.c.l.b16 %v3186
  %v3453 = vunpack.c.h.b16 %v3186
  %v3454 = vunpack.c.l.b16 %v3187
  %v3455 = vunpack.c.h.b16 %v3187
  %v3456 = vunpack.c.l.b16 %v3188
  %v3457 = vunpack.c.h.b16 %v3188
  %v3458 = vunpack.c.l.b16 %v3189
  %v3459 = vunpack.c.h.b16 %v3189
  %v3460 = vpack.c.b16 %v3282, %v3280
  %v3461 = vpack.c.b16 %v3283, %v3281
  %v3462 = vpack.c.b16 %v3286, %v3284
  %v3463 = vpack.c.b16 %v3287, %v3285
  %v3464 = vpack.c.b16 %v3290, %v3288
  %v3465 = vpack.c.b16 %v3291, %v3289
  %v3466 = vpack.c.b16 %v3294, %v3292
  %v3467 = vpack.c.b16 %v3295, %v3293
  %v3468 = vpack.c.b16 %v3298, %v3296
  %v3469 = vpack.c.b16 %v3299, %v3297
  %v3470 = vpack.c.b16 %v3302, %v3300
  %v3471 = vpack.c.b16 %v3303, %v3301
  %v3472 = vpack.c.b16 %v3306, %v3304
  %v3473 = vpack.c.b16 %v3307, %v3305
  %v3474 = vpack.c.b16 %v3310, %v3308
  %v3475 = vpack.c.b16 %v3311, %v3309
  %v3476 = vpack.c.b16 %v3314, %v3312
  %v3477 = vpack.c.b16 %v3315, %v3313
  %v3478 = vpack.c.b16 %v3318, %v3316
  %v3479 = vpack.c.b16 %v3319, %v3317
  %v3480 = vpack.c.b16 %v3322, %v3320
  %v3481 = vpack.c.b16 %v3323, %v3321
  %v3482 = vpack.c.b16 %v3326, %v3324
  %v3483 = vpack.c.b16 %v3327, %v3325
  %v3484 = vpack.c.b16 %v3330, %v3328
  %v3485 = vpack.c.b16 %v3331, %v3329
  %v3486 = vpack.c.b16 %v3334, %v3332
  %v3487 = vpack.c.b16 %v3335, %v3333
  %v3488 = vpack.c.b16 %v3338, %v3336
  %v3489 = vpack.c.b16 %v3339, %v3337
  %v3490 = vpack.c.b16 %v3342, %v3340
  %v3491 = vpack.c.b16 %v3343, %v3341
  %v3492 = vpack.c.b16 %v3346, %v3344
  %v3493 = vpack.c.b16 %v3347, %v3345
  %v3494 = vpack.c.b16 %v3350, %v3348
  %v3495 = vpack.c.b16 %v3351, %v3349
  %v3496 = vpack.c.b16 %v3354, %v3352
  %v3497 = vpack.c.b16 %v3355, %v3353
  %v3498 = vpack.c.b16 %v3358, %v3356
  %v3499 = vpack.c.b16 %v3359, %v3357
  %v3500 = vpack.c.b16 %v3362, %v3360
  %v3501 = vpack.c.b16 %v3363, %v3361
  %v3502 = vpack.c.b16 %v3366, %v3364
  %v3503 = vpack.c.b16 %v3367, %v3365
  %v3504 = vpack.c.b16 %v3370, %v3368
  %v3505 = vpack.c.b16 %v3371, %v3369
  %v3506 = vpack.c.b16 %v3374, %v3372
  %v3507 = vpack.c.b16 %v3375, %v3373
  %v3508 = vpack.c.b16 %v3378, %v3376
  %v3509 = vpack.c.b16 %v3379, %v3377
  %v3510 = vpack.c.b16 %v3382, %v3380
  %v3511 = vpack.c.b16 %v3383, %v3381
  %v3512 = vpack.c.b16 %v3386, %v3384
  %v3513 = vpack.c.b16 %v3387, %v3385
  %v3514 = vpack.c.b16 %v3390, %v3388
  %v3515 = vpack.c.b16 %v3391, %v3389
  %v3516 = vpack.c.b16 %v3394, %v3392
  %v3517 = vpack.c.b16 %v3395, %v3393
  %v3518 = vpack.c.b16 %v3398, %v3396
  %v3519 = vpack.c.b16 %v3399, %v3397
  %v3520 = vpack.c.b16 %v3402, %v3400
  %v3521 = vpack.c.b16 %v3403, %v3401
  %v3522 = vpack.c.b16 %v3406, %v3404
  %v3523 = vpack.c.b16 %v3407, %v3405
  %v3524 = vpack.c.b16 %v3410, %v3408
  %v3525 = vpack.c.b16 %v3411, %v3409
  %v3526 = vpack.c.b16 %v3414, %v3412
  %v3527 = vpack.c.b16 %v3415, %v3413
  %v3528 = vpack.c.b16 %v3418, %v3416
  %v3529 = vpack.c.b16 %v3419, %v3417
  %v3530 = vpack.c.b16 %v3422, %v3420
  %v3531 = vpack.c.b16 %v3423, %v3421
  %v3532 = vpack.c.b16 %v3426, %v3424
  %v3533 = vpack.c.b16 %v3427, %v3425
  %v3534 = vpack.c.b16 %v3430, %v3428
  %v3535 = vpack.c.b16 %v3431, %v3429
  %v3536 = vpack.c.b16 %v3434, %v3432
  %v3537 = vpack.c.b16 %v3435, %v3433
  %v3538 = vpack.c.b16 %v3438, %v3436
  %v3539 = vpack.c.b16 %v3439, %v3437
  %v3540 = vpack.c.b16 %v3442, %v3440
  %v3541 = vpack.c.b16 %v3443, %v3441
  %v3542 = vpack.c.b16 %v3446, %v3444
  %v3543 = vpack.c.b16 %v3447, %v3445
  %v3544 = vpack.c.b16 %v3450, %v3448
  %v3545 = vpack.c.b16 %v3451, %v3449
  %v3546 = vpack.c.b16 %v3454, %v3452
  %v3547 = vpack.c.b16 %v3455, %v3453
  %v3548 = vpack.c.b16 %v3458, %v3456
  %v3549 = vpack.c.b16 %v3459, %v3457
  %vm3640 = vcmask 654336
  %v3642 = vsel %vm3640, %v3099, 0
  %3644 = vmatpush.bf16.msra.mxu0 %v3474
  %3645 = vmatpush.bf16.msra.mxu0 %v3472
  %3646 = vmatpush.bf16.msra.mxu0 %v3470
  %3647 = vmatpush.bf16.msra.mxu0 %v3468
  %3648 = vmatpush.bf16.msra.mxu0 %v3466
  %3649 = vmatpush.bf16.msra.mxu0 %v3464
  %3650 = vmatpush.bf16.msra.mxu0 %v3462
  %3651 = vmatpush.bf16.msra.mxu0 %v3460
  %3652 = vmatmul.bf16.gmra.mxu0 %v3094
  %v3653 = vpop.f32.mrf.mxu0
  %v3654 = vadd.f32 0.0, %v3653
  %v3655 = vpop.f32.mrf.mxu0
  %3656 = vdwg.mxu0
  %3657 = vmatpush.bf16.msra.mxu0 %v3490
  %3658 = vmatpush.bf16.msra.mxu0 %v3488
  %3659 = vmatpush.bf16.msra.mxu0 %v3486
  %3660 = vmatpush.bf16.msra.mxu0 %v3484
  %3661 = vmatpush.bf16.msra.mxu0 %v3482
  %3662 = vmatpush.bf16.msra.mxu0 %v3480
  %3663 = vmatpush.bf16.msra.mxu0 %v3478
  %3664 = vmatpush.bf16.msra.mxu0 %v3476
  %3665 = vmatmul.bf16.gmra.mxu0 %v3095
  %v3666 = vpop.f32.mrf.mxu0
  %v3667 = vadd.f32 %v3654, %v3666
  %v3668 = vpop.f32.mrf.mxu0
  %3669 = vdwg.mxu0
  %3670 = vmatpush.bf16.msra.mxu0 %v3506
  %3671 = vmatpush.bf16.msra.mxu0 %v3504
  %3672 = vmatpush.bf16.msra.mxu0 %v3502
  %3673 = vmatpush.bf16.msra.mxu0 %v3500
  %3674 = vmatpush.bf16.msra.mxu0 %v3498
  %3675 = vmatpush.bf16.msra.mxu0 %v3496
  %3676 = vmatpush.bf16.msra.mxu0 %v3494
  %3677 = vmatpush.bf16.msra.mxu0 %v3492
  %3678 = vmatmul.bf16.gmra.mxu0 %v3096
  %v3679 = vpop.f32.mrf.mxu0
  %v3680 = vadd.f32 %v3667, %v3679
  %v3681 = vpop.f32.mrf.mxu0
  %3682 = vdwg.mxu0
  %3683 = vmatpush.bf16.msra.mxu0 %v3522
  %3684 = vmatpush.bf16.msra.mxu0 %v3520
  %3685 = vmatpush.bf16.msra.mxu0 %v3518
  %3686 = vmatpush.bf16.msra.mxu0 %v3516
  %3687 = vmatpush.bf16.msra.mxu0 %v3514
  %3688 = vmatpush.bf16.msra.mxu0 %v3512
  %3689 = vmatpush.bf16.msra.mxu0 %v3510
  %3690 = vmatpush.bf16.msra.mxu0 %v3508
  %3691 = vmatmul.bf16.gmra.mxu0 %v3097
  %v3692 = vpop.f32.mrf.mxu0
  %v3693 = vadd.f32 %v3680, %v3692
  %v3694 = vpop.f32.mrf.mxu0
  %3695 = vdwg.mxu0
  %3696 = vmatpush.bf16.msra.mxu0 %v3538
  %3697 = vmatpush.bf16.msra.mxu0 %v3536
  %3698 = vmatpush.bf16.msra.mxu0 %v3534
  %3699 = vmatpush.bf16.msra.mxu0 %v3532
  %3700 = vmatpush.bf16.msra.mxu0 %v3530
  %3701 = vmatpush.bf16.msra.mxu0 %v3528
  %3702 = vmatpush.bf16.msra.mxu0 %v3526
  %3703 = vmatpush.bf16.msra.mxu0 %v3524
  %3704 = vmatmul.bf16.gmra.mxu0 %v3098
  %v3705 = vpop.f32.mrf.mxu0
  %v3706 = vadd.f32 %v3693, %v3705
  %v3707 = vpop.f32.mrf.mxu0
  %3708 = vdwg.mxu0
  %3709 = vmatpush.bf16.msra.mxu0 0
  %3710 = vmatpush.bf16.msra.mxu0 0
  %3711 = vmatpush.bf16.msra.mxu0 0
  %3712 = vmatpush.bf16.msra.mxu0 %v3548
  %3713 = vmatpush.bf16.msra.mxu0 %v3546
  %3714 = vmatpush.bf16.msra.mxu0 %v3544
  %3715 = vmatpush.bf16.msra.mxu0 %v3542
  %3716 = vmatpush.bf16.msra.mxu0 %v3540
  %3717 = vmatmul.bf16.gmra.mxu0 %v3642
  %v3718 = vpop.f32.mrf.mxu0
  %v3719 = vadd.f32 %v3706, %v3718
  %v3720 = vpop.f32.mrf.mxu0
  %3721 = vdwg.mxu0
  %3722 = vmatpush.bf16.msra.mxu0 %v3475
  %3723 = vmatpush.bf16.msra.mxu0 %v3473
  %3724 = vmatpush.bf16.msra.mxu0 %v3471
  %3725 = vmatpush.bf16.msra.mxu0 %v3469
  %3726 = vmatpush.bf16.msra.mxu0 %v3467
  %3727 = vmatpush.bf16.msra.mxu0 %v3465
  %3728 = vmatpush.bf16.msra.mxu0 %v3463
  %3729 = vmatpush.bf16.msra.mxu0 %v3461
  %3730 = vmatmul.bf16.gmra.mxu0 %v3094
  %v3731 = vpop.f32.mrf.mxu0
  %v3732 = vadd.f32 0.0, %v3731
  %v3733 = vpop.f32.mrf.mxu0
  %3734 = vdwg.mxu0
  %3735 = vmatpush.bf16.msra.mxu0 %v3491
  %3736 = vmatpush.bf16.msra.mxu0 %v3489
  %3737 = vmatpush.bf16.msra.mxu0 %v3487
  %3738 = vmatpush.bf16.msra.mxu0 %v3485
  %3739 = vmatpush.bf16.msra.mxu0 %v3483
  %3740 = vmatpush.bf16.msra.mxu0 %v3481
  %3741 = vmatpush.bf16.msra.mxu0 %v3479
  %3742 = vmatpush.bf16.msra.mxu0 %v3477
  %3743 = vmatmul.bf16.gmra.mxu0 %v3095
  %v3744 = vpop.f32.mrf.mxu0
  %v3745 = vadd.f32 %v3732, %v3744
  %v3746 = vpop.f32.mrf.mxu0
  %3747 = vdwg.mxu0
  %3748 = vmatpush.bf16.msra.mxu0 %v3507
  %3749 = vmatpush.bf16.msra.mxu0 %v3505
  %3750 = vmatpush.bf16.msra.mxu0 %v3503
  %3751 = vmatpush.bf16.msra.mxu0 %v3501
  %3752 = vmatpush.bf16.msra.mxu0 %v3499
  %3753 = vmatpush.bf16.msra.mxu0 %v3497
  %3754 = vmatpush.bf16.msra.mxu0 %v3495
  %3755 = vmatpush.bf16.msra.mxu0 %v3493
  %3756 = vmatmul.bf16.gmra.mxu0 %v3096
  %v3757 = vpop.f32.mrf.mxu0
  %v3758 = vadd.f32 %v3745, %v3757
  %v3759 = vpop.f32.mrf.mxu0
  %3760 = vdwg.mxu0
  %3761 = vmatpush.bf16.msra.mxu0 %v3523
  %3762 = vmatpush.bf16.msra.mxu0 %v3521
  %3763 = vmatpush.bf16.msra.mxu0 %v3519
  %3764 = vmatpush.bf16.msra.mxu0 %v3517
  %3765 = vmatpush.bf16.msra.mxu0 %v3515
  %3766 = vmatpush.bf16.msra.mxu0 %v3513
  %3767 = vmatpush.bf16.msra.mxu0 %v3511
  %3768 = vmatpush.bf16.msra.mxu0 %v3509
  %3769 = vmatmul.bf16.gmra.mxu0 %v3097
  %v3770 = vpop.f32.mrf.mxu0
  %v3771 = vadd.f32 %v3758, %v3770
  %v3772 = vpop.f32.mrf.mxu0
  %3773 = vdwg.mxu0
  %3774 = vmatpush.bf16.msra.mxu0 %v3539
  %3775 = vmatpush.bf16.msra.mxu0 %v3537
  %3776 = vmatpush.bf16.msra.mxu0 %v3535
  %3777 = vmatpush.bf16.msra.mxu0 %v3533
  %3778 = vmatpush.bf16.msra.mxu0 %v3531
  %3779 = vmatpush.bf16.msra.mxu0 %v3529
  %3780 = vmatpush.bf16.msra.mxu0 %v3527
  %3781 = vmatpush.bf16.msra.mxu0 %v3525
  %3782 = vmatmul.bf16.gmra.mxu0 %v3098
  %v3783 = vpop.f32.mrf.mxu0
  %v3784 = vadd.f32 %v3771, %v3783
  %v3785 = vpop.f32.mrf.mxu0
  %3786 = vdwg.mxu0
  %3787 = vmatpush.bf16.msra.mxu0 0
  %3788 = vmatpush.bf16.msra.mxu0 0
  %3789 = vmatpush.bf16.msra.mxu0 0
  %3790 = vmatpush.bf16.msra.mxu0 %v3549
  %3791 = vmatpush.bf16.msra.mxu0 %v3547
  %3792 = vmatpush.bf16.msra.mxu0 %v3545
  %3793 = vmatpush.bf16.msra.mxu0 %v3543
  %3794 = vmatpush.bf16.msra.mxu0 %v3541
  %3795 = vmatmul.bf16.gmra.mxu0 %v3642
  %v3796 = vpop.f32.mrf.mxu0
  %v3797 = vadd.f32 %v3784, %v3796
  %v3798 = vpop.f32.mrf.mxu0
  %3799 = vdwg.mxu0
  %v3802 = vrot.slane %v3797, 7
  %vm3803 = vcmask 1040384
  %v3804 = vsel %vm3803, %v3719, %v3802
  %v3806 = vadd.f32 %v3075, %v3804
  %s3807 = sshll.u32 %s3077, 4
  %3808 = dma.done %s229, %s3807
  %s3809 = scalar_lea.vmem [#allocation4], 1
  %v3810 = vld [vmem:[%s3809] ss:$4 sm:$0x3f]
  %v3812 = vperm.slane %v3810, 0
  %v3813 = vperm.slane %v3810, 1
  %v3814 = vperm.slane %v3810, 2
  %v3815 = vperm.slane %v3810, 3
  %v3816 = vperm.slane %v3810, 4
  %v3817 = vperm.slane %v3810, 5
  %v3824 = vpack.c.bf16 %v3812, %v3812
  %v3825 = vpack.c.bf16 %v3813, %v3813
  %v3826 = vpack.c.bf16 %v3814, %v3814
  %v3827 = vpack.c.bf16 %v3815, %v3815
  %v3828 = vpack.c.bf16 %v3816, %v3816
  %v3829 = vpack.c.bf16 %v3817, %v3817
  %v3830 = vld [vmem:[%s228] sm:$0xff]
  %v3831 = vld [vmem:[%s228 + $0x8] sm:$0xff]
  %v3832 = vld [vmem:[%s228 + $0x10] sm:$0xff]
  %v3833 = vld [vmem:[%s228 + $0x18] sm:$0xff]
  %v3834 = vld [vmem:[%s228 + $0x20] sm:$0xff]
  %v3835 = vld [vmem:[%s228 + $0x28] sm:$0xff]
  %v3836 = vld [vmem:[%s228 + $0x30] sm:$0xff]
  %v3837 = vld [vmem:[%s228 + $0x38] sm:$0xff]
  %v3838 = vld [vmem:[%s228 + $0x40] sm:$0xff]
  %v3839 = vld [vmem:[%s228 + $0x48] sm:$0xff]
  %v3840 = vld [vmem:[%s228 + $0x50] sm:$0xff]
  %v3841 = vld [vmem:[%s228 + $0x58] sm:$0xff]
  %v3842 = vld [vmem:[%s228 + $0x60] sm:$0xff]
  %v3843 = vld [vmem:[%s228 + $0x68] sm:$0xff]
  %v3844 = vld [vmem:[%s228 + $0x70] sm:$0xff]
  %v3845 = vld [vmem:[%s228 + $0x78] sm:$0xff]
  %v3846 = vld [vmem:[%s228 + $0x80] sm:$0xff]
  %v3847 = vld [vmem:[%s228 + $0x88] sm:$0xff]
  %v3848 = vld [vmem:[%s228 + $0x90] sm:$0xff]
  %v3849 = vld [vmem:[%s228 + $0x98] sm:$0xff]
  %v3850 = vld [vmem:[%s228 + $0xa0] sm:$0xff]
  %v3851 = vld [vmem:[%s228 + $0xa8] sm:$0xff]
  %v3852 = vld [vmem:[%s228 + $0xb0] sm:$0xff]
  %v3853 = vld [vmem:[%s228 + $0xb8] sm:$0xff]
  %v3854 = vld [vmem:[%s228 + $0xc0] sm:$0xff]
  %v3855 = vld [vmem:[%s228 + $0xc8] sm:$0xff]
  %v3856 = vld [vmem:[%s228 + $0xd0] sm:$0xff]
  %v3857 = vld [vmem:[%s228 + $0xd8] sm:$0xff]
  %v3858 = vld [vmem:[%s228 + $0xe0] sm:$0xff]
  %v3859 = vld [vmem:[%s228 + $0xe8] sm:$0xff]
  %v3860 = vld [vmem:[%s228 + $0xf0] sm:$0xff]
  %v3861 = vld [vmem:[%s228 + $0xf8] sm:$0xff]
  %v3862 = vld [vmem:[%s228 + $0x100] sm:$0xff]
  %v3863 = vld [vmem:[%s228 + $0x108] sm:$0xff]
  %v3864 = vld [vmem:[%s228 + $0x110] sm:$0xff]
  %v3865 = vld [vmem:[%s228 + $0x118] sm:$0xff]
  %v3866 = vld [vmem:[%s228 + $0x120] sm:$0xff]
  %v3867 = vld [vmem:[%s228 + $0x128] sm:$0xff]
  %v3868 = vld [vmem:[%s228 + $0x130] sm:$0xff]
  %v3869 = vld [vmem:[%s228 + $0x138] sm:$0xff]
  %v3870 = vld [vmem:[%s228 + $0x140] sm:$0xff]
  %v3871 = vld [vmem:[%s228 + $0x148] sm:$0xff]
  %v3872 = vld [vmem:[%s228 + $0x150] sm:$0xff]
  %v3873 = vld [vmem:[%s228 + $0x158] sm:$0xff]
  %v3874 = vld [vmem:[%s228 + $0x160] sm:$0xff]
  %v3875 = vld [vmem:[%s228 + $0x168] sm:$0xff]
  %v3876 = vld [vmem:[%s228 + $0x170] sm:$0xff]
  %v3877 = vld [vmem:[%s228 + $0x178] sm:$0xff]
  %v3878 = vld [vmem:[%s228 + $0x180] sm:$0xff]
  %v3879 = vld [vmem:[%s228 + $0x188] sm:$0xff]
  %v3880 = vld [vmem:[%s228 + $0x190] sm:$0xff]
  %v3881 = vld [vmem:[%s228 + $0x198] sm:$0xff]
  %v3882 = vld [vmem:[%s228 + $0x1a0] sm:$0xff]
  %v3883 = vld [vmem:[%s228 + $0x1a8] sm:$0xff]
  %v3884 = vld [vmem:[%s228 + $0x1b0] sm:$0xff]
  %v3885 = vld [vmem:[%s228 + $0x1b8] sm:$0xff]
  %v3886 = vld [vmem:[%s228 + $0x1c0] sm:$0xff]
  %v3887 = vld [vmem:[%s228 + $0x1c8] sm:$0xff]
  %v3888 = vld [vmem:[%s228 + $0x1d0] sm:$0xff]
  %v3889 = vld [vmem:[%s228 + $0x1d8] sm:$0xff]
  %v3890 = vld [vmem:[%s228 + $0x1e0] sm:$0xff]
  %v3891 = vld [vmem:[%s228 + $0x1e8] sm:$0xff]
  %v3892 = vld [vmem:[%s228 + $0x1f0] sm:$0xff]
  %v3893 = vld [vmem:[%s228 + $0x1f8] sm:$0xff]
  %v3894 = vld [vmem:[%s228 + $0x200] sm:$0xff]
  %v3895 = vld [vmem:[%s228 + $0x208] sm:$0xff]
  %v3896 = vld [vmem:[%s228 + $0x210] sm:$0xff]
  %v3897 = vld [vmem:[%s228 + $0x218] sm:$0xff]
  %v3898 = vld [vmem:[%s228 + $0x220] sm:$0xff]
  %v3899 = vld [vmem:[%s228 + $0x228] sm:$0xff]
  %v3900 = vld [vmem:[%s228 + $0x230] sm:$0xff]
  %v3901 = vld [vmem:[%s228 + $0x238] sm:$0xff]
  %v3902 = vld [vmem:[%s228 + $0x240] sm:$0xff]
  %v3903 = vld [vmem:[%s228 + $0x248] sm:$0xff]
  %v3904 = vld [vmem:[%s228 + $0x250] sm:$0xff]
  %v3905 = vld [vmem:[%s228 + $0x258] sm:$0xff]
  %v3906 = vld [vmem:[%s228 + $0x260] sm:$0xff]
  %v3907 = vld [vmem:[%s228 + $0x268] sm:$0xff]
  %v3908 = vld [vmem:[%s228 + $0x270] sm:$0xff]
  %v3909 = vld [vmem:[%s228 + $0x278] sm:$0xff]
  %v3910 = vld [vmem:[%s228 + $0x280] sm:$0xff]
  %v3911 = vld [vmem:[%s228 + $0x288] sm:$0xff]
  %v3912 = vld [vmem:[%s228 + $0x290] sm:$0xff]
  %v3913 = vld [vmem:[%s228 + $0x298] sm:$0xff]
  %v3914 = vld [vmem:[%s228 + $0x2a0] sm:$0xff]
  %v3915 = vld [vmem:[%s228 + $0x2a8] sm:$0xff]
  %v3916 = vld [vmem:[%s228 + $0x2b0] sm:$0xff]
  %v3917 = vld [vmem:[%s228 + $0x2b8] sm:$0xff]
  %v3918 = vld [vmem:[%s228 + $0x2c0] sm:$0xff]
  %v3919 = vld [vmem:[%s228 + $0x2c8] sm:$0xff]
  %v4010 = vunpack.c.l.b16 %v3830
  %v4011 = vunpack.c.h.b16 %v3830
  %v4012 = vunpack.c.l.b16 %v3831
  %v4013 = vunpack.c.h.b16 %v3831
  %v4014 = vunpack.c.l.b16 %v3832
  %v4015 = vunpack.c.h.b16 %v3832
  %v4016 = vunpack.c.l.b16 %v3833
  %v4017 = vunpack.c.h.b16 %v3833
  %v4018 = vunpack.c.l.b16 %v3834
  %v4019 = vunpack.c.h.b16 %v3834
  %v4020 = vunpack.c.l.b16 %v3835
  %v4021 = vunpack.c.h.b16 %v3835
  %v4022 = vunpack.c.l.b16 %v3836
  %v4023 = vunpack.c.h.b16 %v3836
  %v4024 = vunpack.c.l.b16 %v3837
  %v4025 = vunpack.c.h.b16 %v3837
  %v4026 = vunpack.c.l.b16 %v3838
  %v4027 = vunpack.c.h.b16 %v3838
  %v4028 = vunpack.c.l.b16 %v3839
  %v4029 = vunpack.c.h.b16 %v3839
  %v4030 = vunpack.c.l.b16 %v3840
  %v4031 = vunpack.c.h.b16 %v3840
  %v4032 = vunpack.c.l.b16 %v3841
  %v4033 = vunpack.c.h.b16 %v3841
  %v4034 = vunpack.c.l.b16 %v3842
  %v4035 = vunpack.c.h.b16 %v3842
  %v4036 = vunpack.c.l.b16 %v3843
  %v4037 = vunpack.c.h.b16 %v3843
  %v4038 = vunpack.c.l.b16 %v3844
  %v4039 = vunpack.c.h.b16 %v3844
  %v4040 = vunpack.c.l.b16 %v3845
  %v4041 = vunpack.c.h.b16 %v3845
  %v4042 = vunpack.c.l.b16 %v3846
  %v4043 = vunpack.c.h.b16 %v3846
  %v4044 = vunpack.c.l.b16 %v3847
  %v4045 = vunpack.c.h.b16 %v3847
  %v4046 = vunpack.c.l.b16 %v3848
  %v4047 = vunpack.c.h.b16 %v3848
  %v4048 = vunpack.c.l.b16 %v3849
  %v4049 = vunpack.c.h.b16 %v3849
  %v4050 = vunpack.c.l.b16 %v3850
  %v4051 = vunpack.c.h.b16 %v3850
  %v4052 = vunpack.c.l.b16 %v3851
  %v4053 = vunpack.c.h.b16 %v3851
  %v4054 = vunpack.c.l.b16 %v3852
  %v4055 = vunpack.c.h.b16 %v3852
  %v4056 = vunpack.c.l.b16 %v3853
  %v4057 = vunpack.c.h.b16 %v3853
  %v4058 = vunpack.c.l.b16 %v3854
  %v4059 = vunpack.c.h.b16 %v3854
  %v4060 = vunpack.c.l.b16 %v3855
  %v4061 = vunpack.c.h.b16 %v3855
  %v4062 = vunpack.c.l.b16 %v3856
  %v4063 = vunpack.c.h.b16 %v3856
  %v4064 = vunpack.c.l.b16 %v3857
  %v4065 = vunpack.c.h.b16 %v3857
  %v4066 = vunpack.c.l.b16 %v3858
  %v4067 = vunpack.c.h.b16 %v3858
  %v4068 = vunpack.c.l.b16 %v3859
  %v4069 = vunpack.c.h.b16 %v3859
  %v4070 = vunpack.c.l.b16 %v3860
  %v4071 = vunpack.c.h.b16 %v3860
  %v4072 = vunpack.c.l.b16 %v3861
  %v4073 = vunpack.c.h.b16 %v3861
  %v4074 = vunpack.c.l.b16 %v3862
  %v4075 = vunpack.c.h.b16 %v3862
  %v4076 = vunpack.c.l.b16 %v3863
  %v4077 = vunpack.c.h.b16 %v3863
  %v4078 = vunpack.c.l.b16 %v3864
  %v4079 = vunpack.c.h.b16 %v3864
  %v4080 = vunpack.c.l.b16 %v3865
  %v4081 = vunpack.c.h.b16 %v3865
  %v4082 = vunpack.c.l.b16 %v3866
  %v4083 = vunpack.c.h.b16 %v3866
  %v4084 = vunpack.c.l.b16 %v3867
  %v4085 = vunpack.c.h.b16 %v3867
  %v4086 = vunpack.c.l.b16 %v3868
  %v4087 = vunpack.c.h.b16 %v3868
  %v4088 = vunpack.c.l.b16 %v3869
  %v4089 = vunpack.c.h.b16 %v3869
  %v4090 = vunpack.c.l.b16 %v3870
  %v4091 = vunpack.c.h.b16 %v3870
  %v4092 = vunpack.c.l.b16 %v3871
  %v4093 = vunpack.c.h.b16 %v3871
  %v4094 = vunpack.c.l.b16 %v3872
  %v4095 = vunpack.c.h.b16 %v3872
  %v4096 = vunpack.c.l.b16 %v3873
  %v4097 = vunpack.c.h.b16 %v3873
  %v4098 = vunpack.c.l.b16 %v3874
  %v4099 = vunpack.c.h.b16 %v3874
  %v4100 = vunpack.c.l.b16 %v3875
  %v4101 = vunpack.c.h.b16 %v3875
  %v4102 = vunpack.c.l.b16 %v3876
  %v4103 = vunpack.c.h.b16 %v3876
  %v4104 = vunpack.c.l.b16 %v3877
  %v4105 = vunpack.c.h.b16 %v3877
  %v4106 = vunpack.c.l.b16 %v3878
  %v4107 = vunpack.c.h.b16 %v3878
  %v4108 = vunpack.c.l.b16 %v3879
  %v4109 = vunpack.c.h.b16 %v3879
  %v4110 = vunpack.c.l.b16 %v3880
  %v4111 = vunpack.c.h.b16 %v3880
  %v4112 = vunpack.c.l.b16 %v3881
  %v4113 = vunpack.c.h.b16 %v3881
  %v4114 = vunpack.c.l.b16 %v3882
  %v4115 = vunpack.c.h.b16 %v3882
  %v4116 = vunpack.c.l.b16 %v3883
  %v4117 = vunpack.c.h.b16 %v3883
  %v4118 = vunpack.c.l.b16 %v3884
  %v4119 = vunpack.c.h.b16 %v3884
  %v4120 = vunpack.c.l.b16 %v3885
  %v4121 = vunpack.c.h.b16 %v3885
  %v4122 = vunpack.c.l.b16 %v3886
  %v4123 = vunpack.c.h.b16 %v3886
  %v4124 = vunpack.c.l.b16 %v3887
  %v4125 = vunpack.c.h.b16 %v3887
  %v4126 = vunpack.c.l.b16 %v3888
  %v4127 = vunpack.c.h.b16 %v3888
  %v4128 = vunpack.c.l.b16 %v3889
  %v4129 = vunpack.c.h.b16 %v3889
  %v4130 = vunpack.c.l.b16 %v3890
  %v4131 = vunpack.c.h.b16 %v3890
  %v4132 = vunpack.c.l.b16 %v3891
  %v4133 = vunpack.c.h.b16 %v3891
  %v4134 = vunpack.c.l.b16 %v3892
  %v4135 = vunpack.c.h.b16 %v3892
  %v4136 = vunpack.c.l.b16 %v3893
  %v4137 = vunpack.c.h.b16 %v3893
  %v4138 = vunpack.c.l.b16 %v3894
  %v4139 = vunpack.c.h.b16 %v3894
  %v4140 = vunpack.c.l.b16 %v3895
  %v4141 = vunpack.c.h.b16 %v3895
  %v4142 = vunpack.c.l.b16 %v3896
  %v4143 = vunpack.c.h.b16 %v3896
  %v4144 = vunpack.c.l.b16 %v3897
  %v4145 = vunpack.c.h.b16 %v3897
  %v4146 = vunpack.c.l.b16 %v3898
  %v4147 = vunpack.c.h.b16 %v3898
  %v4148 = vunpack.c.l.b16 %v3899
  %v4149 = vunpack.c.h.b16 %v3899
  %v4150 = vunpack.c.l.b16 %v3900
  %v4151 = vunpack.c.h.b16 %v3900
  %v4152 = vunpack.c.l.b16 %v3901
  %v4153 = vunpack.c.h.b16 %v3901
  %v4154 = vunpack.c.l.b16 %v3902
  %v4155 = vunpack.c.h.b16 %v3902
  %v4156 = vunpack.c.l.b16 %v3903
  %v4157 = vunpack.c.h.b16 %v3903
  %v4158 = vunpack.c.l.b16 %v3904
  %v4159 = vunpack.c.h.b16 %v3904
  %v4160 = vunpack.c.l.b16 %v3905
  %v4161 = vunpack.c.h.b16 %v3905
  %v4162 = vunpack.c.l.b16 %v3906
  %v4163 = vunpack.c.h.b16 %v3906
  %v4164 = vunpack.c.l.b16 %v3907
  %v4165 = vunpack.c.h.b16 %v3907
  %v4166 = vunpack.c.l.b16 %v3908
  %v4167 = vunpack.c.h.b16 %v3908
  %v4168 = vunpack.c.l.b16 %v3909
  %v4169 = vunpack.c.h.b16 %v3909
  %v4170 = vunpack.c.l.b16 %v3910
  %v4171 = vunpack.c.h.b16 %v3910
  %v4172 = vunpack.c.l.b16 %v3911
  %v4173 = vunpack.c.h.b16 %v3911
  %v4174 = vunpack.c.l.b16 %v3912
  %v4175 = vunpack.c.h.b16 %v3912
  %v4176 = vunpack.c.l.b16 %v3913
  %v4177 = vunpack.c.h.b16 %v3913
  %v4178 = vunpack.c.l.b16 %v3914
  %v4179 = vunpack.c.h.b16 %v3914
  %v4180 = vunpack.c.l.b16 %v3915
  %v4181 = vunpack.c.h.b16 %v3915
  %v4182 = vunpack.c.l.b16 %v3916
  %v4183 = vunpack.c.h.b16 %v3916
  %v4184 = vunpack.c.l.b16 %v3917
  %v4185 = vunpack.c.h.b16 %v3917
  %v4186 = vunpack.c.l.b16 %v3918
  %v4187 = vunpack.c.h.b16 %v3918
  %v4188 = vunpack.c.l.b16 %v3919
  %v4189 = vunpack.c.h.b16 %v3919
  %v4190 = vpack.c.b16 %v4012, %v4010
  %v4191 = vpack.c.b16 %v4013, %v4011
  %v4192 = vpack.c.b16 %v4016, %v4014
  %v4193 = vpack.c.b16 %v4017, %v4015
  %v4194 = vpack.c.b16 %v4020, %v4018
  %v4195 = vpack.c.b16 %v4021, %v4019
  %v4196 = vpack.c.b16 %v4024, %v4022
  %v4197 = vpack.c.b16 %v4025, %v4023
  %v4198 = vpack.c.b16 %v4028, %v4026
  %v4199 = vpack.c.b16 %v4029, %v4027
  %v4200 = vpack.c.b16 %v4032, %v4030
  %v4201 = vpack.c.b16 %v4033, %v4031
  %v4202 = vpack.c.b16 %v4036, %v4034
  %v4203 = vpack.c.b16 %v4037, %v4035
  %v4204 = vpack.c.b16 %v4040, %v4038
  %v4205 = vpack.c.b16 %v4041, %v4039
  %v4206 = vpack.c.b16 %v4044, %v4042
  %v4207 = vpack.c.b16 %v4045, %v4043
  %v4208 = vpack.c.b16 %v4048, %v4046
  %v4209 = vpack.c.b16 %v4049, %v4047
  %v4210 = vpack.c.b16 %v4052, %v4050
  %v4211 = vpack.c.b16 %v4053, %v4051
  %v4212 = vpack.c.b16 %v4056, %v4054
  %v4213 = vpack.c.b16 %v4057, %v4055
  %v4214 = vpack.c.b16 %v4060, %v4058
  %v4215 = vpack.c.b16 %v4061, %v4059
  %v4216 = vpack.c.b16 %v4064, %v4062
  %v4217 = vpack.c.b16 %v4065, %v4063
  %v4218 = vpack.c.b16 %v4068, %v4066
  %v4219 = vpack.c.b16 %v4069, %v4067
  %v4220 = vpack.c.b16 %v4072, %v4070
  %v4221 = vpack.c.b16 %v4073, %v4071
  %v4222 = vpack.c.b16 %v4076, %v4074
  %v4223 = vpack.c.b16 %v4077, %v4075
  %v4224 = vpack.c.b16 %v4080, %v4078
  %v4225 = vpack.c.b16 %v4081, %v4079
  %v4226 = vpack.c.b16 %v4084, %v4082
  %v4227 = vpack.c.b16 %v4085, %v4083
  %v4228 = vpack.c.b16 %v4088, %v4086
  %v4229 = vpack.c.b16 %v4089, %v4087
  %v4230 = vpack.c.b16 %v4092, %v4090
  %v4231 = vpack.c.b16 %v4093, %v4091
  %v4232 = vpack.c.b16 %v4096, %v4094
  %v4233 = vpack.c.b16 %v4097, %v4095
  %v4234 = vpack.c.b16 %v4100, %v4098
  %v4235 = vpack.c.b16 %v4101, %v4099
  %v4236 = vpack.c.b16 %v4104, %v4102
  %v4237 = vpack.c.b16 %v4105, %v4103
  %v4238 = vpack.c.b16 %v4108, %v4106
  %v4239 = vpack.c.b16 %v4109, %v4107
  %v4240 = vpack.c.b16 %v4112, %v4110
  %v4241 = vpack.c.b16 %v4113, %v4111
  %v4242 = vpack.c.b16 %v4116, %v4114
  %v4243 = vpack.c.b16 %v4117, %v4115
  %v4244 = vpack.c.b16 %v4120, %v4118
  %v4245 = vpack.c.b16 %v4121, %v4119
  %v4246 = vpack.c.b16 %v4124, %v4122
  %v4247 = vpack.c.b16 %v4125, %v4123
  %v4248 = vpack.c.b16 %v4128, %v4126
  %v4249 = vpack.c.b16 %v4129, %v4127
  %v4250 = vpack.c.b16 %v4132, %v4130
  %v4251 = vpack.c.b16 %v4133, %v4131
  %v4252 = vpack.c.b16 %v4136, %v4134
  %v4253 = vpack.c.b16 %v4137, %v4135
  %v4254 = vpack.c.b16 %v4140, %v4138
  %v4255 = vpack.c.b16 %v4141, %v4139
  %v4256 = vpack.c.b16 %v4144, %v4142
  %v4257 = vpack.c.b16 %v4145, %v4143
  %v4258 = vpack.c.b16 %v4148, %v4146
  %v4259 = vpack.c.b16 %v4149, %v4147
  %v4260 = vpack.c.b16 %v4152, %v4150
  %v4261 = vpack.c.b16 %v4153, %v4151
  %v4262 = vpack.c.b16 %v4156, %v4154
  %v4263 = vpack.c.b16 %v4157, %v4155
  %v4264 = vpack.c.b16 %v4160, %v4158
  %v4265 = vpack.c.b16 %v4161, %v4159
  %v4266 = vpack.c.b16 %v4164, %v4162
  %v4267 = vpack.c.b16 %v4165, %v4163
  %v4268 = vpack.c.b16 %v4168, %v4166
  %v4269 = vpack.c.b16 %v4169, %v4167
  %v4270 = vpack.c.b16 %v4172, %v4170
  %v4271 = vpack.c.b16 %v4173, %v4171
  %v4272 = vpack.c.b16 %v4176, %v4174
  %v4273 = vpack.c.b16 %v4177, %v4175
  %v4274 = vpack.c.b16 %v4180, %v4178
  %v4275 = vpack.c.b16 %v4181, %v4179
  %v4276 = vpack.c.b16 %v4184, %v4182
  %v4277 = vpack.c.b16 %v4185, %v4183
  %v4278 = vpack.c.b16 %v4188, %v4186
  %v4279 = vpack.c.b16 %v4189, %v4187
  %v4371 = vsel %vm3640, %v3829, 0
  %4373 = vmatpush.bf16.msra.mxu0 %v4204
  %4374 = vmatpush.bf16.msra.mxu0 %v4202
  %4375 = vmatpush.bf16.msra.mxu0 %v4200
  %4376 = vmatpush.bf16.msra.mxu0 %v4198
  %4377 = vmatpush.bf16.msra.mxu0 %v4196
  %4378 = vmatpush.bf16.msra.mxu0 %v4194
  %4379 = vmatpush.bf16.msra.mxu0 %v4192
  %4380 = vmatpush.bf16.msra.mxu0 %v4190
  %4381 = vmatmul.bf16.gmra.mxu0 %v3824
  %v4382 = vpop.f32.mrf.mxu0
  %v4383 = vadd.f32 0.0, %v4382
  %v4384 = vpop.f32.mrf.mxu0
  %4385 = vdwg.mxu0
  %4386 = vmatpush.bf16.msra.mxu0 %v4220
  %4387 = vmatpush.bf16.msra.mxu0 %v4218
  %4388 = vmatpush.bf16.msra.mxu0 %v4216
  %4389 = vmatpush.bf16.msra.mxu0 %v4214
  %4390 = vmatpush.bf16.msra.mxu0 %v4212
  %4391 = vmatpush.bf16.msra.mxu0 %v4210
  %4392 = vmatpush.bf16.msra.mxu0 %v4208
  %4393 = vmatpush.bf16.msra.mxu0 %v4206
  %4394 = vmatmul.bf16.gmra.mxu0 %v3825
  %v4395 = vpop.f32.mrf.mxu0
  %v4396 = vadd.f32 %v4383, %v4395
  %v4397 = vpop.f32.mrf.mxu0
  %4398 = vdwg.mxu0
  %4399 = vmatpush.bf16.msra.mxu0 %v4236
  %4400 = vmatpush.bf16.msra.mxu0 %v4234
  %4401 = vmatpush.bf16.msra.mxu0 %v4232
  %4402 = vmatpush.bf16.msra.mxu0 %v4230
  %4403 = vmatpush.bf16.msra.mxu0 %v4228
  %4404 = vmatpush.bf16.msra.mxu0 %v4226
  %4405 = vmatpush.bf16.msra.mxu0 %v4224
  %4406 = vmatpush.bf16.msra.mxu0 %v4222
  %4407 = vmatmul.bf16.gmra.mxu0 %v3826
  %v4408 = vpop.f32.mrf.mxu0
  %v4409 = vadd.f32 %v4396, %v4408
  %v4410 = vpop.f32.mrf.mxu0
  %4411 = vdwg.mxu0
  %4412 = vmatpush.bf16.msra.mxu0 %v4252
  %4413 = vmatpush.bf16.msra.mxu0 %v4250
  %4414 = vmatpush.bf16.msra.mxu0 %v4248
  %4415 = vmatpush.bf16.msra.mxu0 %v4246
  %4416 = vmatpush.bf16.msra.mxu0 %v4244
  %4417 = vmatpush.bf16.msra.mxu0 %v4242
  %4418 = vmatpush.bf16.msra.mxu0 %v4240
  %4419 = vmatpush.bf16.msra.mxu0 %v4238
  %4420 = vmatmul.bf16.gmra.mxu0 %v3827
  %v4421 = vpop.f32.mrf.mxu0
  %v4422 = vadd.f32 %v4409, %v4421
  %v4423 = vpop.f32.mrf.mxu0
  %4424 = vdwg.mxu0
  %4425 = vmatpush.bf16.msra.mxu0 %v4268
  %4426 = vmatpush.bf16.msra.mxu0 %v4266
  %4427 = vmatpush.bf16.msra.mxu0 %v4264
  %4428 = vmatpush.bf16.msra.mxu0 %v4262
  %4429 = vmatpush.bf16.msra.mxu0 %v4260
  %4430 = vmatpush.bf16.msra.mxu0 %v4258
  %4431 = vmatpush.bf16.msra.mxu0 %v4256
  %4432 = vmatpush.bf16.msra.mxu0 %v4254
  %4433 = vmatmul.bf16.gmra.mxu0 %v3828
  %v4434 = vpop.f32.mrf.mxu0
  %v4435 = vadd.f32 %v4422, %v4434
  %v4436 = vpop.f32.mrf.mxu0
  %4437 = vdwg.mxu0
  %4438 = vmatpush.bf16.msra.mxu0 0
  %4439 = vmatpush.bf16.msra.mxu0 0
  %4440 = vmatpush.bf16.msra.mxu0 0
  %4441 = vmatpush.bf16.msra.mxu0 %v4278
  %4442 = vmatpush.bf16.msra.mxu0 %v4276
  %4443 = vmatpush.bf16.msra.mxu0 %v4274
  %4444 = vmatpush.bf16.msra.mxu0 %v4272
  %4445 = vmatpush.bf16.msra.mxu0 %v4270
  %4446 = vmatmul.bf16.gmra.mxu0 %v4371
  %v4447 = vpop.f32.mrf.mxu0
  %v4448 = vadd.f32 %v4435, %v4447
  %v4449 = vpop.f32.mrf.mxu0
  %4450 = vdwg.mxu0
  %4451 = vmatpush.bf16.msra.mxu0 %v4205
  %4452 = vmatpush.bf16.msra.mxu0 %v4203
  %4453 = vmatpush.bf16.msra.mxu0 %v4201
  %4454 = vmatpush.bf16.msra.mxu0 %v4199
  %4455 = vmatpush.bf16.msra.mxu0 %v4197
  %4456 = vmatpush.bf16.msra.mxu0 %v4195
  %4457 = vmatpush.bf16.msra.mxu0 %v4193
  %4458 = vmatpush.bf16.msra.mxu0 %v4191
  %4459 = vmatmul.bf16.gmra.mxu0 %v3824
  %v4460 = vpop.f32.mrf.mxu0
  %v4461 = vadd.f32 0.0, %v4460
  %v4462 = vpop.f32.mrf.mxu0
  %4463 = vdwg.mxu0
  %4464 = vmatpush.bf16.msra.mxu0 %v4221
  %4465 = vmatpush.bf16.msra.mxu0 %v4219
  %4466 = vmatpush.bf16.msra.mxu0 %v4217
  %4467 = vmatpush.bf16.msra.mxu0 %v4215
  %4468 = vmatpush.bf16.msra.mxu0 %v4213
  %4469 = vmatpush.bf16.msra.mxu0 %v4211
  %4470 = vmatpush.bf16.msra.mxu0 %v4209
  %4471 = vmatpush.bf16.msra.mxu0 %v4207
  %4472 = vmatmul.bf16.gmra.mxu0 %v3825
  %v4473 = vpop.f32.mrf.mxu0
  %v4474 = vadd.f32 %v4461, %v4473
  %v4475 = vpop.f32.mrf.mxu0
  %4476 = vdwg.mxu0
  %4477 = vmatpush.bf16.msra.mxu0 %v4237
  %4478 = vmatpush.bf16.msra.mxu0 %v4235
  %4479 = vmatpush.bf16.msra.mxu0 %v4233
  %4480 = vmatpush.bf16.msra.mxu0 %v4231
  %4481 = vmatpush.bf16.msra.mxu0 %v4229
  %4482 = vmatpush.bf16.msra.mxu0 %v4227
  %4483 = vmatpush.bf16.msra.mxu0 %v4225
  %4484 = vmatpush.bf16.msra.mxu0 %v4223
  %4485 = vmatmul.bf16.gmra.mxu0 %v3826
  %v4486 = vpop.f32.mrf.mxu0
  %v4487 = vadd.f32 %v4474, %v4486
  %v4488 = vpop.f32.mrf.mxu0
  %4489 = vdwg.mxu0
  %4490 = vmatpush.bf16.msra.mxu0 %v4253
  %4491 = vmatpush.bf16.msra.mxu0 %v4251
  %4492 = vmatpush.bf16.msra.mxu0 %v4249
  %4493 = vmatpush.bf16.msra.mxu0 %v4247
  %4494 = vmatpush.bf16.msra.mxu0 %v4245
  %4495 = vmatpush.bf16.msra.mxu0 %v4243
  %4496 = vmatpush.bf16.msra.mxu0 %v4241
  %4497 = vmatpush.bf16.msra.mxu0 %v4239
  %4498 = vmatmul.bf16.gmra.mxu0 %v3827
  %v4499 = vpop.f32.mrf.mxu0
  %v4500 = vadd.f32 %v4487, %v4499
  %v4501 = vpop.f32.mrf.mxu0
  %4502 = vdwg.mxu0
  %4503 = vmatpush.bf16.msra.mxu0 %v4269
  %4504 = vmatpush.bf16.msra.mxu0 %v4267
  %4505 = vmatpush.bf16.msra.mxu0 %v4265
  %4506 = vmatpush.bf16.msra.mxu0 %v4263
  %4507 = vmatpush.bf16.msra.mxu0 %v4261
  %4508 = vmatpush.bf16.msra.mxu0 %v4259
  %4509 = vmatpush.bf16.msra.mxu0 %v4257
  %4510 = vmatpush.bf16.msra.mxu0 %v4255
  %4511 = vmatmul.bf16.gmra.mxu0 %v3828
  %v4512 = vpop.f32.mrf.mxu0
  %v4513 = vadd.f32 %v4500, %v4512
  %v4514 = vpop.f32.mrf.mxu0
  %4515 = vdwg.mxu0
  %4516 = vmatpush.bf16.msra.mxu0 0
  %4517 = vmatpush.bf16.msra.mxu0 0
  %4518 = vmatpush.bf16.msra.mxu0 0
  %4519 = vmatpush.bf16.msra.mxu0 %v4279
  %4520 = vmatpush.bf16.msra.mxu0 %v4277
  %4521 = vmatpush.bf16.msra.mxu0 %v4275
  %4522 = vmatpush.bf16.msra.mxu0 %v4273
  %4523 = vmatpush.bf16.msra.mxu0 %v4271
  %4524 = vmatmul.bf16.gmra.mxu0 %v4371
  %v4525 = vpop.f32.mrf.mxu0
  %v4526 = vadd.f32 %v4513, %v4525
  %v4527 = vpop.f32.mrf.mxu0
  %4528 = vdwg.mxu0
  %v4531 = vrot.slane %v4526, 7
  %v4532 = vsel %vm3803, %v4448, %v4531
  %v4534 = vadd.f32 %v3806, %v4532
  %s4535 = sshll.u32 %s3077, 4
  %4536 = dma.done %s428, %s4535
  %s4537 = scalar_lea.vmem [#allocation4], 2
  %v4538 = vld [vmem:[%s4537] ss:$4 sm:$0x3f]
  %v4540 = vperm.slane %v4538, 0
  %v4541 = vperm.slane %v4538, 1
  %v4542 = vperm.slane %v4538, 2
  %v4543 = vperm.slane %v4538, 3
  %v4544 = vperm.slane %v4538, 4
  %v4545 = vperm.slane %v4538, 5
  %v4552 = vpack.c.bf16 %v4540, %v4540
  %v4553 = vpack.c.bf16 %v4541, %v4541
  %v4554 = vpack.c.bf16 %v4542, %v4542
  %v4555 = vpack.c.bf16 %v4543, %v4543
  %v4556 = vpack.c.bf16 %v4544, %v4544
  %v4557 = vpack.c.bf16 %v4545, %v4545
  %v4558 = vld [vmem:[%s427] sm:$0xff]
  %v4559 = vld [vmem:[%s427 + $0x8] sm:$0xff]
  %v4560 = vld [vmem:[%s427 + $0x10] sm:$0xff]
  %v4561 = vld [vmem:[%s427 + $0x18] sm:$0xff]
  %v4562 = vld [vmem:[%s427 + $0x20] sm:$0xff]
  %v4563 = vld [vmem:[%s427 + $0x28] sm:$0xff]
  %v4564 = vld [vmem:[%s427 + $0x30] sm:$0xff]
  %v4565 = vld [vmem:[%s427 + $0x38] sm:$0xff]
  %v4566 = vld [vmem:[%s427 + $0x40] sm:$0xff]
  %v4567 = vld [vmem:[%s427 + $0x48] sm:$0xff]
  %v4568 = vld [vmem:[%s427 + $0x50] sm:$0xff]
  %v4569 = vld [vmem:[%s427 + $0x58] sm:$0xff]
  %v4570 = vld [vmem:[%s427 + $0x60] sm:$0xff]
  %v4571 = vld [vmem:[%s427 + $0x68] sm:$0xff]
  %v4572 = vld [vmem:[%s427 + $0x70] sm:$0xff]
  %v4573 = vld [vmem:[%s427 + $0x78] sm:$0xff]
  %v4574 = vld [vmem:[%s427 + $0x80] sm:$0xff]
  %v4575 = vld [vmem:[%s427 + $0x88] sm:$0xff]
  %v4576 = vld [vmem:[%s427 + $0x90] sm:$0xff]
  %v4577 = vld [vmem:[%s427 + $0x98] sm:$0xff]
  %v4578 = vld [vmem:[%s427 + $0xa0] sm:$0xff]
  %v4579 = vld [vmem:[%s427 + $0xa8] sm:$0xff]
  %v4580 = vld [vmem:[%s427 + $0xb0] sm:$0xff]
  %v4581 = vld [vmem:[%s427 + $0xb8] sm:$0xff]
  %v4582 = vld [vmem:[%s427 + $0xc0] sm:$0xff]
  %v4583 = vld [vmem:[%s427 + $0xc8] sm:$0xff]
  %v4584 = vld [vmem:[%s427 + $0xd0] sm:$0xff]
  %v4585 = vld [vmem:[%s427 + $0xd8] sm:$0xff]
  %v4586 = vld [vmem:[%s427 + $0xe0] sm:$0xff]
  %v4587 = vld [vmem:[%s427 + $0xe8] sm:$0xff]
  %v4588 = vld [vmem:[%s427 + $0xf0] sm:$0xff]
  %v4589 = vld [vmem:[%s427 + $0xf8] sm:$0xff]
  %v4590 = vld [vmem:[%s427 + $0x100] sm:$0xff]
  %v4591 = vld [vmem:[%s427 + $0x108] sm:$0xff]
  %v4592 = vld [vmem:[%s427 + $0x110] sm:$0xff]
  %v4593 = vld [vmem:[%s427 + $0x118] sm:$0xff]
  %v4594 = vld [vmem:[%s427 + $0x120] sm:$0xff]
  %v4595 = vld [vmem:[%s427 + $0x128] sm:$0xff]
  %v4596 = vld [vmem:[%s427 + $0x130] sm:$0xff]
  %v4597 = vld [vmem:[%s427 + $0x138] sm:$0xff]
  %v4598 = vld [vmem:[%s427 + $0x140] sm:$0xff]
  %v4599 = vld [vmem:[%s427 + $0x148] sm:$0xff]
  %v4600 = vld [vmem:[%s427 + $0x150] sm:$0xff]
  %v4601 = vld [vmem:[%s427 + $0x158] sm:$0xff]
  %v4602 = vld [vmem:[%s427 + $0x160] sm:$0xff]
  %v4603 = vld [vmem:[%s427 + $0x168] sm:$0xff]
  %v4604 = vld [vmem:[%s427 + $0x170] sm:$0xff]
  %v4605 = vld [vmem:[%s427 + $0x178] sm:$0xff]
  %v4606 = vld [vmem:[%s427 + $0x180] sm:$0xff]
  %v4607 = vld [vmem:[%s427 + $0x188] sm:$0xff]
  %v4608 = vld [vmem:[%s427 + $0x190] sm:$0xff]
  %v4609 = vld [vmem:[%s427 + $0x198] sm:$0xff]
  %v4610 = vld [vmem:[%s427 + $0x1a0] sm:$0xff]
  %v4611 = vld [vmem:[%s427 + $0x1a8] sm:$0xff]
  %v4612 = vld [vmem:[%s427 + $0x1b0] sm:$0xff]
  %v4613 = vld [vmem:[%s427 + $0x1b8] sm:$0xff]
  %v4614 = vld [vmem:[%s427 + $0x1c0] sm:$0xff]
  %v4615 = vld [vmem:[%s427 + $0x1c8] sm:$0xff]
  %v4616 = vld [vmem:[%s427 + $0x1d0] sm:$0xff]
  %v4617 = vld [vmem:[%s427 + $0x1d8] sm:$0xff]
  %v4618 = vld [vmem:[%s427 + $0x1e0] sm:$0xff]
  %v4619 = vld [vmem:[%s427 + $0x1e8] sm:$0xff]
  %v4620 = vld [vmem:[%s427 + $0x1f0] sm:$0xff]
  %v4621 = vld [vmem:[%s427 + $0x1f8] sm:$0xff]
  %v4622 = vld [vmem:[%s427 + $0x200] sm:$0xff]
  %v4623 = vld [vmem:[%s427 + $0x208] sm:$0xff]
  %v4624 = vld [vmem:[%s427 + $0x210] sm:$0xff]
  %v4625 = vld [vmem:[%s427 + $0x218] sm:$0xff]
  %v4626 = vld [vmem:[%s427 + $0x220] sm:$0xff]
  %v4627 = vld [vmem:[%s427 + $0x228] sm:$0xff]
  %v4628 = vld [vmem:[%s427 + $0x230] sm:$0xff]
  %v4629 = vld [vmem:[%s427 + $0x238] sm:$0xff]
  %v4630 = vld [vmem:[%s427 + $0x240] sm:$0xff]
  %v4631 = vld [vmem:[%s427 + $0x248] sm:$0xff]
  %v4632 = vld [vmem:[%s427 + $0x250] sm:$0xff]
  %v4633 = vld [vmem:[%s427 + $0x258] sm:$0xff]
  %v4634 = vld [vmem:[%s427 + $0x260] sm:$0xff]
  %v4635 = vld [vmem:[%s427 + $0x268] sm:$0xff]
  %v4636 = vld [vmem:[%s427 + $0x270] sm:$0xff]
  %v4637 = vld [vmem:[%s427 + $0x278] sm:$0xff]
  %v4638 = vld [vmem:[%s427 + $0x280] sm:$0xff]
  %v4639 = vld [vmem:[%s427 + $0x288] sm:$0xff]
  %v4640 = vld [vmem:[%s427 + $0x290] sm:$0xff]
  %v4641 = vld [vmem:[%s427 + $0x298] sm:$0xff]
  %v4642 = vld [vmem:[%s427 + $0x2a0] sm:$0xff]
  %v4643 = vld [vmem:[%s427 + $0x2a8] sm:$0xff]
  %v4644 = vld [vmem:[%s427 + $0x2b0] sm:$0xff]
  %v4645 = vld [vmem:[%s427 + $0x2b8] sm:$0xff]
  %v4646 = vld [vmem:[%s427 + $0x2c0] sm:$0xff]
  %v4647 = vld [vmem:[%s427 + $0x2c8] sm:$0xff]
  %v4738 = vunpack.c.l.b16 %v4558
  %v4739 = vunpack.c.h.b16 %v4558
  %v4740 = vunpack.c.l.b16 %v4559
  %v4741 = vunpack.c.h.b16 %v4559
  %v4742 = vunpack.c.l.b16 %v4560
  %v4743 = vunpack.c.h.b16 %v4560
  %v4744 = vunpack.c.l.b16 %v4561
  %v4745 = vunpack.c.h.b16 %v4561
  %v4746 = vunpack.c.l.b16 %v4562
  %v4747 = vunpack.c.h.b16 %v4562
  %v4748 = vunpack.c.l.b16 %v4563
  %v4749 = vunpack.c.h.b16 %v4563
  %v4750 = vunpack.c.l.b16 %v4564
  %v4751 = vunpack.c.h.b16 %v4564
  %v4752 = vunpack.c.l.b16 %v4565
  %v4753 = vunpack.c.h.b16 %v4565
  %v4754 = vunpack.c.l.b16 %v4566
  %v4755 = vunpack.c.h.b16 %v4566
  %v4756 = vunpack.c.l.b16 %v4567
  %v4757 = vunpack.c.h.b16 %v4567
  %v4758 = vunpack.c.l.b16 %v4568
  %v4759 = vunpack.c.h.b16 %v4568
  %v4760 = vunpack.c.l.b16 %v4569
  %v4761 = vunpack.c.h.b16 %v4569
  %v4762 = vunpack.c.l.b16 %v4570
  %v4763 = vunpack.c.h.b16 %v4570
  %v4764 = vunpack.c.l.b16 %v4571
  %v4765 = vunpack.c.h.b16 %v4571
  %v4766 = vunpack.c.l.b16 %v4572
  %v4767 = vunpack.c.h.b16 %v4572
  %v4768 = vunpack.c.l.b16 %v4573
  %v4769 = vunpack.c.h.b16 %v4573
  %v4770 = vunpack.c.l.b16 %v4574
  %v4771 = vunpack.c.h.b16 %v4574
  %v4772 = vunpack.c.l.b16 %v4575
  %v4773 = vunpack.c.h.b16 %v4575
  %v4774 = vunpack.c.l.b16 %v4576
  %v4775 = vunpack.c.h.b16 %v4576
  %v4776 = vunpack.c.l.b16 %v4577
  %v4777 = vunpack.c.h.b16 %v4577
  %v4778 = vunpack.c.l.b16 %v4578
  %v4779 = vunpack.c.h.b16 %v4578
  %v4780 = vunpack.c.l.b16 %v4579
  %v4781 = vunpack.c.h.b16 %v4579
  %v4782 = vunpack.c.l.b16 %v4580
  %v4783 = vunpack.c.h.b16 %v4580
  %v4784 = vunpack.c.l.b16 %v4581
  %v4785 = vunpack.c.h.b16 %v4581
  %v4786 = vunpack.c.l.b16 %v4582
  %v4787 = vunpack.c.h.b16 %v4582
  %v4788 = vunpack.c.l.b16 %v4583
  %v4789 = vunpack.c.h.b16 %v4583
  %v4790 = vunpack.c.l.b16 %v4584
  %v4791 = vunpack.c.h.b16 %v4584
  %v4792 = vunpack.c.l.b16 %v4585
  %v4793 = vunpack.c.h.b16 %v4585
  %v4794 = vunpack.c.l.b16 %v4586
  %v4795 = vunpack.c.h.b16 %v4586
  %v4796 = vunpack.c.l.b16 %v4587
  %v4797 = vunpack.c.h.b16 %v4587
  %v4798 = vunpack.c.l.b16 %v4588
  %v4799 = vunpack.c.h.b16 %v4588
  %v4800 = vunpack.c.l.b16 %v4589
  %v4801 = vunpack.c.h.b16 %v4589
  %v4802 = vunpack.c.l.b16 %v4590
  %v4803 = vunpack.c.h.b16 %v4590
  %v4804 = vunpack.c.l.b16 %v4591
  %v4805 = vunpack.c.h.b16 %v4591
  %v4806 = vunpack.c.l.b16 %v4592
  %v4807 = vunpack.c.h.b16 %v4592
  %v4808 = vunpack.c.l.b16 %v4593
  %v4809 = vunpack.c.h.b16 %v4593
  %v4810 = vunpack.c.l.b16 %v4594
  %v4811 = vunpack.c.h.b16 %v4594
  %v4812 = vunpack.c.l.b16 %v4595
  %v4813 = vunpack.c.h.b16 %v4595
  %v4814 = vunpack.c.l.b16 %v4596
  %v4815 = vunpack.c.h.b16 %v4596
  %v4816 = vunpack.c.l.b16 %v4597
  %v4817 = vunpack.c.h.b16 %v4597
  %v4818 = vunpack.c.l.b16 %v4598
  %v4819 = vunpack.c.h.b16 %v4598
  %v4820 = vunpack.c.l.b16 %v4599
  %v4821 = vunpack.c.h.b16 %v4599
  %v4822 = vunpack.c.l.b16 %v4600
  %v4823 = vunpack.c.h.b16 %v4600
  %v4824 = vunpack.c.l.b16 %v4601
  %v4825 = vunpack.c.h.b16 %v4601
  %v4826 = vunpack.c.l.b16 %v4602
  %v4827 = vunpack.c.h.b16 %v4602
  %v4828 = vunpack.c.l.b16 %v4603
  %v4829 = vunpack.c.h.b16 %v4603
  %v4830 = vunpack.c.l.b16 %v4604
  %v4831 = vunpack.c.h.b16 %v4604
  %v4832 = vunpack.c.l.b16 %v4605
  %v4833 = vunpack.c.h.b16 %v4605
  %v4834 = vunpack.c.l.b16 %v4606
  %v4835 = vunpack.c.h.b16 %v4606
  %v4836 = vunpack.c.l.b16 %v4607
  %v4837 = vunpack.c.h.b16 %v4607
  %v4838 = vunpack.c.l.b16 %v4608
  %v4839 = vunpack.c.h.b16 %v4608
  %v4840 = vunpack.c.l.b16 %v4609
  %v4841 = vunpack.c.h.b16 %v4609
  %v4842 = vunpack.c.l.b16 %v4610
  %v4843 = vunpack.c.h.b16 %v4610
  %v4844 = vunpack.c.l.b16 %v4611
  %v4845 = vunpack.c.h.b16 %v4611
  %v4846 = vunpack.c.l.b16 %v4612
  %v4847 = vunpack.c.h.b16 %v4612
  %v4848 = vunpack.c.l.b16 %v4613
  %v4849 = vunpack.c.h.b16 %v4613
  %v4850 = vunpack.c.l.b16 %v4614
  %v4851 = vunpack.c.h.b16 %v4614
  %v4852 = vunpack.c.l.b16 %v4615
  %v4853 = vunpack.c.h.b16 %v4615
  %v4854 = vunpack.c.l.b16 %v4616
  %v4855 = vunpack.c.h.b16 %v4616
  %v4856 = vunpack.c.l.b16 %v4617
  %v4857 = vunpack.c.h.b16 %v4617
  %v4858 = vunpack.c.l.b16 %v4618
  %v4859 = vunpack.c.h.b16 %v4618
  %v4860 = vunpack.c.l.b16 %v4619
  %v4861 = vunpack.c.h.b16 %v4619
  %v4862 = vunpack.c.l.b16 %v4620
  %v4863 = vunpack.c.h.b16 %v4620
  %v4864 = vunpack.c.l.b16 %v4621
  %v4865 = vunpack.c.h.b16 %v4621
  %v4866 = vunpack.c.l.b16 %v4622
  %v4867 = vunpack.c.h.b16 %v4622
  %v4868 = vunpack.c.l.b16 %v4623
  %v4869 = vunpack.c.h.b16 %v4623
  %v4870 = vunpack.c.l.b16 %v4624
  %v4871 = vunpack.c.h.b16 %v4624
  %v4872 = vunpack.c.l.b16 %v4625
  %v4873 = vunpack.c.h.b16 %v4625
  %v4874 = vunpack.c.l.b16 %v4626
  %v4875 = vunpack.c.h.b16 %v4626
  %v4876 = vunpack.c.l.b16 %v4627
  %v4877 = vunpack.c.h.b16 %v4627
  %v4878 = vunpack.c.l.b16 %v4628
  %v4879 = vunpack.c.h.b16 %v4628
  %v4880 = vunpack.c.l.b16 %v4629
  %v4881 = vunpack.c.h.b16 %v4629
  %v4882 = vunpack.c.l.b16 %v4630
  %v4883 = vunpack.c.h.b16 %v4630
  %v4884 = vunpack.c.l.b16 %v4631
  %v4885 = vunpack.c.h.b16 %v4631
  %v4886 = vunpack.c.l.b16 %v4632
  %v4887 = vunpack.c.h.b16 %v4632
  %v4888 = vunpack.c.l.b16 %v4633
  %v4889 = vunpack.c.h.b16 %v4633
  %v4890 = vunpack.c.l.b16 %v4634
  %v4891 = vunpack.c.h.b16 %v4634
  %v4892 = vunpack.c.l.b16 %v4635
  %v4893 = vunpack.c.h.b16 %v4635
  %v4894 = vunpack.c.l.b16 %v4636
  %v4895 = vunpack.c.h.b16 %v4636
  %v4896 = vunpack.c.l.b16 %v4637
  %v4897 = vunpack.c.h.b16 %v4637
  %v4898 = vunpack.c.l.b16 %v4638
  %v4899 = vunpack.c.h.b16 %v4638
  %v4900 = vunpack.c.l.b16 %v4639
  %v4901 = vunpack.c.h.b16 %v4639
  %v4902 = vunpack.c.l.b16 %v4640
  %v4903 = vunpack.c.h.b16 %v4640
  %v4904 = vunpack.c.l.b16 %v4641
  %v4905 = vunpack.c.h.b16 %v4641
  %v4906 = vunpack.c.l.b16 %v4642
  %v4907 = vunpack.c.h.b16 %v4642
  %v4908 = vunpack.c.l.b16 %v4643
  %v4909 = vunpack.c.h.b16 %v4643
  %v4910 = vunpack.c.l.b16 %v4644
  %v4911 = vunpack.c.h.b16 %v4644
  %v4912 = vunpack.c.l.b16 %v4645
  %v4913 = vunpack.c.h.b16 %v4645
  %v4914 = vunpack.c.l.b16 %v4646
  %v4915 = vunpack.c.h.b16 %v4646
  %v4916 = vunpack.c.l.b16 %v4647
  %v4917 = vunpack.c.h.b16 %v4647
  %v4918 = vpack.c.b16 %v4740, %v4738
  %v4919 = vpack.c.b16 %v4741, %v4739
  %v4920 = vpack.c.b16 %v4744, %v4742
  %v4921 = vpack.c.b16 %v4745, %v4743
  %v4922 = vpack.c.b16 %v4748, %v4746
  %v4923 = vpack.c.b16 %v4749, %v4747
  %v4924 = vpack.c.b16 %v4752, %v4750
  %v4925 = vpack.c.b16 %v4753, %v4751
  %v4926 = vpack.c.b16 %v4756, %v4754
  %v4927 = vpack.c.b16 %v4757, %v4755
  %v4928 = vpack.c.b16 %v4760, %v4758
  %v4929 = vpack.c.b16 %v4761, %v4759
  %v4930 = vpack.c.b16 %v4764, %v4762
  %v4931 = vpack.c.b16 %v4765, %v4763
  %v4932 = vpack.c.b16 %v4768, %v4766
  %v4933 = vpack.c.b16 %v4769, %v4767
  %v4934 = vpack.c.b16 %v4772, %v4770
  %v4935 = vpack.c.b16 %v4773, %v4771
  %v4936 = vpack.c.b16 %v4776, %v4774
  %v4937 = vpack.c.b16 %v4777, %v4775
  %v4938 = vpack.c.b16 %v4780, %v4778
  %v4939 = vpack.c.b16 %v4781, %v4779
  %v4940 = vpack.c.b16 %v4784, %v4782
  %v4941 = vpack.c.b16 %v4785, %v4783
  %v4942 = vpack.c.b16 %v4788, %v4786
  %v4943 = vpack.c.b16 %v4789, %v4787
  %v4944 = vpack.c.b16 %v4792, %v4790
  %v4945 = vpack.c.b16 %v4793, %v4791
  %v4946 = vpack.c.b16 %v4796, %v4794
  %v4947 = vpack.c.b16 %v4797, %v4795
  %v4948 = vpack.c.b16 %v4800, %v4798
  %v4949 = vpack.c.b16 %v4801, %v4799
  %v4950 = vpack.c.b16 %v4804, %v4802
  %v4951 = vpack.c.b16 %v4805, %v4803
  %v4952 = vpack.c.b16 %v4808, %v4806
  %v4953 = vpack.c.b16 %v4809, %v4807
  %v4954 = vpack.c.b16 %v4812, %v4810
  %v4955 = vpack.c.b16 %v4813, %v4811
  %v4956 = vpack.c.b16 %v4816, %v4814
  %v4957 = vpack.c.b16 %v4817, %v4815
  %v4958 = vpack.c.b16 %v4820, %v4818
  %v4959 = vpack.c.b16 %v4821, %v4819
  %v4960 = vpack.c.b16 %v4824, %v4822
  %v4961 = vpack.c.b16 %v4825, %v4823
  %v4962 = vpack.c.b16 %v4828, %v4826
  %v4963 = vpack.c.b16 %v4829, %v4827
  %v4964 = vpack.c.b16 %v4832, %v4830
  %v4965 = vpack.c.b16 %v4833, %v4831
  %v4966 = vpack.c.b16 %v4836, %v4834
  %v4967 = vpack.c.b16 %v4837, %v4835
  %v4968 = vpack.c.b16 %v4840, %v4838
  %v4969 = vpack.c.b16 %v4841, %v4839
  %v4970 = vpack.c.b16 %v4844, %v4842
  %v4971 = vpack.c.b16 %v4845, %v4843
  %v4972 = vpack.c.b16 %v4848, %v4846
  %v4973 = vpack.c.b16 %v4849, %v4847
  %v4974 = vpack.c.b16 %v4852, %v4850
  %v4975 = vpack.c.b16 %v4853, %v4851
  %v4976 = vpack.c.b16 %v4856, %v4854
  %v4977 = vpack.c.b16 %v4857, %v4855
  %v4978 = vpack.c.b16 %v4860, %v4858
  %v4979 = vpack.c.b16 %v4861, %v4859
  %v4980 = vpack.c.b16 %v4864, %v4862
  %v4981 = vpack.c.b16 %v4865, %v4863
  %v4982 = vpack.c.b16 %v4868, %v4866
  %v4983 = vpack.c.b16 %v4869, %v4867
  %v4984 = vpack.c.b16 %v4872, %v4870
  %v4985 = vpack.c.b16 %v4873, %v4871
  %v4986 = vpack.c.b16 %v4876, %v4874
  %v4987 = vpack.c.b16 %v4877, %v4875
  %v4988 = vpack.c.b16 %v4880, %v4878
  %v4989 = vpack.c.b16 %v4881, %v4879
  %v4990 = vpack.c.b16 %v4884, %v4882
  %v4991 = vpack.c.b16 %v4885, %v4883
  %v4992 = vpack.c.b16 %v4888, %v4886
  %v4993 = vpack.c.b16 %v4889, %v4887
  %v4994 = vpack.c.b16 %v4892, %v4890
  %v4995 = vpack.c.b16 %v4893, %v4891
  %v4996 = vpack.c.b16 %v4896, %v4894
  %v4997 = vpack.c.b16 %v4897, %v4895
  %v4998 = vpack.c.b16 %v4900, %v4898
  %v4999 = vpack.c.b16 %v4901, %v4899
  %v5000 = vpack.c.b16 %v4904, %v4902
  %v5001 = vpack.c.b16 %v4905, %v4903
  %v5002 = vpack.c.b16 %v4908, %v4906
  %v5003 = vpack.c.b16 %v4909, %v4907
  %v5004 = vpack.c.b16 %v4912, %v4910
  %v5005 = vpack.c.b16 %v4913, %v4911
  %v5006 = vpack.c.b16 %v4916, %v4914
  %v5007 = vpack.c.b16 %v4917, %v4915
  %v5099 = vsel %vm3640, %v4557, 0
  %5101 = vmatpush.bf16.msra.mxu0 %v4932
  %5102 = vmatpush.bf16.msra.mxu0 %v4930
  %5103 = vmatpush.bf16.msra.mxu0 %v4928
  %5104 = vmatpush.bf16.msra.mxu0 %v4926
  %5105 = vmatpush.bf16.msra.mxu0 %v4924
  %5106 = vmatpush.bf16.msra.mxu0 %v4922
  %5107 = vmatpush.bf16.msra.mxu0 %v4920
  %5108 = vmatpush.bf16.msra.mxu0 %v4918
  %5109 = vmatmul.bf16.gmra.mxu0 %v4552
  %v5110 = vpop.f32.mrf.mxu0
  %v5111 = vadd.f32 0.0, %v5110
  %v5112 = vpop.f32.mrf.mxu0
  %5113 = vdwg.mxu0
  %5114 = vmatpush.bf16.msra.mxu0 %v4948
  %5115 = vmatpush.bf16.msra.mxu0 %v4946
  %5116 = vmatpush.bf16.msra.mxu0 %v4944
  %5117 = vmatpush.bf16.msra.mxu0 %v4942
  %5118 = vmatpush.bf16.msra.mxu0 %v4940
  %5119 = vmatpush.bf16.msra.mxu0 %v4938
  %5120 = vmatpush.bf16.msra.mxu0 %v4936
  %5121 = vmatpush.bf16.msra.mxu0 %v4934
  %5122 = vmatmul.bf16.gmra.mxu0 %v4553
  %v5123 = vpop.f32.mrf.mxu0
  %v5124 = vadd.f32 %v5111, %v5123
  %v5125 = vpop.f32.mrf.mxu0
  %5126 = vdwg.mxu0
  %5127 = vmatpush.bf16.msra.mxu0 %v4964
  %5128 = vmatpush.bf16.msra.mxu0 %v4962
  %5129 = vmatpush.bf16.msra.mxu0 %v4960
  %5130 = vmatpush.bf16.msra.mxu0 %v4958
  %5131 = vmatpush.bf16.msra.mxu0 %v4956
  %5132 = vmatpush.bf16.msra.mxu0 %v4954
  %5133 = vmatpush.bf16.msra.mxu0 %v4952
  %5134 = vmatpush.bf16.msra.mxu0 %v4950
  %5135 = vmatmul.bf16.gmra.mxu0 %v4554
  %v5136 = vpop.f32.mrf.mxu0
  %v5137 = vadd.f32 %v5124, %v5136
  %v5138 = vpop.f32.mrf.mxu0
  %5139 = vdwg.mxu0
  %5140 = vmatpush.bf16.msra.mxu0 %v4980
  %5141 = vmatpush.bf16.msra.mxu0 %v4978
  %5142 = vmatpush.bf16.msra.mxu0 %v4976
  %5143 = vmatpush.bf16.msra.mxu0 %v4974
  %5144 = vmatpush.bf16.msra.mxu0 %v4972
  %5145 = vmatpush.bf16.msra.mxu0 %v4970
  %5146 = vmatpush.bf16.msra.mxu0 %v4968
  %5147 = vmatpush.bf16.msra.mxu0 %v4966
  %5148 = vmatmul.bf16.gmra.mxu0 %v4555
  %v5149 = vpop.f32.mrf.mxu0
  %v5150 = vadd.f32 %v5137, %v5149
  %v5151 = vpop.f32.mrf.mxu0
  %5152 = vdwg.mxu0
  %5153 = vmatpush.bf16.msra.mxu0 %v4996
  %5154 = vmatpush.bf16.msra.mxu0 %v4994
  %5155 = vmatpush.bf16.msra.mxu0 %v4992
  %5156 = vmatpush.bf16.msra.mxu0 %v4990
  %5157 = vmatpush.bf16.msra.mxu0 %v4988
  %5158 = vmatpush.bf16.msra.mxu0 %v4986
  %5159 = vmatpush.bf16.msra.mxu0 %v4984
  %5160 = vmatpush.bf16.msra.mxu0 %v4982
  %5161 = vmatmul.bf16.gmra.mxu0 %v4556
  %v5162 = vpop.f32.mrf.mxu0
  %v5163 = vadd.f32 %v5150, %v5162
  %v5164 = vpop.f32.mrf.mxu0
  %5165 = vdwg.mxu0
  %5166 = vmatpush.bf16.msra.mxu0 0
  %5167 = vmatpush.bf16.msra.mxu0 0
  %5168 = vmatpush.bf16.msra.mxu0 0
  %5169 = vmatpush.bf16.msra.mxu0 %v5006
  %5170 = vmatpush.bf16.msra.mxu0 %v5004
  %5171 = vmatpush.bf16.msra.mxu0 %v5002
  %5172 = vmatpush.bf16.msra.mxu0 %v5000
  %5173 = vmatpush.bf16.msra.mxu0 %v4998
  %5174 = vmatmul.bf16.gmra.mxu0 %v5099
  %v5175 = vpop.f32.mrf.mxu0
  %v5176 = vadd.f32 %v5163, %v5175
  %v5177 = vpop.f32.mrf.mxu0
  %5178 = vdwg.mxu0
  %5179 = vmatpush.bf16.msra.mxu0 %v4933
  %5180 = vmatpush.bf16.msra.mxu0 %v4931
  %5181 = vmatpush.bf16.msra.mxu0 %v4929
  %5182 = vmatpush.bf16.msra.mxu0 %v4927
  %5183 = vmatpush.bf16.msra.mxu0 %v4925
  %5184 = vmatpush.bf16.msra.mxu0 %v4923
  %5185 = vmatpush.bf16.msra.mxu0 %v4921
  %5186 = vmatpush.bf16.msra.mxu0 %v4919
  %5187 = vmatmul.bf16.gmra.mxu0 %v4552
  %v5188 = vpop.f32.mrf.mxu0
  %v5189 = vadd.f32 0.0, %v5188
  %v5190 = vpop.f32.mrf.mxu0
  %5191 = vdwg.mxu0
  %5192 = vmatpush.bf16.msra.mxu0 %v4949
  %5193 = vmatpush.bf16.msra.mxu0 %v4947
  %5194 = vmatpush.bf16.msra.mxu0 %v4945
  %5195 = vmatpush.bf16.msra.mxu0 %v4943
  %5196 = vmatpush.bf16.msra.mxu0 %v4941
  %5197 = vmatpush.bf16.msra.mxu0 %v4939
  %5198 = vmatpush.bf16.msra.mxu0 %v4937
  %5199 = vmatpush.bf16.msra.mxu0 %v4935
  %5200 = vmatmul.bf16.gmra.mxu0 %v4553
  %v5201 = vpop.f32.mrf.mxu0
  %v5202 = vadd.f32 %v5189, %v5201
  %v5203 = vpop.f32.mrf.mxu0
  %5204 = vdwg.mxu0
  %5205 = vmatpush.bf16.msra.mxu0 %v4965
  %5206 = vmatpush.bf16.msra.mxu0 %v4963
  %5207 = vmatpush.bf16.msra.mxu0 %v4961
  %5208 = vmatpush.bf16.msra.mxu0 %v4959
  %5209 = vmatpush.bf16.msra.mxu0 %v4957
  %5210 = vmatpush.bf16.msra.mxu0 %v4955
  %5211 = vmatpush.bf16.msra.mxu0 %v4953
  %5212 = vmatpush.bf16.msra.mxu0 %v4951
  %5213 = vmatmul.bf16.gmra.mxu0 %v4554
  %v5214 = vpop.f32.mrf.mxu0
  %v5215 = vadd.f32 %v5202, %v5214
  %v5216 = vpop.f32.mrf.mxu0
  %5217 = vdwg.mxu0
  %5218 = vmatpush.bf16.msra.mxu0 %v4981
  %5219 = vmatpush.bf16.msra.mxu0 %v4979
  %5220 = vmatpush.bf16.msra.mxu0 %v4977
  %5221 = vmatpush.bf16.msra.mxu0 %v4975
  %5222 = vmatpush.bf16.msra.mxu0 %v4973
  %5223 = vmatpush.bf16.msra.mxu0 %v4971
  %5224 = vmatpush.bf16.msra.mxu0 %v4969
  %5225 = vmatpush.bf16.msra.mxu0 %v4967
  %5226 = vmatmul.bf16.gmra.mxu0 %v4555
  %v5227 = vpop.f32.mrf.mxu0
  %v5228 = vadd.f32 %v5215, %v5227
  %v5229 = vpop.f32.mrf.mxu0
  %5230 = vdwg.mxu0
  %5231 = vmatpush.bf16.msra.mxu0 %v4997
  %5232 = vmatpush.bf16.msra.mxu0 %v4995
  %5233 = vmatpush.bf16.msra.mxu0 %v4993
  %5234 = vmatpush.bf16.msra.mxu0 %v4991
  %5235 = vmatpush.bf16.msra.mxu0 %v4989
  %5236 = vmatpush.bf16.msra.mxu0 %v4987
  %5237 = vmatpush.bf16.msra.mxu0 %v4985
  %5238 = vmatpush.bf16.msra.mxu0 %v4983
  %5239 = vmatmul.bf16.gmra.mxu0 %v4556
  %v5240 = vpop.f32.mrf.mxu0
  %v5241 = vadd.f32 %v5228, %v5240
  %v5242 = vpop.f32.mrf.mxu0
  %5243 = vdwg.mxu0
  %5244 = vmatpush.bf16.msra.mxu0 0
  %5245 = vmatpush.bf16.msra.mxu0 0
  %5246 = vmatpush.bf16.msra.mxu0 0
  %5247 = vmatpush.bf16.msra.mxu0 %v5007
  %5248 = vmatpush.bf16.msra.mxu0 %v5005
  %5249 = vmatpush.bf16.msra.mxu0 %v5003
  %5250 = vmatpush.bf16.msra.mxu0 %v5001
  %5251 = vmatpush.bf16.msra.mxu0 %v4999
  %5252 = vmatmul.bf16.gmra.mxu0 %v5099
  %v5253 = vpop.f32.mrf.mxu0
  %v5254 = vadd.f32 %v5241, %v5253
  %v5255 = vpop.f32.mrf.mxu0
  %5256 = vdwg.mxu0
  %v5259 = vrot.slane %v5254, 7
  %v5260 = vsel %vm3803, %v5176, %v5259
  %v5262 = vadd.f32 %v4534, %v5260
  %s5263 = sshll.u32 %s3077, 4
  %5264 = dma.done %s627, %s5263
  %s5265 = scalar_lea.vmem [#allocation4], 3
  %v5266 = vld [vmem:[%s5265] ss:$4 sm:$0x3f]
  %v5268 = vperm.slane %v5266, 0
  %v5269 = vperm.slane %v5266, 1
  %v5270 = vperm.slane %v5266, 2
  %v5271 = vperm.slane %v5266, 3
  %v5272 = vperm.slane %v5266, 4
  %v5273 = vperm.slane %v5266, 5
  %v5280 = vpack.c.bf16 %v5268, %v5268
  %v5281 = vpack.c.bf16 %v5269, %v5269
  %v5282 = vpack.c.bf16 %v5270, %v5270
  %v5283 = vpack.c.bf16 %v5271, %v5271
  %v5284 = vpack.c.bf16 %v5272, %v5272
  %v5285 = vpack.c.bf16 %v5273, %v5273
  %v5286 = vld [vmem:[%s626] sm:$0xff]
  %v5287 = vld [vmem:[%s626 + $0x8] sm:$0xff]
  %v5288 = vld [vmem:[%s626 + $0x10] sm:$0xff]
  %v5289 = vld [vmem:[%s626 + $0x18] sm:$0xff]
  %v5290 = vld [vmem:[%s626 + $0x20] sm:$0xff]
  %v5291 = vld [vmem:[%s626 + $0x28] sm:$0xff]
  %v5292 = vld [vmem:[%s626 + $0x30] sm:$0xff]
  %v5293 = vld [vmem:[%s626 + $0x38] sm:$0xff]
  %v5294 = vld [vmem:[%s626 + $0x40] sm:$0xff]
  %v5295 = vld [vmem:[%s626 + $0x48] sm:$0xff]
  %v5296 = vld [vmem:[%s626 + $0x50] sm:$0xff]
  %v5297 = vld [vmem:[%s626 + $0x58] sm:$0xff]
  %v5298 = vld [vmem:[%s626 + $0x60] sm:$0xff]
  %v5299 = vld [vmem:[%s626 + $0x68] sm:$0xff]
  %v5300 = vld [vmem:[%s626 + $0x70] sm:$0xff]
  %v5301 = vld [vmem:[%s626 + $0x78] sm:$0xff]
  %v5302 = vld [vmem:[%s626 + $0x80] sm:$0xff]
  %v5303 = vld [vmem:[%s626 + $0x88] sm:$0xff]
  %v5304 = vld [vmem:[%s626 + $0x90] sm:$0xff]
  %v5305 = vld [vmem:[%s626 + $0x98] sm:$0xff]
  %v5306 = vld [vmem:[%s626 + $0xa0] sm:$0xff]
  %v5307 = vld [vmem:[%s626 + $0xa8] sm:$0xff]
  %v5308 = vld [vmem:[%s626 + $0xb0] sm:$0xff]
  %v5309 = vld [vmem:[%s626 + $0xb8] sm:$0xff]
  %v5310 = vld [vmem:[%s626 + $0xc0] sm:$0xff]
  %v5311 = vld [vmem:[%s626 + $0xc8] sm:$0xff]
  %v5312 = vld [vmem:[%s626 + $0xd0] sm:$0xff]
  %v5313 = vld [vmem:[%s626 + $0xd8] sm:$0xff]
  %v5314 = vld [vmem:[%s626 + $0xe0] sm:$0xff]
  %v5315 = vld [vmem:[%s626 + $0xe8] sm:$0xff]
  %v5316 = vld [vmem:[%s626 + $0xf0] sm:$0xff]
  %v5317 = vld [vmem:[%s626 + $0xf8] sm:$0xff]
  %v5318 = vld [vmem:[%s626 + $0x100] sm:$0xff]
  %v5319 = vld [vmem:[%s626 + $0x108] sm:$0xff]
  %v5320 = vld [vmem:[%s626 + $0x110] sm:$0xff]
  %v5321 = vld [vmem:[%s626 + $0x118] sm:$0xff]
  %v5322 = vld [vmem:[%s626 + $0x120] sm:$0xff]
  %v5323 = vld [vmem:[%s626 + $0x128] sm:$0xff]
  %v5324 = vld [vmem:[%s626 + $0x130] sm:$0xff]
  %v5325 = vld [vmem:[%s626 + $0x138] sm:$0xff]
  %v5326 = vld [vmem:[%s626 + $0x140] sm:$0xff]
  %v5327 = vld [vmem:[%s626 + $0x148] sm:$0xff]
  %v5328 = vld [vmem:[%s626 + $0x150] sm:$0xff]
  %v5329 = vld [vmem:[%s626 + $0x158] sm:$0xff]
  %v5330 = vld [vmem:[%s626 + $0x160] sm:$0xff]
  %v5331 = vld [vmem:[%s626 + $0x168] sm:$0xff]
  %v5332 = vld [vmem:[%s626 + $0x170] sm:$0xff]
  %v5333 = vld [vmem:[%s626 + $0x178] sm:$0xff]
  %v5334 = vld [vmem:[%s626 + $0x180] sm:$0xff]
  %v5335 = vld [vmem:[%s626 + $0x188] sm:$0xff]
  %v5336 = vld [vmem:[%s626 + $0x190] sm:$0xff]
  %v5337 = vld [vmem:[%s626 + $0x198] sm:$0xff]
  %v5338 = vld [vmem:[%s626 + $0x1a0] sm:$0xff]
  %v5339 = vld [vmem:[%s626 + $0x1a8] sm:$0xff]
  %v5340 = vld [vmem:[%s626 + $0x1b0] sm:$0xff]
  %v5341 = vld [vmem:[%s626 + $0x1b8] sm:$0xff]
  %v5342 = vld [vmem:[%s626 + $0x1c0] sm:$0xff]
  %v5343 = vld [vmem:[%s626 + $0x1c8] sm:$0xff]
  %v5344 = vld [vmem:[%s626 + $0x1d0] sm:$0xff]
  %v5345 = vld [vmem:[%s626 + $0x1d8] sm:$0xff]
  %v5346 = vld [vmem:[%s626 + $0x1e0] sm:$0xff]
  %v5347 = vld [vmem:[%s626 + $0x1e8] sm:$0xff]
  %v5348 = vld [vmem:[%s626 + $0x1f0] sm:$0xff]
  %v5349 = vld [vmem:[%s626 + $0x1f8] sm:$0xff]
  %v5350 = vld [vmem:[%s626 + $0x200] sm:$0xff]
  %v5351 = vld [vmem:[%s626 + $0x208] sm:$0xff]
  %v5352 = vld [vmem:[%s626 + $0x210] sm:$0xff]
  %v5353 = vld [vmem:[%s626 + $0x218] sm:$0xff]
  %v5354 = vld [vmem:[%s626 + $0x220] sm:$0xff]
  %v5355 = vld [vmem:[%s626 + $0x228] sm:$0xff]
  %v5356 = vld [vmem:[%s626 + $0x230] sm:$0xff]
  %v5357 = vld [vmem:[%s626 + $0x238] sm:$0xff]
  %v5358 = vld [vmem:[%s626 + $0x240] sm:$0xff]
  %v5359 = vld [vmem:[%s626 + $0x248] sm:$0xff]
  %v5360 = vld [vmem:[%s626 + $0x250] sm:$0xff]
  %v5361 = vld [vmem:[%s626 + $0x258] sm:$0xff]
  %v5362 = vld [vmem:[%s626 + $0x260] sm:$0xff]
  %v5363 = vld [vmem:[%s626 + $0x268] sm:$0xff]
  %v5364 = vld [vmem:[%s626 + $0x270] sm:$0xff]
  %v5365 = vld [vmem:[%s626 + $0x278] sm:$0xff]
  %v5366 = vld [vmem:[%s626 + $0x280] sm:$0xff]
  %v5367 = vld [vmem:[%s626 + $0x288] sm:$0xff]
  %v5368 = vld [vmem:[%s626 + $0x290] sm:$0xff]
  %v5369 = vld [vmem:[%s626 + $0x298] sm:$0xff]
  %v5370 = vld [vmem:[%s626 + $0x2a0] sm:$0xff]
  %v5371 = vld [vmem:[%s626 + $0x2a8] sm:$0xff]
  %v5372 = vld [vmem:[%s626 + $0x2b0] sm:$0xff]
  %v5373 = vld [vmem:[%s626 + $0x2b8] sm:$0xff]
  %v5374 = vld [vmem:[%s626 + $0x2c0] sm:$0xff]
  %v5375 = vld [vmem:[%s626 + $0x2c8] sm:$0xff]
  %v5466 = vunpack.c.l.b16 %v5286
  %v5467 = vunpack.c.h.b16 %v5286
  %v5468 = vunpack.c.l.b16 %v5287
  %v5469 = vunpack.c.h.b16 %v5287
  %v5470 = vunpack.c.l.b16 %v5288
  %v5471 = vunpack.c.h.b16 %v5288
  %v5472 = vunpack.c.l.b16 %v5289
  %v5473 = vunpack.c.h.b16 %v5289
  %v5474 = vunpack.c.l.b16 %v5290
  %v5475 = vunpack.c.h.b16 %v5290
  %v5476 = vunpack.c.l.b16 %v5291
  %v5477 = vunpack.c.h.b16 %v5291
  %v5478 = vunpack.c.l.b16 %v5292
  %v5479 = vunpack.c.h.b16 %v5292
  %v5480 = vunpack.c.l.b16 %v5293
  %v5481 = vunpack.c.h.b16 %v5293
  %v5482 = vunpack.c.l.b16 %v5294
  %v5483 = vunpack.c.h.b16 %v5294
  %v5484 = vunpack.c.l.b16 %v5295
  %v5485 = vunpack.c.h.b16 %v5295
  %v5486 = vunpack.c.l.b16 %v5296
  %v5487 = vunpack.c.h.b16 %v5296
  %v5488 = vunpack.c.l.b16 %v5297
  %v5489 = vunpack.c.h.b16 %v5297
  %v5490 = vunpack.c.l.b16 %v5298
  %v5491 = vunpack.c.h.b16 %v5298
  %v5492 = vunpack.c.l.b16 %v5299
  %v5493 = vunpack.c.h.b16 %v5299
  %v5494 = vunpack.c.l.b16 %v5300
  %v5495 = vunpack.c.h.b16 %v5300
  %v5496 = vunpack.c.l.b16 %v5301
  %v5497 = vunpack.c.h.b16 %v5301
  %v5498 = vunpack.c.l.b16 %v5302
  %v5499 = vunpack.c.h.b16 %v5302
  %v5500 = vunpack.c.l.b16 %v5303
  %v5501 = vunpack.c.h.b16 %v5303
  %v5502 = vunpack.c.l.b16 %v5304
  %v5503 = vunpack.c.h.b16 %v5304
  %v5504 = vunpack.c.l.b16 %v5305
  %v5505 = vunpack.c.h.b16 %v5305
  %v5506 = vunpack.c.l.b16 %v5306
  %v5507 = vunpack.c.h.b16 %v5306
  %v5508 = vunpack.c.l.b16 %v5307
  %v5509 = vunpack.c.h.b16 %v5307
  %v5510 = vunpack.c.l.b16 %v5308
  %v5511 = vunpack.c.h.b16 %v5308
  %v5512 = vunpack.c.l.b16 %v5309
  %v5513 = vunpack.c.h.b16 %v5309
  %v5514 = vunpack.c.l.b16 %v5310
  %v5515 = vunpack.c.h.b16 %v5310
  %v5516 = vunpack.c.l.b16 %v5311
  %v5517 = vunpack.c.h.b16 %v5311
  %v5518 = vunpack.c.l.b16 %v5312
  %v5519 = vunpack.c.h.b16 %v5312
  %v5520 = vunpack.c.l.b16 %v5313
  %v5521 = vunpack.c.h.b16 %v5313
  %v5522 = vunpack.c.l.b16 %v5314
  %v5523 = vunpack.c.h.b16 %v5314
  %v5524 = vunpack.c.l.b16 %v5315
  %v5525 = vunpack.c.h.b16 %v5315
  %v5526 = vunpack.c.l.b16 %v5316
  %v5527 = vunpack.c.h.b16 %v5316
  %v5528 = vunpack.c.l.b16 %v5317
  %v5529 = vunpack.c.h.b16 %v5317
  %v5530 = vunpack.c.l.b16 %v5318
  %v5531 = vunpack.c.h.b16 %v5318
  %v5532 = vunpack.c.l.b16 %v5319
  %v5533 = vunpack.c.h.b16 %v5319
  %v5534 = vunpack.c.l.b16 %v5320
  %v5535 = vunpack.c.h.b16 %v5320
  %v5536 = vunpack.c.l.b16 %v5321
  %v5537 = vunpack.c.h.b16 %v5321
  %v5538 = vunpack.c.l.b16 %v5322
  %v5539 = vunpack.c.h.b16 %v5322
  %v5540 = vunpack.c.l.b16 %v5323
  %v5541 = vunpack.c.h.b16 %v5323
  %v5542 = vunpack.c.l.b16 %v5324
  %v5543 = vunpack.c.h.b16 %v5324
  %v5544 = vunpack.c.l.b16 %v5325
  %v5545 = vunpack.c.h.b16 %v5325
  %v5546 = vunpack.c.l.b16 %v5326
  %v5547 = vunpack.c.h.b16 %v5326
  %v5548 = vunpack.c.l.b16 %v5327
  %v5549 = vunpack.c.h.b16 %v5327
  %v5550 = vunpack.c.l.b16 %v5328
  %v5551 = vunpack.c.h.b16 %v5328
  %v5552 = vunpack.c.l.b16 %v5329
  %v5553 = vunpack.c.h.b16 %v5329
  %v5554 = vunpack.c.l.b16 %v5330
  %v5555 = vunpack.c.h.b16 %v5330
  %v5556 = vunpack.c.l.b16 %v5331
  %v5557 = vunpack.c.h.b16 %v5331
  %v5558 = vunpack.c.l.b16 %v5332
  %v5559 = vunpack.c.h.b16 %v5332
  %v5560 = vunpack.c.l.b16 %v5333
  %v5561 = vunpack.c.h.b16 %v5333
  %v5562 = vunpack.c.l.b16 %v5334
  %v5563 = vunpack.c.h.b16 %v5334
  %v5564 = vunpack.c.l.b16 %v5335
  %v5565 = vunpack.c.h.b16 %v5335
  %v5566 = vunpack.c.l.b16 %v5336
  %v5567 = vunpack.c.h.b16 %v5336
  %v5568 = vunpack.c.l.b16 %v5337
  %v5569 = vunpack.c.h.b16 %v5337
  %v5570 = vunpack.c.l.b16 %v5338
  %v5571 = vunpack.c.h.b16 %v5338
  %v5572 = vunpack.c.l.b16 %v5339
  %v5573 = vunpack.c.h.b16 %v5339
  %v5574 = vunpack.c.l.b16 %v5340
  %v5575 = vunpack.c.h.b16 %v5340
  %v5576 = vunpack.c.l.b16 %v5341
  %v5577 = vunpack.c.h.b16 %v5341
  %v5578 = vunpack.c.l.b16 %v5342
  %v5579 = vunpack.c.h.b16 %v5342
  %v5580 = vunpack.c.l.b16 %v5343
  %v5581 = vunpack.c.h.b16 %v5343
  %v5582 = vunpack.c.l.b16 %v5344
  %v5583 = vunpack.c.h.b16 %v5344
  %v5584 = vunpack.c.l.b16 %v5345
  %v5585 = vunpack.c.h.b16 %v5345
  %v5586 = vunpack.c.l.b16 %v5346
  %v5587 = vunpack.c.h.b16 %v5346
  %v5588 = vunpack.c.l.b16 %v5347
  %v5589 = vunpack.c.h.b16 %v5347
  %v5590 = vunpack.c.l.b16 %v5348
  %v5591 = vunpack.c.h.b16 %v5348
  %v5592 = vunpack.c.l.b16 %v5349
  %v5593 = vunpack.c.h.b16 %v5349
  %v5594 = vunpack.c.l.b16 %v5350
  %v5595 = vunpack.c.h.b16 %v5350
  %v5596 = vunpack.c.l.b16 %v5351
  %v5597 = vunpack.c.h.b16 %v5351
  %v5598 = vunpack.c.l.b16 %v5352
  %v5599 = vunpack.c.h.b16 %v5352
  %v5600 = vunpack.c.l.b16 %v5353
  %v5601 = vunpack.c.h.b16 %v5353
  %v5602 = vunpack.c.l.b16 %v5354
  %v5603 = vunpack.c.h.b16 %v5354
  %v5604 = vunpack.c.l.b16 %v5355
  %v5605 = vunpack.c.h.b16 %v5355
  %v5606 = vunpack.c.l.b16 %v5356
  %v5607 = vunpack.c.h.b16 %v5356
  %v5608 = vunpack.c.l.b16 %v5357
  %v5609 = vunpack.c.h.b16 %v5357
  %v5610 = vunpack.c.l.b16 %v5358
  %v5611 = vunpack.c.h.b16 %v5358
  %v5612 = vunpack.c.l.b16 %v5359
  %v5613 = vunpack.c.h.b16 %v5359
  %v5614 = vunpack.c.l.b16 %v5360
  %v5615 = vunpack.c.h.b16 %v5360
  %v5616 = vunpack.c.l.b16 %v5361
  %v5617 = vunpack.c.h.b16 %v5361
  %v5618 = vunpack.c.l.b16 %v5362
  %v5619 = vunpack.c.h.b16 %v5362
  %v5620 = vunpack.c.l.b16 %v5363
  %v5621 = vunpack.c.h.b16 %v5363
  %v5622 = vunpack.c.l.b16 %v5364
  %v5623 = vunpack.c.h.b16 %v5364
  %v5624 = vunpack.c.l.b16 %v5365
  %v5625 = vunpack.c.h.b16 %v5365
  %v5626 = vunpack.c.l.b16 %v5366
  %v5627 = vunpack.c.h.b16 %v5366
  %v5628 = vunpack.c.l.b16 %v5367
  %v5629 = vunpack.c.h.b16 %v5367
  %v5630 = vunpack.c.l.b16 %v5368
  %v5631 = vunpack.c.h.b16 %v5368
  %v5632 = vunpack.c.l.b16 %v5369
  %v5633 = vunpack.c.h.b16 %v5369
  %v5634 = vunpack.c.l.b16 %v5370
  %v5635 = vunpack.c.h.b16 %v5370
  %v5636 = vunpack.c.l.b16 %v5371
  %v5637 = vunpack.c.h.b16 %v5371
  %v5638 = vunpack.c.l.b16 %v5372
  %v5639 = vunpack.c.h.b16 %v5372
  %v5640 = vunpack.c.l.b16 %v5373
  %v5641 = vunpack.c.h.b16 %v5373
  %v5642 = vunpack.c.l.b16 %v5374
  %v5643 = vunpack.c.h.b16 %v5374
  %v5644 = vunpack.c.l.b16 %v5375
  %v5645 = vunpack.c.h.b16 %v5375
  %v5646 = vpack.c.b16 %v5468, %v5466
  %v5647 = vpack.c.b16 %v5469, %v5467
  %v5648 = vpack.c.b16 %v5472, %v5470
  %v5649 = vpack.c.b16 %v5473, %v5471
  %v5650 = vpack.c.b16 %v5476, %v5474
  %v5651 = vpack.c.b16 %v5477, %v5475
  %v5652 = vpack.c.b16 %v5480, %v5478
  %v5653 = vpack.c.b16 %v5481, %v5479
  %v5654 = vpack.c.b16 %v5484, %v5482
  %v5655 = vpack.c.b16 %v5485, %v5483
  %v5656 = vpack.c.b16 %v5488, %v5486
  %v5657 = vpack.c.b16 %v5489, %v5487
  %v5658 = vpack.c.b16 %v5492, %v5490
  %v5659 = vpack.c.b16 %v5493, %v5491
  %v5660 = vpack.c.b16 %v5496, %v5494
  %v5661 = vpack.c.b16 %v5497, %v5495
  %v5662 = vpack.c.b16 %v5500, %v5498
  %v5663 = vpack.c.b16 %v5501, %v5499
  %v5664 = vpack.c.b16 %v5504, %v5502
  %v5665 = vpack.c.b16 %v5505, %v5503
  %v5666 = vpack.c.b16 %v5508, %v5506
  %v5667 = vpack.c.b16 %v5509, %v5507
  %v5668 = vpack.c.b16 %v5512, %v5510
  %v5669 = vpack.c.b16 %v5513, %v5511
  %v5670 = vpack.c.b16 %v5516, %v5514
  %v5671 = vpack.c.b16 %v5517, %v5515
  %v5672 = vpack.c.b16 %v5520, %v5518
  %v5673 = vpack.c.b16 %v5521, %v5519
  %v5674 = vpack.c.b16 %v5524, %v5522
  %v5675 = vpack.c.b16 %v5525, %v5523
  %v5676 = vpack.c.b16 %v5528, %v5526
  %v5677 = vpack.c.b16 %v5529, %v5527
  %v5678 = vpack.c.b16 %v5532, %v5530
  %v5679 = vpack.c.b16 %v5533, %v5531
  %v5680 = vpack.c.b16 %v5536, %v5534
  %v5681 = vpack.c.b16 %v5537, %v5535
  %v5682 = vpack.c.b16 %v5540, %v5538
  %v5683 = vpack.c.b16 %v5541, %v5539
  %v5684 = vpack.c.b16 %v5544, %v5542
  %v5685 = vpack.c.b16 %v5545, %v5543
  %v5686 = vpack.c.b16 %v5548, %v5546
  %v5687 = vpack.c.b16 %v5549, %v5547
  %v5688 = vpack.c.b16 %v5552, %v5550
  %v5689 = vpack.c.b16 %v5553, %v5551
  %v5690 = vpack.c.b16 %v5556, %v5554
  %v5691 = vpack.c.b16 %v5557, %v5555
  %v5692 = vpack.c.b16 %v5560, %v5558
  %v5693 = vpack.c.b16 %v5561, %v5559
  %v5694 = vpack.c.b16 %v5564, %v5562
  %v5695 = vpack.c.b16 %v5565, %v5563
  %v5696 = vpack.c.b16 %v5568, %v5566
  %v5697 = vpack.c.b16 %v5569, %v5567
  %v5698 = vpack.c.b16 %v5572, %v5570
  %v5699 = vpack.c.b16 %v5573, %v5571
  %v5700 = vpack.c.b16 %v5576, %v5574
  %v5701 = vpack.c.b16 %v5577, %v5575
  %v5702 = vpack.c.b16 %v5580, %v5578
  %v5703 = vpack.c.b16 %v5581, %v5579
  %v5704 = vpack.c.b16 %v5584, %v5582
  %v5705 = vpack.c.b16 %v5585, %v5583
  %v5706 = vpack.c.b16 %v5588, %v5586
  %v5707 = vpack.c.b16 %v5589, %v5587
  %v5708 = vpack.c.b16 %v5592, %v5590
  %v5709 = vpack.c.b16 %v5593, %v5591
  %v5710 = vpack.c.b16 %v5596, %v5594
  %v5711 = vpack.c.b16 %v5597, %v5595
  %v5712 = vpack.c.b16 %v5600, %v5598
  %v5713 = vpack.c.b16 %v5601, %v5599
  %v5714 = vpack.c.b16 %v5604, %v5602
  %v5715 = vpack.c.b16 %v5605, %v5603
  %v5716 = vpack.c.b16 %v5608, %v5606
  %v5717 = vpack.c.b16 %v5609, %v5607
  %v5718 = vpack.c.b16 %v5612, %v5610
  %v5719 = vpack.c.b16 %v5613, %v5611
  %v5720 = vpack.c.b16 %v5616, %v5614
  %v5721 = vpack.c.b16 %v5617, %v5615
  %v5722 = vpack.c.b16 %v5620, %v5618
  %v5723 = vpack.c.b16 %v5621, %v5619
  %v5724 = vpack.c.b16 %v5624, %v5622
  %v5725 = vpack.c.b16 %v5625, %v5623
  %v5726 = vpack.c.b16 %v5628, %v5626
  %v5727 = vpack.c.b16 %v5629, %v5627
  %v5728 = vpack.c.b16 %v5632, %v5630
  %v5729 = vpack.c.b16 %v5633, %v5631
  %v5730 = vpack.c.b16 %v5636, %v5634
  %v5731 = vpack.c.b16 %v5637, %v5635
  %v5732 = vpack.c.b16 %v5640, %v5638
  %v5733 = vpack.c.b16 %v5641, %v5639
  %v5734 = vpack.c.b16 %v5644, %v5642
  %v5735 = vpack.c.b16 %v5645, %v5643
  %v5827 = vsel %vm3640, %v5285, 0
  %5829 = vmatpush.bf16.msra.mxu0 %v5660
  %5830 = vmatpush.bf16.msra.mxu0 %v5658
  %5831 = vmatpush.bf16.msra.mxu0 %v5656
  %5832 = vmatpush.bf16.msra.mxu0 %v5654
  %5833 = vmatpush.bf16.msra.mxu0 %v5652
  %5834 = vmatpush.bf16.msra.mxu0 %v5650
  %5835 = vmatpush.bf16.msra.mxu0 %v5648
  %5836 = vmatpush.bf16.msra.mxu0 %v5646
  %5837 = vmatmul.bf16.gmra.mxu0 %v5280
  %v5838 = vpop.f32.mrf.mxu0
  %v5839 = vadd.f32 0.0, %v5838
  %v5840 = vpop.f32.mrf.mxu0
  %5841 = vdwg.mxu0
  %5842 = vmatpush.bf16.msra.mxu0 %v5676
  %5843 = vmatpush.bf16.msra.mxu0 %v5674
  %5844 = vmatpush.bf16.msra.mxu0 %v5672
  %5845 = vmatpush.bf16.msra.mxu0 %v5670
  %5846 = vmatpush.bf16.msra.mxu0 %v5668
  %5847 = vmatpush.bf16.msra.mxu0 %v5666
  %5848 = vmatpush.bf16.msra.mxu0 %v5664
  %5849 = vmatpush.bf16.msra.mxu0 %v5662
  %5850 = vmatmul.bf16.gmra.mxu0 %v5281
  %v5851 = vpop.f32.mrf.mxu0
  %v5852 = vadd.f32 %v5839, %v5851
  %v5853 = vpop.f32.mrf.mxu0
  %5854 = vdwg.mxu0
  %5855 = vmatpush.bf16.msra.mxu0 %v5692
  %5856 = vmatpush.bf16.msra.mxu0 %v5690
  %5857 = vmatpush.bf16.msra.mxu0 %v5688
  %5858 = vmatpush.bf16.msra.mxu0 %v5686
  %5859 = vmatpush.bf16.msra.mxu0 %v5684
  %5860 = vmatpush.bf16.msra.mxu0 %v5682
  %5861 = vmatpush.bf16.msra.mxu0 %v5680
  %5862 = vmatpush.bf16.msra.mxu0 %v5678
  %5863 = vmatmul.bf16.gmra.mxu0 %v5282
  %v5864 = vpop.f32.mrf.mxu0
  %v5865 = vadd.f32 %v5852, %v5864
  %v5866 = vpop.f32.mrf.mxu0
  %5867 = vdwg.mxu0
  %5868 = vmatpush.bf16.msra.mxu0 %v5708
  %5869 = vmatpush.bf16.msra.mxu0 %v5706
  %5870 = vmatpush.bf16.msra.mxu0 %v5704
  %5871 = vmatpush.bf16.msra.mxu0 %v5702
  %5872 = vmatpush.bf16.msra.mxu0 %v5700
  %5873 = vmatpush.bf16.msra.mxu0 %v5698
  %5874 = vmatpush.bf16.msra.mxu0 %v5696
  %5875 = vmatpush.bf16.msra.mxu0 %v5694
  %5876 = vmatmul.bf16.gmra.mxu0 %v5283
  %v5877 = vpop.f32.mrf.mxu0
  %v5878 = vadd.f32 %v5865, %v5877
  %v5879 = vpop.f32.mrf.mxu0
  %5880 = vdwg.mxu0
  %5881 = vmatpush.bf16.msra.mxu0 %v5724
  %5882 = vmatpush.bf16.msra.mxu0 %v5722
  %5883 = vmatpush.bf16.msra.mxu0 %v5720
  %5884 = vmatpush.bf16.msra.mxu0 %v5718
  %5885 = vmatpush.bf16.msra.mxu0 %v5716
  %5886 = vmatpush.bf16.msra.mxu0 %v5714
  %5887 = vmatpush.bf16.msra.mxu0 %v5712
  %5888 = vmatpush.bf16.msra.mxu0 %v5710
  %5889 = vmatmul.bf16.gmra.mxu0 %v5284
  %v5890 = vpop.f32.mrf.mxu0
  %v5891 = vadd.f32 %v5878, %v5890
  %v5892 = vpop.f32.mrf.mxu0
  %5893 = vdwg.mxu0
  %5894 = vmatpush.bf16.msra.mxu0 0
  %5895 = vmatpush.bf16.msra.mxu0 0
  %5896 = vmatpush.bf16.msra.mxu0 0
  %5897 = vmatpush.bf16.msra.mxu0 %v5734
  %5898 = vmatpush.bf16.msra.mxu0 %v5732
  %5899 = vmatpush.bf16.msra.mxu0 %v5730
  %5900 = vmatpush.bf16.msra.mxu0 %v5728
  %5901 = vmatpush.bf16.msra.mxu0 %v5726
  %5902 = vmatmul.bf16.gmra.mxu0 %v5827
  %v5903 = vpop.f32.mrf.mxu0
  %v5904 = vadd.f32 %v5891, %v5903
  %v5905 = vpop.f32.mrf.mxu0
  %5906 = vdwg.mxu0
  %5907 = vmatpush.bf16.msra.mxu0 %v5661
  %5908 = vmatpush.bf16.msra.mxu0 %v5659
  %5909 = vmatpush.bf16.msra.mxu0 %v5657
  %5910 = vmatpush.bf16.msra.mxu0 %v5655
  %5911 = vmatpush.bf16.msra.mxu0 %v5653
  %5912 = vmatpush.bf16.msra.mxu0 %v5651
  %5913 = vmatpush.bf16.msra.mxu0 %v5649
  %5914 = vmatpush.bf16.msra.mxu0 %v5647
  %5915 = vmatmul.bf16.gmra.mxu0 %v5280
  %v5916 = vpop.f32.mrf.mxu0
  %v5917 = vadd.f32 0.0, %v5916
  %v5918 = vpop.f32.mrf.mxu0
  %5919 = vdwg.mxu0
  %5920 = vmatpush.bf16.msra.mxu0 %v5677
  %5921 = vmatpush.bf16.msra.mxu0 %v5675
  %5922 = vmatpush.bf16.msra.mxu0 %v5673
  %5923 = vmatpush.bf16.msra.mxu0 %v5671
  %5924 = vmatpush.bf16.msra.mxu0 %v5669
  %5925 = vmatpush.bf16.msra.mxu0 %v5667
  %5926 = vmatpush.bf16.msra.mxu0 %v5665
  %5927 = vmatpush.bf16.msra.mxu0 %v5663
  %5928 = vmatmul.bf16.gmra.mxu0 %v5281
  %v5929 = vpop.f32.mrf.mxu0
  %v5930 = vadd.f32 %v5917, %v5929
  %v5931 = vpop.f32.mrf.mxu0
  %5932 = vdwg.mxu0
  %5933 = vmatpush.bf16.msra.mxu0 %v5693
  %5934 = vmatpush.bf16.msra.mxu0 %v5691
  %5935 = vmatpush.bf16.msra.mxu0 %v5689
  %5936 = vmatpush.bf16.msra.mxu0 %v5687
  %5937 = vmatpush.bf16.msra.mxu0 %v5685
  %5938 = vmatpush.bf16.msra.mxu0 %v5683
  %5939 = vmatpush.bf16.msra.mxu0 %v5681
  %5940 = vmatpush.bf16.msra.mxu0 %v5679
  %5941 = vmatmul.bf16.gmra.mxu0 %v5282
  %v5942 = vpop.f32.mrf.mxu0
  %v5943 = vadd.f32 %v5930, %v5942
  %v5944 = vpop.f32.mrf.mxu0
  %5945 = vdwg.mxu0
  %5946 = vmatpush.bf16.msra.mxu0 %v5709
  %5947 = vmatpush.bf16.msra.mxu0 %v5707
  %5948 = vmatpush.bf16.msra.mxu0 %v5705
  %5949 = vmatpush.bf16.msra.mxu0 %v5703
  %5950 = vmatpush.bf16.msra.mxu0 %v5701
  %5951 = vmatpush.bf16.msra.mxu0 %v5699
  %5952 = vmatpush.bf16.msra.mxu0 %v5697
  %5953 = vmatpush.bf16.msra.mxu0 %v5695
  %5954 = vmatmul.bf16.gmra.mxu0 %v5283
  %v5955 = vpop.f32.mrf.mxu0
  %v5956 = vadd.f32 %v5943, %v5955
  %v5957 = vpop.f32.mrf.mxu0
  %5958 = vdwg.mxu0
  %5959 = vmatpush.bf16.msra.mxu0 %v5725
  %5960 = vmatpush.bf16.msra.mxu0 %v5723
  %5961 = vmatpush.bf16.msra.mxu0 %v5721
  %5962 = vmatpush.bf16.msra.mxu0 %v5719
  %5963 = vmatpush.bf16.msra.mxu0 %v5717
  %5964 = vmatpush.bf16.msra.mxu0 %v5715
  %5965 = vmatpush.bf16.msra.mxu0 %v5713
  %5966 = vmatpush.bf16.msra.mxu0 %v5711
  %5967 = vmatmul.bf16.gmra.mxu0 %v5284
  %v5968 = vpop.f32.mrf.mxu0
  %v5969 = vadd.f32 %v5956, %v5968
  %v5970 = vpop.f32.mrf.mxu0
  %5971 = vdwg.mxu0
  %5972 = vmatpush.bf16.msra.mxu0 0
  %5973 = vmatpush.bf16.msra.mxu0 0
  %5974 = vmatpush.bf16.msra.mxu0 0
  %5975 = vmatpush.bf16.msra.mxu0 %v5735
  %5976 = vmatpush.bf16.msra.mxu0 %v5733
  %5977 = vmatpush.bf16.msra.mxu0 %v5731
  %5978 = vmatpush.bf16.msra.mxu0 %v5729
  %5979 = vmatpush.bf16.msra.mxu0 %v5727
  %5980 = vmatmul.bf16.gmra.mxu0 %v5827
  %v5981 = vpop.f32.mrf.mxu0
  %v5982 = vadd.f32 %v5969, %v5981
  %v5983 = vpop.f32.mrf.mxu0
  %5984 = vdwg.mxu0
  %v5987 = vrot.slane %v5982, 7
  %v5988 = vsel %vm3803, %v5904, %v5987
  %v5990 = vadd.f32 %v5262, %v5988
  %v5991 = vmax.f32 %v5990, 0.0
  %v5993 = vperm.slane %v5991, 0
  %v5994 = vperm.slane %v5991, 1
  %v5997 = vpack.c.bf16 %v5993, %v5993
  %v5998 = vpack.c.bf16 %v5994, %v5994
  %v5999 = vld [vmem:[%s7] sm:$0xf]
  %v6000 = vld [vmem:[%s7 + $0x4] sm:$0xf]
  %v6001 = vld [vmem:[%s7 + $0x8] sm:$0xf]
  %v6002 = vld [vmem:[%s7 + $0xc] sm:$0xf]
  %v6003 = vld [vmem:[%s7 + $0x10] sm:$0xf]
  %v6004 = vld [vmem:[%s7 + $0x14] sm:$0xf]
  %v6005 = vld [vmem:[%s7 + $0x18] sm:$0xf]
  %v6006 = vld [vmem:[%s7 + $0x1c] sm:$0xf]
  %v6007 = vld [vmem:[%s7 + $0x20] sm:$0xf]
  %v6008 = vld [vmem:[%s7 + $0x24] sm:$0xf]
  %v6009 = vld [vmem:[%s7 + $0x28] sm:$0xf]
  %v6010 = vld [vmem:[%s7 + $0x2c] sm:$0xf]
  %v6011 = vld [vmem:[%s7 + $0x30] sm:$0xf]
  %v6012 = vld [vmem:[%s7 + $0x34] sm:$0xf]
  %v6013 = vld [vmem:[%s7 + $0x38] sm:$0xf]
  %v6014 = vld [vmem:[%s7 + $0x3c] sm:$0xf]
  %v6015 = vld [vmem:[%s7 + $0x40] sm:$0xf]
  %v6016 = vld [vmem:[%s7 + $0x44] sm:$0xf]
  %v6017 = vld [vmem:[%s7 + $0x48] sm:$0xf]
  %v6018 = vld [vmem:[%s7 + $0x4c] sm:$0xf]
  %v6019 = vld [vmem:[%s7 + $0x50] sm:$0xf]
  %v6020 = vld [vmem:[%s7 + $0x54] sm:$0xf]
  %v6021 = vld [vmem:[%s7 + $0x58] sm:$0xf]
  %v6022 = vld [vmem:[%s7 + $0x5c] sm:$0xf]
  %v6023 = vld [vmem:[%s7 + $0x60] sm:$0xf]
  %v6024 = vld [vmem:[%s7 + $0x64] sm:$0xf]
  %v6025 = vld [vmem:[%s7 + $0x68] sm:$0xf]
  %v6026 = vld [vmem:[%s7 + $0x6c] sm:$0xf]
  %v6027 = vld [vmem:[%s7 + $0x70] sm:$0xf]
  %v6028 = vld [vmem:[%s7 + $0x74] sm:$0xf]
  %v6029 = vld [vmem:[%s7 + $0x78] sm:$0xf]
  %v6030 = vld [vmem:[%s7 + $0x7c] sm:$0xf]
  %v6031 = vld [vmem:[%s8] sm:$0x1]
  %v6064 = vunpack.c.l.b16 %v5999
  %v6065 = vunpack.c.l.b16 %v6000
  %v6066 = vunpack.c.l.b16 %v6001
  %v6067 = vunpack.c.l.b16 %v6002
  %v6068 = vunpack.c.l.b16 %v6003
  %v6069 = vunpack.c.l.b16 %v6004
  %v6070 = vunpack.c.l.b16 %v6005
  %v6071 = vunpack.c.l.b16 %v6006
  %v6072 = vunpack.c.l.b16 %v6007
  %v6073 = vunpack.c.l.b16 %v6008
  %v6074 = vunpack.c.l.b16 %v6009
  %v6075 = vunpack.c.l.b16 %v6010
  %v6076 = vunpack.c.l.b16 %v6011
  %v6077 = vunpack.c.l.b16 %v6012
  %v6078 = vunpack.c.l.b16 %v6013
  %v6079 = vunpack.c.l.b16 %v6014
  %v6080 = vunpack.c.l.b16 %v6015
  %v6081 = vunpack.c.l.b16 %v6016
  %v6082 = vunpack.c.l.b16 %v6017
  %v6083 = vunpack.c.l.b16 %v6018
  %v6084 = vunpack.c.l.b16 %v6019
  %v6085 = vunpack.c.l.b16 %v6020
  %v6086 = vunpack.c.l.b16 %v6021
  %v6087 = vunpack.c.l.b16 %v6022
  %v6088 = vunpack.c.l.b16 %v6023
  %v6089 = vunpack.c.l.b16 %v6024
  %v6090 = vunpack.c.l.b16 %v6025
  %v6091 = vunpack.c.l.b16 %v6026
  %v6092 = vunpack.c.l.b16 %v6027
  %v6093 = vunpack.c.l.b16 %v6028
  %v6094 = vunpack.c.l.b16 %v6029
  %v6095 = vunpack.c.l.b16 %v6030
  %v6096 = vpack.c.b16 %v6065, %v6064
  %v6097 = vpack.c.b16 %v6067, %v6066
  %v6098 = vpack.c.b16 %v6069, %v6068
  %v6099 = vpack.c.b16 %v6071, %v6070
  %v6100 = vpack.c.b16 %v6073, %v6072
  %v6101 = vpack.c.b16 %v6075, %v6074
  %v6102 = vpack.c.b16 %v6077, %v6076
  %v6103 = vpack.c.b16 %v6079, %v6078
  %v6104 = vpack.c.b16 %v6081, %v6080
  %v6105 = vpack.c.b16 %v6083, %v6082
  %v6106 = vpack.c.b16 %v6085, %v6084
  %v6107 = vpack.c.b16 %v6087, %v6086
  %v6108 = vpack.c.b16 %v6089, %v6088
  %v6109 = vpack.c.b16 %v6091, %v6090
  %v6110 = vpack.c.b16 %v6093, %v6092
  %v6111 = vpack.c.b16 %v6095, %v6094
  %6128 = vmatpush.bf16.msra.mxu0 %v6103
  %6129 = vmatpush.bf16.msra.mxu0 %v6102
  %6130 = vmatpush.bf16.msra.mxu0 %v6101
  %6131 = vmatpush.bf16.msra.mxu0 %v6100
  %6132 = vmatpush.bf16.msra.mxu0 %v6099
  %6133 = vmatpush.bf16.msra.mxu0 %v6098
  %6134 = vmatpush.bf16.msra.mxu0 %v6097
  %6135 = vmatpush.bf16.msra.mxu0 %v6096
  %6136 = vmatmul.bf16.gmra.mxu0 %v5997
  %v6137 = vpop.f32.mrf.mxu0
  %v6138 = vadd.f32 %v6031, %v6137
  %v6139 = vpop.f32.mrf.mxu0
  %6140 = vdwg.mxu0
  %6141 = vmatpush.bf16.msra.mxu0 %v6111
  %6142 = vmatpush.bf16.msra.mxu0 %v6110
  %6143 = vmatpush.bf16.msra.mxu0 %v6109
  %6144 = vmatpush.bf16.msra.mxu0 %v6108
  %6145 = vmatpush.bf16.msra.mxu0 %v6107
  %6146 = vmatpush.bf16.msra.mxu0 %v6106
  %6147 = vmatpush.bf16.msra.mxu0 %v6105
  %6148 = vmatpush.bf16.msra.mxu0 %v6104
  %6149 = vmatmul.bf16.gmra.mxu0 %v5998
  %v6150 = vpop.f32.mrf.mxu0
  %v6151 = vadd.f32 %v6138, %v6150
  %v6152 = vpop.f32.mrf.mxu0
  %6153 = vdwg.mxu0
  %6154 = vst [vmem:[%s9] sm:$0x1] %v6151
  // Predicated region
  $region110: #{atari_network_forward.1} parent=0 // pred_check
    _
  $region111: #{atari_network_forward.1} parent=0 // pred_check_branch
    %6156 = sbr.rel (0) target = $region113
  $region112: #{atari_network_forward.1} parent=0 // pred_region
    _
  $region113: #{atari_network_forward.1} parent=0 // pred_fallthru
    _
  // Predicated region
  $region114: #{atari_network_forward.1} parent=0 // pred_check
    _
  $region115: #{atari_network_forward.1} parent=0 // pred_check_branch
    %6158 = sbr.rel (0) target = $region117
  $region116: #{atari_network_forward.1} parent=0 // pred_region
    _
  $region117: #{atari_network_forward.1} parent=0 // pred_fallthru
    _
  %6159 = vsyncmov [#allocation6]
  %s6160 = vpop.sfrf %6159
  %p6161 = scmp.eq.s32.totalorder %s6160, 0
  %p6162 = pneg %p6161
  %6164 = shalt.err (%p6162)
  %s6165 = scalar_lea.sflag [#allocation6], 1
  %6166 = vsyncmov %s6165
  %s6167 = vpop.sfrf %6166
  %p6168 = scmp.eq.s32.totalorder %s6167, 0
  %p6169 = pneg %p6168
  %6171 = shalt.err (%p6169)
  %s6172 = scalar_lea.sflag [#allocation6], 2
  %6173 = vsyncmov %s6172
  %s6174 = vpop.sfrf %6173
  %p6175 = scmp.eq.s32.totalorder %s6174, 0
  %p6176 = pneg %p6175
  %6178 = shalt.err (%p6176)
  %s6179 = scalar_lea.sflag [#allocation6], 3
  %6180 = vsyncmov %s6179
  %s6181 = vpop.sfrf %6180
  %p6182 = scmp.eq.s32.totalorder %s6181, 0
  %p6183 = pneg %p6182
  %6185 = shalt.err (%p6183)

</llo_original>
